<compile_context>
chip_gen: v7x
topology: tpu7x:2x2x1
jax: 0.10.0
libtpu: 0.0.40
codegen_flags: <defaults>
</compile_context>

<pallas_src>
import math

import jax
import jax.numpy as jnp
import numpy as np
from jax import lax
from jax.experimental import pallas as pl
from jax.experimental.pallas import tpu as pltpu


# --------------------------------------------------------------------------- #
# Weight preprocessing (host side, numpy f32 — exact, done once).
# Turns all per-element 3x3 work into shared-weight matmuls over M = TB rows.
# --------------------------------------------------------------------------- #
def _build_operands(params, D, dk):
    f32 = np.float32
    wq = np.asarray(params["wq"], f32)
    bq = np.asarray(params["bq"], f32)
    wk = np.asarray(params["wk"], f32)
    bk = np.asarray(params["bk"], f32)
    wj = np.asarray(params["wj_t"], f32)
    bj = np.asarray(params["bj"], f32)
    wb = np.asarray(params["wbil"], f32)

    I3 = np.eye(3, dtype=f32)
    I9 = np.eye(9, dtype=f32)
    EQ = np.repeat(I3, 3, axis=1)            # (3,9): [r, i*3+k] = (r==i)
    EK = np.tile(I3, (1, 3))                 # (3,9): [r, i*3+k] = (r==k)

    # Q/K projections replicated into the 9 (i,k) score slots.
    wq_rep = np.kron(EQ, wq)                 # (3D, 9dk): col (i*3+k)*dk+d = Q_row_i[d]
    wk_rep = np.kron(EK, wk)                 # (3D, 9dk): col (i*3+k)*dk+d = K_row_k[d]
    bq_rep = np.tile(bq, 9).reshape(1, 9 * dk)
    bk_rep = np.tile(bk, 9).reshape(1, 9 * dk)

    sum_d = np.kron(I9, np.ones((dk, 1), f32))   # (9dk, 9): sum over d per (i,k)
    grp = np.kron(I3, np.ones((3, 3), f32))      # (9, 9): softmax denom broadcast

    # Linear(3,3) per row i, flattened.
    j_blk = np.kron(I3, wj)                      # (9, 9)
    bj_blk = np.tile(bj, 3).reshape(1, 9)        # (1, 9)

    # Bilinear(3,3,3): out[i,k] = sum_{m,n} x1[i,m] W[k,m,n] x2[i,n]
    w_bil = np.transpose(wb, (1, 0, 2)).reshape(3, 9)        # [m, k*3+n] = W[k,m,n]
    bil1 = np.kron(I3, w_bil)                                # (9, 27)
    bil2 = np.kron(I3, EK)                                   # (9, 27)
    bil3 = np.kron(I3, np.kron(I3, np.ones((3, 1), f32)))    # (27, 9)

    # Fold Linear(3,3) into the bilinear projections (saves 3 tiny MXU matmuls
    # + bias adds per grid step): t1 = a_it @ jb1 + c1, t2 = a_xx @ jb2 + c2.
    jb1 = (j_blk @ bil1).astype(f32)             # (9, 27)
    c1 = (bj_blk @ bil1).astype(f32)             # (1, 27)
    jb2 = (j_blk @ bil2).astype(f32)             # (9, 27)
    c2 = (bj_blk @ bil2).astype(f32)             # (1, 27)

    ops = (wq_rep, bq_rep, wk_rep, bk_rep, sum_d, grp, jb1, c1, jb2, c2, bil3)
    return tuple(jnp.asarray(a, jnp.float32) for a in ops)


# --------------------------------------------------------------------------- #
# Kernel
# --------------------------------------------------------------------------- #
def _make_kernel(norm_fact: float, D: int):
    def kernel(img_ref, txt_ref,
               wq_ref, bq_ref, wk_ref, bk_ref,
               sumd_ref, grp_ref, jb1_ref, c1_ref, jb2_ref, c2_ref, b3_ref,
               out_ref):
        # HIGHEST (true-f32) MXU passes: guaranteed Mosaic lowering and keeps
        # the 1e-4 check; all remaining matmuls are small data-bearing ones.
        prec = lax.Precision.HIGHEST
        dot = lambda a, b: jnp.dot(a, b, precision=prec,
                                   preferred_element_type=jnp.float32)

        img = img_ref[...]                       # (TB, 3*D), rows flattened on lanes
        txt = txt_ref[...]

        wq = wq_ref[...]
        wk = wk_ref[...]
        bq = bq_ref[...]
        bk = bk_ref[...]

        # Shared Q/K projections replicated into the 9 (i,k) score slots.
        q_img = dot(img, wq) + bq                # (TB, 9*dk)
        k_img = dot(img, wk) + bk
        q_txt = dot(txt, wq) + bq
        k_txt = dot(txt, wk) + bk

        sum_d = sumd_ref[...]
        grp = grp_ref[...]

        def softmax_attn(q_rep, k_rep):
            # scores[b, i*3+k] = <Q_row_i, K_row_k> (no K.T materialised)
            s = dot(q_rep * k_rep, sum_d)                 # (TB, 9)
            s = s - jnp.max(s, axis=-1, keepdims=True)    # constant within each group
            e = jnp.exp(s)
            denom = dot(e, grp)                           # per-column group sum
            inv = pl.reciprocal(denom, approx=False)      # exact keeps the 1e-4 check
            return e * inv * norm_fact                    # module scales AFTER softmax

        a_it = softmax_attn(q_img, k_txt)
        a_ii = softmax_attn(q_img, k_img)
        a_tt = softmax_attn(q_txt, k_txt)

        # Linear(3,3) folded into the bilinear projections.
        jb1 = jb1_ref[...]
        c1 = c1_ref[...]
        jb2 = jb2_ref[...]
        c2 = c2_ref[...]
        b3 = b3_ref[...]

        t1 = dot(a_it, jb1) + c1                          # (TB, 27), shared
        atten_i = dot(t1 * (dot(a_ii, jb2) + c2), b3)     # (TB, 9)
        atten_t = dot(t1 * (dot(a_tt, jb2) + c2), b3)     # (TB, 9)

        # Final bmm out[b, i*D+d] = sum_k atten[b, i*3+k] * x[b, k*D+d]
        # as VPU broadcast-FMAs over static D-wide lane slices (no replication
        # matmuls, no D^2 weights).
        def bmm3(att, x):
            blocks = []
            for i in range(3):
                acc = att[:, 3 * i:3 * i + 1] * x[:, 0:D]
                acc = acc + att[:, 3 * i + 1:3 * i + 2] * x[:, D:2 * D]
                acc = acc + att[:, 3 * i + 2:3 * i + 3] * x[:, 2 * D:3 * D]
                blocks.append(acc)
            return blocks

        out_blocks = bmm3(atten_i, img) + bmm3(atten_t, txt)   # 6 x (TB, D)
        out_ref[...] = jnp.concatenate(out_blocks, axis=-1)    # (TB, 6*D) lane-dense

    return kernel


# --------------------------------------------------------------------------- #
# Tile / VMEM heuristics (generation-aware, all failures fall back safely)
# --------------------------------------------------------------------------- #
def _vmem_capacity_bytes():
    try:
        cap = int(getattr(pltpu.get_tpu_info(), "vmem_capacity_bytes", 0))
        if cap > 0:
            return cap
    except Exception:
        pass
    return 64 * 2 ** 20      # conservative fallback: v7x per-TC VMEM


def _tensorcores_per_chip():
    try:
        kind = jax.devices()[0].device_kind.lower()
    except Exception:
        return 1
    # v4 / v5p megacore and v7x expose 2 TensorCores worth of parallel work.
    return 2 if any(tag in kind for tag in ("v7", "v4", "v5p")) else 1


def _choose_tb(B, D, dk, vmem_budget, n_cores):
    # Rough per-row VMEM bytes: double-buffered in/out blocks + live intermediates.
    row = (2 * 3 * D + 6 * D) * 4 * 2
    row += (4 * 9 * dk + 6 * 9 + 3 * 27 + 6 * D) * 4
    cap = max(8, int(vmem_budget // max(row, 1)))
    cap -= cap % 8

    tiles = [t for t in range(8, B + 1, 8) if B % t == 0]
    if B not in tiles:
        tiles.append(B)                  # full-extent block is always layout-legal
    tiles = sorted(tiles)
    fitting = [t for t in tiles if t <= cap] or [tiles[0]]

    tb = fitting[-1]                     # 1-TC: fewest grid steps that fit
    if n_cores >= 2:
        even = [t for t in fitting if (B // t) % 2 == 0]
        if even:                         # 2-TC: even #steps so both cores get work
            tb = even[-1]
    return tb


# --------------------------------------------------------------------------- #
# Wrapper
# --------------------------------------------------------------------------- #
def interaction_attention(img, text, params, *, tb=None):
    B, S, D = img.shape
    assert S == 3, "Interaction_Attention hard-codes S=3 (Linear(3,3)/Bilinear(3,3,3))"
    dk = params["wq"].shape[1]
    norm_fact = 1.0 / math.sqrt(dk)

    weights = _build_operands(params, D, dk)
    imgf = img.reshape(B, S * D)         # contiguous-dim merge: metadata only
    txtf = text.reshape(B, S * D)

    phys_vmem = _vmem_capacity_bytes()
    n_cores = _tensorcores_per_chip()
    if tb is None:
        tb = _choose_tb(B, D, dk, int(0.5 * phys_vmem), n_cores)
    assert B % tb == 0 and (tb % 8 == 0 or tb == B), f"bad batch tile {tb} for B={B}"
    grid = (B // tb,)

    data_spec = pl.BlockSpec((tb, S * D), lambda b: (b, 0))
    out_spec = pl.BlockSpec((tb, 2 * S * D), lambda b: (b, 0))
    wspec = lambda a: pl.BlockSpec(a.shape, lambda b: (0, 0))

    weight_bytes = int(sum(int(a.size) for a in weights) * 4)
    block_bytes = 2 * (2 * tb * S * D + tb * 2 * S * D) * 4     # dbl-buffered in + out
    scratch_bytes = tb * (4 * 9 * dk + 6 * 9 + 3 * 27 + 6 * D) * 4
    need = 2 * weight_bytes + block_bytes + scratch_bytes
    # ~25% headroom below physical VMEM; never below the 32 MiB scoped default.
    vmem_limit = int(min(int(0.75 * phys_vmem), max(32 * 2 ** 20, 2 * need)))

    flops_per_row = (
        4 * 2 * (3 * D) * (9 * dk)        # Q/K projections (the real matmuls)
        + 3 * (9 * dk) + 3 * 2 * (9 * dk) * 9   # score products + per-slot d-sum
        + 3 * 2 * 9 * 9                   # softmax group sums
        + 3 * 2 * 9 * 27 + 2 * 2 * 27 * 9  # folded j+bilinear
        + 2 * 2 * 9 * D                   # final bmm (VPU FMAs)
    )
    cost = pl.CostEstimate(
        flops=int(B * flops_per_row),
        transcendentals=int(36 * B),
        bytes_accessed=int(4 * (2 * B * S * D + B * 2 * S * D) + weight_bytes))

    fused = pl.pallas_call(
        _make_kernel(norm_fact, D),
        grid=grid,
        in_specs=[data_spec, data_spec] + [wspec(a) for a in weights],
        out_specs=out_spec,
        out_shape=jax.ShapeDtypeStruct((B, 2 * S * D), jnp.float32),
        compiler_params=pltpu.CompilerParams(
            dimension_semantics=("parallel",),
            vmem_limit_bytes=vmem_limit),
        cost_estimate=cost,
    )(imgf, txtf, *weights)

    out_i = fused[:, : S * D].reshape(B, S, D)
    out_t = fused[:, S * D:].reshape(B, S, D)
    return out_i, out_t


# --------------------------------------------------------------------------- #
# Parameter init + plain-JAX reference (for the correctness check)
# --------------------------------------------------------------------------- #
def init_params(key, input_dim, dim_k):
    """Deterministic init mimicking PyTorch's default uniform(-1/sqrt(fan_in))."""
    ks = jax.random.split(key, 7)
    bq = 1.0 / math.sqrt(input_dim)
    bj = 1.0 / math.sqrt(3.0)
    u = lambda k, shape, b: jax.random.uniform(k, shape, jnp.float32, -b, b)
    return {
        "wq": u(ks[0], (input_dim, dim_k), bq),   # stored (in, out) => y = x @ W + b
        "bq": u(ks[1], (dim_k,), bq),
        "wk": u(ks[2], (input_dim, dim_k), bq),
        "bk": u(ks[3], (dim_k,), bq),
        "wj_t": u(ks[4], (3, 3), bj),             # Linear(3,3) weight, transposed
        "bj": u(ks[5], (3,), bj),
        "wbil": u(ks[6], (3, 3, 3), bj),          # Bilinear(3,3,3), no bias
    }


def reference_forward(img, text, params, dim_k):
    """Plain-JAX reference matching the PyTorch forward (pinned to f32 matmuls)."""
    hp = lax.Precision.HIGHEST
    norm_fact = 1.0 / math.sqrt(dim_k)
    lin = lambda x, w, b: jnp.dot(x, w, precision=hp) + b
    Qi = lin(img, params["wq"], params["bq"])
    Ki = lin(img, params["wk"], params["bk"])
    Qt = lin(text, params["wq"], params["bq"])
    Kt = lin(text, params["wk"], params["bk"])

    def attn(Q, K):
        s = jnp.einsum("bij,bkj->bik", Q, K, precision=hp)
        return jax.nn.softmax(s, axis=-1) * norm_fact

    a_it, a_ii, a_tt = attn(Qi, Kt), attn(Qi, Ki), attn(Qt, Kt)
    jfn = lambda x: jnp.dot(x, params["wj_t"], precision=hp) + params["bj"]
    bil = lambda x1, x2: jnp.einsum("bim,kmn,bin->bik", x1, params["wbil"], x2,
                                    precision=hp)
    atten_i = bil(jfn(a_it), jfn(a_ii))
    atten_t = bil(jfn(a_it), jfn(a_tt))
    out_i = jnp.einsum("bij,bjd->bid", atten_i, img, precision=hp)
    out_t = jnp.einsum("bij,bjd->bid", atten_t, text, precision=hp)
    return out_i, out_t


if __name__ == "__main__":
    # S=3 is fixed by the module's Linear(3,3)/Bilinear(3,3,3).
    B, S, D, DK = 16, 3, 32, 16

    key = jax.random.PRNGKey(0)
    k_img, k_txt, k_par = jax.random.split(key, 3)
    img = jax.random.normal(k_img, (B, S, D), jnp.float32)
    text = jax.random.normal(k_txt, (B, S, D), jnp.float32)
    params = init_params(k_par, D, DK)

    out_i, out_t = interaction_attention(img, text, params)
    jax.block_until_ready((out_i, out_t))

    ref_i, ref_t = reference_forward(img, text, params, DK)
    np.testing.assert_allclose(np.asarray(out_i), np.asarray(ref_i), rtol=1e-4, atol=1e-4)
    np.testing.assert_allclose(np.asarray(out_t), np.asarray(ref_t), rtol=1e-4, atol=1e-4)

    print("KERNEL_OK")
</pallas_src>

<mosaic_0001>
module attributes {stable_mosaic.version = 11 : i64} {
  func.func @kernel(%arg0: i32, %arg1: memref<16x96xf32, #tpu.memory_space<vmem>>, %arg2: memref<16x96xf32, #tpu.memory_space<vmem>>, %arg3: memref<96x144xf32, #tpu.memory_space<vmem>>, %arg4: memref<1x144xf32, #tpu.memory_space<vmem>>, %arg5: memref<96x144xf32, #tpu.memory_space<vmem>>, %arg6: memref<1x144xf32, #tpu.memory_space<vmem>>, %arg7: memref<144x9xf32, #tpu.memory_space<vmem>>, %arg8: memref<9x9xf32, #tpu.memory_space<vmem>>, %arg9: memref<9x27xf32, #tpu.memory_space<vmem>>, %arg10: memref<1x27xf32, #tpu.memory_space<vmem>>, %arg11: memref<9x27xf32, #tpu.memory_space<vmem>>, %arg12: memref<1x27xf32, #tpu.memory_space<vmem>>, %arg13: memref<27x9xf32, #tpu.memory_space<vmem>>, %arg14: memref<16x192xf32, #tpu.memory_space<vmem>>) attributes {dimension_semantics = [#tpu.dimension_semantics<parallel>], iteration_bounds = array<i64: 1>, scalar_prefetch = 0 : i64, scratch_operands = 0 : i64, tpu.core_type = #tpu.core_type<tc>, window_params = [{transform_indices = @transform_0, window_bounds = array<i64: 16, 96>}, {transform_indices = @transform_1, window_bounds = array<i64: 16, 96>}, {pipeline_mode = #tpu.pipeline_mode<synchronous>, transform_indices = @transform_2, window_bounds = array<i64: 96, 144>}, {pipeline_mode = #tpu.pipeline_mode<synchronous>, transform_indices = @transform_3, window_bounds = array<i64: 1, 144>}, {pipeline_mode = #tpu.pipeline_mode<synchronous>, transform_indices = @transform_4, window_bounds = array<i64: 96, 144>}, {pipeline_mode = #tpu.pipeline_mode<synchronous>, transform_indices = @transform_5, window_bounds = array<i64: 1, 144>}, {pipeline_mode = #tpu.pipeline_mode<synchronous>, transform_indices = @transform_6, window_bounds = array<i64: 144, 9>}, {pipeline_mode = #tpu.pipeline_mode<synchronous>, transform_indices = @transform_7, window_bounds = array<i64: 9, 9>}, {pipeline_mode = #tpu.pipeline_mode<synchronous>, transform_indices = @transform_8, window_bounds = array<i64: 9, 27>}, {pipeline_mode = #tpu.pipeline_mode<synchronous>, transform_indices = @transform_9, window_bounds = array<i64: 1, 27>}, {pipeline_mode = #tpu.pipeline_mode<synchronous>, transform_indices = @transform_10, window_bounds = array<i64: 9, 27>}, {pipeline_mode = #tpu.pipeline_mode<synchronous>, transform_indices = @transform_11, window_bounds = array<i64: 1, 27>}, {pipeline_mode = #tpu.pipeline_mode<synchronous>, transform_indices = @transform_12, window_bounds = array<i64: 27, 9>}, {transform_indices = @transform_13, window_bounds = array<i64: 16, 192>}]} {
    %c0 = arith.constant 0 : index
    %c0_0 = arith.constant 0 : index
    %0 = vector.load %arg1[%c0, %c0_0] : memref<16x96xf32, #tpu.memory_space<vmem>>, vector<16x96xf32>
    %c0_1 = arith.constant 0 : index
    %c0_2 = arith.constant 0 : index
    %1 = vector.load %arg2[%c0_1, %c0_2] : memref<16x96xf32, #tpu.memory_space<vmem>>, vector<16x96xf32>
    %c0_3 = arith.constant 0 : index
    %c0_4 = arith.constant 0 : index
    %2 = vector.load %arg3[%c0_3, %c0_4] : memref<96x144xf32, #tpu.memory_space<vmem>>, vector<96x144xf32>
    %c0_5 = arith.constant 0 : index
    %c0_6 = arith.constant 0 : index
    %3 = vector.load %arg5[%c0_5, %c0_6] : memref<96x144xf32, #tpu.memory_space<vmem>>, vector<96x144xf32>
    %c0_7 = arith.constant 0 : index
    %c0_8 = arith.constant 0 : index
    %4 = vector.load %arg4[%c0_7, %c0_8] : memref<1x144xf32, #tpu.memory_space<vmem>>, vector<1x144xf32>
    %c0_9 = arith.constant 0 : index
    %c0_10 = arith.constant 0 : index
    %5 = vector.load %arg6[%c0_9, %c0_10] : memref<1x144xf32, #tpu.memory_space<vmem>>, vector<1x144xf32>
    %cst = arith.constant dense<0.000000e+00> : vector<16x144xf32>
    %6 = tpu.matmul %0, %2, %cst {dimension_numbers = #tpu.dot_dimension_numbers<[1], [0], [0], [1], [0, 0, 1, 1], [], []>, precision = #tpu.contract_precision<fp32>} : vector<16x96xf32>, vector<96x144xf32>, vector<16x144xf32> -> vector<16x144xf32>
    %7 = vector.broadcast %4 : vector<1x144xf32> to vector<16x144xf32>
    %8 = arith.addf %6, %7 : vector<16x144xf32>
    %cst_11 = arith.constant dense<0.000000e+00> : vector<16x144xf32>
    %9 = tpu.matmul %0, %3, %cst_11 {dimension_numbers = #tpu.dot_dimension_numbers<[1], [0], [0], [1], [0, 0, 1, 1], [], []>, precision = #tpu.contract_precision<fp32>} : vector<16x96xf32>, vector<96x144xf32>, vector<16x144xf32> -> vector<16x144xf32>
    %10 = vector.broadcast %5 : vector<1x144xf32> to vector<16x144xf32>
    %11 = arith.addf %9, %10 : vector<16x144xf32>
    %cst_12 = arith.constant dense<0.000000e+00> : vector<16x144xf32>
    %12 = tpu.matmul %1, %2, %cst_12 {dimension_numbers = #tpu.dot_dimension_numbers<[1], [0], [0], [1], [0, 0, 1, 1], [], []>, precision = #tpu.contract_precision<fp32>} : vector<16x96xf32>, vector<96x144xf32>, vector<16x144xf32> -> vector<16x144xf32>
    %13 = vector.broadcast %4 : vector<1x144xf32> to vector<16x144xf32>
    %14 = arith.addf %12, %13 : vector<16x144xf32>
    %cst_13 = arith.constant dense<0.000000e+00> : vector<16x144xf32>
    %15 = tpu.matmul %1, %3, %cst_13 {dimension_numbers = #tpu.dot_dimension_numbers<[1], [0], [0], [1], [0, 0, 1, 1], [], []>, precision = #tpu.contract_precision<fp32>} : vector<16x96xf32>, vector<96x144xf32>, vector<16x144xf32> -> vector<16x144xf32>
    %16 = vector.broadcast %5 : vector<1x144xf32> to vector<16x144xf32>
    %17 = arith.addf %15, %16 : vector<16x144xf32>
    %c0_14 = arith.constant 0 : index
    %c0_15 = arith.constant 0 : index
    %18 = vector.load %arg7[%c0_14, %c0_15] : memref<144x9xf32, #tpu.memory_space<vmem>>, vector<144x9xf32>
    %c0_16 = arith.constant 0 : index
    %c0_17 = arith.constant 0 : index
    %19 = vector.load %arg8[%c0_16, %c0_17] : memref<9x9xf32, #tpu.memory_space<vmem>>, vector<9x9xf32>
    %20 = arith.mulf %8, %17 : vector<16x144xf32>
    %cst_18 = arith.constant dense<0.000000e+00> : vector<16x9xf32>
    %21 = tpu.matmul %20, %18, %cst_18 {dimension_numbers = #tpu.dot_dimension_numbers<[1], [0], [0], [1], [0, 0, 1, 1], [], []>, precision = #tpu.contract_precision<fp32>} : vector<16x144xf32>, vector<144x9xf32>, vector<16x9xf32> -> vector<16x9xf32>
    %cst_19 = arith.constant dense<0xFF800000> : vector<16xf32>
    %22 = vector.multi_reduction <maximumf>, %21, %cst_19 [1] : vector<16x9xf32> to vector<16xf32>
    %23 = vector.shape_cast %22 : vector<16xf32> to vector<16x1xf32>
    %24 = vector.broadcast %23 : vector<16x1xf32> to vector<16x9xf32>
    %25 = arith.subf %21, %24 : vector<16x9xf32>
    %26 = math.exp %25 : vector<16x9xf32>
    %cst_20 = arith.constant dense<0.000000e+00> : vector<16x9xf32>
    %27 = tpu.matmul %26, %19, %cst_20 {dimension_numbers = #tpu.dot_dimension_numbers<[1], [0], [0], [1], [0, 0, 1, 1], [], []>, precision = #tpu.contract_precision<fp32>} : vector<16x9xf32>, vector<9x9xf32>, vector<16x9xf32> -> vector<16x9xf32>
    %28 = tpu.reciprocal %27 : vector<16x9xf32> -> vector<16x9xf32>
    %29 = arith.mulf %26, %28 : vector<16x9xf32>
    %cst_21 = arith.constant 2.500000e-01 : f32
    %30 = vector.broadcast %cst_21 : f32 to vector<16x9xf32>
    %31 = arith.mulf %29, %30 : vector<16x9xf32>
    %32 = arith.mulf %8, %11 : vector<16x144xf32>
    %cst_22 = arith.constant dense<0.000000e+00> : vector<16x9xf32>
    %33 = tpu.matmul %32, %18, %cst_22 {dimension_numbers = #tpu.dot_dimension_numbers<[1], [0], [0], [1], [0, 0, 1, 1], [], []>, precision = #tpu.contract_precision<fp32>} : vector<16x144xf32>, vector<144x9xf32>, vector<16x9xf32> -> vector<16x9xf32>
    %cst_23 = arith.constant dense<0xFF800000> : vector<16xf32>
    %34 = vector.multi_reduction <maximumf>, %33, %cst_23 [1] : vector<16x9xf32> to vector<16xf32>
    %35 = vector.shape_cast %34 : vector<16xf32> to vector<16x1xf32>
    %36 = vector.broadcast %35 : vector<16x1xf32> to vector<16x9xf32>
    %37 = arith.subf %33, %36 : vector<16x9xf32>
    %38 = math.exp %37 : vector<16x9xf32>
    %cst_24 = arith.constant dense<0.000000e+00> : vector<16x9xf32>
    %39 = tpu.matmul %38, %19, %cst_24 {dimension_numbers = #tpu.dot_dimension_numbers<[1], [0], [0], [1], [0, 0, 1, 1], [], []>, precision = #tpu.contract_precision<fp32>} : vector<16x9xf32>, vector<9x9xf32>, vector<16x9xf32> -> vector<16x9xf32>
    %40 = tpu.reciprocal %39 : vector<16x9xf32> -> vector<16x9xf32>
    %41 = arith.mulf %38, %40 : vector<16x9xf32>
    %cst_25 = arith.constant 2.500000e-01 : f32
    %42 = vector.broadcast %cst_25 : f32 to vector<16x9xf32>
    %43 = arith.mulf %41, %42 : vector<16x9xf32>
    %44 = arith.mulf %14, %17 : vector<16x144xf32>
    %cst_26 = arith.constant dense<0.000000e+00> : vector<16x9xf32>
    %45 = tpu.matmul %44, %18, %cst_26 {dimension_numbers = #tpu.dot_dimension_numbers<[1], [0], [0], [1], [0, 0, 1, 1], [], []>, precision = #tpu.contract_precision<fp32>} : vector<16x144xf32>, vector<144x9xf32>, vector<16x9xf32> -> vector<16x9xf32>
    %cst_27 = arith.constant dense<0xFF800000> : vector<16xf32>
    %46 = vector.multi_reduction <maximumf>, %45, %cst_27 [1] : vector<16x9xf32> to vector<16xf32>
    %47 = vector.shape_cast %46 : vector<16xf32> to vector<16x1xf32>
    %48 = vector.broadcast %47 : vector<16x1xf32> to vector<16x9xf32>
    %49 = arith.subf %45, %48 : vector<16x9xf32>
    %50 = math.exp %49 : vector<16x9xf32>
    %cst_28 = arith.constant dense<0.000000e+00> : vector<16x9xf32>
    %51 = tpu.matmul %50, %19, %cst_28 {dimension_numbers = #tpu.dot_dimension_numbers<[1], [0], [0], [1], [0, 0, 1, 1], [], []>, precision = #tpu.contract_precision<fp32>} : vector<16x9xf32>, vector<9x9xf32>, vector<16x9xf32> -> vector<16x9xf32>
    %52 = tpu.reciprocal %51 : vector<16x9xf32> -> vector<16x9xf32>
    %53 = arith.mulf %50, %52 : vector<16x9xf32>
    %cst_29 = arith.constant 2.500000e-01 : f32
    %54 = vector.broadcast %cst_29 : f32 to vector<16x9xf32>
    %55 = arith.mulf %53, %54 : vector<16x9xf32>
    %c0_30 = arith.constant 0 : index
    %c0_31 = arith.constant 0 : index
    %56 = vector.load %arg9[%c0_30, %c0_31] : memref<9x27xf32, #tpu.memory_space<vmem>>, vector<9x27xf32>
    %c0_32 = arith.constant 0 : index
    %c0_33 = arith.constant 0 : index
    %57 = vector.load %arg10[%c0_32, %c0_33] : memref<1x27xf32, #tpu.memory_space<vmem>>, vector<1x27xf32>
    %c0_34 = arith.constant 0 : index
    %c0_35 = arith.constant 0 : index
    %58 = vector.load %arg11[%c0_34, %c0_35] : memref<9x27xf32, #tpu.memory_space<vmem>>, vector<9x27xf32>
    %c0_36 = arith.constant 0 : index
    %c0_37 = arith.constant 0 : index
    %59 = vector.load %arg12[%c0_36, %c0_37] : memref<1x27xf32, #tpu.memory_space<vmem>>, vector<1x27xf32>
    %c0_38 = arith.constant 0 : index
    %c0_39 = arith.constant 0 : index
    %60 = vector.load %arg13[%c0_38, %c0_39] : memref<27x9xf32, #tpu.memory_space<vmem>>, vector<27x9xf32>
    %cst_40 = arith.constant dense<0.000000e+00> : vector<16x27xf32>
    %61 = tpu.matmul %31, %56, %cst_40 {dimension_numbers = #tpu.dot_dimension_numbers<[1], [0], [0], [1], [0, 0, 1, 1], [], []>, precision = #tpu.contract_precision<fp32>} : vector<16x9xf32>, vector<9x27xf32>, vector<16x27xf32> -> vector<16x27xf32>
    %62 = vector.broadcast %57 : vector<1x27xf32> to vector<16x27xf32>
    %63 = arith.addf %61, %62 : vector<16x27xf32>
    %cst_41 = arith.constant dense<0.000000e+00> : vector<16x27xf32>
    %64 = tpu.matmul %43, %58, %cst_41 {dimension_numbers = #tpu.dot_dimension_numbers<[1], [0], [0], [1], [0, 0, 1, 1], [], []>, precision = #tpu.contract_precision<fp32>} : vector<16x9xf32>, vector<9x27xf32>, vector<16x27xf32> -> vector<16x27xf32>
    %65 = vector.broadcast %59 : vector<1x27xf32> to vector<16x27xf32>
    %66 = arith.addf %64, %65 : vector<16x27xf32>
    %67 = arith.mulf %63, %66 : vector<16x27xf32>
    %cst_42 = arith.constant dense<0.000000e+00> : vector<16x9xf32>
    %68 = tpu.matmul %67, %60, %cst_42 {dimension_numbers = #tpu.dot_dimension_numbers<[1], [0], [0], [1], [0, 0, 1, 1], [], []>, precision = #tpu.contract_precision<fp32>} : vector<16x27xf32>, vector<27x9xf32>, vector<16x9xf32> -> vector<16x9xf32>
    %cst_43 = arith.constant dense<0.000000e+00> : vector<16x27xf32>
    %69 = tpu.matmul %55, %58, %cst_43 {dimension_numbers = #tpu.dot_dimension_numbers<[1], [0], [0], [1], [0, 0, 1, 1], [], []>, precision = #tpu.contract_precision<fp32>} : vector<16x9xf32>, vector<9x27xf32>, vector<16x27xf32> -> vector<16x27xf32>
    %70 = vector.broadcast %59 : vector<1x27xf32> to vector<16x27xf32>
    %71 = arith.addf %69, %70 : vector<16x27xf32>
    %72 = arith.mulf %63, %71 : vector<16x27xf32>
    %cst_44 = arith.constant dense<0.000000e+00> : vector<16x9xf32>
    %73 = tpu.matmul %72, %60, %cst_44 {dimension_numbers = #tpu.dot_dimension_numbers<[1], [0], [0], [1], [0, 0, 1, 1], [], []>, precision = #tpu.contract_precision<fp32>} : vector<16x27xf32>, vector<27x9xf32>, vector<16x9xf32> -> vector<16x9xf32>
    %74 = vector.extract_strided_slice %68 {offsets = [0, 0], sizes = [16, 1], strides = [1, 1]} : vector<16x9xf32> to vector<16x1xf32>
    %75 = vector.extract_strided_slice %0 {offsets = [0, 0], sizes = [16, 32], strides = [1, 1]} : vector<16x96xf32> to vector<16x32xf32>
    %76 = vector.broadcast %74 : vector<16x1xf32> to vector<16x32xf32>
    %77 = arith.mulf %76, %75 : vector<16x32xf32>
    %78 = vector.extract_strided_slice %68 {offsets = [0, 1], sizes = [16, 1], strides = [1, 1]} : vector<16x9xf32> to vector<16x1xf32>
    %79 = vector.extract_strided_slice %0 {offsets = [0, 32], sizes = [16, 32], strides = [1, 1]} : vector<16x96xf32> to vector<16x32xf32>
    %80 = vector.broadcast %78 : vector<16x1xf32> to vector<16x32xf32>
    %81 = arith.mulf %80, %79 : vector<16x32xf32>
    %82 = arith.addf %77, %81 : vector<16x32xf32>
    %83 = vector.extract_strided_slice %68 {offsets = [0, 2], sizes = [16, 1], strides = [1, 1]} : vector<16x9xf32> to vector<16x1xf32>
    %84 = vector.extract_strided_slice %0 {offsets = [0, 64], sizes = [16, 32], strides = [1, 1]} : vector<16x96xf32> to vector<16x32xf32>
    %85 = vector.broadcast %83 : vector<16x1xf32> to vector<16x32xf32>
    %86 = arith.mulf %85, %84 : vector<16x32xf32>
    %87 = arith.addf %82, %86 : vector<16x32xf32>
    %88 = vector.extract_strided_slice %68 {offsets = [0, 3], sizes = [16, 1], strides = [1, 1]} : vector<16x9xf32> to vector<16x1xf32>
    %89 = vector.extract_strided_slice %0 {offsets = [0, 0], sizes = [16, 32], strides = [1, 1]} : vector<16x96xf32> to vector<16x32xf32>
    %90 = vector.broadcast %88 : vector<16x1xf32> to vector<16x32xf32>
    %91 = arith.mulf %90, %89 : vector<16x32xf32>
    %92 = vector.extract_strided_slice %68 {offsets = [0, 4], sizes = [16, 1], strides = [1, 1]} : vector<16x9xf32> to vector<16x1xf32>
    %93 = vector.extract_strided_slice %0 {offsets = [0, 32], sizes = [16, 32], strides = [1, 1]} : vector<16x96xf32> to vector<16x32xf32>
    %94 = vector.broadcast %92 : vector<16x1xf32> to vector<16x32xf32>
    %95 = arith.mulf %94, %93 : vector<16x32xf32>
    %96 = arith.addf %91, %95 : vector<16x32xf32>
    %97 = vector.extract_strided_slice %68 {offsets = [0, 5], sizes = [16, 1], strides = [1, 1]} : vector<16x9xf32> to vector<16x1xf32>
    %98 = vector.extract_strided_slice %0 {offsets = [0, 64], sizes = [16, 32], strides = [1, 1]} : vector<16x96xf32> to vector<16x32xf32>
    %99 = vector.broadcast %97 : vector<16x1xf32> to vector<16x32xf32>
    %100 = arith.mulf %99, %98 : vector<16x32xf32>
    %101 = arith.addf %96, %100 : vector<16x32xf32>
    %102 = vector.extract_strided_slice %68 {offsets = [0, 6], sizes = [16, 1], strides = [1, 1]} : vector<16x9xf32> to vector<16x1xf32>
    %103 = vector.extract_strided_slice %0 {offsets = [0, 0], sizes = [16, 32], strides = [1, 1]} : vector<16x96xf32> to vector<16x32xf32>
    %104 = vector.broadcast %102 : vector<16x1xf32> to vector<16x32xf32>
    %105 = arith.mulf %104, %103 : vector<16x32xf32>
    %106 = vector.extract_strided_slice %68 {offsets = [0, 7], sizes = [16, 1], strides = [1, 1]} : vector<16x9xf32> to vector<16x1xf32>
    %107 = vector.extract_strided_slice %0 {offsets = [0, 32], sizes = [16, 32], strides = [1, 1]} : vector<16x96xf32> to vector<16x32xf32>
    %108 = vector.broadcast %106 : vector<16x1xf32> to vector<16x32xf32>
    %109 = arith.mulf %108, %107 : vector<16x32xf32>
    %110 = arith.addf %105, %109 : vector<16x32xf32>
    %111 = vector.extract_strided_slice %68 {offsets = [0, 8], sizes = [16, 1], strides = [1, 1]} : vector<16x9xf32> to vector<16x1xf32>
    %112 = vector.extract_strided_slice %0 {offsets = [0, 64], sizes = [16, 32], strides = [1, 1]} : vector<16x96xf32> to vector<16x32xf32>
    %113 = vector.broadcast %111 : vector<16x1xf32> to vector<16x32xf32>
    %114 = arith.mulf %113, %112 : vector<16x32xf32>
    %115 = arith.addf %110, %114 : vector<16x32xf32>
    %116 = vector.extract_strided_slice %73 {offsets = [0, 0], sizes = [16, 1], strides = [1, 1]} : vector<16x9xf32> to vector<16x1xf32>
    %117 = vector.extract_strided_slice %1 {offsets = [0, 0], sizes = [16, 32], strides = [1, 1]} : vector<16x96xf32> to vector<16x32xf32>
    %118 = vector.broadcast %116 : vector<16x1xf32> to vector<16x32xf32>
    %119 = arith.mulf %118, %117 : vector<16x32xf32>
    %120 = vector.extract_strided_slice %73 {offsets = [0, 1], sizes = [16, 1], strides = [1, 1]} : vector<16x9xf32> to vector<16x1xf32>
    %121 = vector.extract_strided_slice %1 {offsets = [0, 32], sizes = [16, 32], strides = [1, 1]} : vector<16x96xf32> to vector<16x32xf32>
    %122 = vector.broadcast %120 : vector<16x1xf32> to vector<16x32xf32>
    %123 = arith.mulf %122, %121 : vector<16x32xf32>
    %124 = arith.addf %119, %123 : vector<16x32xf32>
    %125 = vector.extract_strided_slice %73 {offsets = [0, 2], sizes = [16, 1], strides = [1, 1]} : vector<16x9xf32> to vector<16x1xf32>
    %126 = vector.extract_strided_slice %1 {offsets = [0, 64], sizes = [16, 32], strides = [1, 1]} : vector<16x96xf32> to vector<16x32xf32>
    %127 = vector.broadcast %125 : vector<16x1xf32> to vector<16x32xf32>
    %128 = arith.mulf %127, %126 : vector<16x32xf32>
    %129 = arith.addf %124, %128 : vector<16x32xf32>
    %130 = vector.extract_strided_slice %73 {offsets = [0, 3], sizes = [16, 1], strides = [1, 1]} : vector<16x9xf32> to vector<16x1xf32>
    %131 = vector.extract_strided_slice %1 {offsets = [0, 0], sizes = [16, 32], strides = [1, 1]} : vector<16x96xf32> to vector<16x32xf32>
    %132 = vector.broadcast %130 : vector<16x1xf32> to vector<16x32xf32>
    %133 = arith.mulf %132, %131 : vector<16x32xf32>
    %134 = vector.extract_strided_slice %73 {offsets = [0, 4], sizes = [16, 1], strides = [1, 1]} : vector<16x9xf32> to vector<16x1xf32>
    %135 = vector.extract_strided_slice %1 {offsets = [0, 32], sizes = [16, 32], strides = [1, 1]} : vector<16x96xf32> to vector<16x32xf32>
    %136 = vector.broadcast %134 : vector<16x1xf32> to vector<16x32xf32>
    %137 = arith.mulf %136, %135 : vector<16x32xf32>
    %138 = arith.addf %133, %137 : vector<16x32xf32>
    %139 = vector.extract_strided_slice %73 {offsets = [0, 5], sizes = [16, 1], strides = [1, 1]} : vector<16x9xf32> to vector<16x1xf32>
    %140 = vector.extract_strided_slice %1 {offsets = [0, 64], sizes = [16, 32], strides = [1, 1]} : vector<16x96xf32> to vector<16x32xf32>
    %141 = vector.broadcast %139 : vector<16x1xf32> to vector<16x32xf32>
    %142 = arith.mulf %141, %140 : vector<16x32xf32>
    %143 = arith.addf %138, %142 : vector<16x32xf32>
    %144 = vector.extract_strided_slice %73 {offsets = [0, 6], sizes = [16, 1], strides = [1, 1]} : vector<16x9xf32> to vector<16x1xf32>
    %145 = vector.extract_strided_slice %1 {offsets = [0, 0], sizes = [16, 32], strides = [1, 1]} : vector<16x96xf32> to vector<16x32xf32>
    %146 = vector.broadcast %144 : vector<16x1xf32> to vector<16x32xf32>
    %147 = arith.mulf %146, %145 : vector<16x32xf32>
    %148 = vector.extract_strided_slice %73 {offsets = [0, 7], sizes = [16, 1], strides = [1, 1]} : vector<16x9xf32> to vector<16x1xf32>
    %149 = vector.extract_strided_slice %1 {offsets = [0, 32], sizes = [16, 32], strides = [1, 1]} : vector<16x96xf32> to vector<16x32xf32>
    %150 = vector.broadcast %148 : vector<16x1xf32> to vector<16x32xf32>
    %151 = arith.mulf %150, %149 : vector<16x32xf32>
    %152 = arith.addf %147, %151 : vector<16x32xf32>
    %153 = vector.extract_strided_slice %73 {offsets = [0, 8], sizes = [16, 1], strides = [1, 1]} : vector<16x9xf32> to vector<16x1xf32>
    %154 = vector.extract_strided_slice %1 {offsets = [0, 64], sizes = [16, 32], strides = [1, 1]} : vector<16x96xf32> to vector<16x32xf32>
    %155 = vector.broadcast %153 : vector<16x1xf32> to vector<16x32xf32>
    %156 = arith.mulf %155, %154 : vector<16x32xf32>
    %157 = arith.addf %152, %156 : vector<16x32xf32>
    %158 = tpu.concatenate %87, %101, %115, %129, %143, %157 in 1 : vector<16x32xf32>, vector<16x32xf32>, vector<16x32xf32>, vector<16x32xf32>, vector<16x32xf32>, vector<16x32xf32> -> vector<16x192xf32>
    %c0_45 = arith.constant 0 : index
    %c0_46 = arith.constant 0 : index
    %159 = vector.load %arg14[%c0_45, %c0_46] : memref<16x192xf32, #tpu.memory_space<vmem>>, vector<16x192xf32>
    tpu.vector_store %arg14[%c0_45, %c0_46], %158 {strides = array<i32>} : memref<16x192xf32, #tpu.memory_space<vmem>>, vector<16x192xf32>,
    return
  }
  func.func @transform_0(%arg0: i32) -> (i32, i32) {
    %c0_i32 = arith.constant 0 : i32
    %c0_i32_0 = arith.constant 0 : i32
    return %arg0, %c0_i32 : i32, i32
  }
  func.func @transform_1(%arg0: i32) -> (i32, i32) {
    %c0_i32 = arith.constant 0 : i32
    %c0_i32_0 = arith.constant 0 : i32
    return %arg0, %c0_i32 : i32, i32
  }
  func.func @transform_2(%arg0: i32) -> (i32, i32) {
    %c0_i32 = arith.constant 0 : i32
    %c0_i32_0 = arith.constant 0 : i32
    %c0_i32_1 = arith.constant 0 : i32
    return %c0_i32, %c0_i32_0 : i32, i32
  }
  func.func @transform_3(%arg0: i32) -> (i32, i32) {
    %c0_i32 = arith.constant 0 : i32
    %c0_i32_0 = arith.constant 0 : i32
    %c0_i32_1 = arith.constant 0 : i32
    return %c0_i32, %c0_i32_0 : i32, i32
  }
  func.func @transform_4(%arg0: i32) -> (i32, i32) {
    %c0_i32 = arith.constant 0 : i32
    %c0_i32_0 = arith.constant 0 : i32
    %c0_i32_1 = arith.constant 0 : i32
    return %c0_i32, %c0_i32_0 : i32, i32
  }
  func.func @transform_5(%arg0: i32) -> (i32, i32) {
    %c0_i32 = arith.constant 0 : i32
    %c0_i32_0 = arith.constant 0 : i32
    %c0_i32_1 = arith.constant 0 : i32
    return %c0_i32, %c0_i32_0 : i32, i32
  }
  func.func @transform_6(%arg0: i32) -> (i32, i32) {
    %c0_i32 = arith.constant 0 : i32
    %c0_i32_0 = arith.constant 0 : i32
    %c0_i32_1 = arith.constant 0 : i32
    return %c0_i32, %c0_i32_0 : i32, i32
  }
  func.func @transform_7(%arg0: i32) -> (i32, i32) {
    %c0_i32 = arith.constant 0 : i32
    %c0_i32_0 = arith.constant 0 : i32
    %c0_i32_1 = arith.constant 0 : i32
    return %c0_i32, %c0_i32_0 : i32, i32
  }
  func.func @transform_8(%arg0: i32) -> (i32, i32) {
    %c0_i32 = arith.constant 0 : i32
    %c0_i32_0 = arith.constant 0 : i32
    %c0_i32_1 = arith.constant 0 : i32
    return %c0_i32, %c0_i32_0 : i32, i32
  }
  func.func @transform_9(%arg0: i32) -> (i32, i32) {
    %c0_i32 = arith.constant 0 : i32
    %c0_i32_0 = arith.constant 0 : i32
    %c0_i32_1 = arith.constant 0 : i32
    return %c0_i32, %c0_i32_0 : i32, i32
  }
  func.func @transform_10(%arg0: i32) -> (i32, i32) {
    %c0_i32 = arith.constant 0 : i32
    %c0_i32_0 = arith.constant 0 : i32
    %c0_i32_1 = arith.constant 0 : i32
    return %c0_i32, %c0_i32_0 : i32, i32
  }
  func.func @transform_11(%arg0: i32) -> (i32, i32) {
    %c0_i32 = arith.constant 0 : i32
    %c0_i32_0 = arith.constant 0 : i32
    %c0_i32_1 = arith.constant 0 : i32
    return %c0_i32, %c0_i32_0 : i32, i32
  }
  func.func @transform_12(%arg0: i32) -> (i32, i32) {
    %c0_i32 = arith.constant 0 : i32
    %c0_i32_0 = arith.constant 0 : i32
    %c0_i32_1 = arith.constant 0 : i32
    return %c0_i32, %c0_i32_0 : i32, i32
  }
  func.func @transform_13(%arg0: i32) -> (i32, i32) {
    %c0_i32 = arith.constant 0 : i32
    %c0_i32_0 = arith.constant 0 : i32
    return %arg0, %c0_i32 : i32, i32
  }
}

</mosaic_0001>

<llo_original>
// kernel: tpu_custom_call.1
$region0: #{tpu_custom_call.1}
  #allocation0 [shape = 'u32[]', space=smem, size = 0x4, offset = 0x4, fixed_abs, tag = 'smem constant byte address 0x4 - core index']
  #allocation1 [shape = 'u32[144,128]{1,0:T(1,128)}', space=vmem, size = 0x12000, scoped, tag = 'internal scratch']
  %s0 = inlined_call_operand.vmem [shape: f32[16,96], index: 0, kind: input, shape index: {}]
  %s1 = inlined_call_operand.vmem [shape: f32[16,96], index: 1, kind: input, shape index: {}]
  %s2 = inlined_call_operand.vmem [shape: f32[96,144], index: 2, kind: input, shape index: {}]
  %s3 = inlined_call_operand.vmem [shape: f32[1,144], index: 3, kind: input, shape index: {}]
  %s4 = inlined_call_operand.vmem [shape: f32[96,144], index: 4, kind: input, shape index: {}]
  %s5 = inlined_call_operand.vmem [shape: f32[1,144], index: 5, kind: input, shape index: {}]
  %s6 = inlined_call_operand.vmem [shape: f32[144,9], index: 6, kind: input, shape index: {}]
  %s7 = inlined_call_operand.vmem [shape: f32[9,9], index: 7, kind: input, shape index: {}]
  %s8 = inlined_call_operand.vmem [shape: f32[9,27], index: 8, kind: input, shape index: {}]
  %s9 = inlined_call_operand.vmem [shape: f32[1,27], index: 9, kind: input, shape index: {}]
  %s10 = inlined_call_operand.vmem [shape: f32[9,27], index: 10, kind: input, shape index: {}]
  %s11 = inlined_call_operand.vmem [shape: f32[1,27], index: 11, kind: input, shape index: {}]
  %s12 = inlined_call_operand.vmem [shape: f32[27,9], index: 12, kind: input, shape index: {}]
  %s13 = inlined_call_operand.hbm [shape: f32[16,192], index: 13, kind: output, shape index: {}]
  %s14 = sld [smem:[#allocation0]]
  $region62: #{tpu_custom_call.1} parent=0
    _
  %s16 = ssub.s32 1, %s14
  %s17 = scalar_select 0, %s16, %s14
  $region1: #{tpu_custom_call.1} parent=0
    #allocation2 [shape = 'u8[16384]{0}', space=vmem, size = 0x4000, scoped, tag = 'output window, operand 0, single buffered']
    #allocation3 [shape = 's32[1]{0}', space=sflag, size = 0x4, scoped, tag = 'scoped memory for tpu_custom_call.1']
    %18 = vsyncpa [#allocation3], 0
    // Predicated region
    $region2: #{tpu_custom_call.1} parent=1 // pred_check
      _
    $region3: #{tpu_custom_call.1} parent=1 // pred_check_branch
      %20 = sbr.rel (0) target = $region5
    $region4: #{tpu_custom_call.1} parent=1 // pred_region
      _
    $region5: #{tpu_custom_call.1} parent=1 // pred_fallthru
      _
    // Predicated region
    $region6: #{tpu_custom_call.1} parent=1 // pred_check
      _
    $region7: #{tpu_custom_call.1} parent=1 // pred_check_branch
      %22 = sbr.rel (0) target = $region9
    $region8: #{tpu_custom_call.1} parent=1 // pred_region
      _
    $region9: #{tpu_custom_call.1} parent=1 // pred_fallthru
      _
    // Predicated region
    $region10: #{tpu_custom_call.1} parent=1 // pred_check
      _
    $region11: #{tpu_custom_call.1} parent=1 // pred_check_branch
      %24 = sbr.rel (0) target = $region13
    $region12: #{tpu_custom_call.1} parent=1 // pred_region
      _
    $region13: #{tpu_custom_call.1} parent=1 // pred_fallthru
      _
    // Predicated region
    $region14: #{tpu_custom_call.1} parent=1 // pred_check
      _
    $region15: #{tpu_custom_call.1} parent=1 // pred_check_branch
      %26 = sbr.rel (0) target = $region17
    $region16: #{tpu_custom_call.1} parent=1 // pred_region
      _
    $region17: #{tpu_custom_call.1} parent=1 // pred_fallthru
      _
    // Predicated region
    $region18: #{tpu_custom_call.1} parent=1 // pred_check
      _
    $region19: #{tpu_custom_call.1} parent=1 // pred_check_branch
      %28 = sbr.rel (0) target = $region21
    $region20: #{tpu_custom_call.1} parent=1 // pred_region
      _
    $region21: #{tpu_custom_call.1} parent=1 // pred_fallthru
      _
    // Predicated region
    $region22: #{tpu_custom_call.1} parent=1 // pred_check
      _
    $region23: #{tpu_custom_call.1} parent=1 // pred_check_branch
      %30 = sbr.rel (0) target = $region25
    $region24: #{tpu_custom_call.1} parent=1 // pred_region
      _
    $region25: #{tpu_custom_call.1} parent=1 // pred_fallthru
      _
    // Predicated region
    $region26: #{tpu_custom_call.1} parent=1 // pred_check
      _
    $region27: #{tpu_custom_call.1} parent=1 // pred_check_branch
      %32 = sbr.rel (0) target = $region29
    $region28: #{tpu_custom_call.1} parent=1 // pred_region
      _
    $region29: #{tpu_custom_call.1} parent=1 // pred_fallthru
      _
    // Predicated region
    $region30: #{tpu_custom_call.1} parent=1 // pred_check
      _
    $region31: #{tpu_custom_call.1} parent=1 // pred_check_branch
      %34 = sbr.rel (0) target = $region33
    $region32: #{tpu_custom_call.1} parent=1 // pred_region
      _
    $region33: #{tpu_custom_call.1} parent=1 // pred_fallthru
      _
    // Predicated region
    $region34: #{tpu_custom_call.1} parent=1 // pred_check
      _
    $region35: #{tpu_custom_call.1} parent=1 // pred_check_branch
      %36 = sbr.rel (0) target = $region37
    $region36: #{tpu_custom_call.1} parent=1 // pred_region
      _
    $region37: #{tpu_custom_call.1} parent=1 // pred_fallthru
      _
    // Predicated region
    $region38: #{tpu_custom_call.1} parent=1 // pred_check
      _
    $region39: #{tpu_custom_call.1} parent=1 // pred_check_branch
      %38 = sbr.rel (0) target = $region41
    $region40: #{tpu_custom_call.1} parent=1 // pred_region
      _
    $region41: #{tpu_custom_call.1} parent=1 // pred_fallthru
      _
    // Predicated region
    $region42: #{tpu_custom_call.1} parent=1 // pred_check
      _
    $region43: #{tpu_custom_call.1} parent=1 // pred_check_branch
      %40 = sbr.rel (0) target = $region45
    $region44: #{tpu_custom_call.1} parent=1 // pred_region
      _
    $region45: #{tpu_custom_call.1} parent=1 // pred_fallthru
      _
    // Predicated region
    $region46: #{tpu_custom_call.1} parent=1 // pred_check
      _
    $region47: #{tpu_custom_call.1} parent=1 // pred_check_branch
      %42 = sbr.rel (0) target = $region49
    $region48: #{tpu_custom_call.1} parent=1 // pred_region
      _
    $region49: #{tpu_custom_call.1} parent=1 // pred_fallthru
      _
    // Predicated region
    $region50: #{tpu_custom_call.1} parent=1 // pred_check
      _
    $region51: #{tpu_custom_call.1} parent=1 // pred_check_branch
      %44 = sbr.rel (0) target = $region53
    $region52: #{tpu_custom_call.1} parent=1 // pred_region
      _
    $region53: #{tpu_custom_call.1} parent=1 // pred_fallthru
      _
    %v45 = vld [vmem:[%s0] sm:$0xff]
    %v46 = vld [vmem:[%s0 + $0x8] sm:$0xff]
    %v47 = vld [vmem:[%s1] sm:$0xff]
    %v48 = vld [vmem:[%s1 + $0x8] sm:$0xff]
    %v49 = vld [vmem:[%s2] sm:$0xff]
    %v50 = vld [vmem:[%s2 + $0x8] sm:$0xff]
    %v51 = vld [vmem:[%s2 + $0x10] sm:$0xff]
    %v52 = vld [vmem:[%s2 + $0x18] sm:$0xff]
    %v53 = vld [vmem:[%s2 + $0x20] sm:$0xff]
    %v54 = vld [vmem:[%s2 + $0x28] sm:$0xff]
    %v55 = vld [vmem:[%s2 + $0x30] sm:$0xff]
    %v56 = vld [vmem:[%s2 + $0x38] sm:$0xff]
    %v57 = vld [vmem:[%s2 + $0x40] sm:$0xff]
    %v58 = vld [vmem:[%s2 + $0x48] sm:$0xff]
    %v59 = vld [vmem:[%s2 + $0x50] sm:$0xff]
    %v60 = vld [vmem:[%s2 + $0x58] sm:$0xff]
    %v61 = vld [vmem:[%s2 + $0x60] sm:$0xff]
    %v62 = vld [vmem:[%s2 + $0x68] sm:$0xff]
    %v63 = vld [vmem:[%s2 + $0x70] sm:$0xff]
    %v64 = vld [vmem:[%s2 + $0x78] sm:$0xff]
    %v65 = vld [vmem:[%s2 + $0x80] sm:$0xff]
    %v66 = vld [vmem:[%s2 + $0x88] sm:$0xff]
    %v67 = vld [vmem:[%s2 + $0x90] sm:$0xff]
    %v68 = vld [vmem:[%s2 + $0x98] sm:$0xff]
    %v69 = vld [vmem:[%s2 + $0xa0] sm:$0xff]
    %v70 = vld [vmem:[%s2 + $0xa8] sm:$0xff]
    %v71 = vld [vmem:[%s2 + $0xb0] sm:$0xff]
    %v72 = vld [vmem:[%s2 + $0xb8] sm:$0xff]
    %v73 = vld [vmem:[%s4] sm:$0xff]
    %v74 = vld [vmem:[%s4 + $0x8] sm:$0xff]
    %v75 = vld [vmem:[%s4 + $0x10] sm:$0xff]
    %v76 = vld [vmem:[%s4 + $0x18] sm:$0xff]
    %v77 = vld [vmem:[%s4 + $0x20] sm:$0xff]
    %v78 = vld [vmem:[%s4 + $0x28] sm:$0xff]
    %v79 = vld [vmem:[%s4 + $0x30] sm:$0xff]
    %v80 = vld [vmem:[%s4 + $0x38] sm:$0xff]
    %v81 = vld [vmem:[%s4 + $0x40] sm:$0xff]
    %v82 = vld [vmem:[%s4 + $0x48] sm:$0xff]
    %v83 = vld [vmem:[%s4 + $0x50] sm:$0xff]
    %v84 = vld [vmem:[%s4 + $0x58] sm:$0xff]
    %v85 = vld [vmem:[%s4 + $0x60] sm:$0xff]
    %v86 = vld [vmem:[%s4 + $0x68] sm:$0xff]
    %v87 = vld [vmem:[%s4 + $0x70] sm:$0xff]
    %v88 = vld [vmem:[%s4 + $0x78] sm:$0xff]
    %v89 = vld [vmem:[%s4 + $0x80] sm:$0xff]
    %v90 = vld [vmem:[%s4 + $0x88] sm:$0xff]
    %v91 = vld [vmem:[%s4 + $0x90] sm:$0xff]
    %v92 = vld [vmem:[%s4 + $0x98] sm:$0xff]
    %v93 = vld [vmem:[%s4 + $0xa0] sm:$0xff]
    %v94 = vld [vmem:[%s4 + $0xa8] sm:$0xff]
    %v95 = vld [vmem:[%s4 + $0xb0] sm:$0xff]
    %v96 = vld [vmem:[%s4 + $0xb8] sm:$0xff]
    %v97 = vld [vmem:[%s3] sm:$0x3]
    %v98 = vld [vmem:[%s5] sm:$0x3]
    %v100 = vlaneseq
    %v101 = vshrl.u32 %v100, 7
    %v102 = vsub.s32 0, %v101
    %v103 = vrot.slane %v97, %v102
    %v104 = vlaneseq
    %v105 = vshrl.u32 %v104, 7
    %v106 = vsub.s32 1, %v105
    %v107 = vrot.slane %v97, %v106
    %vm110 = vcmask 785408
    %v112 = vsel %vm110, %v45, 0
    %v115 = vsel %vm110, %v46, 0
    %v117 = vand.u32 %v50, 4294901760
    %118 = vmatprep.subr.mxu0 %v117
    %v119 = vand.u32 %v49, 4294901760
    %120 = vmatpush1.msra.mxu0 %v119
    %v121 = vand.u32 %v52, 4294901760
    %122 = vmatprep.subr.mxu0 %v121
    %v123 = vand.u32 %v51, 4294901760
    %124 = vmatpush1.msra.mxu0 %v123
    %v125 = vand.u32 %v54, 4294901760
    %126 = vmatprep.subr.mxu0 %v125
    %v127 = vand.u32 %v53, 4294901760
    %128 = vmatpush1.msra.mxu0 %v127
    %v129 = vand.u32 %v56, 4294901760
    %130 = vmatprep.subr.mxu0 %v129
    %v131 = vand.u32 %v55, 4294901760
    %132 = vmatpush1.msra.mxu0 %v131
    %v133 = vand.u32 %v58, 4294901760
    %134 = vmatprep.subr.mxu0 %v133
    %v135 = vand.u32 %v57, 4294901760
    %136 = vmatpush1.msra.mxu0 %v135
    %v137 = vand.u32 %v60, 4294901760
    %138 = vmatprep.subr.mxu0 %v137
    %v139 = vand.u32 %v59, 4294901760
    %140 = vmatpush1.msra.mxu0 %v139
    %v141 = vand.u32 %v62, 4294901760
    %142 = vmatprep.subr.mxu0 %v141
    %v143 = vand.u32 %v61, 4294901760
    %144 = vmatpush1.msra.mxu0 %v143
    %v145 = vand.u32 %v64, 4294901760
    %146 = vmatprep.subr.mxu0 %v145
    %v147 = vand.u32 %v63, 4294901760
    %148 = vmatpush1.msra.mxu0 %v147
    %v149 = vand.u32 %v66, 4294901760
    %150 = vmatprep.subr.mxu0 %v149
    %v151 = vand.u32 %v65, 4294901760
    %152 = vmatpush1.msra.mxu0 %v151
    %v153 = vand.u32 %v68, 4294901760
    %154 = vmatprep.subr.mxu0 %v153
    %v155 = vand.u32 %v67, 4294901760
    %156 = vmatpush1.msra.mxu0 %v155
    %v157 = vand.u32 %v70, 4294901760
    %158 = vmatprep.subr.mxu0 %v157
    %v159 = vand.u32 %v69, 4294901760
    %160 = vmatpush1.msra.mxu0 %v159
    %v161 = vand.u32 %v72, 4294901760
    %162 = vmatprep.subr.mxu0 %v161
    %v163 = vand.u32 %v71, 4294901760
    %164 = vmatpush1.msra.mxu0 %v163
    %165 = vmatprep.subr.mxu0 0.0
    %166 = vmatpush1.msra.mxu0 0.0
    %167 = vmatprep.subr.mxu0 0.0
    %168 = vmatpush1.msra.mxu0 0.0
    %169 = vmatprep.subr.mxu0 0.0
    %170 = vmatpush1.msra.mxu0 0.0
    %171 = vmatprep.subr.mxu0 0.0
    %172 = vmatpush1.msra.mxu0 0.0
    %173 = vmatprep.subr.mxu0 0.0
    %174 = vmatpush1.msra.mxu0 0.0
    %175 = vmatprep.subr.mxu0 0.0
    %176 = vmatpush1.msra.mxu0 0.0
    %177 = vmatprep.subr.mxu0 0.0
    %178 = vmatpush1.msra.mxu0 0.0
    %179 = vmatprep.subr.mxu0 0.0
    %180 = vmatpush1.msra.mxu0 0.0
    %181 = vmatprep.subr.mxu0 0.0
    %182 = vmatpush1.msra.mxu0 0.0
    %183 = vmatprep.subr.mxu0 0.0
    %184 = vmatpush1.msra.mxu0 0.0
    %185 = vmatprep.subr.mxu0 0.0
    %186 = vmatpush1.msra.mxu0 0.0
    %187 = vmatprep.subr.mxu0 0.0
    %188 = vmatpush1.msra.mxu0 0.0
    %189 = vmatprep.subr.mxu0 0.0
    %190 = vmatpush1.msra.mxu0 0.0
    %191 = vmatprep.subr.mxu0 0.0
    %192 = vmatpush1.msra.mxu0 0.0
    %193 = vmatprep.subr.mxu0 0.0
    %194 = vmatpush1.msra.mxu0 0.0
    %195 = vmatprep.subr.mxu0 0.0
    %196 = vmatpush1.msra.mxu0 0.0
    %197 = vmatprep.subr.mxu0 0.0
    %198 = vmatpush1.msra.mxu0 0.0
    %199 = vmatprep.subr.mxu0 0.0
    %200 = vmatpush1.msra.mxu0 0.0
    %201 = vmatprep.subr.mxu0 0.0
    %202 = vmatpush1.msra.mxu0 0.0
    %203 = vmatprep.subr.mxu0 0.0
    %204 = vmatpush1.msra.mxu0 0.0
    %205 = vmatprep.mubr.f32.mxu0 0.0
    %v206 = vand.u32 %v112, 4294901760
    %v207 = vsub.f32 %v112, %v206
    %v208 = vand.u32 %v207, 4294901760
    %v209 = vsub.f32 %v207, %v208
    %v210 = vand.u32 %v209, 4294901760
    %211 = vmatmul.mubr.f32.gmra.mrb[0].mxu0 %v210
    %v212 = vpop.f32.mrb[0].mxu0
    %v213 = vadd.f32 %v103, %v212
    %v214 = vpop.f32.mrb[0].mxu0
    %v215 = vadd.f32 %v107, %v214
    %216 = vmatprep.mubr.f32.mxu0 0.0
    %v217 = vand.u32 %v115, 4294901760
    %v218 = vsub.f32 %v115, %v217
    %v219 = vand.u32 %v218, 4294901760
    %v220 = vsub.f32 %v218, %v219
    %v221 = vand.u32 %v220, 4294901760
    %222 = vmatmul.mubr.f32.gmra.mrb[0].mxu0 %v221
    %v223 = vpop.f32.mrb[0].mxu0
    %v224 = vadd.f32 %v103, %v223
    %v225 = vpop.f32.mrb[0].mxu0
    %v226 = vadd.f32 %v107, %v225
    %227 = vdwg.mxu0
    %v228 = vand.u32 %v50, 4294901760
    %v229 = vsub.f32 %v50, %v228
    %v230 = vand.u32 %v229, 4294901760
    %v231 = vsub.f32 %v229, %v230
    %v232 = vand.u32 %v231, 4294901760
    %233 = vmatprep.subr.mxu0 %v232
    %v234 = vand.u32 %v49, 4294901760
    %v235 = vsub.f32 %v49, %v234
    %v236 = vand.u32 %v235, 4294901760
    %v237 = vsub.f32 %v235, %v236
    %v238 = vand.u32 %v237, 4294901760
    %239 = vmatpush1.msra.mxu0 %v238
    %v240 = vand.u32 %v52, 4294901760
    %v241 = vsub.f32 %v52, %v240
    %v242 = vand.u32 %v241, 4294901760
    %v243 = vsub.f32 %v241, %v242
    %v244 = vand.u32 %v243, 4294901760
    %245 = vmatprep.subr.mxu0 %v244
    %v246 = vand.u32 %v51, 4294901760
    %v247 = vsub.f32 %v51, %v246
    %v248 = vand.u32 %v247, 4294901760
    %v249 = vsub.f32 %v247, %v248
    %v250 = vand.u32 %v249, 4294901760
    %251 = vmatpush1.msra.mxu0 %v250
    %v252 = vand.u32 %v54, 4294901760
    %v253 = vsub.f32 %v54, %v252
    %v254 = vand.u32 %v253, 4294901760
    %v255 = vsub.f32 %v253, %v254
    %v256 = vand.u32 %v255, 4294901760
    %257 = vmatprep.subr.mxu0 %v256
    %v258 = vand.u32 %v53, 4294901760
    %v259 = vsub.f32 %v53, %v258
    %v260 = vand.u32 %v259, 4294901760
    %v261 = vsub.f32 %v259, %v260
    %v262 = vand.u32 %v261, 4294901760
    %263 = vmatpush1.msra.mxu0 %v262
    %v264 = vand.u32 %v56, 4294901760
    %v265 = vsub.f32 %v56, %v264
    %v266 = vand.u32 %v265, 4294901760
    %v267 = vsub.f32 %v265, %v266
    %v268 = vand.u32 %v267, 4294901760
    %269 = vmatprep.subr.mxu0 %v268
    %v270 = vand.u32 %v55, 4294901760
    %v271 = vsub.f32 %v55, %v270
    %v272 = vand.u32 %v271, 4294901760
    %v273 = vsub.f32 %v271, %v272
    %v274 = vand.u32 %v273, 4294901760
    %275 = vmatpush1.msra.mxu0 %v274
    %v276 = vand.u32 %v58, 4294901760
    %v277 = vsub.f32 %v58, %v276
    %v278 = vand.u32 %v277, 4294901760
    %v279 = vsub.f32 %v277, %v278
    %v280 = vand.u32 %v279, 4294901760
    %281 = vmatprep.subr.mxu0 %v280
    %v282 = vand.u32 %v57, 4294901760
    %v283 = vsub.f32 %v57, %v282
    %v284 = vand.u32 %v283, 4294901760
    %v285 = vsub.f32 %v283, %v284
    %v286 = vand.u32 %v285, 4294901760
    %287 = vmatpush1.msra.mxu0 %v286
    %v288 = vand.u32 %v60, 4294901760
    %v289 = vsub.f32 %v60, %v288
    %v290 = vand.u32 %v289, 4294901760
    %v291 = vsub.f32 %v289, %v290
    %v292 = vand.u32 %v291, 4294901760
    %293 = vmatprep.subr.mxu0 %v292
    %v294 = vand.u32 %v59, 4294901760
    %v295 = vsub.f32 %v59, %v294
    %v296 = vand.u32 %v295, 4294901760
    %v297 = vsub.f32 %v295, %v296
    %v298 = vand.u32 %v297, 4294901760
    %299 = vmatpush1.msra.mxu0 %v298
    %v300 = vand.u32 %v62, 4294901760
    %v301 = vsub.f32 %v62, %v300
    %v302 = vand.u32 %v301, 4294901760
    %v303 = vsub.f32 %v301, %v302
    %v304 = vand.u32 %v303, 4294901760
    %305 = vmatprep.subr.mxu0 %v304
    %v306 = vand.u32 %v61, 4294901760
    %v307 = vsub.f32 %v61, %v306
    %v308 = vand.u32 %v307, 4294901760
    %v309 = vsub.f32 %v307, %v308
    %v310 = vand.u32 %v309, 4294901760
    %311 = vmatpush1.msra.mxu0 %v310
    %v312 = vand.u32 %v64, 4294901760
    %v313 = vsub.f32 %v64, %v312
    %v314 = vand.u32 %v313, 4294901760
    %v315 = vsub.f32 %v313, %v314
    %v316 = vand.u32 %v315, 4294901760
    %317 = vmatprep.subr.mxu0 %v316
    %v318 = vand.u32 %v63, 4294901760
    %v319 = vsub.f32 %v63, %v318
    %v320 = vand.u32 %v319, 4294901760
    %v321 = vsub.f32 %v319, %v320
    %v322 = vand.u32 %v321, 4294901760
    %323 = vmatpush1.msra.mxu0 %v322
    %v324 = vand.u32 %v66, 4294901760
    %v325 = vsub.f32 %v66, %v324
    %v326 = vand.u32 %v325, 4294901760
    %v327 = vsub.f32 %v325, %v326
    %v328 = vand.u32 %v327, 4294901760
    %329 = vmatprep.subr.mxu0 %v328
    %v330 = vand.u32 %v65, 4294901760
    %v331 = vsub.f32 %v65, %v330
    %v332 = vand.u32 %v331, 4294901760
    %v333 = vsub.f32 %v331, %v332
    %v334 = vand.u32 %v333, 4294901760
    %335 = vmatpush1.msra.mxu0 %v334
    %v336 = vand.u32 %v68, 4294901760
    %v337 = vsub.f32 %v68, %v336
    %v338 = vand.u32 %v337, 4294901760
    %v339 = vsub.f32 %v337, %v338
    %v340 = vand.u32 %v339, 4294901760
    %341 = vmatprep.subr.mxu0 %v340
    %v342 = vand.u32 %v67, 4294901760
    %v343 = vsub.f32 %v67, %v342
    %v344 = vand.u32 %v343, 4294901760
    %v345 = vsub.f32 %v343, %v344
    %v346 = vand.u32 %v345, 4294901760
    %347 = vmatpush1.msra.mxu0 %v346
    %v348 = vand.u32 %v70, 4294901760
    %v349 = vsub.f32 %v70, %v348
    %v350 = vand.u32 %v349, 4294901760
    %v351 = vsub.f32 %v349, %v350
    %v352 = vand.u32 %v351, 4294901760
    %353 = vmatprep.subr.mxu0 %v352
    %v354 = vand.u32 %v69, 4294901760
    %v355 = vsub.f32 %v69, %v354
    %v356 = vand.u32 %v355, 4294901760
    %v357 = vsub.f32 %v355, %v356
    %v358 = vand.u32 %v357, 4294901760
    %359 = vmatpush1.msra.mxu0 %v358
    %v360 = vand.u32 %v72, 4294901760
    %v361 = vsub.f32 %v72, %v360
    %v362 = vand.u32 %v361, 4294901760
    %v363 = vsub.f32 %v361, %v362
    %v364 = vand.u32 %v363, 4294901760
    %365 = vmatprep.subr.mxu0 %v364
    %v366 = vand.u32 %v71, 4294901760
    %v367 = vsub.f32 %v71, %v366
    %v368 = vand.u32 %v367, 4294901760
    %v369 = vsub.f32 %v367, %v368
    %v370 = vand.u32 %v369, 4294901760
    %371 = vmatpush1.msra.mxu0 %v370
    %372 = vmatprep.subr.mxu0 0.0
    %373 = vmatpush1.msra.mxu0 0.0
    %374 = vmatprep.subr.mxu0 0.0
    %375 = vmatpush1.msra.mxu0 0.0
    %376 = vmatprep.subr.mxu0 0.0
    %377 = vmatpush1.msra.mxu0 0.0
    %378 = vmatprep.subr.mxu0 0.0
    %379 = vmatpush1.msra.mxu0 0.0
    %380 = vmatprep.subr.mxu0 0.0
    %381 = vmatpush1.msra.mxu0 0.0
    %382 = vmatprep.subr.mxu0 0.0
    %383 = vmatpush1.msra.mxu0 0.0
    %384 = vmatprep.subr.mxu0 0.0
    %385 = vmatpush1.msra.mxu0 0.0
    %386 = vmatprep.subr.mxu0 0.0
    %387 = vmatpush1.msra.mxu0 0.0
    %388 = vmatprep.subr.mxu0 0.0
    %389 = vmatpush1.msra.mxu0 0.0
    %390 = vmatprep.subr.mxu0 0.0
    %391 = vmatpush1.msra.mxu0 0.0
    %392 = vmatprep.subr.mxu0 0.0
    %393 = vmatpush1.msra.mxu0 0.0
    %394 = vmatprep.subr.mxu0 0.0
    %395 = vmatpush1.msra.mxu0 0.0
    %396 = vmatprep.subr.mxu0 0.0
    %397 = vmatpush1.msra.mxu0 0.0
    %398 = vmatprep.subr.mxu0 0.0
    %399 = vmatpush1.msra.mxu0 0.0
    %400 = vmatprep.subr.mxu0 0.0
    %401 = vmatpush1.msra.mxu0 0.0
    %402 = vmatprep.subr.mxu0 0.0
    %403 = vmatpush1.msra.mxu0 0.0
    %404 = vmatprep.subr.mxu0 0.0
    %405 = vmatpush1.msra.mxu0 0.0
    %406 = vmatprep.subr.mxu0 0.0
    %407 = vmatpush1.msra.mxu0 0.0
    %408 = vmatprep.subr.mxu0 0.0
    %409 = vmatpush1.msra.mxu0 0.0
    %410 = vmatprep.subr.mxu0 0.0
    %411 = vmatpush1.msra.mxu0 0.0
    %412 = vmatprep.mubr.f32.mxu0 0.0
    %v413 = vand.u32 %v112, 4294901760
    %414 = vmatmul.mubr.f32.gmra.mrb[0].mxu0 %v413
    %v415 = vpop.f32.mrb[0].mxu0
    %v416 = vadd.f32 %v213, %v415
    %v417 = vpop.f32.mrb[0].mxu0
    %v418 = vadd.f32 %v215, %v417
    %419 = vmatprep.mubr.f32.mxu0 0.0
    %v420 = vand.u32 %v115, 4294901760
    %421 = vmatmul.mubr.f32.gmra.mrb[0].mxu0 %v420
    %v422 = vpop.f32.mrb[0].mxu0
    %v423 = vadd.f32 %v224, %v422
    %v424 = vpop.f32.mrb[0].mxu0
    %v425 = vadd.f32 %v226, %v424
    %426 = vdwg.mxu0
    %v427 = vand.u32 %v50, 4294901760
    %v428 = vsub.f32 %v50, %v427
    %429 = vmatprep.subr.mxu0 %v428
    %v430 = vand.u32 %v49, 4294901760
    %v431 = vsub.f32 %v49, %v430
    %432 = vmatpush1.msra.mxu0 %v431
    %v433 = vand.u32 %v52, 4294901760
    %v434 = vsub.f32 %v52, %v433
    %435 = vmatprep.subr.mxu0 %v434
    %v436 = vand.u32 %v51, 4294901760
    %v437 = vsub.f32 %v51, %v436
    %438 = vmatpush1.msra.mxu0 %v437
    %v439 = vand.u32 %v54, 4294901760
    %v440 = vsub.f32 %v54, %v439
    %441 = vmatprep.subr.mxu0 %v440
    %v442 = vand.u32 %v53, 4294901760
    %v443 = vsub.f32 %v53, %v442
    %444 = vmatpush1.msra.mxu0 %v443
    %v445 = vand.u32 %v56, 4294901760
    %v446 = vsub.f32 %v56, %v445
    %447 = vmatprep.subr.mxu0 %v446
    %v448 = vand.u32 %v55, 4294901760
    %v449 = vsub.f32 %v55, %v448
    %450 = vmatpush1.msra.mxu0 %v449
    %v451 = vand.u32 %v58, 4294901760
    %v452 = vsub.f32 %v58, %v451
    %453 = vmatprep.subr.mxu0 %v452
    %v454 = vand.u32 %v57, 4294901760
    %v455 = vsub.f32 %v57, %v454
    %456 = vmatpush1.msra.mxu0 %v455
    %v457 = vand.u32 %v60, 4294901760
    %v458 = vsub.f32 %v60, %v457
    %459 = vmatprep.subr.mxu0 %v458
    %v460 = vand.u32 %v59, 4294901760
    %v461 = vsub.f32 %v59, %v460
    %462 = vmatpush1.msra.mxu0 %v461
    %v463 = vand.u32 %v62, 4294901760
    %v464 = vsub.f32 %v62, %v463
    %465 = vmatprep.subr.mxu0 %v464
    %v466 = vand.u32 %v61, 4294901760
    %v467 = vsub.f32 %v61, %v466
    %468 = vmatpush1.msra.mxu0 %v467
    %v469 = vand.u32 %v64, 4294901760
    %v470 = vsub.f32 %v64, %v469
    %471 = vmatprep.subr.mxu0 %v470
    %v472 = vand.u32 %v63, 4294901760
    %v473 = vsub.f32 %v63, %v472
    %474 = vmatpush1.msra.mxu0 %v473
    %v475 = vand.u32 %v66, 4294901760
    %v476 = vsub.f32 %v66, %v475
    %477 = vmatprep.subr.mxu0 %v476
    %v478 = vand.u32 %v65, 4294901760
    %v479 = vsub.f32 %v65, %v478
    %480 = vmatpush1.msra.mxu0 %v479
    %v481 = vand.u32 %v68, 4294901760
    %v482 = vsub.f32 %v68, %v481
    %483 = vmatprep.subr.mxu0 %v482
    %v484 = vand.u32 %v67, 4294901760
    %v485 = vsub.f32 %v67, %v484
    %486 = vmatpush1.msra.mxu0 %v485
    %v487 = vand.u32 %v70, 4294901760
    %v488 = vsub.f32 %v70, %v487
    %489 = vmatprep.subr.mxu0 %v488
    %v490 = vand.u32 %v69, 4294901760
    %v491 = vsub.f32 %v69, %v490
    %492 = vmatpush1.msra.mxu0 %v491
    %v493 = vand.u32 %v72, 4294901760
    %v494 = vsub.f32 %v72, %v493
    %495 = vmatprep.subr.mxu0 %v494
    %v496 = vand.u32 %v71, 4294901760
    %v497 = vsub.f32 %v71, %v496
    %498 = vmatpush1.msra.mxu0 %v497
    %499 = vmatprep.subr.mxu0 0.0
    %500 = vmatpush1.msra.mxu0 0.0
    %501 = vmatprep.subr.mxu0 0.0
    %502 = vmatpush1.msra.mxu0 0.0
    %503 = vmatprep.subr.mxu0 0.0
    %504 = vmatpush1.msra.mxu0 0.0
    %505 = vmatprep.subr.mxu0 0.0
    %506 = vmatpush1.msra.mxu0 0.0
    %507 = vmatprep.subr.mxu0 0.0
    %508 = vmatpush1.msra.mxu0 0.0
    %509 = vmatprep.subr.mxu0 0.0
    %510 = vmatpush1.msra.mxu0 0.0
    %511 = vmatprep.subr.mxu0 0.0
    %512 = vmatpush1.msra.mxu0 0.0
    %513 = vmatprep.subr.mxu0 0.0
    %514 = vmatpush1.msra.mxu0 0.0
    %515 = vmatprep.subr.mxu0 0.0
    %516 = vmatpush1.msra.mxu0 0.0
    %517 = vmatprep.subr.mxu0 0.0
    %518 = vmatpush1.msra.mxu0 0.0
    %519 = vmatprep.subr.mxu0 0.0
    %520 = vmatpush1.msra.mxu0 0.0
    %521 = vmatprep.subr.mxu0 0.0
    %522 = vmatpush1.msra.mxu0 0.0
    %523 = vmatprep.subr.mxu0 0.0
    %524 = vmatpush1.msra.mxu0 0.0
    %525 = vmatprep.subr.mxu0 0.0
    %526 = vmatpush1.msra.mxu0 0.0
    %527 = vmatprep.subr.mxu0 0.0
    %528 = vmatpush1.msra.mxu0 0.0
    %529 = vmatprep.subr.mxu0 0.0
    %530 = vmatpush1.msra.mxu0 0.0
    %531 = vmatprep.subr.mxu0 0.0
    %532 = vmatpush1.msra.mxu0 0.0
    %533 = vmatprep.subr.mxu0 0.0
    %534 = vmatpush1.msra.mxu0 0.0
    %535 = vmatprep.subr.mxu0 0.0
    %536 = vmatpush1.msra.mxu0 0.0
    %537 = vmatprep.subr.mxu0 0.0
    %538 = vmatpush1.msra.mxu0 0.0
    %539 = vmatprep.mubr.f32.mxu0 0.0
    %v540 = vand.u32 %v112, 4294901760
    %v541 = vsub.f32 %v112, %v540
    %542 = vmatmul.mubr.f32.gmra.mrb[0].mxu0 %v541
    %v543 = vpop.f32.mrb[0].mxu0
    %v544 = vadd.f32 %v416, %v543
    %v545 = vpop.f32.mrb[0].mxu0
    %v546 = vadd.f32 %v418, %v545
    %547 = vmatprep.mubr.f32.mxu0 0.0
    %v548 = vand.u32 %v115, 4294901760
    %v549 = vsub.f32 %v115, %v548
    %550 = vmatmul.mubr.f32.gmra.mrb[0].mxu0 %v549
    %v551 = vpop.f32.mrb[0].mxu0
    %v552 = vadd.f32 %v423, %v551
    %v553 = vpop.f32.mrb[0].mxu0
    %v554 = vadd.f32 %v425, %v553
    %555 = vdwg.mxu0
    %v556 = vand.u32 %v50, 4294901760
    %557 = vmatprep.subr.mxu0 %v556
    %v558 = vand.u32 %v49, 4294901760
    %559 = vmatpush1.msra.mxu0 %v558
    %v560 = vand.u32 %v52, 4294901760
    %561 = vmatprep.subr.mxu0 %v560
    %v562 = vand.u32 %v51, 4294901760
    %563 = vmatpush1.msra.mxu0 %v562
    %v564 = vand.u32 %v54, 4294901760
    %565 = vmatprep.subr.mxu0 %v564
    %v566 = vand.u32 %v53, 4294901760
    %567 = vmatpush1.msra.mxu0 %v566
    %v568 = vand.u32 %v56, 4294901760
    %569 = vmatprep.subr.mxu0 %v568
    %v570 = vand.u32 %v55, 4294901760
    %571 = vmatpush1.msra.mxu0 %v570
    %v572 = vand.u32 %v58, 4294901760
    %573 = vmatprep.subr.mxu0 %v572
    %v574 = vand.u32 %v57, 4294901760
    %575 = vmatpush1.msra.mxu0 %v574
    %v576 = vand.u32 %v60, 4294901760
    %577 = vmatprep.subr.mxu0 %v576
    %v578 = vand.u32 %v59, 4294901760
    %579 = vmatpush1.msra.mxu0 %v578
    %v580 = vand.u32 %v62, 4294901760
    %581 = vmatprep.subr.mxu0 %v580
    %v582 = vand.u32 %v61, 4294901760
    %583 = vmatpush1.msra.mxu0 %v582
    %v584 = vand.u32 %v64, 4294901760
    %585 = vmatprep.subr.mxu0 %v584
    %v586 = vand.u32 %v63, 4294901760
    %587 = vmatpush1.msra.mxu0 %v586
    %v588 = vand.u32 %v66, 4294901760
    %589 = vmatprep.subr.mxu0 %v588
    %v590 = vand.u32 %v65, 4294901760
    %591 = vmatpush1.msra.mxu0 %v590
    %v592 = vand.u32 %v68, 4294901760
    %593 = vmatprep.subr.mxu0 %v592
    %v594 = vand.u32 %v67, 4294901760
    %595 = vmatpush1.msra.mxu0 %v594
    %v596 = vand.u32 %v70, 4294901760
    %597 = vmatprep.subr.mxu0 %v596
    %v598 = vand.u32 %v69, 4294901760
    %599 = vmatpush1.msra.mxu0 %v598
    %v600 = vand.u32 %v72, 4294901760
    %601 = vmatprep.subr.mxu0 %v600
    %v602 = vand.u32 %v71, 4294901760
    %603 = vmatpush1.msra.mxu0 %v602
    %604 = vmatprep.subr.mxu0 0.0
    %605 = vmatpush1.msra.mxu0 0.0
    %606 = vmatprep.subr.mxu0 0.0
    %607 = vmatpush1.msra.mxu0 0.0
    %608 = vmatprep.subr.mxu0 0.0
    %609 = vmatpush1.msra.mxu0 0.0
    %610 = vmatprep.subr.mxu0 0.0
    %611 = vmatpush1.msra.mxu0 0.0
    %612 = vmatprep.subr.mxu0 0.0
    %613 = vmatpush1.msra.mxu0 0.0
    %614 = vmatprep.subr.mxu0 0.0
    %615 = vmatpush1.msra.mxu0 0.0
    %616 = vmatprep.subr.mxu0 0.0
    %617 = vmatpush1.msra.mxu0 0.0
    %618 = vmatprep.subr.mxu0 0.0
    %619 = vmatpush1.msra.mxu0 0.0
    %620 = vmatprep.subr.mxu0 0.0
    %621 = vmatpush1.msra.mxu0 0.0
    %622 = vmatprep.subr.mxu0 0.0
    %623 = vmatpush1.msra.mxu0 0.0
    %624 = vmatprep.subr.mxu0 0.0
    %625 = vmatpush1.msra.mxu0 0.0
    %626 = vmatprep.subr.mxu0 0.0
    %627 = vmatpush1.msra.mxu0 0.0
    %628 = vmatprep.subr.mxu0 0.0
    %629 = vmatpush1.msra.mxu0 0.0
    %630 = vmatprep.subr.mxu0 0.0
    %631 = vmatpush1.msra.mxu0 0.0
    %632 = vmatprep.subr.mxu0 0.0
    %633 = vmatpush1.msra.mxu0 0.0
    %634 = vmatprep.subr.mxu0 0.0
    %635 = vmatpush1.msra.mxu0 0.0
    %636 = vmatprep.subr.mxu0 0.0
    %637 = vmatpush1.msra.mxu0 0.0
    %638 = vmatprep.subr.mxu0 0.0
    %639 = vmatpush1.msra.mxu0 0.0
    %640 = vmatprep.subr.mxu0 0.0
    %641 = vmatpush1.msra.mxu0 0.0
    %642 = vmatprep.subr.mxu0 0.0
    %643 = vmatpush1.msra.mxu0 0.0
    %644 = vmatprep.mubr.f32.mxu0 0.0
    %v645 = vand.u32 %v112, 4294901760
    %v646 = vsub.f32 %v112, %v645
    %v647 = vand.u32 %v646, 4294901760
    %648 = vmatmul.mubr.f32.gmra.mrb[0].mxu0 %v647
    %v649 = vpop.f32.mrb[0].mxu0
    %v650 = vadd.f32 %v544, %v649
    %v651 = vpop.f32.mrb[0].mxu0
    %v652 = vadd.f32 %v546, %v651
    %653 = vmatprep.mubr.f32.mxu0 0.0
    %v654 = vand.u32 %v115, 4294901760
    %v655 = vsub.f32 %v115, %v654
    %v656 = vand.u32 %v655, 4294901760
    %657 = vmatmul.mubr.f32.gmra.mrb[0].mxu0 %v656
    %v658 = vpop.f32.mrb[0].mxu0
    %v659 = vadd.f32 %v552, %v658
    %v660 = vpop.f32.mrb[0].mxu0
    %v661 = vadd.f32 %v554, %v660
    %662 = vdwg.mxu0
    %v663 = vand.u32 %v50, 4294901760
    %v664 = vsub.f32 %v50, %v663
    %v665 = vand.u32 %v664, 4294901760
    %666 = vmatprep.subr.mxu0 %v665
    %v667 = vand.u32 %v49, 4294901760
    %v668 = vsub.f32 %v49, %v667
    %v669 = vand.u32 %v668, 4294901760
    %670 = vmatpush1.msra.mxu0 %v669
    %v671 = vand.u32 %v52, 4294901760
    %v672 = vsub.f32 %v52, %v671
    %v673 = vand.u32 %v672, 4294901760
    %674 = vmatprep.subr.mxu0 %v673
    %v675 = vand.u32 %v51, 4294901760
    %v676 = vsub.f32 %v51, %v675
    %v677 = vand.u32 %v676, 4294901760
    %678 = vmatpush1.msra.mxu0 %v677
    %v679 = vand.u32 %v54, 4294901760
    %v680 = vsub.f32 %v54, %v679
    %v681 = vand.u32 %v680, 4294901760
    %682 = vmatprep.subr.mxu0 %v681
    %v683 = vand.u32 %v53, 4294901760
    %v684 = vsub.f32 %v53, %v683
    %v685 = vand.u32 %v684, 4294901760
    %686 = vmatpush1.msra.mxu0 %v685
    %v687 = vand.u32 %v56, 4294901760
    %v688 = vsub.f32 %v56, %v687
    %v689 = vand.u32 %v688, 4294901760
    %690 = vmatprep.subr.mxu0 %v689
    %v691 = vand.u32 %v55, 4294901760
    %v692 = vsub.f32 %v55, %v691
    %v693 = vand.u32 %v692, 4294901760
    %694 = vmatpush1.msra.mxu0 %v693
    %v695 = vand.u32 %v58, 4294901760
    %v696 = vsub.f32 %v58, %v695
    %v697 = vand.u32 %v696, 4294901760
    %698 = vmatprep.subr.mxu0 %v697
    %v699 = vand.u32 %v57, 4294901760
    %v700 = vsub.f32 %v57, %v699
    %v701 = vand.u32 %v700, 4294901760
    %702 = vmatpush1.msra.mxu0 %v701
    %v703 = vand.u32 %v60, 4294901760
    %v704 = vsub.f32 %v60, %v703
    %v705 = vand.u32 %v704, 4294901760
    %706 = vmatprep.subr.mxu0 %v705
    %v707 = vand.u32 %v59, 4294901760
    %v708 = vsub.f32 %v59, %v707
    %v709 = vand.u32 %v708, 4294901760
    %710 = vmatpush1.msra.mxu0 %v709
    %v711 = vand.u32 %v62, 4294901760
    %v712 = vsub.f32 %v62, %v711
    %v713 = vand.u32 %v712, 4294901760
    %714 = vmatprep.subr.mxu0 %v713
    %v715 = vand.u32 %v61, 4294901760
    %v716 = vsub.f32 %v61, %v715
    %v717 = vand.u32 %v716, 4294901760
    %718 = vmatpush1.msra.mxu0 %v717
    %v719 = vand.u32 %v64, 4294901760
    %v720 = vsub.f32 %v64, %v719
    %v721 = vand.u32 %v720, 4294901760
    %722 = vmatprep.subr.mxu0 %v721
    %v723 = vand.u32 %v63, 4294901760
    %v724 = vsub.f32 %v63, %v723
    %v725 = vand.u32 %v724, 4294901760
    %726 = vmatpush1.msra.mxu0 %v725
    %v727 = vand.u32 %v66, 4294901760
    %v728 = vsub.f32 %v66, %v727
    %v729 = vand.u32 %v728, 4294901760
    %730 = vmatprep.subr.mxu0 %v729
    %v731 = vand.u32 %v65, 4294901760
    %v732 = vsub.f32 %v65, %v731
    %v733 = vand.u32 %v732, 4294901760
    %734 = vmatpush1.msra.mxu0 %v733
    %v735 = vand.u32 %v68, 4294901760
    %v736 = vsub.f32 %v68, %v735
    %v737 = vand.u32 %v736, 4294901760
    %738 = vmatprep.subr.mxu0 %v737
    %v739 = vand.u32 %v67, 4294901760
    %v740 = vsub.f32 %v67, %v739
    %v741 = vand.u32 %v740, 4294901760
    %742 = vmatpush1.msra.mxu0 %v741
    %v743 = vand.u32 %v70, 4294901760
    %v744 = vsub.f32 %v70, %v743
    %v745 = vand.u32 %v744, 4294901760
    %746 = vmatprep.subr.mxu0 %v745
    %v747 = vand.u32 %v69, 4294901760
    %v748 = vsub.f32 %v69, %v747
    %v749 = vand.u32 %v748, 4294901760
    %750 = vmatpush1.msra.mxu0 %v749
    %v751 = vand.u32 %v72, 4294901760
    %v752 = vsub.f32 %v72, %v751
    %v753 = vand.u32 %v752, 4294901760
    %754 = vmatprep.subr.mxu0 %v753
    %v755 = vand.u32 %v71, 4294901760
    %v756 = vsub.f32 %v71, %v755
    %v757 = vand.u32 %v756, 4294901760
    %758 = vmatpush1.msra.mxu0 %v757
    %759 = vmatprep.subr.mxu0 0.0
    %760 = vmatpush1.msra.mxu0 0.0
    %761 = vmatprep.subr.mxu0 0.0
    %762 = vmatpush1.msra.mxu0 0.0
    %763 = vmatprep.subr.mxu0 0.0
    %764 = vmatpush1.msra.mxu0 0.0
    %765 = vmatprep.subr.mxu0 0.0
    %766 = vmatpush1.msra.mxu0 0.0
    %767 = vmatprep.subr.mxu0 0.0
    %768 = vmatpush1.msra.mxu0 0.0
    %769 = vmatprep.subr.mxu0 0.0
    %770 = vmatpush1.msra.mxu0 0.0
    %771 = vmatprep.subr.mxu0 0.0
    %772 = vmatpush1.msra.mxu0 0.0
    %773 = vmatprep.subr.mxu0 0.0
    %774 = vmatpush1.msra.mxu0 0.0
    %775 = vmatprep.subr.mxu0 0.0
    %776 = vmatpush1.msra.mxu0 0.0
    %777 = vmatprep.subr.mxu0 0.0
    %778 = vmatpush1.msra.mxu0 0.0
    %779 = vmatprep.subr.mxu0 0.0
    %780 = vmatpush1.msra.mxu0 0.0
    %781 = vmatprep.subr.mxu0 0.0
    %782 = vmatpush1.msra.mxu0 0.0
    %783 = vmatprep.subr.mxu0 0.0
    %784 = vmatpush1.msra.mxu0 0.0
    %785 = vmatprep.subr.mxu0 0.0
    %786 = vmatpush1.msra.mxu0 0.0
    %787 = vmatprep.subr.mxu0 0.0
    %788 = vmatpush1.msra.mxu0 0.0
    %789 = vmatprep.subr.mxu0 0.0
    %790 = vmatpush1.msra.mxu0 0.0
    %791 = vmatprep.subr.mxu0 0.0
    %792 = vmatpush1.msra.mxu0 0.0
    %793 = vmatprep.subr.mxu0 0.0
    %794 = vmatpush1.msra.mxu0 0.0
    %795 = vmatprep.subr.mxu0 0.0
    %796 = vmatpush1.msra.mxu0 0.0
    %797 = vmatprep.subr.mxu0 0.0
    %798 = vmatpush1.msra.mxu0 0.0
    %799 = vmatprep.mubr.f32.mxu0 0.0
    %v800 = vand.u32 %v112, 4294901760
    %801 = vmatmul.mubr.f32.gmra.mrb[0].mxu0 %v800
    %v802 = vpop.f32.mrb[0].mxu0
    %v803 = vadd.f32 %v650, %v802
    %v804 = vpop.f32.mrb[0].mxu0
    %v805 = vadd.f32 %v652, %v804
    %806 = vmatprep.mubr.f32.mxu0 0.0
    %v807 = vand.u32 %v115, 4294901760
    %808 = vmatmul.mubr.f32.gmra.mrb[0].mxu0 %v807
    %v809 = vpop.f32.mrb[0].mxu0
    %v810 = vadd.f32 %v659, %v809
    %v811 = vpop.f32.mrb[0].mxu0
    %v812 = vadd.f32 %v661, %v811
    %813 = vdwg.mxu0
    %v814 = vand.u32 %v50, 4294901760
    %815 = vmatprep.subr.mxu0 %v814
    %v816 = vand.u32 %v49, 4294901760
    %817 = vmatpush1.msra.mxu0 %v816
    %v818 = vand.u32 %v52, 4294901760
    %819 = vmatprep.subr.mxu0 %v818
    %v820 = vand.u32 %v51, 4294901760
    %821 = vmatpush1.msra.mxu0 %v820
    %v822 = vand.u32 %v54, 4294901760
    %823 = vmatprep.subr.mxu0 %v822
    %v824 = vand.u32 %v53, 4294901760
    %825 = vmatpush1.msra.mxu0 %v824
    %v826 = vand.u32 %v56, 4294901760
    %827 = vmatprep.subr.mxu0 %v826
    %v828 = vand.u32 %v55, 4294901760
    %829 = vmatpush1.msra.mxu0 %v828
    %v830 = vand.u32 %v58, 4294901760
    %831 = vmatprep.subr.mxu0 %v830
    %v832 = vand.u32 %v57, 4294901760
    %833 = vmatpush1.msra.mxu0 %v832
    %v834 = vand.u32 %v60, 4294901760
    %835 = vmatprep.subr.mxu0 %v834
    %v836 = vand.u32 %v59, 4294901760
    %837 = vmatpush1.msra.mxu0 %v836
    %v838 = vand.u32 %v62, 4294901760
    %839 = vmatprep.subr.mxu0 %v838
    %v840 = vand.u32 %v61, 4294901760
    %841 = vmatpush1.msra.mxu0 %v840
    %v842 = vand.u32 %v64, 4294901760
    %843 = vmatprep.subr.mxu0 %v842
    %v844 = vand.u32 %v63, 4294901760
    %845 = vmatpush1.msra.mxu0 %v844
    %v846 = vand.u32 %v66, 4294901760
    %847 = vmatprep.subr.mxu0 %v846
    %v848 = vand.u32 %v65, 4294901760
    %849 = vmatpush1.msra.mxu0 %v848
    %v850 = vand.u32 %v68, 4294901760
    %851 = vmatprep.subr.mxu0 %v850
    %v852 = vand.u32 %v67, 4294901760
    %853 = vmatpush1.msra.mxu0 %v852
    %v854 = vand.u32 %v70, 4294901760
    %855 = vmatprep.subr.mxu0 %v854
    %v856 = vand.u32 %v69, 4294901760
    %857 = vmatpush1.msra.mxu0 %v856
    %v858 = vand.u32 %v72, 4294901760
    %859 = vmatprep.subr.mxu0 %v858
    %v860 = vand.u32 %v71, 4294901760
    %861 = vmatpush1.msra.mxu0 %v860
    %862 = vmatprep.subr.mxu0 0.0
    %863 = vmatpush1.msra.mxu0 0.0
    %864 = vmatprep.subr.mxu0 0.0
    %865 = vmatpush1.msra.mxu0 0.0
    %866 = vmatprep.subr.mxu0 0.0
    %867 = vmatpush1.msra.mxu0 0.0
    %868 = vmatprep.subr.mxu0 0.0
    %869 = vmatpush1.msra.mxu0 0.0
    %870 = vmatprep.subr.mxu0 0.0
    %871 = vmatpush1.msra.mxu0 0.0
    %872 = vmatprep.subr.mxu0 0.0
    %873 = vmatpush1.msra.mxu0 0.0
    %874 = vmatprep.subr.mxu0 0.0
    %875 = vmatpush1.msra.mxu0 0.0
    %876 = vmatprep.subr.mxu0 0.0
    %877 = vmatpush1.msra.mxu0 0.0
    %878 = vmatprep.subr.mxu0 0.0
    %879 = vmatpush1.msra.mxu0 0.0
    %880 = vmatprep.subr.mxu0 0.0
    %881 = vmatpush1.msra.mxu0 0.0
    %882 = vmatprep.subr.mxu0 0.0
    %883 = vmatpush1.msra.mxu0 0.0
    %884 = vmatprep.subr.mxu0 0.0
    %885 = vmatpush1.msra.mxu0 0.0
    %886 = vmatprep.subr.mxu0 0.0
    %887 = vmatpush1.msra.mxu0 0.0
    %888 = vmatprep.subr.mxu0 0.0
    %889 = vmatpush1.msra.mxu0 0.0
    %890 = vmatprep.subr.mxu0 0.0
    %891 = vmatpush1.msra.mxu0 0.0
    %892 = vmatprep.subr.mxu0 0.0
    %893 = vmatpush1.msra.mxu0 0.0
    %894 = vmatprep.subr.mxu0 0.0
    %895 = vmatpush1.msra.mxu0 0.0
    %896 = vmatprep.subr.mxu0 0.0
    %897 = vmatpush1.msra.mxu0 0.0
    %898 = vmatprep.subr.mxu0 0.0
    %899 = vmatpush1.msra.mxu0 0.0
    %900 = vmatprep.subr.mxu0 0.0
    %901 = vmatpush1.msra.mxu0 0.0
    %902 = vmatprep.mubr.f32.mxu0 0.0
    %v903 = vand.u32 %v112, 4294901760
    %904 = vmatmul.mubr.f32.gmra.mrb[0].mxu0 %v903
    %v905 = vpop.f32.mrb[0].mxu0
    %v906 = vadd.f32 %v803, %v905
    %v907 = vpop.f32.mrb[0].mxu0
    %v908 = vadd.f32 %v805, %v907
    %909 = vmatprep.mubr.f32.mxu0 0.0
    %v910 = vand.u32 %v115, 4294901760
    %911 = vmatmul.mubr.f32.gmra.mrb[0].mxu0 %v910
    %v912 = vpop.f32.mrb[0].mxu0
    %v913 = vadd.f32 %v810, %v912
    %v914 = vpop.f32.mrb[0].mxu0
    %v915 = vadd.f32 %v812, %v914
    %916 = vdwg.mxu0
    %v918 = vlaneseq
    %v919 = vshrl.u32 %v918, 7
    %v920 = vsub.s32 0, %v919
    %v921 = vrot.slane %v98, %v920
    %v922 = vlaneseq
    %v923 = vshrl.u32 %v922, 7
    %v924 = vsub.s32 1, %v923
    %v925 = vrot.slane %v98, %v924
    %v928 = vand.u32 %v74, 4294901760
    %929 = vmatprep.subr.mxu0 %v928
    %v930 = vand.u32 %v73, 4294901760
    %931 = vmatpush1.msra.mxu0 %v930
    %v932 = vand.u32 %v76, 4294901760
    %933 = vmatprep.subr.mxu0 %v932
    %v934 = vand.u32 %v75, 4294901760
    %935 = vmatpush1.msra.mxu0 %v934
    %v936 = vand.u32 %v78, 4294901760
    %937 = vmatprep.subr.mxu0 %v936
    %v938 = vand.u32 %v77, 4294901760
    %939 = vmatpush1.msra.mxu0 %v938
    %v940 = vand.u32 %v80, 4294901760
    %941 = vmatprep.subr.mxu0 %v940
    %v942 = vand.u32 %v79, 4294901760
    %943 = vmatpush1.msra.mxu0 %v942
    %v944 = vand.u32 %v82, 4294901760
    %945 = vmatprep.subr.mxu0 %v944
    %v946 = vand.u32 %v81, 4294901760
    %947 = vmatpush1.msra.mxu0 %v946
    %v948 = vand.u32 %v84, 4294901760
    %949 = vmatprep.subr.mxu0 %v948
    %v950 = vand.u32 %v83, 4294901760
    %951 = vmatpush1.msra.mxu0 %v950
    %v952 = vand.u32 %v86, 4294901760
    %953 = vmatprep.subr.mxu0 %v952
    %v954 = vand.u32 %v85, 4294901760
    %955 = vmatpush1.msra.mxu0 %v954
    %v956 = vand.u32 %v88, 4294901760
    %957 = vmatprep.subr.mxu0 %v956
    %v958 = vand.u32 %v87, 4294901760
    %959 = vmatpush1.msra.mxu0 %v958
    %v960 = vand.u32 %v90, 4294901760
    %961 = vmatprep.subr.mxu0 %v960
    %v962 = vand.u32 %v89, 4294901760
    %963 = vmatpush1.msra.mxu0 %v962
    %v964 = vand.u32 %v92, 4294901760
    %965 = vmatprep.subr.mxu0 %v964
    %v966 = vand.u32 %v91, 4294901760
    %967 = vmatpush1.msra.mxu0 %v966
    %v968 = vand.u32 %v94, 4294901760
    %969 = vmatprep.subr.mxu0 %v968
    %v970 = vand.u32 %v93, 4294901760
    %971 = vmatpush1.msra.mxu0 %v970
    %v972 = vand.u32 %v96, 4294901760
    %973 = vmatprep.subr.mxu0 %v972
    %v974 = vand.u32 %v95, 4294901760
    %975 = vmatpush1.msra.mxu0 %v974
    %976 = vmatprep.subr.mxu0 0.0
    %977 = vmatpush1.msra.mxu0 0.0
    %978 = vmatprep.subr.mxu0 0.0
    %979 = vmatpush1.msra.mxu0 0.0
    %980 = vmatprep.subr.mxu0 0.0
    %981 = vmatpush1.msra.mxu0 0.0
    %982 = vmatprep.subr.mxu0 0.0
    %983 = vmatpush1.msra.mxu0 0.0
    %984 = vmatprep.subr.mxu0 0.0
    %985 = vmatpush1.msra.mxu0 0.0
    %986 = vmatprep.subr.mxu0 0.0
    %987 = vmatpush1.msra.mxu0 0.0
    %988 = vmatprep.subr.mxu0 0.0
    %989 = vmatpush1.msra.mxu0 0.0
    %990 = vmatprep.subr.mxu0 0.0
    %991 = vmatpush1.msra.mxu0 0.0
    %992 = vmatprep.subr.mxu0 0.0
    %993 = vmatpush1.msra.mxu0 0.0
    %994 = vmatprep.subr.mxu0 0.0
    %995 = vmatpush1.msra.mxu0 0.0
    %996 = vmatprep.subr.mxu0 0.0
    %997 = vmatpush1.msra.mxu0 0.0
    %998 = vmatprep.subr.mxu0 0.0
    %999 = vmatpush1.msra.mxu0 0.0
    %1000 = vmatprep.subr.mxu0 0.0
    %1001 = vmatpush1.msra.mxu0 0.0
    %1002 = vmatprep.subr.mxu0 0.0
    %1003 = vmatpush1.msra.mxu0 0.0
    %1004 = vmatprep.subr.mxu0 0.0
    %1005 = vmatpush1.msra.mxu0 0.0
    %1006 = vmatprep.subr.mxu0 0.0
    %1007 = vmatpush1.msra.mxu0 0.0
    %1008 = vmatprep.subr.mxu0 0.0
    %1009 = vmatpush1.msra.mxu0 0.0
    %1010 = vmatprep.subr.mxu0 0.0
    %1011 = vmatpush1.msra.mxu0 0.0
    %1012 = vmatprep.subr.mxu0 0.0
    %1013 = vmatpush1.msra.mxu0 0.0
    %1014 = vmatprep.subr.mxu0 0.0
    %1015 = vmatpush1.msra.mxu0 0.0
    %1016 = vmatprep.mubr.f32.mxu0 0.0
    %v1017 = vand.u32 %v112, 4294901760
    %v1018 = vsub.f32 %v112, %v1017
    %v1019 = vand.u32 %v1018, 4294901760
    %v1020 = vsub.f32 %v1018, %v1019
    %v1021 = vand.u32 %v1020, 4294901760
    %1022 = vmatmul.mubr.f32.gmra.mrb[0].mxu0 %v1021
    %v1023 = vpop.f32.mrb[0].mxu0
    %v1024 = vadd.f32 %v921, %v1023
    %v1025 = vpop.f32.mrb[0].mxu0
    %v1026 = vadd.f32 %v925, %v1025
    %1027 = vmatprep.mubr.f32.mxu0 0.0
    %v1028 = vand.u32 %v115, 4294901760
    %v1029 = vsub.f32 %v115, %v1028
    %v1030 = vand.u32 %v1029, 4294901760
    %v1031 = vsub.f32 %v1029, %v1030
    %v1032 = vand.u32 %v1031, 4294901760
    %1033 = vmatmul.mubr.f32.gmra.mrb[0].mxu0 %v1032
    %v1034 = vpop.f32.mrb[0].mxu0
    %v1035 = vadd.f32 %v921, %v1034
    %v1036 = vpop.f32.mrb[0].mxu0
    %v1037 = vadd.f32 %v925, %v1036
    %1038 = vdwg.mxu0
    %v1039 = vand.u32 %v74, 4294901760
    %v1040 = vsub.f32 %v74, %v1039
    %v1041 = vand.u32 %v1040, 4294901760
    %v1042 = vsub.f32 %v1040, %v1041
    %v1043 = vand.u32 %v1042, 4294901760
    %1044 = vmatprep.subr.mxu0 %v1043
    %v1045 = vand.u32 %v73, 4294901760
    %v1046 = vsub.f32 %v73, %v1045
    %v1047 = vand.u32 %v1046, 4294901760
    %v1048 = vsub.f32 %v1046, %v1047
    %v1049 = vand.u32 %v1048, 4294901760
    %1050 = vmatpush1.msra.mxu0 %v1049
    %v1051 = vand.u32 %v76, 4294901760
    %v1052 = vsub.f32 %v76, %v1051
    %v1053 = vand.u32 %v1052, 4294901760
    %v1054 = vsub.f32 %v1052, %v1053
    %v1055 = vand.u32 %v1054, 4294901760
    %1056 = vmatprep.subr.mxu0 %v1055
    %v1057 = vand.u32 %v75, 4294901760
    %v1058 = vsub.f32 %v75, %v1057
    %v1059 = vand.u32 %v1058, 4294901760
    %v1060 = vsub.f32 %v1058, %v1059
    %v1061 = vand.u32 %v1060, 4294901760
    %1062 = vmatpush1.msra.mxu0 %v1061
    %v1063 = vand.u32 %v78, 4294901760
    %v1064 = vsub.f32 %v78, %v1063
    %v1065 = vand.u32 %v1064, 4294901760
    %v1066 = vsub.f32 %v1064, %v1065
    %v1067 = vand.u32 %v1066, 4294901760
    %1068 = vmatprep.subr.mxu0 %v1067
    %v1069 = vand.u32 %v77, 4294901760
    %v1070 = vsub.f32 %v77, %v1069
    %v1071 = vand.u32 %v1070, 4294901760
    %v1072 = vsub.f32 %v1070, %v1071
    %v1073 = vand.u32 %v1072, 4294901760
    %1074 = vmatpush1.msra.mxu0 %v1073
    %v1075 = vand.u32 %v80, 4294901760
    %v1076 = vsub.f32 %v80, %v1075
    %v1077 = vand.u32 %v1076, 4294901760
    %v1078 = vsub.f32 %v1076, %v1077
    %v1079 = vand.u32 %v1078, 4294901760
    %1080 = vmatprep.subr.mxu0 %v1079
    %v1081 = vand.u32 %v79, 4294901760
    %v1082 = vsub.f32 %v79, %v1081
    %v1083 = vand.u32 %v1082, 4294901760
    %v1084 = vsub.f32 %v1082, %v1083
    %v1085 = vand.u32 %v1084, 4294901760
    %1086 = vmatpush1.msra.mxu0 %v1085
    %v1087 = vand.u32 %v82, 4294901760
    %v1088 = vsub.f32 %v82, %v1087
    %v1089 = vand.u32 %v1088, 4294901760
    %v1090 = vsub.f32 %v1088, %v1089
    %v1091 = vand.u32 %v1090, 4294901760
    %1092 = vmatprep.subr.mxu0 %v1091
    %v1093 = vand.u32 %v81, 4294901760
    %v1094 = vsub.f32 %v81, %v1093
    %v1095 = vand.u32 %v1094, 4294901760
    %v1096 = vsub.f32 %v1094, %v1095
    %v1097 = vand.u32 %v1096, 4294901760
    %1098 = vmatpush1.msra.mxu0 %v1097
    %v1099 = vand.u32 %v84, 4294901760
    %v1100 = vsub.f32 %v84, %v1099
    %v1101 = vand.u32 %v1100, 4294901760
    %v1102 = vsub.f32 %v1100, %v1101
    %v1103 = vand.u32 %v1102, 4294901760
    %1104 = vmatprep.subr.mxu0 %v1103
    %v1105 = vand.u32 %v83, 4294901760
    %v1106 = vsub.f32 %v83, %v1105
    %v1107 = vand.u32 %v1106, 4294901760
    %v1108 = vsub.f32 %v1106, %v1107
    %v1109 = vand.u32 %v1108, 4294901760
    %1110 = vmatpush1.msra.mxu0 %v1109
    %v1111 = vand.u32 %v86, 4294901760
    %v1112 = vsub.f32 %v86, %v1111
    %v1113 = vand.u32 %v1112, 4294901760
    %v1114 = vsub.f32 %v1112, %v1113
    %v1115 = vand.u32 %v1114, 4294901760
    %1116 = vmatprep.subr.mxu0 %v1115
    %v1117 = vand.u32 %v85, 4294901760
    %v1118 = vsub.f32 %v85, %v1117
    %v1119 = vand.u32 %v1118, 4294901760
    %v1120 = vsub.f32 %v1118, %v1119
    %v1121 = vand.u32 %v1120, 4294901760
    %1122 = vmatpush1.msra.mxu0 %v1121
    %v1123 = vand.u32 %v88, 4294901760
    %v1124 = vsub.f32 %v88, %v1123
    %v1125 = vand.u32 %v1124, 4294901760
    %v1126 = vsub.f32 %v1124, %v1125
    %v1127 = vand.u32 %v1126, 4294901760
    %1128 = vmatprep.subr.mxu0 %v1127
    %v1129 = vand.u32 %v87, 4294901760
    %v1130 = vsub.f32 %v87, %v1129
    %v1131 = vand.u32 %v1130, 4294901760
    %v1132 = vsub.f32 %v1130, %v1131
    %v1133 = vand.u32 %v1132, 4294901760
    %1134 = vmatpush1.msra.mxu0 %v1133
    %v1135 = vand.u32 %v90, 4294901760
    %v1136 = vsub.f32 %v90, %v1135
    %v1137 = vand.u32 %v1136, 4294901760
    %v1138 = vsub.f32 %v1136, %v1137
    %v1139 = vand.u32 %v1138, 4294901760
    %1140 = vmatprep.subr.mxu0 %v1139
    %v1141 = vand.u32 %v89, 4294901760
    %v1142 = vsub.f32 %v89, %v1141
    %v1143 = vand.u32 %v1142, 4294901760
    %v1144 = vsub.f32 %v1142, %v1143
    %v1145 = vand.u32 %v1144, 4294901760
    %1146 = vmatpush1.msra.mxu0 %v1145
    %v1147 = vand.u32 %v92, 4294901760
    %v1148 = vsub.f32 %v92, %v1147
    %v1149 = vand.u32 %v1148, 4294901760
    %v1150 = vsub.f32 %v1148, %v1149
    %v1151 = vand.u32 %v1150, 4294901760
    %1152 = vmatprep.subr.mxu0 %v1151
    %v1153 = vand.u32 %v91, 4294901760
    %v1154 = vsub.f32 %v91, %v1153
    %v1155 = vand.u32 %v1154, 4294901760
    %v1156 = vsub.f32 %v1154, %v1155
    %v1157 = vand.u32 %v1156, 4294901760
    %1158 = vmatpush1.msra.mxu0 %v1157
    %v1159 = vand.u32 %v94, 4294901760
    %v1160 = vsub.f32 %v94, %v1159
    %v1161 = vand.u32 %v1160, 4294901760
    %v1162 = vsub.f32 %v1160, %v1161
    %v1163 = vand.u32 %v1162, 4294901760
    %1164 = vmatprep.subr.mxu0 %v1163
    %v1165 = vand.u32 %v93, 4294901760
    %v1166 = vsub.f32 %v93, %v1165
    %v1167 = vand.u32 %v1166, 4294901760
    %v1168 = vsub.f32 %v1166, %v1167
    %v1169 = vand.u32 %v1168, 4294901760
    %1170 = vmatpush1.msra.mxu0 %v1169
    %v1171 = vand.u32 %v96, 4294901760
    %v1172 = vsub.f32 %v96, %v1171
    %v1173 = vand.u32 %v1172, 4294901760
    %v1174 = vsub.f32 %v1172, %v1173
    %v1175 = vand.u32 %v1174, 4294901760
    %1176 = vmatprep.subr.mxu0 %v1175
    %v1177 = vand.u32 %v95, 4294901760
    %v1178 = vsub.f32 %v95, %v1177
    %v1179 = vand.u32 %v1178, 4294901760
    %v1180 = vsub.f32 %v1178, %v1179
    %v1181 = vand.u32 %v1180, 4294901760
    %1182 = vmatpush1.msra.mxu0 %v1181
    %1183 = vmatprep.subr.mxu0 0.0
    %1184 = vmatpush1.msra.mxu0 0.0
    %1185 = vmatprep.subr.mxu0 0.0
    %1186 = vmatpush1.msra.mxu0 0.0
    %1187 = vmatprep.subr.mxu0 0.0
    %1188 = vmatpush1.msra.mxu0 0.0
    %1189 = vmatprep.subr.mxu0 0.0
    %1190 = vmatpush1.msra.mxu0 0.0
    %1191 = vmatprep.subr.mxu0 0.0
    %1192 = vmatpush1.msra.mxu0 0.0
    %1193 = vmatprep.subr.mxu0 0.0
    %1194 = vmatpush1.msra.mxu0 0.0
    %1195 = vmatprep.subr.mxu0 0.0
    %1196 = vmatpush1.msra.mxu0 0.0
    %1197 = vmatprep.subr.mxu0 0.0
    %1198 = vmatpush1.msra.mxu0 0.0
    %1199 = vmatprep.subr.mxu0 0.0
    %1200 = vmatpush1.msra.mxu0 0.0
    %1201 = vmatprep.subr.mxu0 0.0
    %1202 = vmatpush1.msra.mxu0 0.0
    %1203 = vmatprep.subr.mxu0 0.0
    %1204 = vmatpush1.msra.mxu0 0.0
    %1205 = vmatprep.subr.mxu0 0.0
    %1206 = vmatpush1.msra.mxu0 0.0
    %1207 = vmatprep.subr.mxu0 0.0
    %1208 = vmatpush1.msra.mxu0 0.0
    %1209 = vmatprep.subr.mxu0 0.0
    %1210 = vmatpush1.msra.mxu0 0.0
    %1211 = vmatprep.subr.mxu0 0.0
    %1212 = vmatpush1.msra.mxu0 0.0
    %1213 = vmatprep.subr.mxu0 0.0
    %1214 = vmatpush1.msra.mxu0 0.0
    %1215 = vmatprep.subr.mxu0 0.0
    %1216 = vmatpush1.msra.mxu0 0.0
    %1217 = vmatprep.subr.mxu0 0.0
    %1218 = vmatpush1.msra.mxu0 0.0
    %1219 = vmatprep.subr.mxu0 0.0
    %1220 = vmatpush1.msra.mxu0 0.0
    %1221 = vmatprep.subr.mxu0 0.0
    %1222 = vmatpush1.msra.mxu0 0.0
    %1223 = vmatprep.mubr.f32.mxu0 0.0
    %v1224 = vand.u32 %v112, 4294901760
    %1225 = vmatmul.mubr.f32.gmra.mrb[0].mxu0 %v1224
    %v1226 = vpop.f32.mrb[0].mxu0
    %v1227 = vadd.f32 %v1024, %v1226
    %v1228 = vpop.f32.mrb[0].mxu0
    %v1229 = vadd.f32 %v1026, %v1228
    %1230 = vmatprep.mubr.f32.mxu0 0.0
    %v1231 = vand.u32 %v115, 4294901760
    %1232 = vmatmul.mubr.f32.gmra.mrb[0].mxu0 %v1231
    %v1233 = vpop.f32.mrb[0].mxu0
    %v1234 = vadd.f32 %v1035, %v1233
    %v1235 = vpop.f32.mrb[0].mxu0
    %v1236 = vadd.f32 %v1037, %v1235
    %1237 = vdwg.mxu0
    %v1238 = vand.u32 %v74, 4294901760
    %v1239 = vsub.f32 %v74, %v1238
    %1240 = vmatprep.subr.mxu0 %v1239
    %v1241 = vand.u32 %v73, 4294901760
    %v1242 = vsub.f32 %v73, %v1241
    %1243 = vmatpush1.msra.mxu0 %v1242
    %v1244 = vand.u32 %v76, 4294901760
    %v1245 = vsub.f32 %v76, %v1244
    %1246 = vmatprep.subr.mxu0 %v1245
    %v1247 = vand.u32 %v75, 4294901760
    %v1248 = vsub.f32 %v75, %v1247
    %1249 = vmatpush1.msra.mxu0 %v1248
    %v1250 = vand.u32 %v78, 4294901760
    %v1251 = vsub.f32 %v78, %v1250
    %1252 = vmatprep.subr.mxu0 %v1251
    %v1253 = vand.u32 %v77, 4294901760
    %v1254 = vsub.f32 %v77, %v1253
    %1255 = vmatpush1.msra.mxu0 %v1254
    %v1256 = vand.u32 %v80, 4294901760
    %v1257 = vsub.f32 %v80, %v1256
    %1258 = vmatprep.subr.mxu0 %v1257
    %v1259 = vand.u32 %v79, 4294901760
    %v1260 = vsub.f32 %v79, %v1259
    %1261 = vmatpush1.msra.mxu0 %v1260
    %v1262 = vand.u32 %v82, 4294901760
    %v1263 = vsub.f32 %v82, %v1262
    %1264 = vmatprep.subr.mxu0 %v1263
    %v1265 = vand.u32 %v81, 4294901760
    %v1266 = vsub.f32 %v81, %v1265
    %1267 = vmatpush1.msra.mxu0 %v1266
    %v1268 = vand.u32 %v84, 4294901760
    %v1269 = vsub.f32 %v84, %v1268
    %1270 = vmatprep.subr.mxu0 %v1269
    %v1271 = vand.u32 %v83, 4294901760
    %v1272 = vsub.f32 %v83, %v1271
    %1273 = vmatpush1.msra.mxu0 %v1272
    %v1274 = vand.u32 %v86, 4294901760
    %v1275 = vsub.f32 %v86, %v1274
    %1276 = vmatprep.subr.mxu0 %v1275
    %v1277 = vand.u32 %v85, 4294901760
    %v1278 = vsub.f32 %v85, %v1277
    %1279 = vmatpush1.msra.mxu0 %v1278
    %v1280 = vand.u32 %v88, 4294901760
    %v1281 = vsub.f32 %v88, %v1280
    %1282 = vmatprep.subr.mxu0 %v1281
    %v1283 = vand.u32 %v87, 4294901760
    %v1284 = vsub.f32 %v87, %v1283
    %1285 = vmatpush1.msra.mxu0 %v1284
    %v1286 = vand.u32 %v90, 4294901760
    %v1287 = vsub.f32 %v90, %v1286
    %1288 = vmatprep.subr.mxu0 %v1287
    %v1289 = vand.u32 %v89, 4294901760
    %v1290 = vsub.f32 %v89, %v1289
    %1291 = vmatpush1.msra.mxu0 %v1290
    %v1292 = vand.u32 %v92, 4294901760
    %v1293 = vsub.f32 %v92, %v1292
    %1294 = vmatprep.subr.mxu0 %v1293
    %v1295 = vand.u32 %v91, 4294901760
    %v1296 = vsub.f32 %v91, %v1295
    %1297 = vmatpush1.msra.mxu0 %v1296
    %v1298 = vand.u32 %v94, 4294901760
    %v1299 = vsub.f32 %v94, %v1298
    %1300 = vmatprep.subr.mxu0 %v1299
    %v1301 = vand.u32 %v93, 4294901760
    %v1302 = vsub.f32 %v93, %v1301
    %1303 = vmatpush1.msra.mxu0 %v1302
    %v1304 = vand.u32 %v96, 4294901760
    %v1305 = vsub.f32 %v96, %v1304
    %1306 = vmatprep.subr.mxu0 %v1305
    %v1307 = vand.u32 %v95, 4294901760
    %v1308 = vsub.f32 %v95, %v1307
    %1309 = vmatpush1.msra.mxu0 %v1308
    %1310 = vmatprep.subr.mxu0 0.0
    %1311 = vmatpush1.msra.mxu0 0.0
    %1312 = vmatprep.subr.mxu0 0.0
    %1313 = vmatpush1.msra.mxu0 0.0
    %1314 = vmatprep.subr.mxu0 0.0
    %1315 = vmatpush1.msra.mxu0 0.0
    %1316 = vmatprep.subr.mxu0 0.0
    %1317 = vmatpush1.msra.mxu0 0.0
    %1318 = vmatprep.subr.mxu0 0.0
    %1319 = vmatpush1.msra.mxu0 0.0
    %1320 = vmatprep.subr.mxu0 0.0
    %1321 = vmatpush1.msra.mxu0 0.0
    %1322 = vmatprep.subr.mxu0 0.0
    %1323 = vmatpush1.msra.mxu0 0.0
    %1324 = vmatprep.subr.mxu0 0.0
    %1325 = vmatpush1.msra.mxu0 0.0
    %1326 = vmatprep.subr.mxu0 0.0
    %1327 = vmatpush1.msra.mxu0 0.0
    %1328 = vmatprep.subr.mxu0 0.0
    %1329 = vmatpush1.msra.mxu0 0.0
    %1330 = vmatprep.subr.mxu0 0.0
    %1331 = vmatpush1.msra.mxu0 0.0
    %1332 = vmatprep.subr.mxu0 0.0
    %1333 = vmatpush1.msra.mxu0 0.0
    %1334 = vmatprep.subr.mxu0 0.0
    %1335 = vmatpush1.msra.mxu0 0.0
    %1336 = vmatprep.subr.mxu0 0.0
    %1337 = vmatpush1.msra.mxu0 0.0
    %1338 = vmatprep.subr.mxu0 0.0
    %1339 = vmatpush1.msra.mxu0 0.0
    %1340 = vmatprep.subr.mxu0 0.0
    %1341 = vmatpush1.msra.mxu0 0.0
    %1342 = vmatprep.subr.mxu0 0.0
    %1343 = vmatpush1.msra.mxu0 0.0
    %1344 = vmatprep.subr.mxu0 0.0
    %1345 = vmatpush1.msra.mxu0 0.0
    %1346 = vmatprep.subr.mxu0 0.0
    %1347 = vmatpush1.msra.mxu0 0.0
    %1348 = vmatprep.subr.mxu0 0.0
    %1349 = vmatpush1.msra.mxu0 0.0
    %1350 = vmatprep.mubr.f32.mxu0 0.0
    %v1351 = vand.u32 %v112, 4294901760
    %v1352 = vsub.f32 %v112, %v1351
    %1353 = vmatmul.mubr.f32.gmra.mrb[0].mxu0 %v1352
    %v1354 = vpop.f32.mrb[0].mxu0
    %v1355 = vadd.f32 %v1227, %v1354
    %v1356 = vpop.f32.mrb[0].mxu0
    %v1357 = vadd.f32 %v1229, %v1356
    %1358 = vmatprep.mubr.f32.mxu0 0.0
    %v1359 = vand.u32 %v115, 4294901760
    %v1360 = vsub.f32 %v115, %v1359
    %1361 = vmatmul.mubr.f32.gmra.mrb[0].mxu0 %v1360
    %v1362 = vpop.f32.mrb[0].mxu0
    %v1363 = vadd.f32 %v1234, %v1362
    %v1364 = vpop.f32.mrb[0].mxu0
    %v1365 = vadd.f32 %v1236, %v1364
    %1366 = vdwg.mxu0
    %v1367 = vand.u32 %v74, 4294901760
    %1368 = vmatprep.subr.mxu0 %v1367
    %v1369 = vand.u32 %v73, 4294901760
    %1370 = vmatpush1.msra.mxu0 %v1369
    %v1371 = vand.u32 %v76, 4294901760
    %1372 = vmatprep.subr.mxu0 %v1371
    %v1373 = vand.u32 %v75, 4294901760
    %1374 = vmatpush1.msra.mxu0 %v1373
    %v1375 = vand.u32 %v78, 4294901760
    %1376 = vmatprep.subr.mxu0 %v1375
    %v1377 = vand.u32 %v77, 4294901760
    %1378 = vmatpush1.msra.mxu0 %v1377
    %v1379 = vand.u32 %v80, 4294901760
    %1380 = vmatprep.subr.mxu0 %v1379
    %v1381 = vand.u32 %v79, 4294901760
    %1382 = vmatpush1.msra.mxu0 %v1381
    %v1383 = vand.u32 %v82, 4294901760
    %1384 = vmatprep.subr.mxu0 %v1383
    %v1385 = vand.u32 %v81, 4294901760
    %1386 = vmatpush1.msra.mxu0 %v1385
    %v1387 = vand.u32 %v84, 4294901760
    %1388 = vmatprep.subr.mxu0 %v1387
    %v1389 = vand.u32 %v83, 4294901760
    %1390 = vmatpush1.msra.mxu0 %v1389
    %v1391 = vand.u32 %v86, 4294901760
    %1392 = vmatprep.subr.mxu0 %v1391
    %v1393 = vand.u32 %v85, 4294901760
    %1394 = vmatpush1.msra.mxu0 %v1393
    %v1395 = vand.u32 %v88, 4294901760
    %1396 = vmatprep.subr.mxu0 %v1395
    %v1397 = vand.u32 %v87, 4294901760
    %1398 = vmatpush1.msra.mxu0 %v1397
    %v1399 = vand.u32 %v90, 4294901760
    %1400 = vmatprep.subr.mxu0 %v1399
    %v1401 = vand.u32 %v89, 4294901760
    %1402 = vmatpush1.msra.mxu0 %v1401
    %v1403 = vand.u32 %v92, 4294901760
    %1404 = vmatprep.subr.mxu0 %v1403
    %v1405 = vand.u32 %v91, 4294901760
    %1406 = vmatpush1.msra.mxu0 %v1405
    %v1407 = vand.u32 %v94, 4294901760
    %1408 = vmatprep.subr.mxu0 %v1407
    %v1409 = vand.u32 %v93, 4294901760
    %1410 = vmatpush1.msra.mxu0 %v1409
    %v1411 = vand.u32 %v96, 4294901760
    %1412 = vmatprep.subr.mxu0 %v1411
    %v1413 = vand.u32 %v95, 4294901760
    %1414 = vmatpush1.msra.mxu0 %v1413
    %1415 = vmatprep.subr.mxu0 0.0
    %1416 = vmatpush1.msra.mxu0 0.0
    %1417 = vmatprep.subr.mxu0 0.0
    %1418 = vmatpush1.msra.mxu0 0.0
    %1419 = vmatprep.subr.mxu0 0.0
    %1420 = vmatpush1.msra.mxu0 0.0
    %1421 = vmatprep.subr.mxu0 0.0
    %1422 = vmatpush1.msra.mxu0 0.0
    %1423 = vmatprep.subr.mxu0 0.0
    %1424 = vmatpush1.msra.mxu0 0.0
    %1425 = vmatprep.subr.mxu0 0.0
    %1426 = vmatpush1.msra.mxu0 0.0
    %1427 = vmatprep.subr.mxu0 0.0
    %1428 = vmatpush1.msra.mxu0 0.0
    %1429 = vmatprep.subr.mxu0 0.0
    %1430 = vmatpush1.msra.mxu0 0.0
    %1431 = vmatprep.subr.mxu0 0.0
    %1432 = vmatpush1.msra.mxu0 0.0
    %1433 = vmatprep.subr.mxu0 0.0
    %1434 = vmatpush1.msra.mxu0 0.0
    %1435 = vmatprep.subr.mxu0 0.0
    %1436 = vmatpush1.msra.mxu0 0.0
    %1437 = vmatprep.subr.mxu0 0.0
    %1438 = vmatpush1.msra.mxu0 0.0
    %1439 = vmatprep.subr.mxu0 0.0
    %1440 = vmatpush1.msra.mxu0 0.0
    %1441 = vmatprep.subr.mxu0 0.0
    %1442 = vmatpush1.msra.mxu0 0.0
    %1443 = vmatprep.subr.mxu0 0.0
    %1444 = vmatpush1.msra.mxu0 0.0
    %1445 = vmatprep.subr.mxu0 0.0
    %1446 = vmatpush1.msra.mxu0 0.0
    %1447 = vmatprep.subr.mxu0 0.0
    %1448 = vmatpush1.msra.mxu0 0.0
    %1449 = vmatprep.subr.mxu0 0.0
    %1450 = vmatpush1.msra.mxu0 0.0
    %1451 = vmatprep.subr.mxu0 0.0
    %1452 = vmatpush1.msra.mxu0 0.0
    %1453 = vmatprep.subr.mxu0 0.0
    %1454 = vmatpush1.msra.mxu0 0.0
    %1455 = vmatprep.mubr.f32.mxu0 0.0
    %v1456 = vand.u32 %v112, 4294901760
    %v1457 = vsub.f32 %v112, %v1456
    %v1458 = vand.u32 %v1457, 4294901760
    %1459 = vmatmul.mubr.f32.gmra.mrb[0].mxu0 %v1458
    %v1460 = vpop.f32.mrb[0].mxu0
    %v1461 = vadd.f32 %v1355, %v1460
    %v1462 = vpop.f32.mrb[0].mxu0
    %v1463 = vadd.f32 %v1357, %v1462
    %1464 = vmatprep.mubr.f32.mxu0 0.0
    %v1465 = vand.u32 %v115, 4294901760
    %v1466 = vsub.f32 %v115, %v1465
    %v1467 = vand.u32 %v1466, 4294901760
    %1468 = vmatmul.mubr.f32.gmra.mrb[0].mxu0 %v1467
    %v1469 = vpop.f32.mrb[0].mxu0
    %v1470 = vadd.f32 %v1363, %v1469
    %v1471 = vpop.f32.mrb[0].mxu0
    %v1472 = vadd.f32 %v1365, %v1471
    %1473 = vdwg.mxu0
    %v1474 = vand.u32 %v74, 4294901760
    %v1475 = vsub.f32 %v74, %v1474
    %v1476 = vand.u32 %v1475, 4294901760
    %1477 = vmatprep.subr.mxu0 %v1476
    %v1478 = vand.u32 %v73, 4294901760
    %v1479 = vsub.f32 %v73, %v1478
    %v1480 = vand.u32 %v1479, 4294901760
    %1481 = vmatpush1.msra.mxu0 %v1480
    %v1482 = vand.u32 %v76, 4294901760
    %v1483 = vsub.f32 %v76, %v1482
    %v1484 = vand.u32 %v1483, 4294901760
    %1485 = vmatprep.subr.mxu0 %v1484
    %v1486 = vand.u32 %v75, 4294901760
    %v1487 = vsub.f32 %v75, %v1486
    %v1488 = vand.u32 %v1487, 4294901760
    %1489 = vmatpush1.msra.mxu0 %v1488
    %v1490 = vand.u32 %v78, 4294901760
    %v1491 = vsub.f32 %v78, %v1490
    %v1492 = vand.u32 %v1491, 4294901760
    %1493 = vmatprep.subr.mxu0 %v1492
    %v1494 = vand.u32 %v77, 4294901760
    %v1495 = vsub.f32 %v77, %v1494
    %v1496 = vand.u32 %v1495, 4294901760
    %1497 = vmatpush1.msra.mxu0 %v1496
    %v1498 = vand.u32 %v80, 4294901760
    %v1499 = vsub.f32 %v80, %v1498
    %v1500 = vand.u32 %v1499, 4294901760
    %1501 = vmatprep.subr.mxu0 %v1500
    %v1502 = vand.u32 %v79, 4294901760
    %v1503 = vsub.f32 %v79, %v1502
    %v1504 = vand.u32 %v1503, 4294901760
    %1505 = vmatpush1.msra.mxu0 %v1504
    %v1506 = vand.u32 %v82, 4294901760
    %v1507 = vsub.f32 %v82, %v1506
    %v1508 = vand.u32 %v1507, 4294901760
    %1509 = vmatprep.subr.mxu0 %v1508
    %v1510 = vand.u32 %v81, 4294901760
    %v1511 = vsub.f32 %v81, %v1510
    %v1512 = vand.u32 %v1511, 4294901760
    %1513 = vmatpush1.msra.mxu0 %v1512
    %v1514 = vand.u32 %v84, 4294901760
    %v1515 = vsub.f32 %v84, %v1514
    %v1516 = vand.u32 %v1515, 4294901760
    %1517 = vmatprep.subr.mxu0 %v1516
    %v1518 = vand.u32 %v83, 4294901760
    %v1519 = vsub.f32 %v83, %v1518
    %v1520 = vand.u32 %v1519, 4294901760
    %1521 = vmatpush1.msra.mxu0 %v1520
    %v1522 = vand.u32 %v86, 4294901760
    %v1523 = vsub.f32 %v86, %v1522
    %v1524 = vand.u32 %v1523, 4294901760
    %1525 = vmatprep.subr.mxu0 %v1524
    %v1526 = vand.u32 %v85, 4294901760
    %v1527 = vsub.f32 %v85, %v1526
    %v1528 = vand.u32 %v1527, 4294901760
    %1529 = vmatpush1.msra.mxu0 %v1528
    %v1530 = vand.u32 %v88, 4294901760
    %v1531 = vsub.f32 %v88, %v1530
    %v1532 = vand.u32 %v1531, 4294901760
    %1533 = vmatprep.subr.mxu0 %v1532
    %v1534 = vand.u32 %v87, 4294901760
    %v1535 = vsub.f32 %v87, %v1534
    %v1536 = vand.u32 %v1535, 4294901760
    %1537 = vmatpush1.msra.mxu0 %v1536
    %v1538 = vand.u32 %v90, 4294901760
    %v1539 = vsub.f32 %v90, %v1538
    %v1540 = vand.u32 %v1539, 4294901760
    %1541 = vmatprep.subr.mxu0 %v1540
    %v1542 = vand.u32 %v89, 4294901760
    %v1543 = vsub.f32 %v89, %v1542
    %v1544 = vand.u32 %v1543, 4294901760
    %1545 = vmatpush1.msra.mxu0 %v1544
    %v1546 = vand.u32 %v92, 4294901760
    %v1547 = vsub.f32 %v92, %v1546
    %v1548 = vand.u32 %v1547, 4294901760
    %1549 = vmatprep.subr.mxu0 %v1548
    %v1550 = vand.u32 %v91, 4294901760
    %v1551 = vsub.f32 %v91, %v1550
    %v1552 = vand.u32 %v1551, 4294901760
    %1553 = vmatpush1.msra.mxu0 %v1552
    %v1554 = vand.u32 %v94, 4294901760
    %v1555 = vsub.f32 %v94, %v1554
    %v1556 = vand.u32 %v1555, 4294901760
    %1557 = vmatprep.subr.mxu0 %v1556
    %v1558 = vand.u32 %v93, 4294901760
    %v1559 = vsub.f32 %v93, %v1558
    %v1560 = vand.u32 %v1559, 4294901760
    %1561 = vmatpush1.msra.mxu0 %v1560
    %v1562 = vand.u32 %v96, 4294901760
    %v1563 = vsub.f32 %v96, %v1562
    %v1564 = vand.u32 %v1563, 4294901760
    %1565 = vmatprep.subr.mxu0 %v1564
    %v1566 = vand.u32 %v95, 4294901760
    %v1567 = vsub.f32 %v95, %v1566
    %v1568 = vand.u32 %v1567, 4294901760
    %1569 = vmatpush1.msra.mxu0 %v1568
    %1570 = vmatprep.subr.mxu0 0.0
    %1571 = vmatpush1.msra.mxu0 0.0
    %1572 = vmatprep.subr.mxu0 0.0
    %1573 = vmatpush1.msra.mxu0 0.0
    %1574 = vmatprep.subr.mxu0 0.0
    %1575 = vmatpush1.msra.mxu0 0.0
    %1576 = vmatprep.subr.mxu0 0.0
    %1577 = vmatpush1.msra.mxu0 0.0
    %1578 = vmatprep.subr.mxu0 0.0
    %1579 = vmatpush1.msra.mxu0 0.0
    %1580 = vmatprep.subr.mxu0 0.0
    %1581 = vmatpush1.msra.mxu0 0.0
    %1582 = vmatprep.subr.mxu0 0.0
    %1583 = vmatpush1.msra.mxu0 0.0
    %1584 = vmatprep.subr.mxu0 0.0
    %1585 = vmatpush1.msra.mxu0 0.0
    %1586 = vmatprep.subr.mxu0 0.0
    %1587 = vmatpush1.msra.mxu0 0.0
    %1588 = vmatprep.subr.mxu0 0.0
    %1589 = vmatpush1.msra.mxu0 0.0
    %1590 = vmatprep.subr.mxu0 0.0
    %1591 = vmatpush1.msra.mxu0 0.0
    %1592 = vmatprep.subr.mxu0 0.0
    %1593 = vmatpush1.msra.mxu0 0.0
    %1594 = vmatprep.subr.mxu0 0.0
    %1595 = vmatpush1.msra.mxu0 0.0
    %1596 = vmatprep.subr.mxu0 0.0
    %1597 = vmatpush1.msra.mxu0 0.0
    %1598 = vmatprep.subr.mxu0 0.0
    %1599 = vmatpush1.msra.mxu0 0.0
    %1600 = vmatprep.subr.mxu0 0.0
    %1601 = vmatpush1.msra.mxu0 0.0
    %1602 = vmatprep.subr.mxu0 0.0
    %1603 = vmatpush1.msra.mxu0 0.0
    %1604 = vmatprep.subr.mxu0 0.0
    %1605 = vmatpush1.msra.mxu0 0.0
    %1606 = vmatprep.subr.mxu0 0.0
    %1607 = vmatpush1.msra.mxu0 0.0
    %1608 = vmatprep.subr.mxu0 0.0
    %1609 = vmatpush1.msra.mxu0 0.0
    %1610 = vmatprep.mubr.f32.mxu0 0.0
    %v1611 = vand.u32 %v112, 4294901760
    %1612 = vmatmul.mubr.f32.gmra.mrb[0].mxu0 %v1611
    %v1613 = vpop.f32.mrb[0].mxu0
    %v1614 = vadd.f32 %v1461, %v1613
    %v1615 = vpop.f32.mrb[0].mxu0
    %v1616 = vadd.f32 %v1463, %v1615
    %1617 = vmatprep.mubr.f32.mxu0 0.0
    %v1618 = vand.u32 %v115, 4294901760
    %1619 = vmatmul.mubr.f32.gmra.mrb[0].mxu0 %v1618
    %v1620 = vpop.f32.mrb[0].mxu0
    %v1621 = vadd.f32 %v1470, %v1620
    %v1622 = vpop.f32.mrb[0].mxu0
    %v1623 = vadd.f32 %v1472, %v1622
    %1624 = vdwg.mxu0
    %v1625 = vand.u32 %v74, 4294901760
    %1626 = vmatprep.subr.mxu0 %v1625
    %v1627 = vand.u32 %v73, 4294901760
    %1628 = vmatpush1.msra.mxu0 %v1627
    %v1629 = vand.u32 %v76, 4294901760
    %1630 = vmatprep.subr.mxu0 %v1629
    %v1631 = vand.u32 %v75, 4294901760
    %1632 = vmatpush1.msra.mxu0 %v1631
    %v1633 = vand.u32 %v78, 4294901760
    %1634 = vmatprep.subr.mxu0 %v1633
    %v1635 = vand.u32 %v77, 4294901760
    %1636 = vmatpush1.msra.mxu0 %v1635
    %v1637 = vand.u32 %v80, 4294901760
    %1638 = vmatprep.subr.mxu0 %v1637
    %v1639 = vand.u32 %v79, 4294901760
    %1640 = vmatpush1.msra.mxu0 %v1639
    %v1641 = vand.u32 %v82, 4294901760
    %1642 = vmatprep.subr.mxu0 %v1641
    %v1643 = vand.u32 %v81, 4294901760
    %1644 = vmatpush1.msra.mxu0 %v1643
    %v1645 = vand.u32 %v84, 4294901760
    %1646 = vmatprep.subr.mxu0 %v1645
    %v1647 = vand.u32 %v83, 4294901760
    %1648 = vmatpush1.msra.mxu0 %v1647
    %v1649 = vand.u32 %v86, 4294901760
    %1650 = vmatprep.subr.mxu0 %v1649
    %v1651 = vand.u32 %v85, 4294901760
    %1652 = vmatpush1.msra.mxu0 %v1651
    %v1653 = vand.u32 %v88, 4294901760
    %1654 = vmatprep.subr.mxu0 %v1653
    %v1655 = vand.u32 %v87, 4294901760
    %1656 = vmatpush1.msra.mxu0 %v1655
    %v1657 = vand.u32 %v90, 4294901760
    %1658 = vmatprep.subr.mxu0 %v1657
    %v1659 = vand.u32 %v89, 4294901760
    %1660 = vmatpush1.msra.mxu0 %v1659
    %v1661 = vand.u32 %v92, 4294901760
    %1662 = vmatprep.subr.mxu0 %v1661
    %v1663 = vand.u32 %v91, 4294901760
    %1664 = vmatpush1.msra.mxu0 %v1663
    %v1665 = vand.u32 %v94, 4294901760
    %1666 = vmatprep.subr.mxu0 %v1665
    %v1667 = vand.u32 %v93, 4294901760
    %1668 = vmatpush1.msra.mxu0 %v1667
    %v1669 = vand.u32 %v96, 4294901760
    %1670 = vmatprep.subr.mxu0 %v1669
    %v1671 = vand.u32 %v95, 4294901760
    %1672 = vmatpush1.msra.mxu0 %v1671
    %1673 = vmatprep.subr.mxu0 0.0
    %1674 = vmatpush1.msra.mxu0 0.0
    %1675 = vmatprep.subr.mxu0 0.0
    %1676 = vmatpush1.msra.mxu0 0.0
    %1677 = vmatprep.subr.mxu0 0.0
    %1678 = vmatpush1.msra.mxu0 0.0
    %1679 = vmatprep.subr.mxu0 0.0
    %1680 = vmatpush1.msra.mxu0 0.0
    %1681 = vmatprep.subr.mxu0 0.0
    %1682 = vmatpush1.msra.mxu0 0.0
    %1683 = vmatprep.subr.mxu0 0.0
    %1684 = vmatpush1.msra.mxu0 0.0
    %1685 = vmatprep.subr.mxu0 0.0
    %1686 = vmatpush1.msra.mxu0 0.0
    %1687 = vmatprep.subr.mxu0 0.0
    %1688 = vmatpush1.msra.mxu0 0.0
    %1689 = vmatprep.subr.mxu0 0.0
    %1690 = vmatpush1.msra.mxu0 0.0
    %1691 = vmatprep.subr.mxu0 0.0
    %1692 = vmatpush1.msra.mxu0 0.0
    %1693 = vmatprep.subr.mxu0 0.0
    %1694 = vmatpush1.msra.mxu0 0.0
    %1695 = vmatprep.subr.mxu0 0.0
    %1696 = vmatpush1.msra.mxu0 0.0
    %1697 = vmatprep.subr.mxu0 0.0
    %1698 = vmatpush1.msra.mxu0 0.0
    %1699 = vmatprep.subr.mxu0 0.0
    %1700 = vmatpush1.msra.mxu0 0.0
    %1701 = vmatprep.subr.mxu0 0.0
    %1702 = vmatpush1.msra.mxu0 0.0
    %1703 = vmatprep.subr.mxu0 0.0
    %1704 = vmatpush1.msra.mxu0 0.0
    %1705 = vmatprep.subr.mxu0 0.0
    %1706 = vmatpush1.msra.mxu0 0.0
    %1707 = vmatprep.subr.mxu0 0.0
    %1708 = vmatpush1.msra.mxu0 0.0
    %1709 = vmatprep.subr.mxu0 0.0
    %1710 = vmatpush1.msra.mxu0 0.0
    %1711 = vmatprep.subr.mxu0 0.0
    %1712 = vmatpush1.msra.mxu0 0.0
    %1713 = vmatprep.mubr.f32.mxu0 0.0
    %v1714 = vand.u32 %v112, 4294901760
    %1715 = vmatmul.mubr.f32.gmra.mrb[0].mxu0 %v1714
    %v1716 = vpop.f32.mrb[0].mxu0
    %v1717 = vadd.f32 %v1614, %v1716
    %v1718 = vpop.f32.mrb[0].mxu0
    %v1719 = vadd.f32 %v1616, %v1718
    %1720 = vmatprep.mubr.f32.mxu0 0.0
    %v1721 = vand.u32 %v115, 4294901760
    %1722 = vmatmul.mubr.f32.gmra.mrb[0].mxu0 %v1721
    %v1723 = vpop.f32.mrb[0].mxu0
    %v1724 = vadd.f32 %v1621, %v1723
    %v1725 = vpop.f32.mrb[0].mxu0
    %v1726 = vadd.f32 %v1623, %v1725
    %1727 = vdwg.mxu0
    %v1729 = vsel %vm110, %v47, 0
    %v1732 = vsel %vm110, %v48, 0
    %v1734 = vand.u32 %v50, 4294901760
    %1735 = vmatprep.subr.mxu0 %v1734
    %v1736 = vand.u32 %v49, 4294901760
    %1737 = vmatpush1.msra.mxu0 %v1736
    %v1738 = vand.u32 %v52, 4294901760
    %1739 = vmatprep.subr.mxu0 %v1738
    %v1740 = vand.u32 %v51, 4294901760
    %1741 = vmatpush1.msra.mxu0 %v1740
    %v1742 = vand.u32 %v54, 4294901760
    %1743 = vmatprep.subr.mxu0 %v1742
    %v1744 = vand.u32 %v53, 4294901760
    %1745 = vmatpush1.msra.mxu0 %v1744
    %v1746 = vand.u32 %v56, 4294901760
    %1747 = vmatprep.subr.mxu0 %v1746
    %v1748 = vand.u32 %v55, 4294901760
    %1749 = vmatpush1.msra.mxu0 %v1748
    %v1750 = vand.u32 %v58, 4294901760
    %1751 = vmatprep.subr.mxu0 %v1750
    %v1752 = vand.u32 %v57, 4294901760
    %1753 = vmatpush1.msra.mxu0 %v1752
    %v1754 = vand.u32 %v60, 4294901760
    %1755 = vmatprep.subr.mxu0 %v1754
    %v1756 = vand.u32 %v59, 4294901760
    %1757 = vmatpush1.msra.mxu0 %v1756
    %v1758 = vand.u32 %v62, 4294901760
    %1759 = vmatprep.subr.mxu0 %v1758
    %v1760 = vand.u32 %v61, 4294901760
    %1761 = vmatpush1.msra.mxu0 %v1760
    %v1762 = vand.u32 %v64, 4294901760
    %1763 = vmatprep.subr.mxu0 %v1762
    %v1764 = vand.u32 %v63, 4294901760
    %1765 = vmatpush1.msra.mxu0 %v1764
    %v1766 = vand.u32 %v66, 4294901760
    %1767 = vmatprep.subr.mxu0 %v1766
    %v1768 = vand.u32 %v65, 4294901760
    %1769 = vmatpush1.msra.mxu0 %v1768
    %v1770 = vand.u32 %v68, 4294901760
    %1771 = vmatprep.subr.mxu0 %v1770
    %v1772 = vand.u32 %v67, 4294901760
    %1773 = vmatpush1.msra.mxu0 %v1772
    %v1774 = vand.u32 %v70, 4294901760
    %1775 = vmatprep.subr.mxu0 %v1774
    %v1776 = vand.u32 %v69, 4294901760
    %1777 = vmatpush1.msra.mxu0 %v1776
    %v1778 = vand.u32 %v72, 4294901760
    %1779 = vmatprep.subr.mxu0 %v1778
    %v1780 = vand.u32 %v71, 4294901760
    %1781 = vmatpush1.msra.mxu0 %v1780
    %1782 = vmatprep.subr.mxu0 0.0
    %1783 = vmatpush1.msra.mxu0 0.0
    %1784 = vmatprep.subr.mxu0 0.0
    %1785 = vmatpush1.msra.mxu0 0.0
    %1786 = vmatprep.subr.mxu0 0.0
    %1787 = vmatpush1.msra.mxu0 0.0
    %1788 = vmatprep.subr.mxu0 0.0
    %1789 = vmatpush1.msra.mxu0 0.0
    %1790 = vmatprep.subr.mxu0 0.0
    %1791 = vmatpush1.msra.mxu0 0.0
    %1792 = vmatprep.subr.mxu0 0.0
    %1793 = vmatpush1.msra.mxu0 0.0
    %1794 = vmatprep.subr.mxu0 0.0
    %1795 = vmatpush1.msra.mxu0 0.0
    %1796 = vmatprep.subr.mxu0 0.0
    %1797 = vmatpush1.msra.mxu0 0.0
    %1798 = vmatprep.subr.mxu0 0.0
    %1799 = vmatpush1.msra.mxu0 0.0
    %1800 = vmatprep.subr.mxu0 0.0
    %1801 = vmatpush1.msra.mxu0 0.0
    %1802 = vmatprep.subr.mxu0 0.0
    %1803 = vmatpush1.msra.mxu0 0.0
    %1804 = vmatprep.subr.mxu0 0.0
    %1805 = vmatpush1.msra.mxu0 0.0
    %1806 = vmatprep.subr.mxu0 0.0
    %1807 = vmatpush1.msra.mxu0 0.0
    %1808 = vmatprep.subr.mxu0 0.0
    %1809 = vmatpush1.msra.mxu0 0.0
    %1810 = vmatprep.subr.mxu0 0.0
    %1811 = vmatpush1.msra.mxu0 0.0
    %1812 = vmatprep.subr.mxu0 0.0
    %1813 = vmatpush1.msra.mxu0 0.0
    %1814 = vmatprep.subr.mxu0 0.0
    %1815 = vmatpush1.msra.mxu0 0.0
    %1816 = vmatprep.subr.mxu0 0.0
    %1817 = vmatpush1.msra.mxu0 0.0
    %1818 = vmatprep.subr.mxu0 0.0
    %1819 = vmatpush1.msra.mxu0 0.0
    %1820 = vmatprep.subr.mxu0 0.0
    %1821 = vmatpush1.msra.mxu0 0.0
    %1822 = vmatprep.mubr.f32.mxu0 0.0
    %v1823 = vand.u32 %v1729, 4294901760
    %v1824 = vsub.f32 %v1729, %v1823
    %v1825 = vand.u32 %v1824, 4294901760
    %v1826 = vsub.f32 %v1824, %v1825
    %v1827 = vand.u32 %v1826, 4294901760
    %1828 = vmatmul.mubr.f32.gmra.mrb[0].mxu0 %v1827
    %v1829 = vpop.f32.mrb[0].mxu0
    %v1830 = vadd.f32 %v103, %v1829
    %v1831 = vpop.f32.mrb[0].mxu0
    %v1832 = vadd.f32 %v107, %v1831
    %1833 = vmatprep.mubr.f32.mxu0 0.0
    %v1834 = vand.u32 %v1732, 4294901760
    %v1835 = vsub.f32 %v1732, %v1834
    %v1836 = vand.u32 %v1835, 4294901760
    %v1837 = vsub.f32 %v1835, %v1836
    %v1838 = vand.u32 %v1837, 4294901760
    %1839 = vmatmul.mubr.f32.gmra.mrb[0].mxu0 %v1838
    %v1840 = vpop.f32.mrb[0].mxu0
    %v1841 = vadd.f32 %v103, %v1840
    %v1842 = vpop.f32.mrb[0].mxu0
    %v1843 = vadd.f32 %v107, %v1842
    %1844 = vdwg.mxu0
    %v1845 = vand.u32 %v50, 4294901760
    %v1846 = vsub.f32 %v50, %v1845
    %v1847 = vand.u32 %v1846, 4294901760
    %v1848 = vsub.f32 %v1846, %v1847
    %v1849 = vand.u32 %v1848, 4294901760
    %1850 = vmatprep.subr.mxu0 %v1849
    %v1851 = vand.u32 %v49, 4294901760
    %v1852 = vsub.f32 %v49, %v1851
    %v1853 = vand.u32 %v1852, 4294901760
    %v1854 = vsub.f32 %v1852, %v1853
    %v1855 = vand.u32 %v1854, 4294901760
    %1856 = vmatpush1.msra.mxu0 %v1855
    %v1857 = vand.u32 %v52, 4294901760
    %v1858 = vsub.f32 %v52, %v1857
    %v1859 = vand.u32 %v1858, 4294901760
    %v1860 = vsub.f32 %v1858, %v1859
    %v1861 = vand.u32 %v1860, 4294901760
    %1862 = vmatprep.subr.mxu0 %v1861
    %v1863 = vand.u32 %v51, 4294901760
    %v1864 = vsub.f32 %v51, %v1863
    %v1865 = vand.u32 %v1864, 4294901760
    %v1866 = vsub.f32 %v1864, %v1865
    %v1867 = vand.u32 %v1866, 4294901760
    %1868 = vmatpush1.msra.mxu0 %v1867
    %v1869 = vand.u32 %v54, 4294901760
    %v1870 = vsub.f32 %v54, %v1869
    %v1871 = vand.u32 %v1870, 4294901760
    %v1872 = vsub.f32 %v1870, %v1871
    %v1873 = vand.u32 %v1872, 4294901760
    %1874 = vmatprep.subr.mxu0 %v1873
    %v1875 = vand.u32 %v53, 4294901760
    %v1876 = vsub.f32 %v53, %v1875
    %v1877 = vand.u32 %v1876, 4294901760
    %v1878 = vsub.f32 %v1876, %v1877
    %v1879 = vand.u32 %v1878, 4294901760
    %1880 = vmatpush1.msra.mxu0 %v1879
    %v1881 = vand.u32 %v56, 4294901760
    %v1882 = vsub.f32 %v56, %v1881
    %v1883 = vand.u32 %v1882, 4294901760
    %v1884 = vsub.f32 %v1882, %v1883
    %v1885 = vand.u32 %v1884, 4294901760
    %1886 = vmatprep.subr.mxu0 %v1885
    %v1887 = vand.u32 %v55, 4294901760
    %v1888 = vsub.f32 %v55, %v1887
    %v1889 = vand.u32 %v1888, 4294901760
    %v1890 = vsub.f32 %v1888, %v1889
    %v1891 = vand.u32 %v1890, 4294901760
    %1892 = vmatpush1.msra.mxu0 %v1891
    %v1893 = vand.u32 %v58, 4294901760
    %v1894 = vsub.f32 %v58, %v1893
    %v1895 = vand.u32 %v1894, 4294901760
    %v1896 = vsub.f32 %v1894, %v1895
    %v1897 = vand.u32 %v1896, 4294901760
    %1898 = vmatprep.subr.mxu0 %v1897
    %v1899 = vand.u32 %v57, 4294901760
    %v1900 = vsub.f32 %v57, %v1899
    %v1901 = vand.u32 %v1900, 4294901760
    %v1902 = vsub.f32 %v1900, %v1901
    %v1903 = vand.u32 %v1902, 4294901760
    %1904 = vmatpush1.msra.mxu0 %v1903
    %v1905 = vand.u32 %v60, 4294901760
    %v1906 = vsub.f32 %v60, %v1905
    %v1907 = vand.u32 %v1906, 4294901760
    %v1908 = vsub.f32 %v1906, %v1907
    %v1909 = vand.u32 %v1908, 4294901760
    %1910 = vmatprep.subr.mxu0 %v1909
    %v1911 = vand.u32 %v59, 4294901760
    %v1912 = vsub.f32 %v59, %v1911
    %v1913 = vand.u32 %v1912, 4294901760
    %v1914 = vsub.f32 %v1912, %v1913
    %v1915 = vand.u32 %v1914, 4294901760
    %1916 = vmatpush1.msra.mxu0 %v1915
    %v1917 = vand.u32 %v62, 4294901760
    %v1918 = vsub.f32 %v62, %v1917
    %v1919 = vand.u32 %v1918, 4294901760
    %v1920 = vsub.f32 %v1918, %v1919
    %v1921 = vand.u32 %v1920, 4294901760
    %1922 = vmatprep.subr.mxu0 %v1921
    %v1923 = vand.u32 %v61, 4294901760
    %v1924 = vsub.f32 %v61, %v1923
    %v1925 = vand.u32 %v1924, 4294901760
    %v1926 = vsub.f32 %v1924, %v1925
    %v1927 = vand.u32 %v1926, 4294901760
    %1928 = vmatpush1.msra.mxu0 %v1927
    %v1929 = vand.u32 %v64, 4294901760
    %v1930 = vsub.f32 %v64, %v1929
    %v1931 = vand.u32 %v1930, 4294901760
    %v1932 = vsub.f32 %v1930, %v1931
    %v1933 = vand.u32 %v1932, 4294901760
    %1934 = vmatprep.subr.mxu0 %v1933
    %v1935 = vand.u32 %v63, 4294901760
    %v1936 = vsub.f32 %v63, %v1935
    %v1937 = vand.u32 %v1936, 4294901760
    %v1938 = vsub.f32 %v1936, %v1937
    %v1939 = vand.u32 %v1938, 4294901760
    %1940 = vmatpush1.msra.mxu0 %v1939
    %v1941 = vand.u32 %v66, 4294901760
    %v1942 = vsub.f32 %v66, %v1941
    %v1943 = vand.u32 %v1942, 4294901760
    %v1944 = vsub.f32 %v1942, %v1943
    %v1945 = vand.u32 %v1944, 4294901760
    %1946 = vmatprep.subr.mxu0 %v1945
    %v1947 = vand.u32 %v65, 4294901760
    %v1948 = vsub.f32 %v65, %v1947
    %v1949 = vand.u32 %v1948, 4294901760
    %v1950 = vsub.f32 %v1948, %v1949
    %v1951 = vand.u32 %v1950, 4294901760
    %1952 = vmatpush1.msra.mxu0 %v1951
    %v1953 = vand.u32 %v68, 4294901760
    %v1954 = vsub.f32 %v68, %v1953
    %v1955 = vand.u32 %v1954, 4294901760
    %v1956 = vsub.f32 %v1954, %v1955
    %v1957 = vand.u32 %v1956, 4294901760
    %1958 = vmatprep.subr.mxu0 %v1957
    %v1959 = vand.u32 %v67, 4294901760
    %v1960 = vsub.f32 %v67, %v1959
    %v1961 = vand.u32 %v1960, 4294901760
    %v1962 = vsub.f32 %v1960, %v1961
    %v1963 = vand.u32 %v1962, 4294901760
    %1964 = vmatpush1.msra.mxu0 %v1963
    %v1965 = vand.u32 %v70, 4294901760
    %v1966 = vsub.f32 %v70, %v1965
    %v1967 = vand.u32 %v1966, 4294901760
    %v1968 = vsub.f32 %v1966, %v1967
    %v1969 = vand.u32 %v1968, 4294901760
    %1970 = vmatprep.subr.mxu0 %v1969
    %v1971 = vand.u32 %v69, 4294901760
    %v1972 = vsub.f32 %v69, %v1971
    %v1973 = vand.u32 %v1972, 4294901760
    %v1974 = vsub.f32 %v1972, %v1973
    %v1975 = vand.u32 %v1974, 4294901760
    %1976 = vmatpush1.msra.mxu0 %v1975
    %v1977 = vand.u32 %v72, 4294901760
    %v1978 = vsub.f32 %v72, %v1977
    %v1979 = vand.u32 %v1978, 4294901760
    %v1980 = vsub.f32 %v1978, %v1979
    %v1981 = vand.u32 %v1980, 4294901760
    %1982 = vmatprep.subr.mxu0 %v1981
    %v1983 = vand.u32 %v71, 4294901760
    %v1984 = vsub.f32 %v71, %v1983
    %v1985 = vand.u32 %v1984, 4294901760
    %v1986 = vsub.f32 %v1984, %v1985
    %v1987 = vand.u32 %v1986, 4294901760
    %1988 = vmatpush1.msra.mxu0 %v1987
    %1989 = vmatprep.subr.mxu0 0.0
    %1990 = vmatpush1.msra.mxu0 0.0
    %1991 = vmatprep.subr.mxu0 0.0
    %1992 = vmatpush1.msra.mxu0 0.0
    %1993 = vmatprep.subr.mxu0 0.0
    %1994 = vmatpush1.msra.mxu0 0.0
    %1995 = vmatprep.subr.mxu0 0.0
    %1996 = vmatpush1.msra.mxu0 0.0
    %1997 = vmatprep.subr.mxu0 0.0
    %1998 = vmatpush1.msra.mxu0 0.0
    %1999 = vmatprep.subr.mxu0 0.0
    %2000 = vmatpush1.msra.mxu0 0.0
    %2001 = vmatprep.subr.mxu0 0.0
    %2002 = vmatpush1.msra.mxu0 0.0
    %2003 = vmatprep.subr.mxu0 0.0
    %2004 = vmatpush1.msra.mxu0 0.0
    %2005 = vmatprep.subr.mxu0 0.0
    %2006 = vmatpush1.msra.mxu0 0.0
    %2007 = vmatprep.subr.mxu0 0.0
    %2008 = vmatpush1.msra.mxu0 0.0
    %2009 = vmatprep.subr.mxu0 0.0
    %2010 = vmatpush1.msra.mxu0 0.0
    %2011 = vmatprep.subr.mxu0 0.0
    %2012 = vmatpush1.msra.mxu0 0.0
    %2013 = vmatprep.subr.mxu0 0.0
    %2014 = vmatpush1.msra.mxu0 0.0
    %2015 = vmatprep.subr.mxu0 0.0
    %2016 = vmatpush1.msra.mxu0 0.0
    %2017 = vmatprep.subr.mxu0 0.0
    %2018 = vmatpush1.msra.mxu0 0.0
    %2019 = vmatprep.subr.mxu0 0.0
    %2020 = vmatpush1.msra.mxu0 0.0
    %2021 = vmatprep.subr.mxu0 0.0
    %2022 = vmatpush1.msra.mxu0 0.0
    %2023 = vmatprep.subr.mxu0 0.0
    %2024 = vmatpush1.msra.mxu0 0.0
    %2025 = vmatprep.subr.mxu0 0.0
    %2026 = vmatpush1.msra.mxu0 0.0
    %2027 = vmatprep.subr.mxu0 0.0
    %2028 = vmatpush1.msra.mxu0 0.0
    %2029 = vmatprep.mubr.f32.mxu0 0.0
    %v2030 = vand.u32 %v1729, 4294901760
    %2031 = vmatmul.mubr.f32.gmra.mrb[0].mxu0 %v2030
    %v2032 = vpop.f32.mrb[0].mxu0
    %v2033 = vadd.f32 %v1830, %v2032
    %v2034 = vpop.f32.mrb[0].mxu0
    %v2035 = vadd.f32 %v1832, %v2034
    %2036 = vmatprep.mubr.f32.mxu0 0.0
    %v2037 = vand.u32 %v1732, 4294901760
    %2038 = vmatmul.mubr.f32.gmra.mrb[0].mxu0 %v2037
    %v2039 = vpop.f32.mrb[0].mxu0
    %v2040 = vadd.f32 %v1841, %v2039
    %v2041 = vpop.f32.mrb[0].mxu0
    %v2042 = vadd.f32 %v1843, %v2041
    %2043 = vdwg.mxu0
    %v2044 = vand.u32 %v50, 4294901760
    %v2045 = vsub.f32 %v50, %v2044
    %2046 = vmatprep.subr.mxu0 %v2045
    %v2047 = vand.u32 %v49, 4294901760
    %v2048 = vsub.f32 %v49, %v2047
    %2049 = vmatpush1.msra.mxu0 %v2048
    %v2050 = vand.u32 %v52, 4294901760
    %v2051 = vsub.f32 %v52, %v2050
    %2052 = vmatprep.subr.mxu0 %v2051
    %v2053 = vand.u32 %v51, 4294901760
    %v2054 = vsub.f32 %v51, %v2053
    %2055 = vmatpush1.msra.mxu0 %v2054
    %v2056 = vand.u32 %v54, 4294901760
    %v2057 = vsub.f32 %v54, %v2056
    %2058 = vmatprep.subr.mxu0 %v2057
    %v2059 = vand.u32 %v53, 4294901760
    %v2060 = vsub.f32 %v53, %v2059
    %2061 = vmatpush1.msra.mxu0 %v2060
    %v2062 = vand.u32 %v56, 4294901760
    %v2063 = vsub.f32 %v56, %v2062
    %2064 = vmatprep.subr.mxu0 %v2063
    %v2065 = vand.u32 %v55, 4294901760
    %v2066 = vsub.f32 %v55, %v2065
    %2067 = vmatpush1.msra.mxu0 %v2066
    %v2068 = vand.u32 %v58, 4294901760
    %v2069 = vsub.f32 %v58, %v2068
    %2070 = vmatprep.subr.mxu0 %v2069
    %v2071 = vand.u32 %v57, 4294901760
    %v2072 = vsub.f32 %v57, %v2071
    %2073 = vmatpush1.msra.mxu0 %v2072
    %v2074 = vand.u32 %v60, 4294901760
    %v2075 = vsub.f32 %v60, %v2074
    %2076 = vmatprep.subr.mxu0 %v2075
    %v2077 = vand.u32 %v59, 4294901760
    %v2078 = vsub.f32 %v59, %v2077
    %2079 = vmatpush1.msra.mxu0 %v2078
    %v2080 = vand.u32 %v62, 4294901760
    %v2081 = vsub.f32 %v62, %v2080
    %2082 = vmatprep.subr.mxu0 %v2081
    %v2083 = vand.u32 %v61, 4294901760
    %v2084 = vsub.f32 %v61, %v2083
    %2085 = vmatpush1.msra.mxu0 %v2084
    %v2086 = vand.u32 %v64, 4294901760
    %v2087 = vsub.f32 %v64, %v2086
    %2088 = vmatprep.subr.mxu0 %v2087
    %v2089 = vand.u32 %v63, 4294901760
    %v2090 = vsub.f32 %v63, %v2089
    %2091 = vmatpush1.msra.mxu0 %v2090
    %v2092 = vand.u32 %v66, 4294901760
    %v2093 = vsub.f32 %v66, %v2092
    %2094 = vmatprep.subr.mxu0 %v2093
    %v2095 = vand.u32 %v65, 4294901760
    %v2096 = vsub.f32 %v65, %v2095
    %2097 = vmatpush1.msra.mxu0 %v2096
    %v2098 = vand.u32 %v68, 4294901760
    %v2099 = vsub.f32 %v68, %v2098
    %2100 = vmatprep.subr.mxu0 %v2099
    %v2101 = vand.u32 %v67, 4294901760
    %v2102 = vsub.f32 %v67, %v2101
    %2103 = vmatpush1.msra.mxu0 %v2102
    %v2104 = vand.u32 %v70, 4294901760
    %v2105 = vsub.f32 %v70, %v2104
    %2106 = vmatprep.subr.mxu0 %v2105
    %v2107 = vand.u32 %v69, 4294901760
    %v2108 = vsub.f32 %v69, %v2107
    %2109 = vmatpush1.msra.mxu0 %v2108
    %v2110 = vand.u32 %v72, 4294901760
    %v2111 = vsub.f32 %v72, %v2110
    %2112 = vmatprep.subr.mxu0 %v2111
    %v2113 = vand.u32 %v71, 4294901760
    %v2114 = vsub.f32 %v71, %v2113
    %2115 = vmatpush1.msra.mxu0 %v2114
    %2116 = vmatprep.subr.mxu0 0.0
    %2117 = vmatpush1.msra.mxu0 0.0
    %2118 = vmatprep.subr.mxu0 0.0
    %2119 = vmatpush1.msra.mxu0 0.0
    %2120 = vmatprep.subr.mxu0 0.0
    %2121 = vmatpush1.msra.mxu0 0.0
    %2122 = vmatprep.subr.mxu0 0.0
    %2123 = vmatpush1.msra.mxu0 0.0
    %2124 = vmatprep.subr.mxu0 0.0
    %2125 = vmatpush1.msra.mxu0 0.0
    %2126 = vmatprep.subr.mxu0 0.0
    %2127 = vmatpush1.msra.mxu0 0.0
    %2128 = vmatprep.subr.mxu0 0.0
    %2129 = vmatpush1.msra.mxu0 0.0
    %2130 = vmatprep.subr.mxu0 0.0
    %2131 = vmatpush1.msra.mxu0 0.0
    %2132 = vmatprep.subr.mxu0 0.0
    %2133 = vmatpush1.msra.mxu0 0.0
    %2134 = vmatprep.subr.mxu0 0.0
    %2135 = vmatpush1.msra.mxu0 0.0
    %2136 = vmatprep.subr.mxu0 0.0
    %2137 = vmatpush1.msra.mxu0 0.0
    %2138 = vmatprep.subr.mxu0 0.0
    %2139 = vmatpush1.msra.mxu0 0.0
    %2140 = vmatprep.subr.mxu0 0.0
    %2141 = vmatpush1.msra.mxu0 0.0
    %2142 = vmatprep.subr.mxu0 0.0
    %2143 = vmatpush1.msra.mxu0 0.0
    %2144 = vmatprep.subr.mxu0 0.0
    %2145 = vmatpush1.msra.mxu0 0.0
    %2146 = vmatprep.subr.mxu0 0.0
    %2147 = vmatpush1.msra.mxu0 0.0
    %2148 = vmatprep.subr.mxu0 0.0
    %2149 = vmatpush1.msra.mxu0 0.0
    %2150 = vmatprep.subr.mxu0 0.0
    %2151 = vmatpush1.msra.mxu0 0.0
    %2152 = vmatprep.subr.mxu0 0.0
    %2153 = vmatpush1.msra.mxu0 0.0
    %2154 = vmatprep.subr.mxu0 0.0
    %2155 = vmatpush1.msra.mxu0 0.0
    %2156 = vmatprep.mubr.f32.mxu0 0.0
    %v2157 = vand.u32 %v1729, 4294901760
    %v2158 = vsub.f32 %v1729, %v2157
    %2159 = vmatmul.mubr.f32.gmra.mrb[0].mxu0 %v2158
    %v2160 = vpop.f32.mrb[0].mxu0
    %v2161 = vadd.f32 %v2033, %v2160
    %v2162 = vpop.f32.mrb[0].mxu0
    %v2163 = vadd.f32 %v2035, %v2162
    %2164 = vmatprep.mubr.f32.mxu0 0.0
    %v2165 = vand.u32 %v1732, 4294901760
    %v2166 = vsub.f32 %v1732, %v2165
    %2167 = vmatmul.mubr.f32.gmra.mrb[0].mxu0 %v2166
    %v2168 = vpop.f32.mrb[0].mxu0
    %v2169 = vadd.f32 %v2040, %v2168
    %v2170 = vpop.f32.mrb[0].mxu0
    %v2171 = vadd.f32 %v2042, %v2170
    %2172 = vdwg.mxu0
    %v2173 = vand.u32 %v50, 4294901760
    %2174 = vmatprep.subr.mxu0 %v2173
    %v2175 = vand.u32 %v49, 4294901760
    %2176 = vmatpush1.msra.mxu0 %v2175
    %v2177 = vand.u32 %v52, 4294901760
    %2178 = vmatprep.subr.mxu0 %v2177
    %v2179 = vand.u32 %v51, 4294901760
    %2180 = vmatpush1.msra.mxu0 %v2179
    %v2181 = vand.u32 %v54, 4294901760
    %2182 = vmatprep.subr.mxu0 %v2181
    %v2183 = vand.u32 %v53, 4294901760
    %2184 = vmatpush1.msra.mxu0 %v2183
    %v2185 = vand.u32 %v56, 4294901760
    %2186 = vmatprep.subr.mxu0 %v2185
    %v2187 = vand.u32 %v55, 4294901760
    %2188 = vmatpush1.msra.mxu0 %v2187
    %v2189 = vand.u32 %v58, 4294901760
    %2190 = vmatprep.subr.mxu0 %v2189
    %v2191 = vand.u32 %v57, 4294901760
    %2192 = vmatpush1.msra.mxu0 %v2191
    %v2193 = vand.u32 %v60, 4294901760
    %2194 = vmatprep.subr.mxu0 %v2193
    %v2195 = vand.u32 %v59, 4294901760
    %2196 = vmatpush1.msra.mxu0 %v2195
    %v2197 = vand.u32 %v62, 4294901760
    %2198 = vmatprep.subr.mxu0 %v2197
    %v2199 = vand.u32 %v61, 4294901760
    %2200 = vmatpush1.msra.mxu0 %v2199
    %v2201 = vand.u32 %v64, 4294901760
    %2202 = vmatprep.subr.mxu0 %v2201
    %v2203 = vand.u32 %v63, 4294901760
    %2204 = vmatpush1.msra.mxu0 %v2203
    %v2205 = vand.u32 %v66, 4294901760
    %2206 = vmatprep.subr.mxu0 %v2205
    %v2207 = vand.u32 %v65, 4294901760
    %2208 = vmatpush1.msra.mxu0 %v2207
    %v2209 = vand.u32 %v68, 4294901760
    %2210 = vmatprep.subr.mxu0 %v2209
    %v2211 = vand.u32 %v67, 4294901760
    %2212 = vmatpush1.msra.mxu0 %v2211
    %v2213 = vand.u32 %v70, 4294901760
    %2214 = vmatprep.subr.mxu0 %v2213
    %v2215 = vand.u32 %v69, 4294901760
    %2216 = vmatpush1.msra.mxu0 %v2215
    %v2217 = vand.u32 %v72, 4294901760
    %2218 = vmatprep.subr.mxu0 %v2217
    %v2219 = vand.u32 %v71, 4294901760
    %2220 = vmatpush1.msra.mxu0 %v2219
    %2221 = vmatprep.subr.mxu0 0.0
    %2222 = vmatpush1.msra.mxu0 0.0
    %2223 = vmatprep.subr.mxu0 0.0
    %2224 = vmatpush1.msra.mxu0 0.0
    %2225 = vmatprep.subr.mxu0 0.0
    %2226 = vmatpush1.msra.mxu0 0.0
    %2227 = vmatprep.subr.mxu0 0.0
    %2228 = vmatpush1.msra.mxu0 0.0
    %2229 = vmatprep.subr.mxu0 0.0
    %2230 = vmatpush1.msra.mxu0 0.0
    %2231 = vmatprep.subr.mxu0 0.0
    %2232 = vmatpush1.msra.mxu0 0.0
    %2233 = vmatprep.subr.mxu0 0.0
    %2234 = vmatpush1.msra.mxu0 0.0
    %2235 = vmatprep.subr.mxu0 0.0
    %2236 = vmatpush1.msra.mxu0 0.0
    %2237 = vmatprep.subr.mxu0 0.0
    %2238 = vmatpush1.msra.mxu0 0.0
    %2239 = vmatprep.subr.mxu0 0.0
    %2240 = vmatpush1.msra.mxu0 0.0
    %2241 = vmatprep.subr.mxu0 0.0
    %2242 = vmatpush1.msra.mxu0 0.0
    %2243 = vmatprep.subr.mxu0 0.0
    %2244 = vmatpush1.msra.mxu0 0.0
    %2245 = vmatprep.subr.mxu0 0.0
    %2246 = vmatpush1.msra.mxu0 0.0
    %2247 = vmatprep.subr.mxu0 0.0
    %2248 = vmatpush1.msra.mxu0 0.0
    %2249 = vmatprep.subr.mxu0 0.0
    %2250 = vmatpush1.msra.mxu0 0.0
    %2251 = vmatprep.subr.mxu0 0.0
    %2252 = vmatpush1.msra.mxu0 0.0
    %2253 = vmatprep.subr.mxu0 0.0
    %2254 = vmatpush1.msra.mxu0 0.0
    %2255 = vmatprep.subr.mxu0 0.0
    %2256 = vmatpush1.msra.mxu0 0.0
    %2257 = vmatprep.subr.mxu0 0.0
    %2258 = vmatpush1.msra.mxu0 0.0
    %2259 = vmatprep.subr.mxu0 0.0
    %2260 = vmatpush1.msra.mxu0 0.0
    %2261 = vmatprep.mubr.f32.mxu0 0.0
    %v2262 = vand.u32 %v1729, 4294901760
    %v2263 = vsub.f32 %v1729, %v2262
    %v2264 = vand.u32 %v2263, 4294901760
    %2265 = vmatmul.mubr.f32.gmra.mrb[0].mxu0 %v2264
    %v2266 = vpop.f32.mrb[0].mxu0
    %v2267 = vadd.f32 %v2161, %v2266
    %v2268 = vpop.f32.mrb[0].mxu0
    %v2269 = vadd.f32 %v2163, %v2268
    %2270 = vmatprep.mubr.f32.mxu0 0.0
    %v2271 = vand.u32 %v1732, 4294901760
    %v2272 = vsub.f32 %v1732, %v2271
    %v2273 = vand.u32 %v2272, 4294901760
    %2274 = vmatmul.mubr.f32.gmra.mrb[0].mxu0 %v2273
    %v2275 = vpop.f32.mrb[0].mxu0
    %v2276 = vadd.f32 %v2169, %v2275
    %v2277 = vpop.f32.mrb[0].mxu0
    %v2278 = vadd.f32 %v2171, %v2277
    %2279 = vdwg.mxu0
    %v2280 = vand.u32 %v50, 4294901760
    %v2281 = vsub.f32 %v50, %v2280
    %v2282 = vand.u32 %v2281, 4294901760
    %2283 = vmatprep.subr.mxu0 %v2282
    %v2284 = vand.u32 %v49, 4294901760
    %v2285 = vsub.f32 %v49, %v2284
    %v2286 = vand.u32 %v2285, 4294901760
    %2287 = vmatpush1.msra.mxu0 %v2286
    %v2288 = vand.u32 %v52, 4294901760
    %v2289 = vsub.f32 %v52, %v2288
    %v2290 = vand.u32 %v2289, 4294901760
    %2291 = vmatprep.subr.mxu0 %v2290
    %v2292 = vand.u32 %v51, 4294901760
    %v2293 = vsub.f32 %v51, %v2292
    %v2294 = vand.u32 %v2293, 4294901760
    %2295 = vmatpush1.msra.mxu0 %v2294
    %v2296 = vand.u32 %v54, 4294901760
    %v2297 = vsub.f32 %v54, %v2296
    %v2298 = vand.u32 %v2297, 4294901760
    %2299 = vmatprep.subr.mxu0 %v2298
    %v2300 = vand.u32 %v53, 4294901760
    %v2301 = vsub.f32 %v53, %v2300
    %v2302 = vand.u32 %v2301, 4294901760
    %2303 = vmatpush1.msra.mxu0 %v2302
    %v2304 = vand.u32 %v56, 4294901760
    %v2305 = vsub.f32 %v56, %v2304
    %v2306 = vand.u32 %v2305, 4294901760
    %2307 = vmatprep.subr.mxu0 %v2306
    %v2308 = vand.u32 %v55, 4294901760
    %v2309 = vsub.f32 %v55, %v2308
    %v2310 = vand.u32 %v2309, 4294901760
    %2311 = vmatpush1.msra.mxu0 %v2310
    %v2312 = vand.u32 %v58, 4294901760
    %v2313 = vsub.f32 %v58, %v2312
    %v2314 = vand.u32 %v2313, 4294901760
    %2315 = vmatprep.subr.mxu0 %v2314
    %v2316 = vand.u32 %v57, 4294901760
    %v2317 = vsub.f32 %v57, %v2316
    %v2318 = vand.u32 %v2317, 4294901760
    %2319 = vmatpush1.msra.mxu0 %v2318
    %v2320 = vand.u32 %v60, 4294901760
    %v2321 = vsub.f32 %v60, %v2320
    %v2322 = vand.u32 %v2321, 4294901760
    %2323 = vmatprep.subr.mxu0 %v2322
    %v2324 = vand.u32 %v59, 4294901760
    %v2325 = vsub.f32 %v59, %v2324
    %v2326 = vand.u32 %v2325, 4294901760
    %2327 = vmatpush1.msra.mxu0 %v2326
    %v2328 = vand.u32 %v62, 4294901760
    %v2329 = vsub.f32 %v62, %v2328
    %v2330 = vand.u32 %v2329, 4294901760
    %2331 = vmatprep.subr.mxu0 %v2330
    %v2332 = vand.u32 %v61, 4294901760
    %v2333 = vsub.f32 %v61, %v2332
    %v2334 = vand.u32 %v2333, 4294901760
    %2335 = vmatpush1.msra.mxu0 %v2334
    %v2336 = vand.u32 %v64, 4294901760
    %v2337 = vsub.f32 %v64, %v2336
    %v2338 = vand.u32 %v2337, 4294901760
    %2339 = vmatprep.subr.mxu0 %v2338
    %v2340 = vand.u32 %v63, 4294901760
    %v2341 = vsub.f32 %v63, %v2340
    %v2342 = vand.u32 %v2341, 4294901760
    %2343 = vmatpush1.msra.mxu0 %v2342
    %v2344 = vand.u32 %v66, 4294901760
    %v2345 = vsub.f32 %v66, %v2344
    %v2346 = vand.u32 %v2345, 4294901760
    %2347 = vmatprep.subr.mxu0 %v2346
    %v2348 = vand.u32 %v65, 4294901760
    %v2349 = vsub.f32 %v65, %v2348
    %v2350 = vand.u32 %v2349, 4294901760
    %2351 = vmatpush1.msra.mxu0 %v2350
    %v2352 = vand.u32 %v68, 4294901760
    %v2353 = vsub.f32 %v68, %v2352
    %v2354 = vand.u32 %v2353, 4294901760
    %2355 = vmatprep.subr.mxu0 %v2354
    %v2356 = vand.u32 %v67, 4294901760
    %v2357 = vsub.f32 %v67, %v2356
    %v2358 = vand.u32 %v2357, 4294901760
    %2359 = vmatpush1.msra.mxu0 %v2358
    %v2360 = vand.u32 %v70, 4294901760
    %v2361 = vsub.f32 %v70, %v2360
    %v2362 = vand.u32 %v2361, 4294901760
    %2363 = vmatprep.subr.mxu0 %v2362
    %v2364 = vand.u32 %v69, 4294901760
    %v2365 = vsub.f32 %v69, %v2364
    %v2366 = vand.u32 %v2365, 4294901760
    %2367 = vmatpush1.msra.mxu0 %v2366
    %v2368 = vand.u32 %v72, 4294901760
    %v2369 = vsub.f32 %v72, %v2368
    %v2370 = vand.u32 %v2369, 4294901760
    %2371 = vmatprep.subr.mxu0 %v2370
    %v2372 = vand.u32 %v71, 4294901760
    %v2373 = vsub.f32 %v71, %v2372
    %v2374 = vand.u32 %v2373, 4294901760
    %2375 = vmatpush1.msra.mxu0 %v2374
    %2376 = vmatprep.subr.mxu0 0.0
    %2377 = vmatpush1.msra.mxu0 0.0
    %2378 = vmatprep.subr.mxu0 0.0
    %2379 = vmatpush1.msra.mxu0 0.0
    %2380 = vmatprep.subr.mxu0 0.0
    %2381 = vmatpush1.msra.mxu0 0.0
    %2382 = vmatprep.subr.mxu0 0.0
    %2383 = vmatpush1.msra.mxu0 0.0
    %2384 = vmatprep.subr.mxu0 0.0
    %2385 = vmatpush1.msra.mxu0 0.0
    %2386 = vmatprep.subr.mxu0 0.0
    %2387 = vmatpush1.msra.mxu0 0.0
    %2388 = vmatprep.subr.mxu0 0.0
    %2389 = vmatpush1.msra.mxu0 0.0
    %2390 = vmatprep.subr.mxu0 0.0
    %2391 = vmatpush1.msra.mxu0 0.0
    %2392 = vmatprep.subr.mxu0 0.0
    %2393 = vmatpush1.msra.mxu0 0.0
    %2394 = vmatprep.subr.mxu0 0.0
    %2395 = vmatpush1.msra.mxu0 0.0
    %2396 = vmatprep.subr.mxu0 0.0
    %2397 = vmatpush1.msra.mxu0 0.0
    %2398 = vmatprep.subr.mxu0 0.0
    %2399 = vmatpush1.msra.mxu0 0.0
    %2400 = vmatprep.subr.mxu0 0.0
    %2401 = vmatpush1.msra.mxu0 0.0
    %2402 = vmatprep.subr.mxu0 0.0
    %2403 = vmatpush1.msra.mxu0 0.0
    %2404 = vmatprep.subr.mxu0 0.0
    %2405 = vmatpush1.msra.mxu0 0.0
    %2406 = vmatprep.subr.mxu0 0.0
    %2407 = vmatpush1.msra.mxu0 0.0
    %2408 = vmatprep.subr.mxu0 0.0
    %2409 = vmatpush1.msra.mxu0 0.0
    %2410 = vmatprep.subr.mxu0 0.0
    %2411 = vmatpush1.msra.mxu0 0.0
    %2412 = vmatprep.subr.mxu0 0.0
    %2413 = vmatpush1.msra.mxu0 0.0
    %2414 = vmatprep.subr.mxu0 0.0
    %2415 = vmatpush1.msra.mxu0 0.0
    %2416 = vmatprep.mubr.f32.mxu0 0.0
    %v2417 = vand.u32 %v1729, 4294901760
    %2418 = vmatmul.mubr.f32.gmra.mrb[0].mxu0 %v2417
    %v2419 = vpop.f32.mrb[0].mxu0
    %v2420 = vadd.f32 %v2267, %v2419
    %v2421 = vpop.f32.mrb[0].mxu0
    %v2422 = vadd.f32 %v2269, %v2421
    %2423 = vmatprep.mubr.f32.mxu0 0.0
    %v2424 = vand.u32 %v1732, 4294901760
    %2425 = vmatmul.mubr.f32.gmra.mrb[0].mxu0 %v2424
    %v2426 = vpop.f32.mrb[0].mxu0
    %v2427 = vadd.f32 %v2276, %v2426
    %v2428 = vpop.f32.mrb[0].mxu0
    %v2429 = vadd.f32 %v2278, %v2428
    %2430 = vdwg.mxu0
    %v2431 = vand.u32 %v50, 4294901760
    %2432 = vmatprep.subr.mxu0 %v2431
    %v2433 = vand.u32 %v49, 4294901760
    %2434 = vmatpush1.msra.mxu0 %v2433
    %v2435 = vand.u32 %v52, 4294901760
    %2436 = vmatprep.subr.mxu0 %v2435
    %v2437 = vand.u32 %v51, 4294901760
    %2438 = vmatpush1.msra.mxu0 %v2437
    %v2439 = vand.u32 %v54, 4294901760
    %2440 = vmatprep.subr.mxu0 %v2439
    %v2441 = vand.u32 %v53, 4294901760
    %2442 = vmatpush1.msra.mxu0 %v2441
    %v2443 = vand.u32 %v56, 4294901760
    %2444 = vmatprep.subr.mxu0 %v2443
    %v2445 = vand.u32 %v55, 4294901760
    %2446 = vmatpush1.msra.mxu0 %v2445
    %v2447 = vand.u32 %v58, 4294901760
    %2448 = vmatprep.subr.mxu0 %v2447
    %v2449 = vand.u32 %v57, 4294901760
    %2450 = vmatpush1.msra.mxu0 %v2449
    %v2451 = vand.u32 %v60, 4294901760
    %2452 = vmatprep.subr.mxu0 %v2451
    %v2453 = vand.u32 %v59, 4294901760
    %2454 = vmatpush1.msra.mxu0 %v2453
    %v2455 = vand.u32 %v62, 4294901760
    %2456 = vmatprep.subr.mxu0 %v2455
    %v2457 = vand.u32 %v61, 4294901760
    %2458 = vmatpush1.msra.mxu0 %v2457
    %v2459 = vand.u32 %v64, 4294901760
    %2460 = vmatprep.subr.mxu0 %v2459
    %v2461 = vand.u32 %v63, 4294901760
    %2462 = vmatpush1.msra.mxu0 %v2461
    %v2463 = vand.u32 %v66, 4294901760
    %2464 = vmatprep.subr.mxu0 %v2463
    %v2465 = vand.u32 %v65, 4294901760
    %2466 = vmatpush1.msra.mxu0 %v2465
    %v2467 = vand.u32 %v68, 4294901760
    %2468 = vmatprep.subr.mxu0 %v2467
    %v2469 = vand.u32 %v67, 4294901760
    %2470 = vmatpush1.msra.mxu0 %v2469
    %v2471 = vand.u32 %v70, 4294901760
    %2472 = vmatprep.subr.mxu0 %v2471
    %v2473 = vand.u32 %v69, 4294901760
    %2474 = vmatpush1.msra.mxu0 %v2473
    %v2475 = vand.u32 %v72, 4294901760
    %2476 = vmatprep.subr.mxu0 %v2475
    %v2477 = vand.u32 %v71, 4294901760
    %2478 = vmatpush1.msra.mxu0 %v2477
    %2479 = vmatprep.subr.mxu0 0.0
    %2480 = vmatpush1.msra.mxu0 0.0
    %2481 = vmatprep.subr.mxu0 0.0
    %2482 = vmatpush1.msra.mxu0 0.0
    %2483 = vmatprep.subr.mxu0 0.0
    %2484 = vmatpush1.msra.mxu0 0.0
    %2485 = vmatprep.subr.mxu0 0.0
    %2486 = vmatpush1.msra.mxu0 0.0
    %2487 = vmatprep.subr.mxu0 0.0
    %2488 = vmatpush1.msra.mxu0 0.0
    %2489 = vmatprep.subr.mxu0 0.0
    %2490 = vmatpush1.msra.mxu0 0.0
    %2491 = vmatprep.subr.mxu0 0.0
    %2492 = vmatpush1.msra.mxu0 0.0
    %2493 = vmatprep.subr.mxu0 0.0
    %2494 = vmatpush1.msra.mxu0 0.0
    %2495 = vmatprep.subr.mxu0 0.0
    %2496 = vmatpush1.msra.mxu0 0.0
    %2497 = vmatprep.subr.mxu0 0.0
    %2498 = vmatpush1.msra.mxu0 0.0
    %2499 = vmatprep.subr.mxu0 0.0
    %2500 = vmatpush1.msra.mxu0 0.0
    %2501 = vmatprep.subr.mxu0 0.0
    %2502 = vmatpush1.msra.mxu0 0.0
    %2503 = vmatprep.subr.mxu0 0.0
    %2504 = vmatpush1.msra.mxu0 0.0
    %2505 = vmatprep.subr.mxu0 0.0
    %2506 = vmatpush1.msra.mxu0 0.0
    %2507 = vmatprep.subr.mxu0 0.0
    %2508 = vmatpush1.msra.mxu0 0.0
    %2509 = vmatprep.subr.mxu0 0.0
    %2510 = vmatpush1.msra.mxu0 0.0
    %2511 = vmatprep.subr.mxu0 0.0
    %2512 = vmatpush1.msra.mxu0 0.0
    %2513 = vmatprep.subr.mxu0 0.0
    %2514 = vmatpush1.msra.mxu0 0.0
    %2515 = vmatprep.subr.mxu0 0.0
    %2516 = vmatpush1.msra.mxu0 0.0
    %2517 = vmatprep.subr.mxu0 0.0
    %2518 = vmatpush1.msra.mxu0 0.0
    %2519 = vmatprep.mubr.f32.mxu0 0.0
    %v2520 = vand.u32 %v1729, 4294901760
    %2521 = vmatmul.mubr.f32.gmra.mrb[0].mxu0 %v2520
    %v2522 = vpop.f32.mrb[0].mxu0
    %v2523 = vadd.f32 %v2420, %v2522
    %v2524 = vpop.f32.mrb[0].mxu0
    %v2525 = vadd.f32 %v2422, %v2524
    %2526 = vmatprep.mubr.f32.mxu0 0.0
    %v2527 = vand.u32 %v1732, 4294901760
    %2528 = vmatmul.mubr.f32.gmra.mrb[0].mxu0 %v2527
    %v2529 = vpop.f32.mrb[0].mxu0
    %v2530 = vadd.f32 %v2427, %v2529
    %v2531 = vpop.f32.mrb[0].mxu0
    %v2532 = vadd.f32 %v2429, %v2531
    %2533 = vdwg.mxu0
    %v2534 = vand.u32 %v74, 4294901760
    %2535 = vmatprep.subr.mxu0 %v2534
    %v2536 = vand.u32 %v73, 4294901760
    %2537 = vmatpush1.msra.mxu0 %v2536
    %v2538 = vand.u32 %v76, 4294901760
    %2539 = vmatprep.subr.mxu0 %v2538
    %v2540 = vand.u32 %v75, 4294901760
    %2541 = vmatpush1.msra.mxu0 %v2540
    %v2542 = vand.u32 %v78, 4294901760
    %2543 = vmatprep.subr.mxu0 %v2542
    %v2544 = vand.u32 %v77, 4294901760
    %2545 = vmatpush1.msra.mxu0 %v2544
    %v2546 = vand.u32 %v80, 4294901760
    %2547 = vmatprep.subr.mxu0 %v2546
    %v2548 = vand.u32 %v79, 4294901760
    %2549 = vmatpush1.msra.mxu0 %v2548
    %v2550 = vand.u32 %v82, 4294901760
    %2551 = vmatprep.subr.mxu0 %v2550
    %v2552 = vand.u32 %v81, 4294901760
    %2553 = vmatpush1.msra.mxu0 %v2552
    %v2554 = vand.u32 %v84, 4294901760
    %2555 = vmatprep.subr.mxu0 %v2554
    %v2556 = vand.u32 %v83, 4294901760
    %2557 = vmatpush1.msra.mxu0 %v2556
    %v2558 = vand.u32 %v86, 4294901760
    %2559 = vmatprep.subr.mxu0 %v2558
    %v2560 = vand.u32 %v85, 4294901760
    %2561 = vmatpush1.msra.mxu0 %v2560
    %v2562 = vand.u32 %v88, 4294901760
    %2563 = vmatprep.subr.mxu0 %v2562
    %v2564 = vand.u32 %v87, 4294901760
    %2565 = vmatpush1.msra.mxu0 %v2564
    %v2566 = vand.u32 %v90, 4294901760
    %2567 = vmatprep.subr.mxu0 %v2566
    %v2568 = vand.u32 %v89, 4294901760
    %2569 = vmatpush1.msra.mxu0 %v2568
    %v2570 = vand.u32 %v92, 4294901760
    %2571 = vmatprep.subr.mxu0 %v2570
    %v2572 = vand.u32 %v91, 4294901760
    %2573 = vmatpush1.msra.mxu0 %v2572
    %v2574 = vand.u32 %v94, 4294901760
    %2575 = vmatprep.subr.mxu0 %v2574
    %v2576 = vand.u32 %v93, 4294901760
    %2577 = vmatpush1.msra.mxu0 %v2576
    %v2578 = vand.u32 %v96, 4294901760
    %2579 = vmatprep.subr.mxu0 %v2578
    %v2580 = vand.u32 %v95, 4294901760
    %2581 = vmatpush1.msra.mxu0 %v2580
    %2582 = vmatprep.subr.mxu0 0.0
    %2583 = vmatpush1.msra.mxu0 0.0
    %2584 = vmatprep.subr.mxu0 0.0
    %2585 = vmatpush1.msra.mxu0 0.0
    %2586 = vmatprep.subr.mxu0 0.0
    %2587 = vmatpush1.msra.mxu0 0.0
    %2588 = vmatprep.subr.mxu0 0.0
    %2589 = vmatpush1.msra.mxu0 0.0
    %2590 = vmatprep.subr.mxu0 0.0
    %2591 = vmatpush1.msra.mxu0 0.0
    %2592 = vmatprep.subr.mxu0 0.0
    %2593 = vmatpush1.msra.mxu0 0.0
    %2594 = vmatprep.subr.mxu0 0.0
    %2595 = vmatpush1.msra.mxu0 0.0
    %2596 = vmatprep.subr.mxu0 0.0
    %2597 = vmatpush1.msra.mxu0 0.0
    %2598 = vmatprep.subr.mxu0 0.0
    %2599 = vmatpush1.msra.mxu0 0.0
    %2600 = vmatprep.subr.mxu0 0.0
    %2601 = vmatpush1.msra.mxu0 0.0
    %2602 = vmatprep.subr.mxu0 0.0
    %2603 = vmatpush1.msra.mxu0 0.0
    %2604 = vmatprep.subr.mxu0 0.0
    %2605 = vmatpush1.msra.mxu0 0.0
    %2606 = vmatprep.subr.mxu0 0.0
    %2607 = vmatpush1.msra.mxu0 0.0
    %2608 = vmatprep.subr.mxu0 0.0
    %2609 = vmatpush1.msra.mxu0 0.0
    %2610 = vmatprep.subr.mxu0 0.0
    %2611 = vmatpush1.msra.mxu0 0.0
    %2612 = vmatprep.subr.mxu0 0.0
    %2613 = vmatpush1.msra.mxu0 0.0
    %2614 = vmatprep.subr.mxu0 0.0
    %2615 = vmatpush1.msra.mxu0 0.0
    %2616 = vmatprep.subr.mxu0 0.0
    %2617 = vmatpush1.msra.mxu0 0.0
    %2618 = vmatprep.subr.mxu0 0.0
    %2619 = vmatpush1.msra.mxu0 0.0
    %2620 = vmatprep.subr.mxu0 0.0
    %2621 = vmatpush1.msra.mxu0 0.0
    %2622 = vmatprep.mubr.f32.mxu0 0.0
    %v2623 = vand.u32 %v1729, 4294901760
    %v2624 = vsub.f32 %v1729, %v2623
    %v2625 = vand.u32 %v2624, 4294901760
    %v2626 = vsub.f32 %v2624, %v2625
    %v2627 = vand.u32 %v2626, 4294901760
    %2628 = vmatmul.mubr.f32.gmra.mrb[0].mxu0 %v2627
    %v2629 = vpop.f32.mrb[0].mxu0
    %v2630 = vadd.f32 %v921, %v2629
    %v2631 = vpop.f32.mrb[0].mxu0
    %v2632 = vadd.f32 %v925, %v2631
    %2633 = vmatprep.mubr.f32.mxu0 0.0
    %v2634 = vand.u32 %v1732, 4294901760
    %v2635 = vsub.f32 %v1732, %v2634
    %v2636 = vand.u32 %v2635, 4294901760
    %v2637 = vsub.f32 %v2635, %v2636
    %v2638 = vand.u32 %v2637, 4294901760
    %2639 = vmatmul.mubr.f32.gmra.mrb[0].mxu0 %v2638
    %v2640 = vpop.f32.mrb[0].mxu0
    %v2641 = vadd.f32 %v921, %v2640
    %v2642 = vpop.f32.mrb[0].mxu0
    %v2643 = vadd.f32 %v925, %v2642
    %2644 = vdwg.mxu0
    %v2645 = vand.u32 %v74, 4294901760
    %v2646 = vsub.f32 %v74, %v2645
    %v2647 = vand.u32 %v2646, 4294901760
    %v2648 = vsub.f32 %v2646, %v2647
    %v2649 = vand.u32 %v2648, 4294901760
    %2650 = vmatprep.subr.mxu0 %v2649
    %v2651 = vand.u32 %v73, 4294901760
    %v2652 = vsub.f32 %v73, %v2651
    %v2653 = vand.u32 %v2652, 4294901760
    %v2654 = vsub.f32 %v2652, %v2653
    %v2655 = vand.u32 %v2654, 4294901760
    %2656 = vmatpush1.msra.mxu0 %v2655
    %v2657 = vand.u32 %v76, 4294901760
    %v2658 = vsub.f32 %v76, %v2657
    %v2659 = vand.u32 %v2658, 4294901760
    %v2660 = vsub.f32 %v2658, %v2659
    %v2661 = vand.u32 %v2660, 4294901760
    %2662 = vmatprep.subr.mxu0 %v2661
    %v2663 = vand.u32 %v75, 4294901760
    %v2664 = vsub.f32 %v75, %v2663
    %v2665 = vand.u32 %v2664, 4294901760
    %v2666 = vsub.f32 %v2664, %v2665
    %v2667 = vand.u32 %v2666, 4294901760
    %2668 = vmatpush1.msra.mxu0 %v2667
    %v2669 = vand.u32 %v78, 4294901760
    %v2670 = vsub.f32 %v78, %v2669
    %v2671 = vand.u32 %v2670, 4294901760
    %v2672 = vsub.f32 %v2670, %v2671
    %v2673 = vand.u32 %v2672, 4294901760
    %2674 = vmatprep.subr.mxu0 %v2673
    %v2675 = vand.u32 %v77, 4294901760
    %v2676 = vsub.f32 %v77, %v2675
    %v2677 = vand.u32 %v2676, 4294901760
    %v2678 = vsub.f32 %v2676, %v2677
    %v2679 = vand.u32 %v2678, 4294901760
    %2680 = vmatpush1.msra.mxu0 %v2679
    %v2681 = vand.u32 %v80, 4294901760
    %v2682 = vsub.f32 %v80, %v2681
    %v2683 = vand.u32 %v2682, 4294901760
    %v2684 = vsub.f32 %v2682, %v2683
    %v2685 = vand.u32 %v2684, 4294901760
    %2686 = vmatprep.subr.mxu0 %v2685
    %v2687 = vand.u32 %v79, 4294901760
    %v2688 = vsub.f32 %v79, %v2687
    %v2689 = vand.u32 %v2688, 4294901760
    %v2690 = vsub.f32 %v2688, %v2689
    %v2691 = vand.u32 %v2690, 4294901760
    %2692 = vmatpush1.msra.mxu0 %v2691
    %v2693 = vand.u32 %v82, 4294901760
    %v2694 = vsub.f32 %v82, %v2693
    %v2695 = vand.u32 %v2694, 4294901760
    %v2696 = vsub.f32 %v2694, %v2695
    %v2697 = vand.u32 %v2696, 4294901760
    %2698 = vmatprep.subr.mxu0 %v2697
    %v2699 = vand.u32 %v81, 4294901760
    %v2700 = vsub.f32 %v81, %v2699
    %v2701 = vand.u32 %v2700, 4294901760
    %v2702 = vsub.f32 %v2700, %v2701
    %v2703 = vand.u32 %v2702, 4294901760
    %2704 = vmatpush1.msra.mxu0 %v2703
    %v2705 = vand.u32 %v84, 4294901760
    %v2706 = vsub.f32 %v84, %v2705
    %v2707 = vand.u32 %v2706, 4294901760
    %v2708 = vsub.f32 %v2706, %v2707
    %v2709 = vand.u32 %v2708, 4294901760
    %2710 = vmatprep.subr.mxu0 %v2709
    %v2711 = vand.u32 %v83, 4294901760
    %v2712 = vsub.f32 %v83, %v2711
    %v2713 = vand.u32 %v2712, 4294901760
    %v2714 = vsub.f32 %v2712, %v2713
    %v2715 = vand.u32 %v2714, 4294901760
    %2716 = vmatpush1.msra.mxu0 %v2715
    %v2717 = vand.u32 %v86, 4294901760
    %v2718 = vsub.f32 %v86, %v2717
    %v2719 = vand.u32 %v2718, 4294901760
    %v2720 = vsub.f32 %v2718, %v2719
    %v2721 = vand.u32 %v2720, 4294901760
    %2722 = vmatprep.subr.mxu0 %v2721
    %v2723 = vand.u32 %v85, 4294901760
    %v2724 = vsub.f32 %v85, %v2723
    %v2725 = vand.u32 %v2724, 4294901760
    %v2726 = vsub.f32 %v2724, %v2725
    %v2727 = vand.u32 %v2726, 4294901760
    %2728 = vmatpush1.msra.mxu0 %v2727
    %v2729 = vand.u32 %v88, 4294901760
    %v2730 = vsub.f32 %v88, %v2729
    %v2731 = vand.u32 %v2730, 4294901760
    %v2732 = vsub.f32 %v2730, %v2731
    %v2733 = vand.u32 %v2732, 4294901760
    %2734 = vmatprep.subr.mxu0 %v2733
    %v2735 = vand.u32 %v87, 4294901760
    %v2736 = vsub.f32 %v87, %v2735
    %v2737 = vand.u32 %v2736, 4294901760
    %v2738 = vsub.f32 %v2736, %v2737
    %v2739 = vand.u32 %v2738, 4294901760
    %2740 = vmatpush1.msra.mxu0 %v2739
    %v2741 = vand.u32 %v90, 4294901760
    %v2742 = vsub.f32 %v90, %v2741
    %v2743 = vand.u32 %v2742, 4294901760
    %v2744 = vsub.f32 %v2742, %v2743
    %v2745 = vand.u32 %v2744, 4294901760
    %2746 = vmatprep.subr.mxu0 %v2745
    %v2747 = vand.u32 %v89, 4294901760
    %v2748 = vsub.f32 %v89, %v2747
    %v2749 = vand.u32 %v2748, 4294901760
    %v2750 = vsub.f32 %v2748, %v2749
    %v2751 = vand.u32 %v2750, 4294901760
    %2752 = vmatpush1.msra.mxu0 %v2751
    %v2753 = vand.u32 %v92, 4294901760
    %v2754 = vsub.f32 %v92, %v2753
    %v2755 = vand.u32 %v2754, 4294901760
    %v2756 = vsub.f32 %v2754, %v2755
    %v2757 = vand.u32 %v2756, 4294901760
    %2758 = vmatprep.subr.mxu0 %v2757
    %v2759 = vand.u32 %v91, 4294901760
    %v2760 = vsub.f32 %v91, %v2759
    %v2761 = vand.u32 %v2760, 4294901760
    %v2762 = vsub.f32 %v2760, %v2761
    %v2763 = vand.u32 %v2762, 4294901760
    %2764 = vmatpush1.msra.mxu0 %v2763
    %v2765 = vand.u32 %v94, 4294901760
    %v2766 = vsub.f32 %v94, %v2765
    %v2767 = vand.u32 %v2766, 4294901760
    %v2768 = vsub.f32 %v2766, %v2767
    %v2769 = vand.u32 %v2768, 4294901760
    %2770 = vmatprep.subr.mxu0 %v2769
    %v2771 = vand.u32 %v93, 4294901760
    %v2772 = vsub.f32 %v93, %v2771
    %v2773 = vand.u32 %v2772, 4294901760
    %v2774 = vsub.f32 %v2772, %v2773
    %v2775 = vand.u32 %v2774, 4294901760
    %2776 = vmatpush1.msra.mxu0 %v2775
    %v2777 = vand.u32 %v96, 4294901760
    %v2778 = vsub.f32 %v96, %v2777
    %v2779 = vand.u32 %v2778, 4294901760
    %v2780 = vsub.f32 %v2778, %v2779
    %v2781 = vand.u32 %v2780, 4294901760
    %2782 = vmatprep.subr.mxu0 %v2781
    %v2783 = vand.u32 %v95, 4294901760
    %v2784 = vsub.f32 %v95, %v2783
    %v2785 = vand.u32 %v2784, 4294901760
    %v2786 = vsub.f32 %v2784, %v2785
    %v2787 = vand.u32 %v2786, 4294901760
    %2788 = vmatpush1.msra.mxu0 %v2787
    %2789 = vmatprep.subr.mxu0 0.0
    %2790 = vmatpush1.msra.mxu0 0.0
    %2791 = vmatprep.subr.mxu0 0.0
    %2792 = vmatpush1.msra.mxu0 0.0
    %2793 = vmatprep.subr.mxu0 0.0
    %2794 = vmatpush1.msra.mxu0 0.0
    %2795 = vmatprep.subr.mxu0 0.0
    %2796 = vmatpush1.msra.mxu0 0.0
    %2797 = vmatprep.subr.mxu0 0.0
    %2798 = vmatpush1.msra.mxu0 0.0
    %2799 = vmatprep.subr.mxu0 0.0
    %2800 = vmatpush1.msra.mxu0 0.0
    %2801 = vmatprep.subr.mxu0 0.0
    %2802 = vmatpush1.msra.mxu0 0.0
    %2803 = vmatprep.subr.mxu0 0.0
    %2804 = vmatpush1.msra.mxu0 0.0
    %2805 = vmatprep.subr.mxu0 0.0
    %2806 = vmatpush1.msra.mxu0 0.0
    %2807 = vmatprep.subr.mxu0 0.0
    %2808 = vmatpush1.msra.mxu0 0.0
    %2809 = vmatprep.subr.mxu0 0.0
    %2810 = vmatpush1.msra.mxu0 0.0
    %2811 = vmatprep.subr.mxu0 0.0
    %2812 = vmatpush1.msra.mxu0 0.0
    %2813 = vmatprep.subr.mxu0 0.0
    %2814 = vmatpush1.msra.mxu0 0.0
    %2815 = vmatprep.subr.mxu0 0.0
    %2816 = vmatpush1.msra.mxu0 0.0
    %2817 = vmatprep.subr.mxu0 0.0
    %2818 = vmatpush1.msra.mxu0 0.0
    %2819 = vmatprep.subr.mxu0 0.0
    %2820 = vmatpush1.msra.mxu0 0.0
    %2821 = vmatprep.subr.mxu0 0.0
    %2822 = vmatpush1.msra.mxu0 0.0
    %2823 = vmatprep.subr.mxu0 0.0
    %2824 = vmatpush1.msra.mxu0 0.0
    %2825 = vmatprep.subr.mxu0 0.0
    %2826 = vmatpush1.msra.mxu0 0.0
    %2827 = vmatprep.subr.mxu0 0.0
    %2828 = vmatpush1.msra.mxu0 0.0
    %2829 = vmatprep.mubr.f32.mxu0 0.0
    %v2830 = vand.u32 %v1729, 4294901760
    %2831 = vmatmul.mubr.f32.gmra.mrb[0].mxu0 %v2830
    %v2832 = vpop.f32.mrb[0].mxu0
    %v2833 = vadd.f32 %v2630, %v2832
    %v2834 = vpop.f32.mrb[0].mxu0
    %v2835 = vadd.f32 %v2632, %v2834
    %2836 = vmatprep.mubr.f32.mxu0 0.0
    %v2837 = vand.u32 %v1732, 4294901760
    %2838 = vmatmul.mubr.f32.gmra.mrb[0].mxu0 %v2837
    %v2839 = vpop.f32.mrb[0].mxu0
    %v2840 = vadd.f32 %v2641, %v2839
    %v2841 = vpop.f32.mrb[0].mxu0
    %v2842 = vadd.f32 %v2643, %v2841
    %2843 = vdwg.mxu0
    %v2844 = vand.u32 %v74, 4294901760
    %v2845 = vsub.f32 %v74, %v2844
    %2846 = vmatprep.subr.mxu0 %v2845
    %v2847 = vand.u32 %v73, 4294901760
    %v2848 = vsub.f32 %v73, %v2847
    %2849 = vmatpush1.msra.mxu0 %v2848
    %v2850 = vand.u32 %v76, 4294901760
    %v2851 = vsub.f32 %v76, %v2850
    %2852 = vmatprep.subr.mxu0 %v2851
    %v2853 = vand.u32 %v75, 4294901760
    %v2854 = vsub.f32 %v75, %v2853
    %2855 = vmatpush1.msra.mxu0 %v2854
    %v2856 = vand.u32 %v78, 4294901760
    %v2857 = vsub.f32 %v78, %v2856
    %2858 = vmatprep.subr.mxu0 %v2857
    %v2859 = vand.u32 %v77, 4294901760
    %v2860 = vsub.f32 %v77, %v2859
    %2861 = vmatpush1.msra.mxu0 %v2860
    %v2862 = vand.u32 %v80, 4294901760
    %v2863 = vsub.f32 %v80, %v2862
    %2864 = vmatprep.subr.mxu0 %v2863
    %v2865 = vand.u32 %v79, 4294901760
    %v2866 = vsub.f32 %v79, %v2865
    %2867 = vmatpush1.msra.mxu0 %v2866
    %v2868 = vand.u32 %v82, 4294901760
    %v2869 = vsub.f32 %v82, %v2868
    %2870 = vmatprep.subr.mxu0 %v2869
    %v2871 = vand.u32 %v81, 4294901760
    %v2872 = vsub.f32 %v81, %v2871
    %2873 = vmatpush1.msra.mxu0 %v2872
    %v2874 = vand.u32 %v84, 4294901760
    %v2875 = vsub.f32 %v84, %v2874
    %2876 = vmatprep.subr.mxu0 %v2875
    %v2877 = vand.u32 %v83, 4294901760
    %v2878 = vsub.f32 %v83, %v2877
    %2879 = vmatpush1.msra.mxu0 %v2878
    %v2880 = vand.u32 %v86, 4294901760
    %v2881 = vsub.f32 %v86, %v2880
    %2882 = vmatprep.subr.mxu0 %v2881
    %v2883 = vand.u32 %v85, 4294901760
    %v2884 = vsub.f32 %v85, %v2883
    %2885 = vmatpush1.msra.mxu0 %v2884
    %v2886 = vand.u32 %v88, 4294901760
    %v2887 = vsub.f32 %v88, %v2886
    %2888 = vmatprep.subr.mxu0 %v2887
    %v2889 = vand.u32 %v87, 4294901760
    %v2890 = vsub.f32 %v87, %v2889
    %2891 = vmatpush1.msra.mxu0 %v2890
    %v2892 = vand.u32 %v90, 4294901760
    %v2893 = vsub.f32 %v90, %v2892
    %2894 = vmatprep.subr.mxu0 %v2893
    %v2895 = vand.u32 %v89, 4294901760
    %v2896 = vsub.f32 %v89, %v2895
    %2897 = vmatpush1.msra.mxu0 %v2896
    %v2898 = vand.u32 %v92, 4294901760
    %v2899 = vsub.f32 %v92, %v2898
    %2900 = vmatprep.subr.mxu0 %v2899
    %v2901 = vand.u32 %v91, 4294901760
    %v2902 = vsub.f32 %v91, %v2901
    %2903 = vmatpush1.msra.mxu0 %v2902
    %v2904 = vand.u32 %v94, 4294901760
    %v2905 = vsub.f32 %v94, %v2904
    %2906 = vmatprep.subr.mxu0 %v2905
    %v2907 = vand.u32 %v93, 4294901760
    %v2908 = vsub.f32 %v93, %v2907
    %2909 = vmatpush1.msra.mxu0 %v2908
    %v2910 = vand.u32 %v96, 4294901760
    %v2911 = vsub.f32 %v96, %v2910
    %2912 = vmatprep.subr.mxu0 %v2911
    %v2913 = vand.u32 %v95, 4294901760
    %v2914 = vsub.f32 %v95, %v2913
    %2915 = vmatpush1.msra.mxu0 %v2914
    %2916 = vmatprep.subr.mxu0 0.0
    %2917 = vmatpush1.msra.mxu0 0.0
    %2918 = vmatprep.subr.mxu0 0.0
    %2919 = vmatpush1.msra.mxu0 0.0
    %2920 = vmatprep.subr.mxu0 0.0
    %2921 = vmatpush1.msra.mxu0 0.0
    %2922 = vmatprep.subr.mxu0 0.0
    %2923 = vmatpush1.msra.mxu0 0.0
    %2924 = vmatprep.subr.mxu0 0.0
    %2925 = vmatpush1.msra.mxu0 0.0
    %2926 = vmatprep.subr.mxu0 0.0
    %2927 = vmatpush1.msra.mxu0 0.0
    %2928 = vmatprep.subr.mxu0 0.0
    %2929 = vmatpush1.msra.mxu0 0.0
    %2930 = vmatprep.subr.mxu0 0.0
    %2931 = vmatpush1.msra.mxu0 0.0
    %2932 = vmatprep.subr.mxu0 0.0
    %2933 = vmatpush1.msra.mxu0 0.0
    %2934 = vmatprep.subr.mxu0 0.0
    %2935 = vmatpush1.msra.mxu0 0.0
    %2936 = vmatprep.subr.mxu0 0.0
    %2937 = vmatpush1.msra.mxu0 0.0
    %2938 = vmatprep.subr.mxu0 0.0
    %2939 = vmatpush1.msra.mxu0 0.0
    %2940 = vmatprep.subr.mxu0 0.0
    %2941 = vmatpush1.msra.mxu0 0.0
    %2942 = vmatprep.subr.mxu0 0.0
    %2943 = vmatpush1.msra.mxu0 0.0
    %2944 = vmatprep.subr.mxu0 0.0
    %2945 = vmatpush1.msra.mxu0 0.0
    %2946 = vmatprep.subr.mxu0 0.0
    %2947 = vmatpush1.msra.mxu0 0.0
    %2948 = vmatprep.subr.mxu0 0.0
    %2949 = vmatpush1.msra.mxu0 0.0
    %2950 = vmatprep.subr.mxu0 0.0
    %2951 = vmatpush1.msra.mxu0 0.0
    %2952 = vmatprep.subr.mxu0 0.0
    %2953 = vmatpush1.msra.mxu0 0.0
    %2954 = vmatprep.subr.mxu0 0.0
    %2955 = vmatpush1.msra.mxu0 0.0
    %2956 = vmatprep.mubr.f32.mxu0 0.0
    %v2957 = vand.u32 %v1729, 4294901760
    %v2958 = vsub.f32 %v1729, %v2957
    %2959 = vmatmul.mubr.f32.gmra.mrb[0].mxu0 %v2958
    %v2960 = vpop.f32.mrb[0].mxu0
    %v2961 = vadd.f32 %v2833, %v2960
    %v2962 = vpop.f32.mrb[0].mxu0
    %v2963 = vadd.f32 %v2835, %v2962
    %2964 = vmatprep.mubr.f32.mxu0 0.0
    %v2965 = vand.u32 %v1732, 4294901760
    %v2966 = vsub.f32 %v1732, %v2965
    %2967 = vmatmul.mubr.f32.gmra.mrb[0].mxu0 %v2966
    %v2968 = vpop.f32.mrb[0].mxu0
    %v2969 = vadd.f32 %v2840, %v2968
    %v2970 = vpop.f32.mrb[0].mxu0
    %v2971 = vadd.f32 %v2842, %v2970
    %2972 = vdwg.mxu0
    %v2973 = vand.u32 %v74, 4294901760
    %2974 = vmatprep.subr.mxu0 %v2973
    %v2975 = vand.u32 %v73, 4294901760
    %2976 = vmatpush1.msra.mxu0 %v2975
    %v2977 = vand.u32 %v76, 4294901760
    %2978 = vmatprep.subr.mxu0 %v2977
    %v2979 = vand.u32 %v75, 4294901760
    %2980 = vmatpush1.msra.mxu0 %v2979
    %v2981 = vand.u32 %v78, 4294901760
    %2982 = vmatprep.subr.mxu0 %v2981
    %v2983 = vand.u32 %v77, 4294901760
    %2984 = vmatpush1.msra.mxu0 %v2983
    %v2985 = vand.u32 %v80, 4294901760
    %2986 = vmatprep.subr.mxu0 %v2985
    %v2987 = vand.u32 %v79, 4294901760
    %2988 = vmatpush1.msra.mxu0 %v2987
    %v2989 = vand.u32 %v82, 4294901760
    %2990 = vmatprep.subr.mxu0 %v2989
    %v2991 = vand.u32 %v81, 4294901760
    %2992 = vmatpush1.msra.mxu0 %v2991
    %v2993 = vand.u32 %v84, 4294901760
    %2994 = vmatprep.subr.mxu0 %v2993
    %v2995 = vand.u32 %v83, 4294901760
    %2996 = vmatpush1.msra.mxu0 %v2995
    %v2997 = vand.u32 %v86, 4294901760
    %2998 = vmatprep.subr.mxu0 %v2997
    %v2999 = vand.u32 %v85, 4294901760
    %3000 = vmatpush1.msra.mxu0 %v2999
    %v3001 = vand.u32 %v88, 4294901760
    %3002 = vmatprep.subr.mxu0 %v3001
    %v3003 = vand.u32 %v87, 4294901760
    %3004 = vmatpush1.msra.mxu0 %v3003
    %v3005 = vand.u32 %v90, 4294901760
    %3006 = vmatprep.subr.mxu0 %v3005
    %v3007 = vand.u32 %v89, 4294901760
    %3008 = vmatpush1.msra.mxu0 %v3007
    %v3009 = vand.u32 %v92, 4294901760
    %3010 = vmatprep.subr.mxu0 %v3009
    %v3011 = vand.u32 %v91, 4294901760
    %3012 = vmatpush1.msra.mxu0 %v3011
    %v3013 = vand.u32 %v94, 4294901760
    %3014 = vmatprep.subr.mxu0 %v3013
    %v3015 = vand.u32 %v93, 4294901760
    %3016 = vmatpush1.msra.mxu0 %v3015
    %v3017 = vand.u32 %v96, 4294901760
    %3018 = vmatprep.subr.mxu0 %v3017
    %v3019 = vand.u32 %v95, 4294901760
    %3020 = vmatpush1.msra.mxu0 %v3019
    %3021 = vmatprep.subr.mxu0 0.0
    %3022 = vmatpush1.msra.mxu0 0.0
    %3023 = vmatprep.subr.mxu0 0.0
    %3024 = vmatpush1.msra.mxu0 0.0
    %3025 = vmatprep.subr.mxu0 0.0
    %3026 = vmatpush1.msra.mxu0 0.0
    %3027 = vmatprep.subr.mxu0 0.0
    %3028 = vmatpush1.msra.mxu0 0.0
    %3029 = vmatprep.subr.mxu0 0.0
    %3030 = vmatpush1.msra.mxu0 0.0
    %3031 = vmatprep.subr.mxu0 0.0
    %3032 = vmatpush1.msra.mxu0 0.0
    %3033 = vmatprep.subr.mxu0 0.0
    %3034 = vmatpush1.msra.mxu0 0.0
    %3035 = vmatprep.subr.mxu0 0.0
    %3036 = vmatpush1.msra.mxu0 0.0
    %3037 = vmatprep.subr.mxu0 0.0
    %3038 = vmatpush1.msra.mxu0 0.0
    %3039 = vmatprep.subr.mxu0 0.0
    %3040 = vmatpush1.msra.mxu0 0.0
    %3041 = vmatprep.subr.mxu0 0.0
    %3042 = vmatpush1.msra.mxu0 0.0
    %3043 = vmatprep.subr.mxu0 0.0
    %3044 = vmatpush1.msra.mxu0 0.0
    %3045 = vmatprep.subr.mxu0 0.0
    %3046 = vmatpush1.msra.mxu0 0.0
    %3047 = vmatprep.subr.mxu0 0.0
    %3048 = vmatpush1.msra.mxu0 0.0
    %3049 = vmatprep.subr.mxu0 0.0
    %3050 = vmatpush1.msra.mxu0 0.0
    %3051 = vmatprep.subr.mxu0 0.0
    %3052 = vmatpush1.msra.mxu0 0.0
    %3053 = vmatprep.subr.mxu0 0.0
    %3054 = vmatpush1.msra.mxu0 0.0
    %3055 = vmatprep.subr.mxu0 0.0
    %3056 = vmatpush1.msra.mxu0 0.0
    %3057 = vmatprep.subr.mxu0 0.0
    %3058 = vmatpush1.msra.mxu0 0.0
    %3059 = vmatprep.subr.mxu0 0.0
    %3060 = vmatpush1.msra.mxu0 0.0
    %3061 = vmatprep.mubr.f32.mxu0 0.0
    %v3062 = vand.u32 %v1729, 4294901760
    %v3063 = vsub.f32 %v1729, %v3062
    %v3064 = vand.u32 %v3063, 4294901760
    %3065 = vmatmul.mubr.f32.gmra.mrb[0].mxu0 %v3064
    %v3066 = vpop.f32.mrb[0].mxu0
    %v3067 = vadd.f32 %v2961, %v3066
    %v3068 = vpop.f32.mrb[0].mxu0
    %v3069 = vadd.f32 %v2963, %v3068
    %3070 = vmatprep.mubr.f32.mxu0 0.0
    %v3071 = vand.u32 %v1732, 4294901760
    %v3072 = vsub.f32 %v1732, %v3071
    %v3073 = vand.u32 %v3072, 4294901760
    %3074 = vmatmul.mubr.f32.gmra.mrb[0].mxu0 %v3073
    %v3075 = vpop.f32.mrb[0].mxu0
    %v3076 = vadd.f32 %v2969, %v3075
    %v3077 = vpop.f32.mrb[0].mxu0
    %v3078 = vadd.f32 %v2971, %v3077
    %3079 = vdwg.mxu0
    %v3080 = vand.u32 %v74, 4294901760
    %v3081 = vsub.f32 %v74, %v3080
    %v3082 = vand.u32 %v3081, 4294901760
    %3083 = vmatprep.subr.mxu0 %v3082
    %v3084 = vand.u32 %v73, 4294901760
    %v3085 = vsub.f32 %v73, %v3084
    %v3086 = vand.u32 %v3085, 4294901760
    %3087 = vmatpush1.msra.mxu0 %v3086
    %v3088 = vand.u32 %v76, 4294901760
    %v3089 = vsub.f32 %v76, %v3088
    %v3090 = vand.u32 %v3089, 4294901760
    %3091 = vmatprep.subr.mxu0 %v3090
    %v3092 = vand.u32 %v75, 4294901760
    %v3093 = vsub.f32 %v75, %v3092
    %v3094 = vand.u32 %v3093, 4294901760
    %3095 = vmatpush1.msra.mxu0 %v3094
    %v3096 = vand.u32 %v78, 4294901760
    %v3097 = vsub.f32 %v78, %v3096
    %v3098 = vand.u32 %v3097, 4294901760
    %3099 = vmatprep.subr.mxu0 %v3098
    %v3100 = vand.u32 %v77, 4294901760
    %v3101 = vsub.f32 %v77, %v3100
    %v3102 = vand.u32 %v3101, 4294901760
    %3103 = vmatpush1.msra.mxu0 %v3102
    %v3104 = vand.u32 %v80, 4294901760
    %v3105 = vsub.f32 %v80, %v3104
    %v3106 = vand.u32 %v3105, 4294901760
    %3107 = vmatprep.subr.mxu0 %v3106
    %v3108 = vand.u32 %v79, 4294901760
    %v3109 = vsub.f32 %v79, %v3108
    %v3110 = vand.u32 %v3109, 4294901760
    %3111 = vmatpush1.msra.mxu0 %v3110
    %v3112 = vand.u32 %v82, 4294901760
    %v3113 = vsub.f32 %v82, %v3112
    %v3114 = vand.u32 %v3113, 4294901760
    %3115 = vmatprep.subr.mxu0 %v3114
    %v3116 = vand.u32 %v81, 4294901760
    %v3117 = vsub.f32 %v81, %v3116
    %v3118 = vand.u32 %v3117, 4294901760
    %3119 = vmatpush1.msra.mxu0 %v3118
    %v3120 = vand.u32 %v84, 4294901760
    %v3121 = vsub.f32 %v84, %v3120
    %v3122 = vand.u32 %v3121, 4294901760
    %3123 = vmatprep.subr.mxu0 %v3122
    %v3124 = vand.u32 %v83, 4294901760
    %v3125 = vsub.f32 %v83, %v3124
    %v3126 = vand.u32 %v3125, 4294901760
    %3127 = vmatpush1.msra.mxu0 %v3126
    %v3128 = vand.u32 %v86, 4294901760
    %v3129 = vsub.f32 %v86, %v3128
    %v3130 = vand.u32 %v3129, 4294901760
    %3131 = vmatprep.subr.mxu0 %v3130
    %v3132 = vand.u32 %v85, 4294901760
    %v3133 = vsub.f32 %v85, %v3132
    %v3134 = vand.u32 %v3133, 4294901760
    %3135 = vmatpush1.msra.mxu0 %v3134
    %v3136 = vand.u32 %v88, 4294901760
    %v3137 = vsub.f32 %v88, %v3136
    %v3138 = vand.u32 %v3137, 4294901760
    %3139 = vmatprep.subr.mxu0 %v3138
    %v3140 = vand.u32 %v87, 4294901760
    %v3141 = vsub.f32 %v87, %v3140
    %v3142 = vand.u32 %v3141, 4294901760
    %3143 = vmatpush1.msra.mxu0 %v3142
    %v3144 = vand.u32 %v90, 4294901760
    %v3145 = vsub.f32 %v90, %v3144
    %v3146 = vand.u32 %v3145, 4294901760
    %3147 = vmatprep.subr.mxu0 %v3146
    %v3148 = vand.u32 %v89, 4294901760
    %v3149 = vsub.f32 %v89, %v3148
    %v3150 = vand.u32 %v3149, 4294901760
    %3151 = vmatpush1.msra.mxu0 %v3150
    %v3152 = vand.u32 %v92, 4294901760
    %v3153 = vsub.f32 %v92, %v3152
    %v3154 = vand.u32 %v3153, 4294901760
    %3155 = vmatprep.subr.mxu0 %v3154
    %v3156 = vand.u32 %v91, 4294901760
    %v3157 = vsub.f32 %v91, %v3156
    %v3158 = vand.u32 %v3157, 4294901760
    %3159 = vmatpush1.msra.mxu0 %v3158
    %v3160 = vand.u32 %v94, 4294901760
    %v3161 = vsub.f32 %v94, %v3160
    %v3162 = vand.u32 %v3161, 4294901760
    %3163 = vmatprep.subr.mxu0 %v3162
    %v3164 = vand.u32 %v93, 4294901760
    %v3165 = vsub.f32 %v93, %v3164
    %v3166 = vand.u32 %v3165, 4294901760
    %3167 = vmatpush1.msra.mxu0 %v3166
    %v3168 = vand.u32 %v96, 4294901760
    %v3169 = vsub.f32 %v96, %v3168
    %v3170 = vand.u32 %v3169, 4294901760
    %3171 = vmatprep.subr.mxu0 %v3170
    %v3172 = vand.u32 %v95, 4294901760
    %v3173 = vsub.f32 %v95, %v3172
    %v3174 = vand.u32 %v3173, 4294901760
    %3175 = vmatpush1.msra.mxu0 %v3174
    %3176 = vmatprep.subr.mxu0 0.0
    %3177 = vmatpush1.msra.mxu0 0.0
    %3178 = vmatprep.subr.mxu0 0.0
    %3179 = vmatpush1.msra.mxu0 0.0
    %3180 = vmatprep.subr.mxu0 0.0
    %3181 = vmatpush1.msra.mxu0 0.0
    %3182 = vmatprep.subr.mxu0 0.0
    %3183 = vmatpush1.msra.mxu0 0.0
    %3184 = vmatprep.subr.mxu0 0.0
    %3185 = vmatpush1.msra.mxu0 0.0
    %3186 = vmatprep.subr.mxu0 0.0
    %3187 = vmatpush1.msra.mxu0 0.0
    %3188 = vmatprep.subr.mxu0 0.0
    %3189 = vmatpush1.msra.mxu0 0.0
    %3190 = vmatprep.subr.mxu0 0.0
    %3191 = vmatpush1.msra.mxu0 0.0
    %3192 = vmatprep.subr.mxu0 0.0
    %3193 = vmatpush1.msra.mxu0 0.0
    %3194 = vmatprep.subr.mxu0 0.0
    %3195 = vmatpush1.msra.mxu0 0.0
    %3196 = vmatprep.subr.mxu0 0.0
    %3197 = vmatpush1.msra.mxu0 0.0
    %3198 = vmatprep.subr.mxu0 0.0
    %3199 = vmatpush1.msra.mxu0 0.0
    %3200 = vmatprep.subr.mxu0 0.0
    %3201 = vmatpush1.msra.mxu0 0.0
    %3202 = vmatprep.subr.mxu0 0.0
    %3203 = vmatpush1.msra.mxu0 0.0
    %3204 = vmatprep.subr.mxu0 0.0
    %3205 = vmatpush1.msra.mxu0 0.0
    %3206 = vmatprep.subr.mxu0 0.0
    %3207 = vmatpush1.msra.mxu0 0.0
    %3208 = vmatprep.subr.mxu0 0.0
    %3209 = vmatpush1.msra.mxu0 0.0
    %3210 = vmatprep.subr.mxu0 0.0
    %3211 = vmatpush1.msra.mxu0 0.0
    %3212 = vmatprep.subr.mxu0 0.0
    %3213 = vmatpush1.msra.mxu0 0.0
    %3214 = vmatprep.subr.mxu0 0.0
    %3215 = vmatpush1.msra.mxu0 0.0
    %3216 = vmatprep.mubr.f32.mxu0 0.0
    %v3217 = vand.u32 %v1729, 4294901760
    %3218 = vmatmul.mubr.f32.gmra.mrb[0].mxu0 %v3217
    %v3219 = vpop.f32.mrb[0].mxu0
    %v3220 = vadd.f32 %v3067, %v3219
    %v3221 = vpop.f32.mrb[0].mxu0
    %v3222 = vadd.f32 %v3069, %v3221
    %3223 = vmatprep.mubr.f32.mxu0 0.0
    %v3224 = vand.u32 %v1732, 4294901760
    %3225 = vmatmul.mubr.f32.gmra.mrb[0].mxu0 %v3224
    %v3226 = vpop.f32.mrb[0].mxu0
    %v3227 = vadd.f32 %v3076, %v3226
    %v3228 = vpop.f32.mrb[0].mxu0
    %v3229 = vadd.f32 %v3078, %v3228
    %3230 = vdwg.mxu0
    %v3231 = vand.u32 %v74, 4294901760
    %3232 = vmatprep.subr.mxu0 %v3231
    %v3233 = vand.u32 %v73, 4294901760
    %3234 = vmatpush1.msra.mxu0 %v3233
    %v3235 = vand.u32 %v76, 4294901760
    %3236 = vmatprep.subr.mxu0 %v3235
    %v3237 = vand.u32 %v75, 4294901760
    %3238 = vmatpush1.msra.mxu0 %v3237
    %v3239 = vand.u32 %v78, 4294901760
    %3240 = vmatprep.subr.mxu0 %v3239
    %v3241 = vand.u32 %v77, 4294901760
    %3242 = vmatpush1.msra.mxu0 %v3241
    %v3243 = vand.u32 %v80, 4294901760
    %3244 = vmatprep.subr.mxu0 %v3243
    %v3245 = vand.u32 %v79, 4294901760
    %3246 = vmatpush1.msra.mxu0 %v3245
    %v3247 = vand.u32 %v82, 4294901760
    %3248 = vmatprep.subr.mxu0 %v3247
    %v3249 = vand.u32 %v81, 4294901760
    %3250 = vmatpush1.msra.mxu0 %v3249
    %v3251 = vand.u32 %v84, 4294901760
    %3252 = vmatprep.subr.mxu0 %v3251
    %v3253 = vand.u32 %v83, 4294901760
    %3254 = vmatpush1.msra.mxu0 %v3253
    %v3255 = vand.u32 %v86, 4294901760
    %3256 = vmatprep.subr.mxu0 %v3255
    %v3257 = vand.u32 %v85, 4294901760
    %3258 = vmatpush1.msra.mxu0 %v3257
    %v3259 = vand.u32 %v88, 4294901760
    %3260 = vmatprep.subr.mxu0 %v3259
    %v3261 = vand.u32 %v87, 4294901760
    %3262 = vmatpush1.msra.mxu0 %v3261
    %v3263 = vand.u32 %v90, 4294901760
    %3264 = vmatprep.subr.mxu0 %v3263
    %v3265 = vand.u32 %v89, 4294901760
    %3266 = vmatpush1.msra.mxu0 %v3265
    %v3267 = vand.u32 %v92, 4294901760
    %3268 = vmatprep.subr.mxu0 %v3267
    %v3269 = vand.u32 %v91, 4294901760
    %3270 = vmatpush1.msra.mxu0 %v3269
    %v3271 = vand.u32 %v94, 4294901760
    %3272 = vmatprep.subr.mxu0 %v3271
    %v3273 = vand.u32 %v93, 4294901760
    %3274 = vmatpush1.msra.mxu0 %v3273
    %v3275 = vand.u32 %v96, 4294901760
    %3276 = vmatprep.subr.mxu0 %v3275
    %v3277 = vand.u32 %v95, 4294901760
    %3278 = vmatpush1.msra.mxu0 %v3277
    %3279 = vmatprep.subr.mxu0 0.0
    %3280 = vmatpush1.msra.mxu0 0.0
    %3281 = vmatprep.subr.mxu0 0.0
    %3282 = vmatpush1.msra.mxu0 0.0
    %3283 = vmatprep.subr.mxu0 0.0
    %3284 = vmatpush1.msra.mxu0 0.0
    %3285 = vmatprep.subr.mxu0 0.0
    %3286 = vmatpush1.msra.mxu0 0.0
    %3287 = vmatprep.subr.mxu0 0.0
    %3288 = vmatpush1.msra.mxu0 0.0
    %3289 = vmatprep.subr.mxu0 0.0
    %3290 = vmatpush1.msra.mxu0 0.0
    %3291 = vmatprep.subr.mxu0 0.0
    %3292 = vmatpush1.msra.mxu0 0.0
    %3293 = vmatprep.subr.mxu0 0.0
    %3294 = vmatpush1.msra.mxu0 0.0
    %3295 = vmatprep.subr.mxu0 0.0
    %3296 = vmatpush1.msra.mxu0 0.0
    %3297 = vmatprep.subr.mxu0 0.0
    %3298 = vmatpush1.msra.mxu0 0.0
    %3299 = vmatprep.subr.mxu0 0.0
    %3300 = vmatpush1.msra.mxu0 0.0
    %3301 = vmatprep.subr.mxu0 0.0
    %3302 = vmatpush1.msra.mxu0 0.0
    %3303 = vmatprep.subr.mxu0 0.0
    %3304 = vmatpush1.msra.mxu0 0.0
    %3305 = vmatprep.subr.mxu0 0.0
    %3306 = vmatpush1.msra.mxu0 0.0
    %3307 = vmatprep.subr.mxu0 0.0
    %3308 = vmatpush1.msra.mxu0 0.0
    %3309 = vmatprep.subr.mxu0 0.0
    %3310 = vmatpush1.msra.mxu0 0.0
    %3311 = vmatprep.subr.mxu0 0.0
    %3312 = vmatpush1.msra.mxu0 0.0
    %3313 = vmatprep.subr.mxu0 0.0
    %3314 = vmatpush1.msra.mxu0 0.0
    %3315 = vmatprep.subr.mxu0 0.0
    %3316 = vmatpush1.msra.mxu0 0.0
    %3317 = vmatprep.subr.mxu0 0.0
    %3318 = vmatpush1.msra.mxu0 0.0
    %3319 = vmatprep.mubr.f32.mxu0 0.0
    %v3320 = vand.u32 %v1729, 4294901760
    %3321 = vmatmul.mubr.f32.gmra.mrb[0].mxu0 %v3320
    %v3322 = vpop.f32.mrb[0].mxu0
    %v3323 = vadd.f32 %v3220, %v3322
    %v3324 = vpop.f32.mrb[0].mxu0
    %v3325 = vadd.f32 %v3222, %v3324
    %3326 = vmatprep.mubr.f32.mxu0 0.0
    %v3327 = vand.u32 %v1732, 4294901760
    %3328 = vmatmul.mubr.f32.gmra.mrb[0].mxu0 %v3327
    %v3329 = vpop.f32.mrb[0].mxu0
    %v3330 = vadd.f32 %v3227, %v3329
    %v3331 = vpop.f32.mrb[0].mxu0
    %v3332 = vadd.f32 %v3229, %v3331
    %3333 = vdwg.mxu0
    %v3334 = vld [vmem:[%s6] sm:$0xff]
    %v3335 = vld [vmem:[%s6 + $0x8] sm:$0xff]
    %v3336 = vld [vmem:[%s6 + $0x10] sm:$0xff]
    %v3337 = vld [vmem:[%s6 + $0x18] sm:$0xff]
    %v3338 = vld [vmem:[%s6 + $0x20] sm:$0xff]
    %v3339 = vld [vmem:[%s6 + $0x28] sm:$0xff]
    %v3340 = vld [vmem:[%s6 + $0x30] sm:$0xff]
    %v3341 = vld [vmem:[%s6 + $0x38] sm:$0xff]
    %v3342 = vld [vmem:[%s6 + $0x40] sm:$0xff]
    %v3343 = vld [vmem:[%s6 + $0x48] sm:$0xff]
    %v3344 = vld [vmem:[%s6 + $0x50] sm:$0xff]
    %v3345 = vld [vmem:[%s6 + $0x58] sm:$0xff]
    %v3346 = vld [vmem:[%s6 + $0x60] sm:$0xff]
    %v3347 = vld [vmem:[%s6 + $0x68] sm:$0xff]
    %v3348 = vld [vmem:[%s6 + $0x70] sm:$0xff]
    %v3349 = vld [vmem:[%s6 + $0x78] sm:$0xff]
    %v3350 = vld [vmem:[%s6 + $0x80] sm:$0xff]
    %v3351 = vld [vmem:[%s6 + $0x88] sm:$0xff]
    %v3352 = vld [vmem:[%s7] sm:$0xff]
    %v3353 = vld [vmem:[%s7 + $0x8] sm:$0x1]
    %v3354 = vmul.f32 %v906, %v3323
    %v3355 = vmul.f32 %v908, %v3325
    %v3356 = vmul.f32 %v913, %v3330
    %v3357 = vmul.f32 %v915, %v3332
    %vm3358 = vcmask 130048
    %v3360 = vsel %vm3358, %v3355, 0
    %v3363 = vsel %vm3358, %v3357, 0
    %3365 = vmatprep.subr.mxu0 0.0
    %v3366 = vand.u32 %v3334, 4294901760
    %3367 = vmatpush1.msra.mxu0 %v3366
    %3368 = vmatprep.subr.mxu0 0.0
    %v3369 = vand.u32 %v3335, 4294901760
    %3370 = vmatpush1.msra.mxu0 %v3369
    %3371 = vmatprep.subr.mxu0 0.0
    %v3372 = vand.u32 %v3336, 4294901760
    %3373 = vmatpush1.msra.mxu0 %v3372
    %3374 = vmatprep.subr.mxu0 0.0
    %v3375 = vand.u32 %v3337, 4294901760
    %3376 = vmatpush1.msra.mxu0 %v3375
    %3377 = vmatprep.subr.mxu0 0.0
    %v3378 = vand.u32 %v3338, 4294901760
    %3379 = vmatpush1.msra.mxu0 %v3378
    %3380 = vmatprep.subr.mxu0 0.0
    %v3381 = vand.u32 %v3339, 4294901760
    %3382 = vmatpush1.msra.mxu0 %v3381
    %3383 = vmatprep.subr.mxu0 0.0
    %v3384 = vand.u32 %v3340, 4294901760
    %3385 = vmatpush1.msra.mxu0 %v3384
    %3386 = vmatprep.subr.mxu0 0.0
    %v3387 = vand.u32 %v3341, 4294901760
    %3388 = vmatpush1.msra.mxu0 %v3387
    %3389 = vmatprep.subr.mxu0 0.0
    %v3390 = vand.u32 %v3342, 4294901760
    %3391 = vmatpush1.msra.mxu0 %v3390
    %3392 = vmatprep.subr.mxu0 0.0
    %v3393 = vand.u32 %v3343, 4294901760
    %3394 = vmatpush1.msra.mxu0 %v3393
    %3395 = vmatprep.subr.mxu0 0.0
    %v3396 = vand.u32 %v3344, 4294901760
    %3397 = vmatpush1.msra.mxu0 %v3396
    %3398 = vmatprep.subr.mxu0 0.0
    %v3399 = vand.u32 %v3345, 4294901760
    %3400 = vmatpush1.msra.mxu0 %v3399
    %3401 = vmatprep.subr.mxu0 0.0
    %v3402 = vand.u32 %v3346, 4294901760
    %3403 = vmatpush1.msra.mxu0 %v3402
    %3404 = vmatprep.subr.mxu0 0.0
    %v3405 = vand.u32 %v3347, 4294901760
    %3406 = vmatpush1.msra.mxu0 %v3405
    %3407 = vmatprep.subr.mxu0 0.0
    %v3408 = vand.u32 %v3348, 4294901760
    %3409 = vmatpush1.msra.mxu0 %v3408
    %3410 = vmatprep.subr.mxu0 0.0
    %v3411 = vand.u32 %v3349, 4294901760
    %3412 = vmatpush1.msra.mxu0 %v3411
    %3413 = vmatprep.subr.mxu0 0.0
    %v3414 = vand.u32 %v3350, 4294901760
    %3415 = vmatpush1.msra.mxu0 %v3414
    %3416 = vmatprep.subr.mxu0 0.0
    %v3417 = vand.u32 %v3351, 4294901760
    %3418 = vmatpush1.msra.mxu0 %v3417
    %3419 = vmatprep.subr.mxu0 0.0
    %3420 = vmatpush1.msra.mxu0 0.0
    %3421 = vmatprep.subr.mxu0 0.0
    %3422 = vmatpush1.msra.mxu0 0.0
    %3423 = vmatprep.subr.mxu0 0.0
    %3424 = vmatpush1.msra.mxu0 0.0
    %3425 = vmatprep.subr.mxu0 0.0
    %3426 = vmatpush1.msra.mxu0 0.0
    %3427 = vmatprep.subr.mxu0 0.0
    %3428 = vmatpush1.msra.mxu0 0.0
    %3429 = vmatprep.subr.mxu0 0.0
    %3430 = vmatpush1.msra.mxu0 0.0
    %3431 = vmatprep.subr.mxu0 0.0
    %3432 = vmatpush1.msra.mxu0 0.0
    %3433 = vmatprep.subr.mxu0 0.0
    %3434 = vmatpush1.msra.mxu0 0.0
    %3435 = vmatprep.subr.mxu0 0.0
    %3436 = vmatpush1.msra.mxu0 0.0
    %3437 = vmatprep.subr.mxu0 0.0
    %3438 = vmatpush1.msra.mxu0 0.0
    %3439 = vmatprep.subr.mxu0 0.0
    %3440 = vmatpush1.msra.mxu0 0.0
    %3441 = vmatprep.subr.mxu0 0.0
    %3442 = vmatpush1.msra.mxu0 0.0
    %3443 = vmatprep.subr.mxu0 0.0
    %3444 = vmatpush1.msra.mxu0 0.0
    %3445 = vmatprep.subr.mxu0 0.0
    %3446 = vmatpush1.msra.mxu0 0.0
    %v3447 = vand.u32 %v3360, 4294901760
    %v3448 = vsub.f32 %v3360, %v3447
    %v3449 = vand.u32 %v3448, 4294901760
    %v3450 = vsub.f32 %v3448, %v3449
    %v3451 = vand.u32 %v3450, 4294901760
    %3452 = vmatprep.mubr.f32.mxu0 %v3451
    %v3453 = vand.u32 %v3354, 4294901760
    %v3454 = vsub.f32 %v3354, %v3453
    %v3455 = vand.u32 %v3454, 4294901760
    %v3456 = vsub.f32 %v3454, %v3455
    %v3457 = vand.u32 %v3456, 4294901760
    %3458 = vmatmul.mubr.f32.gmra.mrb[0].mxu0 %v3457
    %v3459 = vpop.f32.mrb[0].mxu0
    %v3460 = vadd.f32 0.0, %v3459
    %v3461 = vpop.f32.mrb[0].mxu0
    %v3462 = vand.u32 %v3363, 4294901760
    %v3463 = vsub.f32 %v3363, %v3462
    %v3464 = vand.u32 %v3463, 4294901760
    %v3465 = vsub.f32 %v3463, %v3464
    %v3466 = vand.u32 %v3465, 4294901760
    %3467 = vmatprep.mubr.f32.mxu0 %v3466
    %v3468 = vand.u32 %v3356, 4294901760
    %v3469 = vsub.f32 %v3356, %v3468
    %v3470 = vand.u32 %v3469, 4294901760
    %v3471 = vsub.f32 %v3469, %v3470
    %v3472 = vand.u32 %v3471, 4294901760
    %3473 = vmatmul.mubr.f32.gmra.mrb[0].mxu0 %v3472
    %v3474 = vpop.f32.mrb[0].mxu0
    %v3475 = vadd.f32 0.0, %v3474
    %v3476 = vpop.f32.mrb[0].mxu0
    %3477 = vdwg.mxu0
    %3478 = vmatprep.subr.mxu0 0.0
    %v3479 = vand.u32 %v3334, 4294901760
    %v3480 = vsub.f32 %v3334, %v3479
    %v3481 = vand.u32 %v3480, 4294901760
    %v3482 = vsub.f32 %v3480, %v3481
    %v3483 = vand.u32 %v3482, 4294901760
    %3484 = vmatpush1.msra.mxu0 %v3483
    %3485 = vmatprep.subr.mxu0 0.0
    %v3486 = vand.u32 %v3335, 4294901760
    %v3487 = vsub.f32 %v3335, %v3486
    %v3488 = vand.u32 %v3487, 4294901760
    %v3489 = vsub.f32 %v3487, %v3488
    %v3490 = vand.u32 %v3489, 4294901760
    %3491 = vmatpush1.msra.mxu0 %v3490
    %3492 = vmatprep.subr.mxu0 0.0
    %v3493 = vand.u32 %v3336, 4294901760
    %v3494 = vsub.f32 %v3336, %v3493
    %v3495 = vand.u32 %v3494, 4294901760
    %v3496 = vsub.f32 %v3494, %v3495
    %v3497 = vand.u32 %v3496, 4294901760
    %3498 = vmatpush1.msra.mxu0 %v3497
    %3499 = vmatprep.subr.mxu0 0.0
    %v3500 = vand.u32 %v3337, 4294901760
    %v3501 = vsub.f32 %v3337, %v3500
    %v3502 = vand.u32 %v3501, 4294901760
    %v3503 = vsub.f32 %v3501, %v3502
    %v3504 = vand.u32 %v3503, 4294901760
    %3505 = vmatpush1.msra.mxu0 %v3504
    %3506 = vmatprep.subr.mxu0 0.0
    %v3507 = vand.u32 %v3338, 4294901760
    %v3508 = vsub.f32 %v3338, %v3507
    %v3509 = vand.u32 %v3508, 4294901760
    %v3510 = vsub.f32 %v3508, %v3509
    %v3511 = vand.u32 %v3510, 4294901760
    %3512 = vmatpush1.msra.mxu0 %v3511
    %3513 = vmatprep.subr.mxu0 0.0
    %v3514 = vand.u32 %v3339, 4294901760
    %v3515 = vsub.f32 %v3339, %v3514
    %v3516 = vand.u32 %v3515, 4294901760
    %v3517 = vsub.f32 %v3515, %v3516
    %v3518 = vand.u32 %v3517, 4294901760
    %3519 = vmatpush1.msra.mxu0 %v3518
    %3520 = vmatprep.subr.mxu0 0.0
    %v3521 = vand.u32 %v3340, 4294901760
    %v3522 = vsub.f32 %v3340, %v3521
    %v3523 = vand.u32 %v3522, 4294901760
    %v3524 = vsub.f32 %v3522, %v3523
    %v3525 = vand.u32 %v3524, 4294901760
    %3526 = vmatpush1.msra.mxu0 %v3525
    %3527 = vmatprep.subr.mxu0 0.0
    %v3528 = vand.u32 %v3341, 4294901760
    %v3529 = vsub.f32 %v3341, %v3528
    %v3530 = vand.u32 %v3529, 4294901760
    %v3531 = vsub.f32 %v3529, %v3530
    %v3532 = vand.u32 %v3531, 4294901760
    %3533 = vmatpush1.msra.mxu0 %v3532
    %3534 = vmatprep.subr.mxu0 0.0
    %v3535 = vand.u32 %v3342, 4294901760
    %v3536 = vsub.f32 %v3342, %v3535
    %v3537 = vand.u32 %v3536, 4294901760
    %v3538 = vsub.f32 %v3536, %v3537
    %v3539 = vand.u32 %v3538, 4294901760
    %3540 = vmatpush1.msra.mxu0 %v3539
    %3541 = vmatprep.subr.mxu0 0.0
    %v3542 = vand.u32 %v3343, 4294901760
    %v3543 = vsub.f32 %v3343, %v3542
    %v3544 = vand.u32 %v3543, 4294901760
    %v3545 = vsub.f32 %v3543, %v3544
    %v3546 = vand.u32 %v3545, 4294901760
    %3547 = vmatpush1.msra.mxu0 %v3546
    %3548 = vmatprep.subr.mxu0 0.0
    %v3549 = vand.u32 %v3344, 4294901760
    %v3550 = vsub.f32 %v3344, %v3549
    %v3551 = vand.u32 %v3550, 4294901760
    %v3552 = vsub.f32 %v3550, %v3551
    %v3553 = vand.u32 %v3552, 4294901760
    %3554 = vmatpush1.msra.mxu0 %v3553
    %3555 = vmatprep.subr.mxu0 0.0
    %v3556 = vand.u32 %v3345, 4294901760
    %v3557 = vsub.f32 %v3345, %v3556
    %v3558 = vand.u32 %v3557, 4294901760
    %v3559 = vsub.f32 %v3557, %v3558
    %v3560 = vand.u32 %v3559, 4294901760
    %3561 = vmatpush1.msra.mxu0 %v3560
    %3562 = vmatprep.subr.mxu0 0.0
    %v3563 = vand.u32 %v3346, 4294901760
    %v3564 = vsub.f32 %v3346, %v3563
    %v3565 = vand.u32 %v3564, 4294901760
    %v3566 = vsub.f32 %v3564, %v3565
    %v3567 = vand.u32 %v3566, 4294901760
    %3568 = vmatpush1.msra.mxu0 %v3567
    %3569 = vmatprep.subr.mxu0 0.0
    %v3570 = vand.u32 %v3347, 4294901760
    %v3571 = vsub.f32 %v3347, %v3570
    %v3572 = vand.u32 %v3571, 4294901760
    %v3573 = vsub.f32 %v3571, %v3572
    %v3574 = vand.u32 %v3573, 4294901760
    %3575 = vmatpush1.msra.mxu0 %v3574
    %3576 = vmatprep.subr.mxu0 0.0
    %v3577 = vand.u32 %v3348, 4294901760
    %v3578 = vsub.f32 %v3348, %v3577
    %v3579 = vand.u32 %v3578, 4294901760
    %v3580 = vsub.f32 %v3578, %v3579
    %v3581 = vand.u32 %v3580, 4294901760
    %3582 = vmatpush1.msra.mxu0 %v3581
    %3583 = vmatprep.subr.mxu0 0.0
    %v3584 = vand.u32 %v3349, 4294901760
    %v3585 = vsub.f32 %v3349, %v3584
    %v3586 = vand.u32 %v3585, 4294901760
    %v3587 = vsub.f32 %v3585, %v3586
    %v3588 = vand.u32 %v3587, 4294901760
    %3589 = vmatpush1.msra.mxu0 %v3588
    %3590 = vmatprep.subr.mxu0 0.0
    %v3591 = vand.u32 %v3350, 4294901760
    %v3592 = vsub.f32 %v3350, %v3591
    %v3593 = vand.u32 %v3592, 4294901760
    %v3594 = vsub.f32 %v3592, %v3593
    %v3595 = vand.u32 %v3594, 4294901760
    %3596 = vmatpush1.msra.mxu0 %v3595
    %3597 = vmatprep.subr.mxu0 0.0
    %v3598 = vand.u32 %v3351, 4294901760
    %v3599 = vsub.f32 %v3351, %v3598
    %v3600 = vand.u32 %v3599, 4294901760
    %v3601 = vsub.f32 %v3599, %v3600
    %v3602 = vand.u32 %v3601, 4294901760
    %3603 = vmatpush1.msra.mxu0 %v3602
    %3604 = vmatprep.subr.mxu0 0.0
    %3605 = vmatpush1.msra.mxu0 0.0
    %3606 = vmatprep.subr.mxu0 0.0
    %3607 = vmatpush1.msra.mxu0 0.0
    %3608 = vmatprep.subr.mxu0 0.0
    %3609 = vmatpush1.msra.mxu0 0.0
    %3610 = vmatprep.subr.mxu0 0.0
    %3611 = vmatpush1.msra.mxu0 0.0
    %3612 = vmatprep.subr.mxu0 0.0
    %3613 = vmatpush1.msra.mxu0 0.0
    %3614 = vmatprep.subr.mxu0 0.0
    %3615 = vmatpush1.msra.mxu0 0.0
    %3616 = vmatprep.subr.mxu0 0.0
    %3617 = vmatpush1.msra.mxu0 0.0
    %3618 = vmatprep.subr.mxu0 0.0
    %3619 = vmatpush1.msra.mxu0 0.0
    %3620 = vmatprep.subr.mxu0 0.0
    %3621 = vmatpush1.msra.mxu0 0.0
    %3622 = vmatprep.subr.mxu0 0.0
    %3623 = vmatpush1.msra.mxu0 0.0
    %3624 = vmatprep.subr.mxu0 0.0
    %3625 = vmatpush1.msra.mxu0 0.0
    %3626 = vmatprep.subr.mxu0 0.0
    %3627 = vmatpush1.msra.mxu0 0.0
    %3628 = vmatprep.subr.mxu0 0.0
    %3629 = vmatpush1.msra.mxu0 0.0
    %3630 = vmatprep.subr.mxu0 0.0
    %3631 = vmatpush1.msra.mxu0 0.0
    %v3632 = vand.u32 %v3360, 4294901760
    %3633 = vmatprep.mubr.f32.mxu0 %v3632
    %v3634 = vand.u32 %v3354, 4294901760
    %3635 = vmatmul.mubr.f32.gmra.mrb[0].mxu0 %v3634
    %v3636 = vpop.f32.mrb[0].mxu0
    %v3637 = vadd.f32 %v3460, %v3636
    %v3638 = vpop.f32.mrb[0].mxu0
    %v3639 = vand.u32 %v3363, 4294901760
    %3640 = vmatprep.mubr.f32.mxu0 %v3639
    %v3641 = vand.u32 %v3356, 4294901760
    %3642 = vmatmul.mubr.f32.gmra.mrb[0].mxu0 %v3641
    %v3643 = vpop.f32.mrb[0].mxu0
    %v3644 = vadd.f32 %v3475, %v3643
    %v3645 = vpop.f32.mrb[0].mxu0
    %3646 = vdwg.mxu0
    %3647 = vmatprep.subr.mxu0 0.0
    %v3648 = vand.u32 %v3334, 4294901760
    %v3649 = vsub.f32 %v3334, %v3648
    %3650 = vmatpush1.msra.mxu0 %v3649
    %3651 = vmatprep.subr.mxu0 0.0
    %v3652 = vand.u32 %v3335, 4294901760
    %v3653 = vsub.f32 %v3335, %v3652
    %3654 = vmatpush1.msra.mxu0 %v3653
    %3655 = vmatprep.subr.mxu0 0.0
    %v3656 = vand.u32 %v3336, 4294901760
    %v3657 = vsub.f32 %v3336, %v3656
    %3658 = vmatpush1.msra.mxu0 %v3657
    %3659 = vmatprep.subr.mxu0 0.0
    %v3660 = vand.u32 %v3337, 4294901760
    %v3661 = vsub.f32 %v3337, %v3660
    %3662 = vmatpush1.msra.mxu0 %v3661
    %3663 = vmatprep.subr.mxu0 0.0
    %v3664 = vand.u32 %v3338, 4294901760
    %v3665 = vsub.f32 %v3338, %v3664
    %3666 = vmatpush1.msra.mxu0 %v3665
    %3667 = vmatprep.subr.mxu0 0.0
    %v3668 = vand.u32 %v3339, 4294901760
    %v3669 = vsub.f32 %v3339, %v3668
    %3670 = vmatpush1.msra.mxu0 %v3669
    %3671 = vmatprep.subr.mxu0 0.0
    %v3672 = vand.u32 %v3340, 4294901760
    %v3673 = vsub.f32 %v3340, %v3672
    %3674 = vmatpush1.msra.mxu0 %v3673
    %3675 = vmatprep.subr.mxu0 0.0
    %v3676 = vand.u32 %v3341, 4294901760
    %v3677 = vsub.f32 %v3341, %v3676
    %3678 = vmatpush1.msra.mxu0 %v3677
    %3679 = vmatprep.subr.mxu0 0.0
    %v3680 = vand.u32 %v3342, 4294901760
    %v3681 = vsub.f32 %v3342, %v3680
    %3682 = vmatpush1.msra.mxu0 %v3681
    %3683 = vmatprep.subr.mxu0 0.0
    %v3684 = vand.u32 %v3343, 4294901760
    %v3685 = vsub.f32 %v3343, %v3684
    %3686 = vmatpush1.msra.mxu0 %v3685
    %3687 = vmatprep.subr.mxu0 0.0
    %v3688 = vand.u32 %v3344, 4294901760
    %v3689 = vsub.f32 %v3344, %v3688
    %3690 = vmatpush1.msra.mxu0 %v3689
    %3691 = vmatprep.subr.mxu0 0.0
    %v3692 = vand.u32 %v3345, 4294901760
    %v3693 = vsub.f32 %v3345, %v3692
    %3694 = vmatpush1.msra.mxu0 %v3693
    %3695 = vmatprep.subr.mxu0 0.0
    %v3696 = vand.u32 %v3346, 4294901760
    %v3697 = vsub.f32 %v3346, %v3696
    %3698 = vmatpush1.msra.mxu0 %v3697
    %3699 = vmatprep.subr.mxu0 0.0
    %v3700 = vand.u32 %v3347, 4294901760
    %v3701 = vsub.f32 %v3347, %v3700
    %3702 = vmatpush1.msra.mxu0 %v3701
    %3703 = vmatprep.subr.mxu0 0.0
    %v3704 = vand.u32 %v3348, 4294901760
    %v3705 = vsub.f32 %v3348, %v3704
    %3706 = vmatpush1.msra.mxu0 %v3705
    %3707 = vmatprep.subr.mxu0 0.0
    %v3708 = vand.u32 %v3349, 4294901760
    %v3709 = vsub.f32 %v3349, %v3708
    %3710 = vmatpush1.msra.mxu0 %v3709
    %3711 = vmatprep.subr.mxu0 0.0
    %v3712 = vand.u32 %v3350, 4294901760
    %v3713 = vsub.f32 %v3350, %v3712
    %3714 = vmatpush1.msra.mxu0 %v3713
    %3715 = vmatprep.subr.mxu0 0.0
    %v3716 = vand.u32 %v3351, 4294901760
    %v3717 = vsub.f32 %v3351, %v3716
    %3718 = vmatpush1.msra.mxu0 %v3717
    %3719 = vmatprep.subr.mxu0 0.0
    %3720 = vmatpush1.msra.mxu0 0.0
    %3721 = vmatprep.subr.mxu0 0.0
    %3722 = vmatpush1.msra.mxu0 0.0
    %3723 = vmatprep.subr.mxu0 0.0
    %3724 = vmatpush1.msra.mxu0 0.0
    %3725 = vmatprep.subr.mxu0 0.0
    %3726 = vmatpush1.msra.mxu0 0.0
    %3727 = vmatprep.subr.mxu0 0.0
    %3728 = vmatpush1.msra.mxu0 0.0
    %3729 = vmatprep.subr.mxu0 0.0
    %3730 = vmatpush1.msra.mxu0 0.0
    %3731 = vmatprep.subr.mxu0 0.0
    %3732 = vmatpush1.msra.mxu0 0.0
    %3733 = vmatprep.subr.mxu0 0.0
    %3734 = vmatpush1.msra.mxu0 0.0
    %3735 = vmatprep.subr.mxu0 0.0
    %3736 = vmatpush1.msra.mxu0 0.0
    %3737 = vmatprep.subr.mxu0 0.0
    %3738 = vmatpush1.msra.mxu0 0.0
    %3739 = vmatprep.subr.mxu0 0.0
    %3740 = vmatpush1.msra.mxu0 0.0
    %3741 = vmatprep.subr.mxu0 0.0
    %3742 = vmatpush1.msra.mxu0 0.0
    %3743 = vmatprep.subr.mxu0 0.0
    %3744 = vmatpush1.msra.mxu0 0.0
    %3745 = vmatprep.subr.mxu0 0.0
    %3746 = vmatpush1.msra.mxu0 0.0
    %v3747 = vand.u32 %v3360, 4294901760
    %v3748 = vsub.f32 %v3360, %v3747
    %3749 = vmatprep.mubr.f32.mxu0 %v3748
    %v3750 = vand.u32 %v3354, 4294901760
    %v3751 = vsub.f32 %v3354, %v3750
    %3752 = vmatmul.mubr.f32.gmra.mrb[0].mxu0 %v3751
    %v3753 = vpop.f32.mrb[0].mxu0
    %v3754 = vadd.f32 %v3637, %v3753
    %v3755 = vpop.f32.mrb[0].mxu0
    %v3756 = vand.u32 %v3363, 4294901760
    %v3757 = vsub.f32 %v3363, %v3756
    %3758 = vmatprep.mubr.f32.mxu0 %v3757
    %v3759 = vand.u32 %v3356, 4294901760
    %v3760 = vsub.f32 %v3356, %v3759
    %3761 = vmatmul.mubr.f32.gmra.mrb[0].mxu0 %v3760
    %v3762 = vpop.f32.mrb[0].mxu0
    %v3763 = vadd.f32 %v3644, %v3762
    %v3764 = vpop.f32.mrb[0].mxu0
    %3765 = vdwg.mxu0
    %3766 = vmatprep.subr.mxu0 0.0
    %v3767 = vand.u32 %v3334, 4294901760
    %3768 = vmatpush1.msra.mxu0 %v3767
    %3769 = vmatprep.subr.mxu0 0.0
    %v3770 = vand.u32 %v3335, 4294901760
    %3771 = vmatpush1.msra.mxu0 %v3770
    %3772 = vmatprep.subr.mxu0 0.0
    %v3773 = vand.u32 %v3336, 4294901760
    %3774 = vmatpush1.msra.mxu0 %v3773
    %3775 = vmatprep.subr.mxu0 0.0
    %v3776 = vand.u32 %v3337, 4294901760
    %3777 = vmatpush1.msra.mxu0 %v3776
    %3778 = vmatprep.subr.mxu0 0.0
    %v3779 = vand.u32 %v3338, 4294901760
    %3780 = vmatpush1.msra.mxu0 %v3779
    %3781 = vmatprep.subr.mxu0 0.0
    %v3782 = vand.u32 %v3339, 4294901760
    %3783 = vmatpush1.msra.mxu0 %v3782
    %3784 = vmatprep.subr.mxu0 0.0
    %v3785 = vand.u32 %v3340, 4294901760
    %3786 = vmatpush1.msra.mxu0 %v3785
    %3787 = vmatprep.subr.mxu0 0.0
    %v3788 = vand.u32 %v3341, 4294901760
    %3789 = vmatpush1.msra.mxu0 %v3788
    %3790 = vmatprep.subr.mxu0 0.0
    %v3791 = vand.u32 %v3342, 4294901760
    %3792 = vmatpush1.msra.mxu0 %v3791
    %3793 = vmatprep.subr.mxu0 0.0
    %v3794 = vand.u32 %v3343, 4294901760
    %3795 = vmatpush1.msra.mxu0 %v3794
    %3796 = vmatprep.subr.mxu0 0.0
    %v3797 = vand.u32 %v3344, 4294901760
    %3798 = vmatpush1.msra.mxu0 %v3797
    %3799 = vmatprep.subr.mxu0 0.0
    %v3800 = vand.u32 %v3345, 4294901760
    %3801 = vmatpush1.msra.mxu0 %v3800
    %3802 = vmatprep.subr.mxu0 0.0
    %v3803 = vand.u32 %v3346, 4294901760
    %3804 = vmatpush1.msra.mxu0 %v3803
    %3805 = vmatprep.subr.mxu0 0.0
    %v3806 = vand.u32 %v3347, 4294901760
    %3807 = vmatpush1.msra.mxu0 %v3806
    %3808 = vmatprep.subr.mxu0 0.0
    %v3809 = vand.u32 %v3348, 4294901760
    %3810 = vmatpush1.msra.mxu0 %v3809
    %3811 = vmatprep.subr.mxu0 0.0
    %v3812 = vand.u32 %v3349, 4294901760
    %3813 = vmatpush1.msra.mxu0 %v3812
    %3814 = vmatprep.subr.mxu0 0.0
    %v3815 = vand.u32 %v3350, 4294901760
    %3816 = vmatpush1.msra.mxu0 %v3815
    %3817 = vmatprep.subr.mxu0 0.0
    %v3818 = vand.u32 %v3351, 4294901760
    %3819 = vmatpush1.msra.mxu0 %v3818
    %3820 = vmatprep.subr.mxu0 0.0
    %3821 = vmatpush1.msra.mxu0 0.0
    %3822 = vmatprep.subr.mxu0 0.0
    %3823 = vmatpush1.msra.mxu0 0.0
    %3824 = vmatprep.subr.mxu0 0.0
    %3825 = vmatpush1.msra.mxu0 0.0
    %3826 = vmatprep.subr.mxu0 0.0
    %3827 = vmatpush1.msra.mxu0 0.0
    %3828 = vmatprep.subr.mxu0 0.0
    %3829 = vmatpush1.msra.mxu0 0.0
    %3830 = vmatprep.subr.mxu0 0.0
    %3831 = vmatpush1.msra.mxu0 0.0
    %3832 = vmatprep.subr.mxu0 0.0
    %3833 = vmatpush1.msra.mxu0 0.0
    %3834 = vmatprep.subr.mxu0 0.0
    %3835 = vmatpush1.msra.mxu0 0.0
    %3836 = vmatprep.subr.mxu0 0.0
    %3837 = vmatpush1.msra.mxu0 0.0
    %3838 = vmatprep.subr.mxu0 0.0
    %3839 = vmatpush1.msra.mxu0 0.0
    %3840 = vmatprep.subr.mxu0 0.0
    %3841 = vmatpush1.msra.mxu0 0.0
    %3842 = vmatprep.subr.mxu0 0.0
    %3843 = vmatpush1.msra.mxu0 0.0
    %3844 = vmatprep.subr.mxu0 0.0
    %3845 = vmatpush1.msra.mxu0 0.0
    %3846 = vmatprep.subr.mxu0 0.0
    %3847 = vmatpush1.msra.mxu0 0.0
    %v3848 = vand.u32 %v3360, 4294901760
    %v3849 = vsub.f32 %v3360, %v3848
    %v3850 = vand.u32 %v3849, 4294901760
    %3851 = vmatprep.mubr.f32.mxu0 %v3850
    %v3852 = vand.u32 %v3354, 4294901760
    %v3853 = vsub.f32 %v3354, %v3852
    %v3854 = vand.u32 %v3853, 4294901760
    %3855 = vmatmul.mubr.f32.gmra.mrb[0].mxu0 %v3854
    %v3856 = vpop.f32.mrb[0].mxu0
    %v3857 = vadd.f32 %v3754, %v3856
    %v3858 = vpop.f32.mrb[0].mxu0
    %v3859 = vand.u32 %v3363, 4294901760
    %v3860 = vsub.f32 %v3363, %v3859
    %v3861 = vand.u32 %v3860, 4294901760
    %3862 = vmatprep.mubr.f32.mxu0 %v3861
    %v3863 = vand.u32 %v3356, 4294901760
    %v3864 = vsub.f32 %v3356, %v3863
    %v3865 = vand.u32 %v3864, 4294901760
    %3866 = vmatmul.mubr.f32.gmra.mrb[0].mxu0 %v3865
    %v3867 = vpop.f32.mrb[0].mxu0
    %v3868 = vadd.f32 %v3763, %v3867
    %v3869 = vpop.f32.mrb[0].mxu0
    %3870 = vdwg.mxu0
    %3871 = vmatprep.subr.mxu0 0.0
    %v3872 = vand.u32 %v3334, 4294901760
    %v3873 = vsub.f32 %v3334, %v3872
    %v3874 = vand.u32 %v3873, 4294901760
    %3875 = vmatpush1.msra.mxu0 %v3874
    %3876 = vmatprep.subr.mxu0 0.0
    %v3877 = vand.u32 %v3335, 4294901760
    %v3878 = vsub.f32 %v3335, %v3877
    %v3879 = vand.u32 %v3878, 4294901760
    %3880 = vmatpush1.msra.mxu0 %v3879
    %3881 = vmatprep.subr.mxu0 0.0
    %v3882 = vand.u32 %v3336, 4294901760
    %v3883 = vsub.f32 %v3336, %v3882
    %v3884 = vand.u32 %v3883, 4294901760
    %3885 = vmatpush1.msra.mxu0 %v3884
    %3886 = vmatprep.subr.mxu0 0.0
    %v3887 = vand.u32 %v3337, 4294901760
    %v3888 = vsub.f32 %v3337, %v3887
    %v3889 = vand.u32 %v3888, 4294901760
    %3890 = vmatpush1.msra.mxu0 %v3889
    %3891 = vmatprep.subr.mxu0 0.0
    %v3892 = vand.u32 %v3338, 4294901760
    %v3893 = vsub.f32 %v3338, %v3892
    %v3894 = vand.u32 %v3893, 4294901760
    %3895 = vmatpush1.msra.mxu0 %v3894
    %3896 = vmatprep.subr.mxu0 0.0
    %v3897 = vand.u32 %v3339, 4294901760
    %v3898 = vsub.f32 %v3339, %v3897
    %v3899 = vand.u32 %v3898, 4294901760
    %3900 = vmatpush1.msra.mxu0 %v3899
    %3901 = vmatprep.subr.mxu0 0.0
    %v3902 = vand.u32 %v3340, 4294901760
    %v3903 = vsub.f32 %v3340, %v3902
    %v3904 = vand.u32 %v3903, 4294901760
    %3905 = vmatpush1.msra.mxu0 %v3904
    %3906 = vmatprep.subr.mxu0 0.0
    %v3907 = vand.u32 %v3341, 4294901760
    %v3908 = vsub.f32 %v3341, %v3907
    %v3909 = vand.u32 %v3908, 4294901760
    %3910 = vmatpush1.msra.mxu0 %v3909
    %3911 = vmatprep.subr.mxu0 0.0
    %v3912 = vand.u32 %v3342, 4294901760
    %v3913 = vsub.f32 %v3342, %v3912
    %v3914 = vand.u32 %v3913, 4294901760
    %3915 = vmatpush1.msra.mxu0 %v3914
    %3916 = vmatprep.subr.mxu0 0.0
    %v3917 = vand.u32 %v3343, 4294901760
    %v3918 = vsub.f32 %v3343, %v3917
    %v3919 = vand.u32 %v3918, 4294901760
    %3920 = vmatpush1.msra.mxu0 %v3919
    %3921 = vmatprep.subr.mxu0 0.0
    %v3922 = vand.u32 %v3344, 4294901760
    %v3923 = vsub.f32 %v3344, %v3922
    %v3924 = vand.u32 %v3923, 4294901760
    %3925 = vmatpush1.msra.mxu0 %v3924
    %3926 = vmatprep.subr.mxu0 0.0
    %v3927 = vand.u32 %v3345, 4294901760
    %v3928 = vsub.f32 %v3345, %v3927
    %v3929 = vand.u32 %v3928, 4294901760
    %3930 = vmatpush1.msra.mxu0 %v3929
    %3931 = vmatprep.subr.mxu0 0.0
    %v3932 = vand.u32 %v3346, 4294901760
    %v3933 = vsub.f32 %v3346, %v3932
    %v3934 = vand.u32 %v3933, 4294901760
    %3935 = vmatpush1.msra.mxu0 %v3934
    %3936 = vmatprep.subr.mxu0 0.0
    %v3937 = vand.u32 %v3347, 4294901760
    %v3938 = vsub.f32 %v3347, %v3937
    %v3939 = vand.u32 %v3938, 4294901760
    %3940 = vmatpush1.msra.mxu0 %v3939
    %3941 = vmatprep.subr.mxu0 0.0
    %v3942 = vand.u32 %v3348, 4294901760
    %v3943 = vsub.f32 %v3348, %v3942
    %v3944 = vand.u32 %v3943, 4294901760
    %3945 = vmatpush1.msra.mxu0 %v3944
    %3946 = vmatprep.subr.mxu0 0.0
    %v3947 = vand.u32 %v3349, 4294901760
    %v3948 = vsub.f32 %v3349, %v3947
    %v3949 = vand.u32 %v3948, 4294901760
    %3950 = vmatpush1.msra.mxu0 %v3949
    %3951 = vmatprep.subr.mxu0 0.0
    %v3952 = vand.u32 %v3350, 4294901760
    %v3953 = vsub.f32 %v3350, %v3952
    %v3954 = vand.u32 %v3953, 4294901760
    %3955 = vmatpush1.msra.mxu0 %v3954
    %3956 = vmatprep.subr.mxu0 0.0
    %v3957 = vand.u32 %v3351, 4294901760
    %v3958 = vsub.f32 %v3351, %v3957
    %v3959 = vand.u32 %v3958, 4294901760
    %3960 = vmatpush1.msra.mxu0 %v3959
    %3961 = vmatprep.subr.mxu0 0.0
    %3962 = vmatpush1.msra.mxu0 0.0
    %3963 = vmatprep.subr.mxu0 0.0
    %3964 = vmatpush1.msra.mxu0 0.0
    %3965 = vmatprep.subr.mxu0 0.0
    %3966 = vmatpush1.msra.mxu0 0.0
    %3967 = vmatprep.subr.mxu0 0.0
    %3968 = vmatpush1.msra.mxu0 0.0
    %3969 = vmatprep.subr.mxu0 0.0
    %3970 = vmatpush1.msra.mxu0 0.0
    %3971 = vmatprep.subr.mxu0 0.0
    %3972 = vmatpush1.msra.mxu0 0.0
    %3973 = vmatprep.subr.mxu0 0.0
    %3974 = vmatpush1.msra.mxu0 0.0
    %3975 = vmatprep.subr.mxu0 0.0
    %3976 = vmatpush1.msra.mxu0 0.0
    %3977 = vmatprep.subr.mxu0 0.0
    %3978 = vmatpush1.msra.mxu0 0.0
    %3979 = vmatprep.subr.mxu0 0.0
    %3980 = vmatpush1.msra.mxu0 0.0
    %3981 = vmatprep.subr.mxu0 0.0
    %3982 = vmatpush1.msra.mxu0 0.0
    %3983 = vmatprep.subr.mxu0 0.0
    %3984 = vmatpush1.msra.mxu0 0.0
    %3985 = vmatprep.subr.mxu0 0.0
    %3986 = vmatpush1.msra.mxu0 0.0
    %3987 = vmatprep.subr.mxu0 0.0
    %3988 = vmatpush1.msra.mxu0 0.0
    %v3989 = vand.u32 %v3360, 4294901760
    %3990 = vmatprep.mubr.f32.mxu0 %v3989
    %v3991 = vand.u32 %v3354, 4294901760
    %3992 = vmatmul.mubr.f32.gmra.mrb[0].mxu0 %v3991
    %v3993 = vpop.f32.mrb[0].mxu0
    %v3994 = vadd.f32 %v3857, %v3993
    %v3995 = vpop.f32.mrb[0].mxu0
    %v3996 = vand.u32 %v3363, 4294901760
    %3997 = vmatprep.mubr.f32.mxu0 %v3996
    %v3998 = vand.u32 %v3356, 4294901760
    %3999 = vmatmul.mubr.f32.gmra.mrb[0].mxu0 %v3998
    %v4000 = vpop.f32.mrb[0].mxu0
    %v4001 = vadd.f32 %v3868, %v4000
    %v4002 = vpop.f32.mrb[0].mxu0
    %4003 = vdwg.mxu0
    %4004 = vmatprep.subr.mxu0 0.0
    %v4005 = vand.u32 %v3334, 4294901760
    %4006 = vmatpush1.msra.mxu0 %v4005
    %4007 = vmatprep.subr.mxu0 0.0
    %v4008 = vand.u32 %v3335, 4294901760
    %4009 = vmatpush1.msra.mxu0 %v4008
    %4010 = vmatprep.subr.mxu0 0.0
    %v4011 = vand.u32 %v3336, 4294901760
    %4012 = vmatpush1.msra.mxu0 %v4011
    %4013 = vmatprep.subr.mxu0 0.0
    %v4014 = vand.u32 %v3337, 4294901760
    %4015 = vmatpush1.msra.mxu0 %v4014
    %4016 = vmatprep.subr.mxu0 0.0
    %v4017 = vand.u32 %v3338, 4294901760
    %4018 = vmatpush1.msra.mxu0 %v4017
    %4019 = vmatprep.subr.mxu0 0.0
    %v4020 = vand.u32 %v3339, 4294901760
    %4021 = vmatpush1.msra.mxu0 %v4020
    %4022 = vmatprep.subr.mxu0 0.0
    %v4023 = vand.u32 %v3340, 4294901760
    %4024 = vmatpush1.msra.mxu0 %v4023
    %4025 = vmatprep.subr.mxu0 0.0
    %v4026 = vand.u32 %v3341, 4294901760
    %4027 = vmatpush1.msra.mxu0 %v4026
    %4028 = vmatprep.subr.mxu0 0.0
    %v4029 = vand.u32 %v3342, 4294901760
    %4030 = vmatpush1.msra.mxu0 %v4029
    %4031 = vmatprep.subr.mxu0 0.0
    %v4032 = vand.u32 %v3343, 4294901760
    %4033 = vmatpush1.msra.mxu0 %v4032
    %4034 = vmatprep.subr.mxu0 0.0
    %v4035 = vand.u32 %v3344, 4294901760
    %4036 = vmatpush1.msra.mxu0 %v4035
    %4037 = vmatprep.subr.mxu0 0.0
    %v4038 = vand.u32 %v3345, 4294901760
    %4039 = vmatpush1.msra.mxu0 %v4038
    %4040 = vmatprep.subr.mxu0 0.0
    %v4041 = vand.u32 %v3346, 4294901760
    %4042 = vmatpush1.msra.mxu0 %v4041
    %4043 = vmatprep.subr.mxu0 0.0
    %v4044 = vand.u32 %v3347, 4294901760
    %4045 = vmatpush1.msra.mxu0 %v4044
    %4046 = vmatprep.subr.mxu0 0.0
    %v4047 = vand.u32 %v3348, 4294901760
    %4048 = vmatpush1.msra.mxu0 %v4047
    %4049 = vmatprep.subr.mxu0 0.0
    %v4050 = vand.u32 %v3349, 4294901760
    %4051 = vmatpush1.msra.mxu0 %v4050
    %4052 = vmatprep.subr.mxu0 0.0
    %v4053 = vand.u32 %v3350, 4294901760
    %4054 = vmatpush1.msra.mxu0 %v4053
    %4055 = vmatprep.subr.mxu0 0.0
    %v4056 = vand.u32 %v3351, 4294901760
    %4057 = vmatpush1.msra.mxu0 %v4056
    %4058 = vmatprep.subr.mxu0 0.0
    %4059 = vmatpush1.msra.mxu0 0.0
    %4060 = vmatprep.subr.mxu0 0.0
    %4061 = vmatpush1.msra.mxu0 0.0
    %4062 = vmatprep.subr.mxu0 0.0
    %4063 = vmatpush1.msra.mxu0 0.0
    %4064 = vmatprep.subr.mxu0 0.0
    %4065 = vmatpush1.msra.mxu0 0.0
    %4066 = vmatprep.subr.mxu0 0.0
    %4067 = vmatpush1.msra.mxu0 0.0
    %4068 = vmatprep.subr.mxu0 0.0
    %4069 = vmatpush1.msra.mxu0 0.0
    %4070 = vmatprep.subr.mxu0 0.0
    %4071 = vmatpush1.msra.mxu0 0.0
    %4072 = vmatprep.subr.mxu0 0.0
    %4073 = vmatpush1.msra.mxu0 0.0
    %4074 = vmatprep.subr.mxu0 0.0
    %4075 = vmatpush1.msra.mxu0 0.0
    %4076 = vmatprep.subr.mxu0 0.0
    %4077 = vmatpush1.msra.mxu0 0.0
    %4078 = vmatprep.subr.mxu0 0.0
    %4079 = vmatpush1.msra.mxu0 0.0
    %4080 = vmatprep.subr.mxu0 0.0
    %4081 = vmatpush1.msra.mxu0 0.0
    %4082 = vmatprep.subr.mxu0 0.0
    %4083 = vmatpush1.msra.mxu0 0.0
    %4084 = vmatprep.subr.mxu0 0.0
    %4085 = vmatpush1.msra.mxu0 0.0
    %v4086 = vand.u32 %v3360, 4294901760
    %4087 = vmatprep.mubr.f32.mxu0 %v4086
    %v4088 = vand.u32 %v3354, 4294901760
    %4089 = vmatmul.mubr.f32.gmra.mrb[0].mxu0 %v4088
    %v4090 = vpop.f32.mrb[0].mxu0
    %v4091 = vadd.f32 %v3994, %v4090
    %v4092 = vpop.f32.mrb[0].mxu0
    %v4093 = vand.u32 %v3363, 4294901760
    %4094 = vmatprep.mubr.f32.mxu0 %v4093
    %v4095 = vand.u32 %v3356, 4294901760
    %4096 = vmatmul.mubr.f32.gmra.mrb[0].mxu0 %v4095
    %v4097 = vpop.f32.mrb[0].mxu0
    %v4098 = vadd.f32 %v4001, %v4097
    %v4099 = vpop.f32.mrb[0].mxu0
    %4100 = vdwg.mxu0
    %vm4101 = vcmask 72704
    %v4102 = vsel %vm4101, %v4091, -inf
    %4103 = vmax.xlane.f32.xlu0 %v4102
    %v4104 = vpop.xlane.xlu0 %4103
    %v4105 = vsel %vm4101, %v4098, -inf
    %4106 = vmax.xlane.f32.xlu0 %v4105
    %v4107 = vpop.xlane.xlu0 %4106
    %v4108 = vsub.f32 %v4091, %v4104
    %v4109 = vsub.f32 %v4098, %v4107
    %v4110 = vmul.f32 %v4108, 1.442695
    %v4111 = vpow.pop %v4110
    %v4112 = vmul.f32 %v4109, 1.442695
    %v4113 = vpow.pop %v4112
    %v4115 = vsel %vm4101, %v4111, 0
    %v4118 = vsel %vm4101, %v4113, 0
    %vm4120 = vcmask 1040384
    %v4122 = vsel %vm4120, %v3353, 0
    %4124 = vmatprep.subr.mxu0 0.0
    %v4125 = vand.u32 %v3352, 4294901760
    %4126 = vmatpush1.msra.mxu0 %v4125
    %4127 = vmatprep.subr.mxu0 0.0
    %v4128 = vand.u32 %v4122, 4294901760
    %4129 = vmatpush1.msra.mxu0 %v4128
    %4130 = vmatprep.subr.mxu0 0.0
    %4131 = vmatpush1.msra.mxu0 0.0
    %4132 = vmatprep.subr.mxu0 0.0
    %4133 = vmatpush1.msra.mxu0 0.0
    %4134 = vmatprep.subr.mxu0 0.0
    %4135 = vmatpush1.msra.mxu0 0.0
    %4136 = vmatprep.subr.mxu0 0.0
    %4137 = vmatpush1.msra.mxu0 0.0
    %4138 = vmatprep.subr.mxu0 0.0
    %4139 = vmatpush1.msra.mxu0 0.0
    %4140 = vmatprep.subr.mxu0 0.0
    %4141 = vmatpush1.msra.mxu0 0.0
    %4142 = vmatprep.subr.mxu0 0.0
    %4143 = vmatpush1.msra.mxu0 0.0
    %4144 = vmatprep.subr.mxu0 0.0
    %4145 = vmatpush1.msra.mxu0 0.0
    %4146 = vmatprep.subr.mxu0 0.0
    %4147 = vmatpush1.msra.mxu0 0.0
    %4148 = vmatprep.subr.mxu0 0.0
    %4149 = vmatpush1.msra.mxu0 0.0
    %4150 = vmatprep.subr.mxu0 0.0
    %4151 = vmatpush1.msra.mxu0 0.0
    %4152 = vmatprep.subr.mxu0 0.0
    %4153 = vmatpush1.msra.mxu0 0.0
    %4154 = vmatprep.subr.mxu0 0.0
    %4155 = vmatpush1.msra.mxu0 0.0
    %4156 = vmatprep.subr.mxu0 0.0
    %4157 = vmatpush1.msra.mxu0 0.0
    %4158 = vmatprep.subr.mxu0 0.0
    %4159 = vmatpush1.msra.mxu0 0.0
    %4160 = vmatprep.subr.mxu0 0.0
    %4161 = vmatpush1.msra.mxu0 0.0
    %4162 = vmatprep.subr.mxu0 0.0
    %4163 = vmatpush1.msra.mxu0 0.0
    %4164 = vmatprep.subr.mxu0 0.0
    %4165 = vmatpush1.msra.mxu0 0.0
    %4166 = vmatprep.subr.mxu0 0.0
    %4167 = vmatpush1.msra.mxu0 0.0
    %4168 = vmatprep.subr.mxu0 0.0
    %4169 = vmatpush1.msra.mxu0 0.0
    %4170 = vmatprep.subr.mxu0 0.0
    %4171 = vmatpush1.msra.mxu0 0.0
    %4172 = vmatprep.subr.mxu0 0.0
    %4173 = vmatpush1.msra.mxu0 0.0
    %4174 = vmatprep.subr.mxu0 0.0
    %4175 = vmatpush1.msra.mxu0 0.0
    %4176 = vmatprep.subr.mxu0 0.0
    %4177 = vmatpush1.msra.mxu0 0.0
    %4178 = vmatprep.subr.mxu0 0.0
    %4179 = vmatpush1.msra.mxu0 0.0
    %4180 = vmatprep.subr.mxu0 0.0
    %4181 = vmatpush1.msra.mxu0 0.0
    %4182 = vmatprep.subr.mxu0 0.0
    %4183 = vmatpush1.msra.mxu0 0.0
    %4184 = vmatprep.subr.mxu0 0.0
    %4185 = vmatpush1.msra.mxu0 0.0
    %4186 = vmatprep.subr.mxu0 0.0
    %4187 = vmatpush1.msra.mxu0 0.0
    %4188 = vmatprep.subr.mxu0 0.0
    %4189 = vmatpush1.msra.mxu0 0.0
    %4190 = vmatprep.mubr.f32.mxu0 0.0
    %v4191 = vand.u32 %v4115, 4294901760
    %v4192 = vsub.f32 %v4115, %v4191
    %v4193 = vand.u32 %v4192, 4294901760
    %v4194 = vsub.f32 %v4192, %v4193
    %v4195 = vand.u32 %v4194, 4294901760
    %4196 = vmatmul.mubr.f32.gmra.mrb[0].mxu0 %v4195
    %v4197 = vpop.f32.mrb[0].mxu0
    %v4198 = vadd.f32 0.0, %v4197
    %v4199 = vpop.f32.mrb[0].mxu0
    %4200 = vmatprep.mubr.f32.mxu0 0.0
    %v4201 = vand.u32 %v4118, 4294901760
    %v4202 = vsub.f32 %v4118, %v4201
    %v4203 = vand.u32 %v4202, 4294901760
    %v4204 = vsub.f32 %v4202, %v4203
    %v4205 = vand.u32 %v4204, 4294901760
    %4206 = vmatmul.mubr.f32.gmra.mrb[0].mxu0 %v4205
    %v4207 = vpop.f32.mrb[0].mxu0
    %v4208 = vadd.f32 0.0, %v4207
    %v4209 = vpop.f32.mrb[0].mxu0
    %4210 = vdwg.mxu0
    %4211 = vmatprep.subr.mxu0 0.0
    %v4212 = vand.u32 %v3352, 4294901760
    %v4213 = vsub.f32 %v3352, %v4212
    %v4214 = vand.u32 %v4213, 4294901760
    %v4215 = vsub.f32 %v4213, %v4214
    %v4216 = vand.u32 %v4215, 4294901760
    %4217 = vmatpush1.msra.mxu0 %v4216
    %4218 = vmatprep.subr.mxu0 0.0
    %v4219 = vand.u32 %v4122, 4294901760
    %v4220 = vsub.f32 %v4122, %v4219
    %v4221 = vand.u32 %v4220, 4294901760
    %v4222 = vsub.f32 %v4220, %v4221
    %v4223 = vand.u32 %v4222, 4294901760
    %4224 = vmatpush1.msra.mxu0 %v4223
    %4225 = vmatprep.subr.mxu0 0.0
    %4226 = vmatpush1.msra.mxu0 0.0
    %4227 = vmatprep.subr.mxu0 0.0
    %4228 = vmatpush1.msra.mxu0 0.0
    %4229 = vmatprep.subr.mxu0 0.0
    %4230 = vmatpush1.msra.mxu0 0.0
    %4231 = vmatprep.subr.mxu0 0.0
    %4232 = vmatpush1.msra.mxu0 0.0
    %4233 = vmatprep.subr.mxu0 0.0
    %4234 = vmatpush1.msra.mxu0 0.0
    %4235 = vmatprep.subr.mxu0 0.0
    %4236 = vmatpush1.msra.mxu0 0.0
    %4237 = vmatprep.subr.mxu0 0.0
    %4238 = vmatpush1.msra.mxu0 0.0
    %4239 = vmatprep.subr.mxu0 0.0
    %4240 = vmatpush1.msra.mxu0 0.0
    %4241 = vmatprep.subr.mxu0 0.0
    %4242 = vmatpush1.msra.mxu0 0.0
    %4243 = vmatprep.subr.mxu0 0.0
    %4244 = vmatpush1.msra.mxu0 0.0
    %4245 = vmatprep.subr.mxu0 0.0
    %4246 = vmatpush1.msra.mxu0 0.0
    %4247 = vmatprep.subr.mxu0 0.0
    %4248 = vmatpush1.msra.mxu0 0.0
    %4249 = vmatprep.subr.mxu0 0.0
    %4250 = vmatpush1.msra.mxu0 0.0
    %4251 = vmatprep.subr.mxu0 0.0
    %4252 = vmatpush1.msra.mxu0 0.0
    %4253 = vmatprep.subr.mxu0 0.0
    %4254 = vmatpush1.msra.mxu0 0.0
    %4255 = vmatprep.subr.mxu0 0.0
    %4256 = vmatpush1.msra.mxu0 0.0
    %4257 = vmatprep.subr.mxu0 0.0
    %4258 = vmatpush1.msra.mxu0 0.0
    %4259 = vmatprep.subr.mxu0 0.0
    %4260 = vmatpush1.msra.mxu0 0.0
    %4261 = vmatprep.subr.mxu0 0.0
    %4262 = vmatpush1.msra.mxu0 0.0
    %4263 = vmatprep.subr.mxu0 0.0
    %4264 = vmatpush1.msra.mxu0 0.0
    %4265 = vmatprep.subr.mxu0 0.0
    %4266 = vmatpush1.msra.mxu0 0.0
    %4267 = vmatprep.subr.mxu0 0.0
    %4268 = vmatpush1.msra.mxu0 0.0
    %4269 = vmatprep.subr.mxu0 0.0
    %4270 = vmatpush1.msra.mxu0 0.0
    %4271 = vmatprep.subr.mxu0 0.0
    %4272 = vmatpush1.msra.mxu0 0.0
    %4273 = vmatprep.subr.mxu0 0.0
    %4274 = vmatpush1.msra.mxu0 0.0
    %4275 = vmatprep.subr.mxu0 0.0
    %4276 = vmatpush1.msra.mxu0 0.0
    %4277 = vmatprep.subr.mxu0 0.0
    %4278 = vmatpush1.msra.mxu0 0.0
    %4279 = vmatprep.subr.mxu0 0.0
    %4280 = vmatpush1.msra.mxu0 0.0
    %4281 = vmatprep.subr.mxu0 0.0
    %4282 = vmatpush1.msra.mxu0 0.0
    %4283 = vmatprep.subr.mxu0 0.0
    %4284 = vmatpush1.msra.mxu0 0.0
    %4285 = vmatprep.mubr.f32.mxu0 0.0
    %v4286 = vand.u32 %v4115, 4294901760
    %4287 = vmatmul.mubr.f32.gmra.mrb[0].mxu0 %v4286
    %v4288 = vpop.f32.mrb[0].mxu0
    %v4289 = vadd.f32 %v4198, %v4288
    %v4290 = vpop.f32.mrb[0].mxu0
    %4291 = vmatprep.mubr.f32.mxu0 0.0
    %v4292 = vand.u32 %v4118, 4294901760
    %4293 = vmatmul.mubr.f32.gmra.mrb[0].mxu0 %v4292
    %v4294 = vpop.f32.mrb[0].mxu0
    %v4295 = vadd.f32 %v4208, %v4294
    %v4296 = vpop.f32.mrb[0].mxu0
    %4297 = vdwg.mxu0
    %4298 = vmatprep.subr.mxu0 0.0
    %v4299 = vand.u32 %v3352, 4294901760
    %v4300 = vsub.f32 %v3352, %v4299
    %4301 = vmatpush1.msra.mxu0 %v4300
    %4302 = vmatprep.subr.mxu0 0.0
    %v4303 = vand.u32 %v4122, 4294901760
    %v4304 = vsub.f32 %v4122, %v4303
    %4305 = vmatpush1.msra.mxu0 %v4304
    %4306 = vmatprep.subr.mxu0 0.0
    %4307 = vmatpush1.msra.mxu0 0.0
    %4308 = vmatprep.subr.mxu0 0.0
    %4309 = vmatpush1.msra.mxu0 0.0
    %4310 = vmatprep.subr.mxu0 0.0
    %4311 = vmatpush1.msra.mxu0 0.0
    %4312 = vmatprep.subr.mxu0 0.0
    %4313 = vmatpush1.msra.mxu0 0.0
    %4314 = vmatprep.subr.mxu0 0.0
    %4315 = vmatpush1.msra.mxu0 0.0
    %4316 = vmatprep.subr.mxu0 0.0
    %4317 = vmatpush1.msra.mxu0 0.0
    %4318 = vmatprep.subr.mxu0 0.0
    %4319 = vmatpush1.msra.mxu0 0.0
    %4320 = vmatprep.subr.mxu0 0.0
    %4321 = vmatpush1.msra.mxu0 0.0
    %4322 = vmatprep.subr.mxu0 0.0
    %4323 = vmatpush1.msra.mxu0 0.0
    %4324 = vmatprep.subr.mxu0 0.0
    %4325 = vmatpush1.msra.mxu0 0.0
    %4326 = vmatprep.subr.mxu0 0.0
    %4327 = vmatpush1.msra.mxu0 0.0
    %4328 = vmatprep.subr.mxu0 0.0
    %4329 = vmatpush1.msra.mxu0 0.0
    %4330 = vmatprep.subr.mxu0 0.0
    %4331 = vmatpush1.msra.mxu0 0.0
    %4332 = vmatprep.subr.mxu0 0.0
    %4333 = vmatpush1.msra.mxu0 0.0
    %4334 = vmatprep.subr.mxu0 0.0
    %4335 = vmatpush1.msra.mxu0 0.0
    %4336 = vmatprep.subr.mxu0 0.0
    %4337 = vmatpush1.msra.mxu0 0.0
    %4338 = vmatprep.subr.mxu0 0.0
    %4339 = vmatpush1.msra.mxu0 0.0
    %4340 = vmatprep.subr.mxu0 0.0
    %4341 = vmatpush1.msra.mxu0 0.0
    %4342 = vmatprep.subr.mxu0 0.0
    %4343 = vmatpush1.msra.mxu0 0.0
    %4344 = vmatprep.subr.mxu0 0.0
    %4345 = vmatpush1.msra.mxu0 0.0
    %4346 = vmatprep.subr.mxu0 0.0
    %4347 = vmatpush1.msra.mxu0 0.0
    %4348 = vmatprep.subr.mxu0 0.0
    %4349 = vmatpush1.msra.mxu0 0.0
    %4350 = vmatprep.subr.mxu0 0.0
    %4351 = vmatpush1.msra.mxu0 0.0
    %4352 = vmatprep.subr.mxu0 0.0
    %4353 = vmatpush1.msra.mxu0 0.0
    %4354 = vmatprep.subr.mxu0 0.0
    %4355 = vmatpush1.msra.mxu0 0.0
    %4356 = vmatprep.subr.mxu0 0.0
    %4357 = vmatpush1.msra.mxu0 0.0
    %4358 = vmatprep.subr.mxu0 0.0
    %4359 = vmatpush1.msra.mxu0 0.0
    %4360 = vmatprep.subr.mxu0 0.0
    %4361 = vmatpush1.msra.mxu0 0.0
    %4362 = vmatprep.subr.mxu0 0.0
    %4363 = vmatpush1.msra.mxu0 0.0
    %4364 = vmatprep.subr.mxu0 0.0
    %4365 = vmatpush1.msra.mxu0 0.0
    %4366 = vmatprep.mubr.f32.mxu0 0.0
    %v4367 = vand.u32 %v4115, 4294901760
    %v4368 = vsub.f32 %v4115, %v4367
    %4369 = vmatmul.mubr.f32.gmra.mrb[0].mxu0 %v4368
    %v4370 = vpop.f32.mrb[0].mxu0
    %v4371 = vadd.f32 %v4289, %v4370
    %v4372 = vpop.f32.mrb[0].mxu0
    %4373 = vmatprep.mubr.f32.mxu0 0.0
    %v4374 = vand.u32 %v4118, 4294901760
    %v4375 = vsub.f32 %v4118, %v4374
    %4376 = vmatmul.mubr.f32.gmra.mrb[0].mxu0 %v4375
    %v4377 = vpop.f32.mrb[0].mxu0
    %v4378 = vadd.f32 %v4295, %v4377
    %v4379 = vpop.f32.mrb[0].mxu0
    %4380 = vdwg.mxu0
    %4381 = vmatprep.subr.mxu0 0.0
    %v4382 = vand.u32 %v3352, 4294901760
    %4383 = vmatpush1.msra.mxu0 %v4382
    %4384 = vmatprep.subr.mxu0 0.0
    %v4385 = vand.u32 %v4122, 4294901760
    %4386 = vmatpush1.msra.mxu0 %v4385
    %4387 = vmatprep.subr.mxu0 0.0
    %4388 = vmatpush1.msra.mxu0 0.0
    %4389 = vmatprep.subr.mxu0 0.0
    %4390 = vmatpush1.msra.mxu0 0.0
    %4391 = vmatprep.subr.mxu0 0.0
    %4392 = vmatpush1.msra.mxu0 0.0
    %4393 = vmatprep.subr.mxu0 0.0
    %4394 = vmatpush1.msra.mxu0 0.0
    %4395 = vmatprep.subr.mxu0 0.0
    %4396 = vmatpush1.msra.mxu0 0.0
    %4397 = vmatprep.subr.mxu0 0.0
    %4398 = vmatpush1.msra.mxu0 0.0
    %4399 = vmatprep.subr.mxu0 0.0
    %4400 = vmatpush1.msra.mxu0 0.0
    %4401 = vmatprep.subr.mxu0 0.0
    %4402 = vmatpush1.msra.mxu0 0.0
    %4403 = vmatprep.subr.mxu0 0.0
    %4404 = vmatpush1.msra.mxu0 0.0
    %4405 = vmatprep.subr.mxu0 0.0
    %4406 = vmatpush1.msra.mxu0 0.0
    %4407 = vmatprep.subr.mxu0 0.0
    %4408 = vmatpush1.msra.mxu0 0.0
    %4409 = vmatprep.subr.mxu0 0.0
    %4410 = vmatpush1.msra.mxu0 0.0
    %4411 = vmatprep.subr.mxu0 0.0
    %4412 = vmatpush1.msra.mxu0 0.0
    %4413 = vmatprep.subr.mxu0 0.0
    %4414 = vmatpush1.msra.mxu0 0.0
    %4415 = vmatprep.subr.mxu0 0.0
    %4416 = vmatpush1.msra.mxu0 0.0
    %4417 = vmatprep.subr.mxu0 0.0
    %4418 = vmatpush1.msra.mxu0 0.0
    %4419 = vmatprep.subr.mxu0 0.0
    %4420 = vmatpush1.msra.mxu0 0.0
    %4421 = vmatprep.subr.mxu0 0.0
    %4422 = vmatpush1.msra.mxu0 0.0
    %4423 = vmatprep.subr.mxu0 0.0
    %4424 = vmatpush1.msra.mxu0 0.0
    %4425 = vmatprep.subr.mxu0 0.0
    %4426 = vmatpush1.msra.mxu0 0.0
    %4427 = vmatprep.subr.mxu0 0.0
    %4428 = vmatpush1.msra.mxu0 0.0
    %4429 = vmatprep.subr.mxu0 0.0
    %4430 = vmatpush1.msra.mxu0 0.0
    %4431 = vmatprep.subr.mxu0 0.0
    %4432 = vmatpush1.msra.mxu0 0.0
    %4433 = vmatprep.subr.mxu0 0.0
    %4434 = vmatpush1.msra.mxu0 0.0
    %4435 = vmatprep.subr.mxu0 0.0
    %4436 = vmatpush1.msra.mxu0 0.0
    %4437 = vmatprep.subr.mxu0 0.0
    %4438 = vmatpush1.msra.mxu0 0.0
    %4439 = vmatprep.subr.mxu0 0.0
    %4440 = vmatpush1.msra.mxu0 0.0
    %4441 = vmatprep.subr.mxu0 0.0
    %4442 = vmatpush1.msra.mxu0 0.0
    %4443 = vmatprep.subr.mxu0 0.0
    %4444 = vmatpush1.msra.mxu0 0.0
    %4445 = vmatprep.subr.mxu0 0.0
    %4446 = vmatpush1.msra.mxu0 0.0
    %4447 = vmatprep.mubr.f32.mxu0 0.0
    %v4448 = vand.u32 %v4115, 4294901760
    %v4449 = vsub.f32 %v4115, %v4448
    %v4450 = vand.u32 %v4449, 4294901760
    %4451 = vmatmul.mubr.f32.gmra.mrb[0].mxu0 %v4450
    %v4452 = vpop.f32.mrb[0].mxu0
    %v4453 = vadd.f32 %v4371, %v4452
    %v4454 = vpop.f32.mrb[0].mxu0
    %4455 = vmatprep.mubr.f32.mxu0 0.0
    %v4456 = vand.u32 %v4118, 4294901760
    %v4457 = vsub.f32 %v4118, %v4456
    %v4458 = vand.u32 %v4457, 4294901760
    %4459 = vmatmul.mubr.f32.gmra.mrb[0].mxu0 %v4458
    %v4460 = vpop.f32.mrb[0].mxu0
    %v4461 = vadd.f32 %v4378, %v4460
    %v4462 = vpop.f32.mrb[0].mxu0
    %4463 = vdwg.mxu0
    %4464 = vmatprep.subr.mxu0 0.0
    %v4465 = vand.u32 %v3352, 4294901760
    %v4466 = vsub.f32 %v3352, %v4465
    %v4467 = vand.u32 %v4466, 4294901760
    %4468 = vmatpush1.msra.mxu0 %v4467
    %4469 = vmatprep.subr.mxu0 0.0
    %v4470 = vand.u32 %v4122, 4294901760
    %v4471 = vsub.f32 %v4122, %v4470
    %v4472 = vand.u32 %v4471, 4294901760
    %4473 = vmatpush1.msra.mxu0 %v4472
    %4474 = vmatprep.subr.mxu0 0.0
    %4475 = vmatpush1.msra.mxu0 0.0
    %4476 = vmatprep.subr.mxu0 0.0
    %4477 = vmatpush1.msra.mxu0 0.0
    %4478 = vmatprep.subr.mxu0 0.0
    %4479 = vmatpush1.msra.mxu0 0.0
    %4480 = vmatprep.subr.mxu0 0.0
    %4481 = vmatpush1.msra.mxu0 0.0
    %4482 = vmatprep.subr.mxu0 0.0
    %4483 = vmatpush1.msra.mxu0 0.0
    %4484 = vmatprep.subr.mxu0 0.0
    %4485 = vmatpush1.msra.mxu0 0.0
    %4486 = vmatprep.subr.mxu0 0.0
    %4487 = vmatpush1.msra.mxu0 0.0
    %4488 = vmatprep.subr.mxu0 0.0
    %4489 = vmatpush1.msra.mxu0 0.0
    %4490 = vmatprep.subr.mxu0 0.0
    %4491 = vmatpush1.msra.mxu0 0.0
    %4492 = vmatprep.subr.mxu0 0.0
    %4493 = vmatpush1.msra.mxu0 0.0
    %4494 = vmatprep.subr.mxu0 0.0
    %4495 = vmatpush1.msra.mxu0 0.0
    %4496 = vmatprep.subr.mxu0 0.0
    %4497 = vmatpush1.msra.mxu0 0.0
    %4498 = vmatprep.subr.mxu0 0.0
    %4499 = vmatpush1.msra.mxu0 0.0
    %4500 = vmatprep.subr.mxu0 0.0
    %4501 = vmatpush1.msra.mxu0 0.0
    %4502 = vmatprep.subr.mxu0 0.0
    %4503 = vmatpush1.msra.mxu0 0.0
    %4504 = vmatprep.subr.mxu0 0.0
    %4505 = vmatpush1.msra.mxu0 0.0
    %4506 = vmatprep.subr.mxu0 0.0
    %4507 = vmatpush1.msra.mxu0 0.0
    %4508 = vmatprep.subr.mxu0 0.0
    %4509 = vmatpush1.msra.mxu0 0.0
    %4510 = vmatprep.subr.mxu0 0.0
    %4511 = vmatpush1.msra.mxu0 0.0
    %4512 = vmatprep.subr.mxu0 0.0
    %4513 = vmatpush1.msra.mxu0 0.0
    %4514 = vmatprep.subr.mxu0 0.0
    %4515 = vmatpush1.msra.mxu0 0.0
    %4516 = vmatprep.subr.mxu0 0.0
    %4517 = vmatpush1.msra.mxu0 0.0
    %4518 = vmatprep.subr.mxu0 0.0
    %4519 = vmatpush1.msra.mxu0 0.0
    %4520 = vmatprep.subr.mxu0 0.0
    %4521 = vmatpush1.msra.mxu0 0.0
    %4522 = vmatprep.subr.mxu0 0.0
    %4523 = vmatpush1.msra.mxu0 0.0
    %4524 = vmatprep.subr.mxu0 0.0
    %4525 = vmatpush1.msra.mxu0 0.0
    %4526 = vmatprep.subr.mxu0 0.0
    %4527 = vmatpush1.msra.mxu0 0.0
    %4528 = vmatprep.subr.mxu0 0.0
    %4529 = vmatpush1.msra.mxu0 0.0
    %4530 = vmatprep.subr.mxu0 0.0
    %4531 = vmatpush1.msra.mxu0 0.0
    %4532 = vmatprep.subr.mxu0 0.0
    %4533 = vmatpush1.msra.mxu0 0.0
    %4534 = vmatprep.mubr.f32.mxu0 0.0
    %v4535 = vand.u32 %v4115, 4294901760
    %4536 = vmatmul.mubr.f32.gmra.mrb[0].mxu0 %v4535
    %v4537 = vpop.f32.mrb[0].mxu0
    %v4538 = vadd.f32 %v4453, %v4537
    %v4539 = vpop.f32.mrb[0].mxu0
    %4540 = vmatprep.mubr.f32.mxu0 0.0
    %v4541 = vand.u32 %v4118, 4294901760
    %4542 = vmatmul.mubr.f32.gmra.mrb[0].mxu0 %v4541
    %v4543 = vpop.f32.mrb[0].mxu0
    %v4544 = vadd.f32 %v4461, %v4543
    %v4545 = vpop.f32.mrb[0].mxu0
    %4546 = vdwg.mxu0
    %4547 = vmatprep.subr.mxu0 0.0
    %v4548 = vand.u32 %v3352, 4294901760
    %4549 = vmatpush1.msra.mxu0 %v4548
    %4550 = vmatprep.subr.mxu0 0.0
    %v4551 = vand.u32 %v4122, 4294901760
    %4552 = vmatpush1.msra.mxu0 %v4551
    %4553 = vmatprep.subr.mxu0 0.0
    %4554 = vmatpush1.msra.mxu0 0.0
    %4555 = vmatprep.subr.mxu0 0.0
    %4556 = vmatpush1.msra.mxu0 0.0
    %4557 = vmatprep.subr.mxu0 0.0
    %4558 = vmatpush1.msra.mxu0 0.0
    %4559 = vmatprep.subr.mxu0 0.0
    %4560 = vmatpush1.msra.mxu0 0.0
    %4561 = vmatprep.subr.mxu0 0.0
    %4562 = vmatpush1.msra.mxu0 0.0
    %4563 = vmatprep.subr.mxu0 0.0
    %4564 = vmatpush1.msra.mxu0 0.0
    %4565 = vmatprep.subr.mxu0 0.0
    %4566 = vmatpush1.msra.mxu0 0.0
    %4567 = vmatprep.subr.mxu0 0.0
    %4568 = vmatpush1.msra.mxu0 0.0
    %4569 = vmatprep.subr.mxu0 0.0
    %4570 = vmatpush1.msra.mxu0 0.0
    %4571 = vmatprep.subr.mxu0 0.0
    %4572 = vmatpush1.msra.mxu0 0.0
    %4573 = vmatprep.subr.mxu0 0.0
    %4574 = vmatpush1.msra.mxu0 0.0
    %4575 = vmatprep.subr.mxu0 0.0
    %4576 = vmatpush1.msra.mxu0 0.0
    %4577 = vmatprep.subr.mxu0 0.0
    %4578 = vmatpush1.msra.mxu0 0.0
    %4579 = vmatprep.subr.mxu0 0.0
    %4580 = vmatpush1.msra.mxu0 0.0
    %4581 = vmatprep.subr.mxu0 0.0
    %4582 = vmatpush1.msra.mxu0 0.0
    %4583 = vmatprep.subr.mxu0 0.0
    %4584 = vmatpush1.msra.mxu0 0.0
    %4585 = vmatprep.subr.mxu0 0.0
    %4586 = vmatpush1.msra.mxu0 0.0
    %4587 = vmatprep.subr.mxu0 0.0
    %4588 = vmatpush1.msra.mxu0 0.0
    %4589 = vmatprep.subr.mxu0 0.0
    %4590 = vmatpush1.msra.mxu0 0.0
    %4591 = vmatprep.subr.mxu0 0.0
    %4592 = vmatpush1.msra.mxu0 0.0
    %4593 = vmatprep.subr.mxu0 0.0
    %4594 = vmatpush1.msra.mxu0 0.0
    %4595 = vmatprep.subr.mxu0 0.0
    %4596 = vmatpush1.msra.mxu0 0.0
    %4597 = vmatprep.subr.mxu0 0.0
    %4598 = vmatpush1.msra.mxu0 0.0
    %4599 = vmatprep.subr.mxu0 0.0
    %4600 = vmatpush1.msra.mxu0 0.0
    %4601 = vmatprep.subr.mxu0 0.0
    %4602 = vmatpush1.msra.mxu0 0.0
    %4603 = vmatprep.subr.mxu0 0.0
    %4604 = vmatpush1.msra.mxu0 0.0
    %4605 = vmatprep.subr.mxu0 0.0
    %4606 = vmatpush1.msra.mxu0 0.0
    %4607 = vmatprep.subr.mxu0 0.0
    %4608 = vmatpush1.msra.mxu0 0.0
    %4609 = vmatprep.subr.mxu0 0.0
    %4610 = vmatpush1.msra.mxu0 0.0
    %4611 = vmatprep.subr.mxu0 0.0
    %4612 = vmatpush1.msra.mxu0 0.0
    %4613 = vmatprep.mubr.f32.mxu0 0.0
    %v4614 = vand.u32 %v4115, 4294901760
    %4615 = vmatmul.mubr.f32.gmra.mrb[0].mxu0 %v4614
    %v4616 = vpop.f32.mrb[0].mxu0
    %v4617 = vadd.f32 %v4538, %v4616
    %v4618 = vpop.f32.mrb[0].mxu0
    %4619 = vmatprep.mubr.f32.mxu0 0.0
    %v4620 = vand.u32 %v4118, 4294901760
    %4621 = vmatmul.mubr.f32.gmra.mrb[0].mxu0 %v4620
    %v4622 = vpop.f32.mrb[0].mxu0
    %v4623 = vadd.f32 %v4544, %v4622
    %v4624 = vpop.f32.mrb[0].mxu0
    %4625 = vdwg.mxu0
    %v4626 = vrcp.pop %v4617
    %v4627 = vrcp.pop %v4623
    %v4628 = vmul.f32 %v4111, %v4626
    %v4629 = vmul.f32 %v4113, %v4627
    %v4630 = vmul.f32 %v4628, 0.25
    %v4631 = vmul.f32 %v4629, 0.25
    %v4632 = vmul.f32 %v906, %v1717
    %v4633 = vmul.f32 %v908, %v1719
    %v4634 = vmul.f32 %v913, %v1724
    %v4635 = vmul.f32 %v915, %v1726
    %v4637 = vsel %vm3358, %v4633, 0
    %v4640 = vsel %vm3358, %v4635, 0
    %4642 = vmatprep.subr.mxu0 0.0
    %v4643 = vand.u32 %v3334, 4294901760
    %4644 = vmatpush1.msra.mxu0 %v4643
    %4645 = vmatprep.subr.mxu0 0.0
    %v4646 = vand.u32 %v3335, 4294901760
    %4647 = vmatpush1.msra.mxu0 %v4646
    %4648 = vmatprep.subr.mxu0 0.0
    %v4649 = vand.u32 %v3336, 4294901760
    %4650 = vmatpush1.msra.mxu0 %v4649
    %4651 = vmatprep.subr.mxu0 0.0
    %v4652 = vand.u32 %v3337, 4294901760
    %4653 = vmatpush1.msra.mxu0 %v4652
    %4654 = vmatprep.subr.mxu0 0.0
    %v4655 = vand.u32 %v3338, 4294901760
    %4656 = vmatpush1.msra.mxu0 %v4655
    %4657 = vmatprep.subr.mxu0 0.0
    %v4658 = vand.u32 %v3339, 4294901760
    %4659 = vmatpush1.msra.mxu0 %v4658
    %4660 = vmatprep.subr.mxu0 0.0
    %v4661 = vand.u32 %v3340, 4294901760
    %4662 = vmatpush1.msra.mxu0 %v4661
    %4663 = vmatprep.subr.mxu0 0.0
    %v4664 = vand.u32 %v3341, 4294901760
    %4665 = vmatpush1.msra.mxu0 %v4664
    %4666 = vmatprep.subr.mxu0 0.0
    %v4667 = vand.u32 %v3342, 4294901760
    %4668 = vmatpush1.msra.mxu0 %v4667
    %4669 = vmatprep.subr.mxu0 0.0
    %v4670 = vand.u32 %v3343, 4294901760
    %4671 = vmatpush1.msra.mxu0 %v4670
    %4672 = vmatprep.subr.mxu0 0.0
    %v4673 = vand.u32 %v3344, 4294901760
    %4674 = vmatpush1.msra.mxu0 %v4673
    %4675 = vmatprep.subr.mxu0 0.0
    %v4676 = vand.u32 %v3345, 4294901760
    %4677 = vmatpush1.msra.mxu0 %v4676
    %4678 = vmatprep.subr.mxu0 0.0
    %v4679 = vand.u32 %v3346, 4294901760
    %4680 = vmatpush1.msra.mxu0 %v4679
    %4681 = vmatprep.subr.mxu0 0.0
    %v4682 = vand.u32 %v3347, 4294901760
    %4683 = vmatpush1.msra.mxu0 %v4682
    %4684 = vmatprep.subr.mxu0 0.0
    %v4685 = vand.u32 %v3348, 4294901760
    %4686 = vmatpush1.msra.mxu0 %v4685
    %4687 = vmatprep.subr.mxu0 0.0
    %v4688 = vand.u32 %v3349, 4294901760
    %4689 = vmatpush1.msra.mxu0 %v4688
    %4690 = vmatprep.subr.mxu0 0.0
    %v4691 = vand.u32 %v3350, 4294901760
    %4692 = vmatpush1.msra.mxu0 %v4691
    %4693 = vmatprep.subr.mxu0 0.0
    %v4694 = vand.u32 %v3351, 4294901760
    %4695 = vmatpush1.msra.mxu0 %v4694
    %4696 = vmatprep.subr.mxu0 0.0
    %4697 = vmatpush1.msra.mxu0 0.0
    %4698 = vmatprep.subr.mxu0 0.0
    %4699 = vmatpush1.msra.mxu0 0.0
    %4700 = vmatprep.subr.mxu0 0.0
    %4701 = vmatpush1.msra.mxu0 0.0
    %4702 = vmatprep.subr.mxu0 0.0
    %4703 = vmatpush1.msra.mxu0 0.0
    %4704 = vmatprep.subr.mxu0 0.0
    %4705 = vmatpush1.msra.mxu0 0.0
    %4706 = vmatprep.subr.mxu0 0.0
    %4707 = vmatpush1.msra.mxu0 0.0
    %4708 = vmatprep.subr.mxu0 0.0
    %4709 = vmatpush1.msra.mxu0 0.0
    %4710 = vmatprep.subr.mxu0 0.0
    %4711 = vmatpush1.msra.mxu0 0.0
    %4712 = vmatprep.subr.mxu0 0.0
    %4713 = vmatpush1.msra.mxu0 0.0
    %4714 = vmatprep.subr.mxu0 0.0
    %4715 = vmatpush1.msra.mxu0 0.0
    %4716 = vmatprep.subr.mxu0 0.0
    %4717 = vmatpush1.msra.mxu0 0.0
    %4718 = vmatprep.subr.mxu0 0.0
    %4719 = vmatpush1.msra.mxu0 0.0
    %4720 = vmatprep.subr.mxu0 0.0
    %4721 = vmatpush1.msra.mxu0 0.0
    %4722 = vmatprep.subr.mxu0 0.0
    %4723 = vmatpush1.msra.mxu0 0.0
    %v4724 = vand.u32 %v4637, 4294901760
    %v4725 = vsub.f32 %v4637, %v4724
    %v4726 = vand.u32 %v4725, 4294901760
    %v4727 = vsub.f32 %v4725, %v4726
    %v4728 = vand.u32 %v4727, 4294901760
    %4729 = vmatprep.mubr.f32.mxu0 %v4728
    %v4730 = vand.u32 %v4632, 4294901760
    %v4731 = vsub.f32 %v4632, %v4730
    %v4732 = vand.u32 %v4731, 4294901760
    %v4733 = vsub.f32 %v4731, %v4732
    %v4734 = vand.u32 %v4733, 4294901760
    %4735 = vmatmul.mubr.f32.gmra.mrb[0].mxu0 %v4734
    %v4736 = vpop.f32.mrb[0].mxu0
    %v4737 = vadd.f32 0.0, %v4736
    %v4738 = vpop.f32.mrb[0].mxu0
    %v4739 = vand.u32 %v4640, 4294901760
    %v4740 = vsub.f32 %v4640, %v4739
    %v4741 = vand.u32 %v4740, 4294901760
    %v4742 = vsub.f32 %v4740, %v4741
    %v4743 = vand.u32 %v4742, 4294901760
    %4744 = vmatprep.mubr.f32.mxu0 %v4743
    %v4745 = vand.u32 %v4634, 4294901760
    %v4746 = vsub.f32 %v4634, %v4745
    %v4747 = vand.u32 %v4746, 4294901760
    %v4748 = vsub.f32 %v4746, %v4747
    %v4749 = vand.u32 %v4748, 4294901760
    %4750 = vmatmul.mubr.f32.gmra.mrb[0].mxu0 %v4749
    %v4751 = vpop.f32.mrb[0].mxu0
    %v4752 = vadd.f32 0.0, %v4751
    %v4753 = vpop.f32.mrb[0].mxu0
    %4754 = vdwg.mxu0
    %4755 = vmatprep.subr.mxu0 0.0
    %v4756 = vand.u32 %v3334, 4294901760
    %v4757 = vsub.f32 %v3334, %v4756
    %v4758 = vand.u32 %v4757, 4294901760
    %v4759 = vsub.f32 %v4757, %v4758
    %v4760 = vand.u32 %v4759, 4294901760
    %4761 = vmatpush1.msra.mxu0 %v4760
    %4762 = vmatprep.subr.mxu0 0.0
    %v4763 = vand.u32 %v3335, 4294901760
    %v4764 = vsub.f32 %v3335, %v4763
    %v4765 = vand.u32 %v4764, 4294901760
    %v4766 = vsub.f32 %v4764, %v4765
    %v4767 = vand.u32 %v4766, 4294901760
    %4768 = vmatpush1.msra.mxu0 %v4767
    %4769 = vmatprep.subr.mxu0 0.0
    %v4770 = vand.u32 %v3336, 4294901760
    %v4771 = vsub.f32 %v3336, %v4770
    %v4772 = vand.u32 %v4771, 4294901760
    %v4773 = vsub.f32 %v4771, %v4772
    %v4774 = vand.u32 %v4773, 4294901760
    %4775 = vmatpush1.msra.mxu0 %v4774
    %4776 = vmatprep.subr.mxu0 0.0
    %v4777 = vand.u32 %v3337, 4294901760
    %v4778 = vsub.f32 %v3337, %v4777
    %v4779 = vand.u32 %v4778, 4294901760
    %v4780 = vsub.f32 %v4778, %v4779
    %v4781 = vand.u32 %v4780, 4294901760
    %4782 = vmatpush1.msra.mxu0 %v4781
    %4783 = vmatprep.subr.mxu0 0.0
    %v4784 = vand.u32 %v3338, 4294901760
    %v4785 = vsub.f32 %v3338, %v4784
    %v4786 = vand.u32 %v4785, 4294901760
    %v4787 = vsub.f32 %v4785, %v4786
    %v4788 = vand.u32 %v4787, 4294901760
    %4789 = vmatpush1.msra.mxu0 %v4788
    %4790 = vmatprep.subr.mxu0 0.0
    %v4791 = vand.u32 %v3339, 4294901760
    %v4792 = vsub.f32 %v3339, %v4791
    %v4793 = vand.u32 %v4792, 4294901760
    %v4794 = vsub.f32 %v4792, %v4793
    %v4795 = vand.u32 %v4794, 4294901760
    %4796 = vmatpush1.msra.mxu0 %v4795
    %4797 = vmatprep.subr.mxu0 0.0
    %v4798 = vand.u32 %v3340, 4294901760
    %v4799 = vsub.f32 %v3340, %v4798
    %v4800 = vand.u32 %v4799, 4294901760
    %v4801 = vsub.f32 %v4799, %v4800
    %v4802 = vand.u32 %v4801, 4294901760
    %4803 = vmatpush1.msra.mxu0 %v4802
    %4804 = vmatprep.subr.mxu0 0.0
    %v4805 = vand.u32 %v3341, 4294901760
    %v4806 = vsub.f32 %v3341, %v4805
    %v4807 = vand.u32 %v4806, 4294901760
    %v4808 = vsub.f32 %v4806, %v4807
    %v4809 = vand.u32 %v4808, 4294901760
    %4810 = vmatpush1.msra.mxu0 %v4809
    %4811 = vmatprep.subr.mxu0 0.0
    %v4812 = vand.u32 %v3342, 4294901760
    %v4813 = vsub.f32 %v3342, %v4812
    %v4814 = vand.u32 %v4813, 4294901760
    %v4815 = vsub.f32 %v4813, %v4814
    %v4816 = vand.u32 %v4815, 4294901760
    %4817 = vmatpush1.msra.mxu0 %v4816
    %4818 = vmatprep.subr.mxu0 0.0
    %v4819 = vand.u32 %v3343, 4294901760
    %v4820 = vsub.f32 %v3343, %v4819
    %v4821 = vand.u32 %v4820, 4294901760
    %v4822 = vsub.f32 %v4820, %v4821
    %v4823 = vand.u32 %v4822, 4294901760
    %4824 = vmatpush1.msra.mxu0 %v4823
    %4825 = vmatprep.subr.mxu0 0.0
    %v4826 = vand.u32 %v3344, 4294901760
    %v4827 = vsub.f32 %v3344, %v4826
    %v4828 = vand.u32 %v4827, 4294901760
    %v4829 = vsub.f32 %v4827, %v4828
    %v4830 = vand.u32 %v4829, 4294901760
    %4831 = vmatpush1.msra.mxu0 %v4830
    %4832 = vmatprep.subr.mxu0 0.0
    %v4833 = vand.u32 %v3345, 4294901760
    %v4834 = vsub.f32 %v3345, %v4833
    %v4835 = vand.u32 %v4834, 4294901760
    %v4836 = vsub.f32 %v4834, %v4835
    %v4837 = vand.u32 %v4836, 4294901760
    %4838 = vmatpush1.msra.mxu0 %v4837
    %4839 = vmatprep.subr.mxu0 0.0
    %v4840 = vand.u32 %v3346, 4294901760
    %v4841 = vsub.f32 %v3346, %v4840
    %v4842 = vand.u32 %v4841, 4294901760
    %v4843 = vsub.f32 %v4841, %v4842
    %v4844 = vand.u32 %v4843, 4294901760
    %4845 = vmatpush1.msra.mxu0 %v4844
    %4846 = vmatprep.subr.mxu0 0.0
    %v4847 = vand.u32 %v3347, 4294901760
    %v4848 = vsub.f32 %v3347, %v4847
    %v4849 = vand.u32 %v4848, 4294901760
    %v4850 = vsub.f32 %v4848, %v4849
    %v4851 = vand.u32 %v4850, 4294901760
    %4852 = vmatpush1.msra.mxu0 %v4851
    %4853 = vmatprep.subr.mxu0 0.0
    %v4854 = vand.u32 %v3348, 4294901760
    %v4855 = vsub.f32 %v3348, %v4854
    %v4856 = vand.u32 %v4855, 4294901760
    %v4857 = vsub.f32 %v4855, %v4856
    %v4858 = vand.u32 %v4857, 4294901760
    %4859 = vmatpush1.msra.mxu0 %v4858
    %4860 = vmatprep.subr.mxu0 0.0
    %v4861 = vand.u32 %v3349, 4294901760
    %v4862 = vsub.f32 %v3349, %v4861
    %v4863 = vand.u32 %v4862, 4294901760
    %v4864 = vsub.f32 %v4862, %v4863
    %v4865 = vand.u32 %v4864, 4294901760
    %4866 = vmatpush1.msra.mxu0 %v4865
    %4867 = vmatprep.subr.mxu0 0.0
    %v4868 = vand.u32 %v3350, 4294901760
    %v4869 = vsub.f32 %v3350, %v4868
    %v4870 = vand.u32 %v4869, 4294901760
    %v4871 = vsub.f32 %v4869, %v4870
    %v4872 = vand.u32 %v4871, 4294901760
    %4873 = vmatpush1.msra.mxu0 %v4872
    %4874 = vmatprep.subr.mxu0 0.0
    %v4875 = vand.u32 %v3351, 4294901760
    %v4876 = vsub.f32 %v3351, %v4875
    %v4877 = vand.u32 %v4876, 4294901760
    %v4878 = vsub.f32 %v4876, %v4877
    %v4879 = vand.u32 %v4878, 4294901760
    %4880 = vmatpush1.msra.mxu0 %v4879
    %4881 = vmatprep.subr.mxu0 0.0
    %4882 = vmatpush1.msra.mxu0 0.0
    %4883 = vmatprep.subr.mxu0 0.0
    %4884 = vmatpush1.msra.mxu0 0.0
    %4885 = vmatprep.subr.mxu0 0.0
    %4886 = vmatpush1.msra.mxu0 0.0
    %4887 = vmatprep.subr.mxu0 0.0
    %4888 = vmatpush1.msra.mxu0 0.0
    %4889 = vmatprep.subr.mxu0 0.0
    %4890 = vmatpush1.msra.mxu0 0.0
    %4891 = vmatprep.subr.mxu0 0.0
    %4892 = vmatpush1.msra.mxu0 0.0
    %4893 = vmatprep.subr.mxu0 0.0
    %4894 = vmatpush1.msra.mxu0 0.0
    %4895 = vmatprep.subr.mxu0 0.0
    %4896 = vmatpush1.msra.mxu0 0.0
    %4897 = vmatprep.subr.mxu0 0.0
    %4898 = vmatpush1.msra.mxu0 0.0
    %4899 = vmatprep.subr.mxu0 0.0
    %4900 = vmatpush1.msra.mxu0 0.0
    %4901 = vmatprep.subr.mxu0 0.0
    %4902 = vmatpush1.msra.mxu0 0.0
    %4903 = vmatprep.subr.mxu0 0.0
    %4904 = vmatpush1.msra.mxu0 0.0
    %4905 = vmatprep.subr.mxu0 0.0
    %4906 = vmatpush1.msra.mxu0 0.0
    %4907 = vmatprep.subr.mxu0 0.0
    %4908 = vmatpush1.msra.mxu0 0.0
    %v4909 = vand.u32 %v4637, 4294901760
    %4910 = vmatprep.mubr.f32.mxu0 %v4909
    %v4911 = vand.u32 %v4632, 4294901760
    %4912 = vmatmul.mubr.f32.gmra.mrb[0].mxu0 %v4911
    %v4913 = vpop.f32.mrb[0].mxu0
    %v4914 = vadd.f32 %v4737, %v4913
    %v4915 = vpop.f32.mrb[0].mxu0
    %v4916 = vand.u32 %v4640, 4294901760
    %4917 = vmatprep.mubr.f32.mxu0 %v4916
    %v4918 = vand.u32 %v4634, 4294901760
    %4919 = vmatmul.mubr.f32.gmra.mrb[0].mxu0 %v4918
    %v4920 = vpop.f32.mrb[0].mxu0
    %v4921 = vadd.f32 %v4752, %v4920
    %v4922 = vpop.f32.mrb[0].mxu0
    %4923 = vdwg.mxu0
    %4924 = vmatprep.subr.mxu0 0.0
    %v4925 = vand.u32 %v3334, 4294901760
    %v4926 = vsub.f32 %v3334, %v4925
    %4927 = vmatpush1.msra.mxu0 %v4926
    %4928 = vmatprep.subr.mxu0 0.0
    %v4929 = vand.u32 %v3335, 4294901760
    %v4930 = vsub.f32 %v3335, %v4929
    %4931 = vmatpush1.msra.mxu0 %v4930
    %4932 = vmatprep.subr.mxu0 0.0
    %v4933 = vand.u32 %v3336, 4294901760
    %v4934 = vsub.f32 %v3336, %v4933
    %4935 = vmatpush1.msra.mxu0 %v4934
    %4936 = vmatprep.subr.mxu0 0.0
    %v4937 = vand.u32 %v3337, 4294901760
    %v4938 = vsub.f32 %v3337, %v4937
    %4939 = vmatpush1.msra.mxu0 %v4938
    %4940 = vmatprep.subr.mxu0 0.0
    %v4941 = vand.u32 %v3338, 4294901760
    %v4942 = vsub.f32 %v3338, %v4941
    %4943 = vmatpush1.msra.mxu0 %v4942
    %4944 = vmatprep.subr.mxu0 0.0
    %v4945 = vand.u32 %v3339, 4294901760
    %v4946 = vsub.f32 %v3339, %v4945
    %4947 = vmatpush1.msra.mxu0 %v4946
    %4948 = vmatprep.subr.mxu0 0.0
    %v4949 = vand.u32 %v3340, 4294901760
    %v4950 = vsub.f32 %v3340, %v4949
    %4951 = vmatpush1.msra.mxu0 %v4950
    %4952 = vmatprep.subr.mxu0 0.0
    %v4953 = vand.u32 %v3341, 4294901760
    %v4954 = vsub.f32 %v3341, %v4953
    %4955 = vmatpush1.msra.mxu0 %v4954
    %4956 = vmatprep.subr.mxu0 0.0
    %v4957 = vand.u32 %v3342, 4294901760
    %v4958 = vsub.f32 %v3342, %v4957
    %4959 = vmatpush1.msra.mxu0 %v4958
    %4960 = vmatprep.subr.mxu0 0.0
    %v4961 = vand.u32 %v3343, 4294901760
    %v4962 = vsub.f32 %v3343, %v4961
    %4963 = vmatpush1.msra.mxu0 %v4962
    %4964 = vmatprep.subr.mxu0 0.0
    %v4965 = vand.u32 %v3344, 4294901760
    %v4966 = vsub.f32 %v3344, %v4965
    %4967 = vmatpush1.msra.mxu0 %v4966
    %4968 = vmatprep.subr.mxu0 0.0
    %v4969 = vand.u32 %v3345, 4294901760
    %v4970 = vsub.f32 %v3345, %v4969
    %4971 = vmatpush1.msra.mxu0 %v4970
    %4972 = vmatprep.subr.mxu0 0.0
    %v4973 = vand.u32 %v3346, 4294901760
    %v4974 = vsub.f32 %v3346, %v4973
    %4975 = vmatpush1.msra.mxu0 %v4974
    %4976 = vmatprep.subr.mxu0 0.0
    %v4977 = vand.u32 %v3347, 4294901760
    %v4978 = vsub.f32 %v3347, %v4977
    %4979 = vmatpush1.msra.mxu0 %v4978
    %4980 = vmatprep.subr.mxu0 0.0
    %v4981 = vand.u32 %v3348, 4294901760
    %v4982 = vsub.f32 %v3348, %v4981
    %4983 = vmatpush1.msra.mxu0 %v4982
    %4984 = vmatprep.subr.mxu0 0.0
    %v4985 = vand.u32 %v3349, 4294901760
    %v4986 = vsub.f32 %v3349, %v4985
    %4987 = vmatpush1.msra.mxu0 %v4986
    %4988 = vmatprep.subr.mxu0 0.0
    %v4989 = vand.u32 %v3350, 4294901760
    %v4990 = vsub.f32 %v3350, %v4989
    %4991 = vmatpush1.msra.mxu0 %v4990
    %4992 = vmatprep.subr.mxu0 0.0
    %v4993 = vand.u32 %v3351, 4294901760
    %v4994 = vsub.f32 %v3351, %v4993
    %4995 = vmatpush1.msra.mxu0 %v4994
    %4996 = vmatprep.subr.mxu0 0.0
    %4997 = vmatpush1.msra.mxu0 0.0
    %4998 = vmatprep.subr.mxu0 0.0
    %4999 = vmatpush1.msra.mxu0 0.0
    %5000 = vmatprep.subr.mxu0 0.0
    %5001 = vmatpush1.msra.mxu0 0.0
    %5002 = vmatprep.subr.mxu0 0.0
    %5003 = vmatpush1.msra.mxu0 0.0
    %5004 = vmatprep.subr.mxu0 0.0
    %5005 = vmatpush1.msra.mxu0 0.0
    %5006 = vmatprep.subr.mxu0 0.0
    %5007 = vmatpush1.msra.mxu0 0.0
    %5008 = vmatprep.subr.mxu0 0.0
    %5009 = vmatpush1.msra.mxu0 0.0
    %5010 = vmatprep.subr.mxu0 0.0
    %5011 = vmatpush1.msra.mxu0 0.0
    %5012 = vmatprep.subr.mxu0 0.0
    %5013 = vmatpush1.msra.mxu0 0.0
    %5014 = vmatprep.subr.mxu0 0.0
    %5015 = vmatpush1.msra.mxu0 0.0
    %5016 = vmatprep.subr.mxu0 0.0
    %5017 = vmatpush1.msra.mxu0 0.0
    %5018 = vmatprep.subr.mxu0 0.0
    %5019 = vmatpush1.msra.mxu0 0.0
    %5020 = vmatprep.subr.mxu0 0.0
    %5021 = vmatpush1.msra.mxu0 0.0
    %5022 = vmatprep.subr.mxu0 0.0
    %5023 = vmatpush1.msra.mxu0 0.0
    %v5024 = vand.u32 %v4637, 4294901760
    %v5025 = vsub.f32 %v4637, %v5024
    %5026 = vmatprep.mubr.f32.mxu0 %v5025
    %v5027 = vand.u32 %v4632, 4294901760
    %v5028 = vsub.f32 %v4632, %v5027
    %5029 = vmatmul.mubr.f32.gmra.mrb[0].mxu0 %v5028
    %v5030 = vpop.f32.mrb[0].mxu0
    %v5031 = vadd.f32 %v4914, %v5030
    %v5032 = vpop.f32.mrb[0].mxu0
    %v5033 = vand.u32 %v4640, 4294901760
    %v5034 = vsub.f32 %v4640, %v5033
    %5035 = vmatprep.mubr.f32.mxu0 %v5034
    %v5036 = vand.u32 %v4634, 4294901760
    %v5037 = vsub.f32 %v4634, %v5036
    %5038 = vmatmul.mubr.f32.gmra.mrb[0].mxu0 %v5037
    %v5039 = vpop.f32.mrb[0].mxu0
    %v5040 = vadd.f32 %v4921, %v5039
    %v5041 = vpop.f32.mrb[0].mxu0
    %5042 = vdwg.mxu0
    %5043 = vmatprep.subr.mxu0 0.0
    %v5044 = vand.u32 %v3334, 4294901760
    %5045 = vmatpush1.msra.mxu0 %v5044
    %5046 = vmatprep.subr.mxu0 0.0
    %v5047 = vand.u32 %v3335, 4294901760
    %5048 = vmatpush1.msra.mxu0 %v5047
    %5049 = vmatprep.subr.mxu0 0.0
    %v5050 = vand.u32 %v3336, 4294901760
    %5051 = vmatpush1.msra.mxu0 %v5050
    %5052 = vmatprep.subr.mxu0 0.0
    %v5053 = vand.u32 %v3337, 4294901760
    %5054 = vmatpush1.msra.mxu0 %v5053
    %5055 = vmatprep.subr.mxu0 0.0
    %v5056 = vand.u32 %v3338, 4294901760
    %5057 = vmatpush1.msra.mxu0 %v5056
    %5058 = vmatprep.subr.mxu0 0.0
    %v5059 = vand.u32 %v3339, 4294901760
    %5060 = vmatpush1.msra.mxu0 %v5059
    %5061 = vmatprep.subr.mxu0 0.0
    %v5062 = vand.u32 %v3340, 4294901760
    %5063 = vmatpush1.msra.mxu0 %v5062
    %5064 = vmatprep.subr.mxu0 0.0
    %v5065 = vand.u32 %v3341, 4294901760
    %5066 = vmatpush1.msra.mxu0 %v5065
    %5067 = vmatprep.subr.mxu0 0.0
    %v5068 = vand.u32 %v3342, 4294901760
    %5069 = vmatpush1.msra.mxu0 %v5068
    %5070 = vmatprep.subr.mxu0 0.0
    %v5071 = vand.u32 %v3343, 4294901760
    %5072 = vmatpush1.msra.mxu0 %v5071
    %5073 = vmatprep.subr.mxu0 0.0
    %v5074 = vand.u32 %v3344, 4294901760
    %5075 = vmatpush1.msra.mxu0 %v5074
    %5076 = vmatprep.subr.mxu0 0.0
    %v5077 = vand.u32 %v3345, 4294901760
    %5078 = vmatpush1.msra.mxu0 %v5077
    %5079 = vmatprep.subr.mxu0 0.0
    %v5080 = vand.u32 %v3346, 4294901760
    %5081 = vmatpush1.msra.mxu0 %v5080
    %5082 = vmatprep.subr.mxu0 0.0
    %v5083 = vand.u32 %v3347, 4294901760
    %5084 = vmatpush1.msra.mxu0 %v5083
    %5085 = vmatprep.subr.mxu0 0.0
    %v5086 = vand.u32 %v3348, 4294901760
    %5087 = vmatpush1.msra.mxu0 %v5086
    %5088 = vmatprep.subr.mxu0 0.0
    %v5089 = vand.u32 %v3349, 4294901760
    %5090 = vmatpush1.msra.mxu0 %v5089
    %5091 = vmatprep.subr.mxu0 0.0
    %v5092 = vand.u32 %v3350, 4294901760
    %5093 = vmatpush1.msra.mxu0 %v5092
    %5094 = vmatprep.subr.mxu0 0.0
    %v5095 = vand.u32 %v3351, 4294901760
    %5096 = vmatpush1.msra.mxu0 %v5095
    %5097 = vmatprep.subr.mxu0 0.0
    %5098 = vmatpush1.msra.mxu0 0.0
    %5099 = vmatprep.subr.mxu0 0.0
    %5100 = vmatpush1.msra.mxu0 0.0
    %5101 = vmatprep.subr.mxu0 0.0
    %5102 = vmatpush1.msra.mxu0 0.0
    %5103 = vmatprep.subr.mxu0 0.0
    %5104 = vmatpush1.msra.mxu0 0.0
    %5105 = vmatprep.subr.mxu0 0.0
    %5106 = vmatpush1.msra.mxu0 0.0
    %5107 = vmatprep.subr.mxu0 0.0
    %5108 = vmatpush1.msra.mxu0 0.0
    %5109 = vmatprep.subr.mxu0 0.0
    %5110 = vmatpush1.msra.mxu0 0.0
    %5111 = vmatprep.subr.mxu0 0.0
    %5112 = vmatpush1.msra.mxu0 0.0
    %5113 = vmatprep.subr.mxu0 0.0
    %5114 = vmatpush1.msra.mxu0 0.0
    %5115 = vmatprep.subr.mxu0 0.0
    %5116 = vmatpush1.msra.mxu0 0.0
    %5117 = vmatprep.subr.mxu0 0.0
    %5118 = vmatpush1.msra.mxu0 0.0
    %5119 = vmatprep.subr.mxu0 0.0
    %5120 = vmatpush1.msra.mxu0 0.0
    %5121 = vmatprep.subr.mxu0 0.0
    %5122 = vmatpush1.msra.mxu0 0.0
    %5123 = vmatprep.subr.mxu0 0.0
    %5124 = vmatpush1.msra.mxu0 0.0
    %v5125 = vand.u32 %v4637, 4294901760
    %v5126 = vsub.f32 %v4637, %v5125
    %v5127 = vand.u32 %v5126, 4294901760
    %5128 = vmatprep.mubr.f32.mxu0 %v5127
    %v5129 = vand.u32 %v4632, 4294901760
    %v5130 = vsub.f32 %v4632, %v5129
    %v5131 = vand.u32 %v5130, 4294901760
    %5132 = vmatmul.mubr.f32.gmra.mrb[0].mxu0 %v5131
    %v5133 = vpop.f32.mrb[0].mxu0
    %v5134 = vadd.f32 %v5031, %v5133
    %v5135 = vpop.f32.mrb[0].mxu0
    %v5136 = vand.u32 %v4640, 4294901760
    %v5137 = vsub.f32 %v4640, %v5136
    %v5138 = vand.u32 %v5137, 4294901760
    %5139 = vmatprep.mubr.f32.mxu0 %v5138
    %v5140 = vand.u32 %v4634, 4294901760
    %v5141 = vsub.f32 %v4634, %v5140
    %v5142 = vand.u32 %v5141, 4294901760
    %5143 = vmatmul.mubr.f32.gmra.mrb[0].mxu0 %v5142
    %v5144 = vpop.f32.mrb[0].mxu0
    %v5145 = vadd.f32 %v5040, %v5144
    %v5146 = vpop.f32.mrb[0].mxu0
    %5147 = vdwg.mxu0
    %5148 = vmatprep.subr.mxu0 0.0
    %v5149 = vand.u32 %v3334, 4294901760
    %v5150 = vsub.f32 %v3334, %v5149
    %v5151 = vand.u32 %v5150, 4294901760
    %5152 = vmatpush1.msra.mxu0 %v5151
    %5153 = vmatprep.subr.mxu0 0.0
    %v5154 = vand.u32 %v3335, 4294901760
    %v5155 = vsub.f32 %v3335, %v5154
    %v5156 = vand.u32 %v5155, 4294901760
    %5157 = vmatpush1.msra.mxu0 %v5156
    %5158 = vmatprep.subr.mxu0 0.0
    %v5159 = vand.u32 %v3336, 4294901760
    %v5160 = vsub.f32 %v3336, %v5159
    %v5161 = vand.u32 %v5160, 4294901760
    %5162 = vmatpush1.msra.mxu0 %v5161
    %5163 = vmatprep.subr.mxu0 0.0
    %v5164 = vand.u32 %v3337, 4294901760
    %v5165 = vsub.f32 %v3337, %v5164
    %v5166 = vand.u32 %v5165, 4294901760
    %5167 = vmatpush1.msra.mxu0 %v5166
    %5168 = vmatprep.subr.mxu0 0.0
    %v5169 = vand.u32 %v3338, 4294901760
    %v5170 = vsub.f32 %v3338, %v5169
    %v5171 = vand.u32 %v5170, 4294901760
    %5172 = vmatpush1.msra.mxu0 %v5171
    %5173 = vmatprep.subr.mxu0 0.0
    %v5174 = vand.u32 %v3339, 4294901760
    %v5175 = vsub.f32 %v3339, %v5174
    %v5176 = vand.u32 %v5175, 4294901760
    %5177 = vmatpush1.msra.mxu0 %v5176
    %5178 = vmatprep.subr.mxu0 0.0
    %v5179 = vand.u32 %v3340, 4294901760
    %v5180 = vsub.f32 %v3340, %v5179
    %v5181 = vand.u32 %v5180, 4294901760
    %5182 = vmatpush1.msra.mxu0 %v5181
    %5183 = vmatprep.subr.mxu0 0.0
    %v5184 = vand.u32 %v3341, 4294901760
    %v5185 = vsub.f32 %v3341, %v5184
    %v5186 = vand.u32 %v5185, 4294901760
    %5187 = vmatpush1.msra.mxu0 %v5186
    %5188 = vmatprep.subr.mxu0 0.0
    %v5189 = vand.u32 %v3342, 4294901760
    %v5190 = vsub.f32 %v3342, %v5189
    %v5191 = vand.u32 %v5190, 4294901760
    %5192 = vmatpush1.msra.mxu0 %v5191
    %5193 = vmatprep.subr.mxu0 0.0
    %v5194 = vand.u32 %v3343, 4294901760
    %v5195 = vsub.f32 %v3343, %v5194
    %v5196 = vand.u32 %v5195, 4294901760
    %5197 = vmatpush1.msra.mxu0 %v5196
    %5198 = vmatprep.subr.mxu0 0.0
    %v5199 = vand.u32 %v3344, 4294901760
    %v5200 = vsub.f32 %v3344, %v5199
    %v5201 = vand.u32 %v5200, 4294901760
    %5202 = vmatpush1.msra.mxu0 %v5201
    %5203 = vmatprep.subr.mxu0 0.0
    %v5204 = vand.u32 %v3345, 4294901760
    %v5205 = vsub.f32 %v3345, %v5204
    %v5206 = vand.u32 %v5205, 4294901760
    %5207 = vmatpush1.msra.mxu0 %v5206
    %5208 = vmatprep.subr.mxu0 0.0
    %v5209 = vand.u32 %v3346, 4294901760
    %v5210 = vsub.f32 %v3346, %v5209
    %v5211 = vand.u32 %v5210, 4294901760
    %5212 = vmatpush1.msra.mxu0 %v5211
    %5213 = vmatprep.subr.mxu0 0.0
    %v5214 = vand.u32 %v3347, 4294901760
    %v5215 = vsub.f32 %v3347, %v5214
    %v5216 = vand.u32 %v5215, 4294901760
    %5217 = vmatpush1.msra.mxu0 %v5216
    %5218 = vmatprep.subr.mxu0 0.0
    %v5219 = vand.u32 %v3348, 4294901760
    %v5220 = vsub.f32 %v3348, %v5219
    %v5221 = vand.u32 %v5220, 4294901760
    %5222 = vmatpush1.msra.mxu0 %v5221
    %5223 = vmatprep.subr.mxu0 0.0
    %v5224 = vand.u32 %v3349, 4294901760
    %v5225 = vsub.f32 %v3349, %v5224
    %v5226 = vand.u32 %v5225, 4294901760
    %5227 = vmatpush1.msra.mxu0 %v5226
    %5228 = vmatprep.subr.mxu0 0.0
    %v5229 = vand.u32 %v3350, 4294901760
    %v5230 = vsub.f32 %v3350, %v5229
    %v5231 = vand.u32 %v5230, 4294901760
    %5232 = vmatpush1.msra.mxu0 %v5231
    %5233 = vmatprep.subr.mxu0 0.0
    %v5234 = vand.u32 %v3351, 4294901760
    %v5235 = vsub.f32 %v3351, %v5234
    %v5236 = vand.u32 %v5235, 4294901760
    %5237 = vmatpush1.msra.mxu0 %v5236
    %5238 = vmatprep.subr.mxu0 0.0
    %5239 = vmatpush1.msra.mxu0 0.0
    %5240 = vmatprep.subr.mxu0 0.0
    %5241 = vmatpush1.msra.mxu0 0.0
    %5242 = vmatprep.subr.mxu0 0.0
    %5243 = vmatpush1.msra.mxu0 0.0
    %5244 = vmatprep.subr.mxu0 0.0
    %5245 = vmatpush1.msra.mxu0 0.0
    %5246 = vmatprep.subr.mxu0 0.0
    %5247 = vmatpush1.msra.mxu0 0.0
    %5248 = vmatprep.subr.mxu0 0.0
    %5249 = vmatpush1.msra.mxu0 0.0
    %5250 = vmatprep.subr.mxu0 0.0
    %5251 = vmatpush1.msra.mxu0 0.0
    %5252 = vmatprep.subr.mxu0 0.0
    %5253 = vmatpush1.msra.mxu0 0.0
    %5254 = vmatprep.subr.mxu0 0.0
    %5255 = vmatpush1.msra.mxu0 0.0
    %5256 = vmatprep.subr.mxu0 0.0
    %5257 = vmatpush1.msra.mxu0 0.0
    %5258 = vmatprep.subr.mxu0 0.0
    %5259 = vmatpush1.msra.mxu0 0.0
    %5260 = vmatprep.subr.mxu0 0.0
    %5261 = vmatpush1.msra.mxu0 0.0
    %5262 = vmatprep.subr.mxu0 0.0
    %5263 = vmatpush1.msra.mxu0 0.0
    %5264 = vmatprep.subr.mxu0 0.0
    %5265 = vmatpush1.msra.mxu0 0.0
    %v5266 = vand.u32 %v4637, 4294901760
    %5267 = vmatprep.mubr.f32.mxu0 %v5266
    %v5268 = vand.u32 %v4632, 4294901760
    %5269 = vmatmul.mubr.f32.gmra.mrb[0].mxu0 %v5268
    %v5270 = vpop.f32.mrb[0].mxu0
    %v5271 = vadd.f32 %v5134, %v5270
    %v5272 = vpop.f32.mrb[0].mxu0
    %v5273 = vand.u32 %v4640, 4294901760
    %5274 = vmatprep.mubr.f32.mxu0 %v5273
    %v5275 = vand.u32 %v4634, 4294901760
    %5276 = vmatmul.mubr.f32.gmra.mrb[0].mxu0 %v5275
    %v5277 = vpop.f32.mrb[0].mxu0
    %v5278 = vadd.f32 %v5145, %v5277
    %v5279 = vpop.f32.mrb[0].mxu0
    %5280 = vdwg.mxu0
    %5281 = vmatprep.subr.mxu0 0.0
    %v5282 = vand.u32 %v3334, 4294901760
    %5283 = vmatpush1.msra.mxu0 %v5282
    %5284 = vmatprep.subr.mxu0 0.0
    %v5285 = vand.u32 %v3335, 4294901760
    %5286 = vmatpush1.msra.mxu0 %v5285
    %5287 = vmatprep.subr.mxu0 0.0
    %v5288 = vand.u32 %v3336, 4294901760
    %5289 = vmatpush1.msra.mxu0 %v5288
    %5290 = vmatprep.subr.mxu0 0.0
    %v5291 = vand.u32 %v3337, 4294901760
    %5292 = vmatpush1.msra.mxu0 %v5291
    %5293 = vmatprep.subr.mxu0 0.0
    %v5294 = vand.u32 %v3338, 4294901760
    %5295 = vmatpush1.msra.mxu0 %v5294
    %5296 = vmatprep.subr.mxu0 0.0
    %v5297 = vand.u32 %v3339, 4294901760
    %5298 = vmatpush1.msra.mxu0 %v5297
    %5299 = vmatprep.subr.mxu0 0.0
    %v5300 = vand.u32 %v3340, 4294901760
    %5301 = vmatpush1.msra.mxu0 %v5300
    %5302 = vmatprep.subr.mxu0 0.0
    %v5303 = vand.u32 %v3341, 4294901760
    %5304 = vmatpush1.msra.mxu0 %v5303
    %5305 = vmatprep.subr.mxu0 0.0
    %v5306 = vand.u32 %v3342, 4294901760
    %5307 = vmatpush1.msra.mxu0 %v5306
    %5308 = vmatprep.subr.mxu0 0.0
    %v5309 = vand.u32 %v3343, 4294901760
    %5310 = vmatpush1.msra.mxu0 %v5309
    %5311 = vmatprep.subr.mxu0 0.0
    %v5312 = vand.u32 %v3344, 4294901760
    %5313 = vmatpush1.msra.mxu0 %v5312
    %5314 = vmatprep.subr.mxu0 0.0
    %v5315 = vand.u32 %v3345, 4294901760
    %5316 = vmatpush1.msra.mxu0 %v5315
    %5317 = vmatprep.subr.mxu0 0.0
    %v5318 = vand.u32 %v3346, 4294901760
    %5319 = vmatpush1.msra.mxu0 %v5318
    %5320 = vmatprep.subr.mxu0 0.0
    %v5321 = vand.u32 %v3347, 4294901760
    %5322 = vmatpush1.msra.mxu0 %v5321
    %5323 = vmatprep.subr.mxu0 0.0
    %v5324 = vand.u32 %v3348, 4294901760
    %5325 = vmatpush1.msra.mxu0 %v5324
    %5326 = vmatprep.subr.mxu0 0.0
    %v5327 = vand.u32 %v3349, 4294901760
    %5328 = vmatpush1.msra.mxu0 %v5327
    %5329 = vmatprep.subr.mxu0 0.0
    %v5330 = vand.u32 %v3350, 4294901760
    %5331 = vmatpush1.msra.mxu0 %v5330
    %5332 = vmatprep.subr.mxu0 0.0
    %v5333 = vand.u32 %v3351, 4294901760
    %5334 = vmatpush1.msra.mxu0 %v5333
    %5335 = vmatprep.subr.mxu0 0.0
    %5336 = vmatpush1.msra.mxu0 0.0
    %5337 = vmatprep.subr.mxu0 0.0
    %5338 = vmatpush1.msra.mxu0 0.0
    %5339 = vmatprep.subr.mxu0 0.0
    %5340 = vmatpush1.msra.mxu0 0.0
    %5341 = vmatprep.subr.mxu0 0.0
    %5342 = vmatpush1.msra.mxu0 0.0
    %5343 = vmatprep.subr.mxu0 0.0
    %5344 = vmatpush1.msra.mxu0 0.0
    %5345 = vmatprep.subr.mxu0 0.0
    %5346 = vmatpush1.msra.mxu0 0.0
    %5347 = vmatprep.subr.mxu0 0.0
    %5348 = vmatpush1.msra.mxu0 0.0
    %5349 = vmatprep.subr.mxu0 0.0
    %5350 = vmatpush1.msra.mxu0 0.0
    %5351 = vmatprep.subr.mxu0 0.0
    %5352 = vmatpush1.msra.mxu0 0.0
    %5353 = vmatprep.subr.mxu0 0.0
    %5354 = vmatpush1.msra.mxu0 0.0
    %5355 = vmatprep.subr.mxu0 0.0
    %5356 = vmatpush1.msra.mxu0 0.0
    %5357 = vmatprep.subr.mxu0 0.0
    %5358 = vmatpush1.msra.mxu0 0.0
    %5359 = vmatprep.subr.mxu0 0.0
    %5360 = vmatpush1.msra.mxu0 0.0
    %5361 = vmatprep.subr.mxu0 0.0
    %5362 = vmatpush1.msra.mxu0 0.0
    %v5363 = vand.u32 %v4637, 4294901760
    %5364 = vmatprep.mubr.f32.mxu0 %v5363
    %v5365 = vand.u32 %v4632, 4294901760
    %5366 = vmatmul.mubr.f32.gmra.mrb[0].mxu0 %v5365
    %v5367 = vpop.f32.mrb[0].mxu0
    %v5368 = vadd.f32 %v5271, %v5367
    %v5369 = vpop.f32.mrb[0].mxu0
    %v5370 = vand.u32 %v4640, 4294901760
    %5371 = vmatprep.mubr.f32.mxu0 %v5370
    %v5372 = vand.u32 %v4634, 4294901760
    %5373 = vmatmul.mubr.f32.gmra.mrb[0].mxu0 %v5372
    %v5374 = vpop.f32.mrb[0].mxu0
    %v5375 = vadd.f32 %v5278, %v5374
    %v5376 = vpop.f32.mrb[0].mxu0
    %5377 = vdwg.mxu0
    %v5378 = vsel %vm4101, %v5368, -inf
    %5379 = vmax.xlane.f32.xlu0 %v5378
    %v5380 = vpop.xlane.xlu0 %5379
    %v5381 = vsel %vm4101, %v5375, -inf
    %5382 = vmax.xlane.f32.xlu0 %v5381
    %v5383 = vpop.xlane.xlu0 %5382
    %v5384 = vsub.f32 %v5368, %v5380
    %v5385 = vsub.f32 %v5375, %v5383
    %v5386 = vmul.f32 %v5384, 1.442695
    %v5387 = vpow.pop %v5386
    %v5388 = vmul.f32 %v5385, 1.442695
    %v5389 = vpow.pop %v5388
    %v5391 = vsel %vm4101, %v5387, 0
    %v5394 = vsel %vm4101, %v5389, 0
    %5396 = vmatprep.subr.mxu0 0.0
    %v5397 = vand.u32 %v3352, 4294901760
    %5398 = vmatpush1.msra.mxu0 %v5397
    %5399 = vmatprep.subr.mxu0 0.0
    %v5400 = vand.u32 %v4122, 4294901760
    %5401 = vmatpush1.msra.mxu0 %v5400
    %5402 = vmatprep.subr.mxu0 0.0
    %5403 = vmatpush1.msra.mxu0 0.0
    %5404 = vmatprep.subr.mxu0 0.0
    %5405 = vmatpush1.msra.mxu0 0.0
    %5406 = vmatprep.subr.mxu0 0.0
    %5407 = vmatpush1.msra.mxu0 0.0
    %5408 = vmatprep.subr.mxu0 0.0
    %5409 = vmatpush1.msra.mxu0 0.0
    %5410 = vmatprep.subr.mxu0 0.0
    %5411 = vmatpush1.msra.mxu0 0.0
    %5412 = vmatprep.subr.mxu0 0.0
    %5413 = vmatpush1.msra.mxu0 0.0
    %5414 = vmatprep.subr.mxu0 0.0
    %5415 = vmatpush1.msra.mxu0 0.0
    %5416 = vmatprep.subr.mxu0 0.0
    %5417 = vmatpush1.msra.mxu0 0.0
    %5418 = vmatprep.subr.mxu0 0.0
    %5419 = vmatpush1.msra.mxu0 0.0
    %5420 = vmatprep.subr.mxu0 0.0
    %5421 = vmatpush1.msra.mxu0 0.0
    %5422 = vmatprep.subr.mxu0 0.0
    %5423 = vmatpush1.msra.mxu0 0.0
    %5424 = vmatprep.subr.mxu0 0.0
    %5425 = vmatpush1.msra.mxu0 0.0
    %5426 = vmatprep.subr.mxu0 0.0
    %5427 = vmatpush1.msra.mxu0 0.0
    %5428 = vmatprep.subr.mxu0 0.0
    %5429 = vmatpush1.msra.mxu0 0.0
    %5430 = vmatprep.subr.mxu0 0.0
    %5431 = vmatpush1.msra.mxu0 0.0
    %5432 = vmatprep.subr.mxu0 0.0
    %5433 = vmatpush1.msra.mxu0 0.0
    %5434 = vmatprep.subr.mxu0 0.0
    %5435 = vmatpush1.msra.mxu0 0.0
    %5436 = vmatprep.subr.mxu0 0.0
    %5437 = vmatpush1.msra.mxu0 0.0
    %5438 = vmatprep.subr.mxu0 0.0
    %5439 = vmatpush1.msra.mxu0 0.0
    %5440 = vmatprep.subr.mxu0 0.0
    %5441 = vmatpush1.msra.mxu0 0.0
    %5442 = vmatprep.subr.mxu0 0.0
    %5443 = vmatpush1.msra.mxu0 0.0
    %5444 = vmatprep.subr.mxu0 0.0
    %5445 = vmatpush1.msra.mxu0 0.0
    %5446 = vmatprep.subr.mxu0 0.0
    %5447 = vmatpush1.msra.mxu0 0.0
    %5448 = vmatprep.subr.mxu0 0.0
    %5449 = vmatpush1.msra.mxu0 0.0
    %5450 = vmatprep.subr.mxu0 0.0
    %5451 = vmatpush1.msra.mxu0 0.0
    %5452 = vmatprep.subr.mxu0 0.0
    %5453 = vmatpush1.msra.mxu0 0.0
    %5454 = vmatprep.subr.mxu0 0.0
    %5455 = vmatpush1.msra.mxu0 0.0
    %5456 = vmatprep.subr.mxu0 0.0
    %5457 = vmatpush1.msra.mxu0 0.0
    %5458 = vmatprep.subr.mxu0 0.0
    %5459 = vmatpush1.msra.mxu0 0.0
    %5460 = vmatprep.subr.mxu0 0.0
    %5461 = vmatpush1.msra.mxu0 0.0
    %5462 = vmatprep.mubr.f32.mxu0 0.0
    %v5463 = vand.u32 %v5391, 4294901760
    %v5464 = vsub.f32 %v5391, %v5463
    %v5465 = vand.u32 %v5464, 4294901760
    %v5466 = vsub.f32 %v5464, %v5465
    %v5467 = vand.u32 %v5466, 4294901760
    %5468 = vmatmul.mubr.f32.gmra.mrb[0].mxu0 %v5467
    %v5469 = vpop.f32.mrb[0].mxu0
    %v5470 = vadd.f32 0.0, %v5469
    %v5471 = vpop.f32.mrb[0].mxu0
    %5472 = vmatprep.mubr.f32.mxu0 0.0
    %v5473 = vand.u32 %v5394, 4294901760
    %v5474 = vsub.f32 %v5394, %v5473
    %v5475 = vand.u32 %v5474, 4294901760
    %v5476 = vsub.f32 %v5474, %v5475
    %v5477 = vand.u32 %v5476, 4294901760
    %5478 = vmatmul.mubr.f32.gmra.mrb[0].mxu0 %v5477
    %v5479 = vpop.f32.mrb[0].mxu0
    %v5480 = vadd.f32 0.0, %v5479
    %v5481 = vpop.f32.mrb[0].mxu0
    %5482 = vdwg.mxu0
    %5483 = vmatprep.subr.mxu0 0.0
    %v5484 = vand.u32 %v3352, 4294901760
    %v5485 = vsub.f32 %v3352, %v5484
    %v5486 = vand.u32 %v5485, 4294901760
    %v5487 = vsub.f32 %v5485, %v5486
    %v5488 = vand.u32 %v5487, 4294901760
    %5489 = vmatpush1.msra.mxu0 %v5488
    %5490 = vmatprep.subr.mxu0 0.0
    %v5491 = vand.u32 %v4122, 4294901760
    %v5492 = vsub.f32 %v4122, %v5491
    %v5493 = vand.u32 %v5492, 4294901760
    %v5494 = vsub.f32 %v5492, %v5493
    %v5495 = vand.u32 %v5494, 4294901760
    %5496 = vmatpush1.msra.mxu0 %v5495
    %5497 = vmatprep.subr.mxu0 0.0
    %5498 = vmatpush1.msra.mxu0 0.0
    %5499 = vmatprep.subr.mxu0 0.0
    %5500 = vmatpush1.msra.mxu0 0.0
    %5501 = vmatprep.subr.mxu0 0.0
    %5502 = vmatpush1.msra.mxu0 0.0
    %5503 = vmatprep.subr.mxu0 0.0
    %5504 = vmatpush1.msra.mxu0 0.0
    %5505 = vmatprep.subr.mxu0 0.0
    %5506 = vmatpush1.msra.mxu0 0.0
    %5507 = vmatprep.subr.mxu0 0.0
    %5508 = vmatpush1.msra.mxu0 0.0
    %5509 = vmatprep.subr.mxu0 0.0
    %5510 = vmatpush1.msra.mxu0 0.0
    %5511 = vmatprep.subr.mxu0 0.0
    %5512 = vmatpush1.msra.mxu0 0.0
    %5513 = vmatprep.subr.mxu0 0.0
    %5514 = vmatpush1.msra.mxu0 0.0
    %5515 = vmatprep.subr.mxu0 0.0
    %5516 = vmatpush1.msra.mxu0 0.0
    %5517 = vmatprep.subr.mxu0 0.0
    %5518 = vmatpush1.msra.mxu0 0.0
    %5519 = vmatprep.subr.mxu0 0.0
    %5520 = vmatpush1.msra.mxu0 0.0
    %5521 = vmatprep.subr.mxu0 0.0
    %5522 = vmatpush1.msra.mxu0 0.0
    %5523 = vmatprep.subr.mxu0 0.0
    %5524 = vmatpush1.msra.mxu0 0.0
    %5525 = vmatprep.subr.mxu0 0.0
    %5526 = vmatpush1.msra.mxu0 0.0
    %5527 = vmatprep.subr.mxu0 0.0
    %5528 = vmatpush1.msra.mxu0 0.0
    %5529 = vmatprep.subr.mxu0 0.0
    %5530 = vmatpush1.msra.mxu0 0.0
    %5531 = vmatprep.subr.mxu0 0.0
    %5532 = vmatpush1.msra.mxu0 0.0
    %5533 = vmatprep.subr.mxu0 0.0
    %5534 = vmatpush1.msra.mxu0 0.0
    %5535 = vmatprep.subr.mxu0 0.0
    %5536 = vmatpush1.msra.mxu0 0.0
    %5537 = vmatprep.subr.mxu0 0.0
    %5538 = vmatpush1.msra.mxu0 0.0
    %5539 = vmatprep.subr.mxu0 0.0
    %5540 = vmatpush1.msra.mxu0 0.0
    %5541 = vmatprep.subr.mxu0 0.0
    %5542 = vmatpush1.msra.mxu0 0.0
    %5543 = vmatprep.subr.mxu0 0.0
    %5544 = vmatpush1.msra.mxu0 0.0
    %5545 = vmatprep.subr.mxu0 0.0
    %5546 = vmatpush1.msra.mxu0 0.0
    %5547 = vmatprep.subr.mxu0 0.0
    %5548 = vmatpush1.msra.mxu0 0.0
    %5549 = vmatprep.subr.mxu0 0.0
    %5550 = vmatpush1.msra.mxu0 0.0
    %5551 = vmatprep.subr.mxu0 0.0
    %5552 = vmatpush1.msra.mxu0 0.0
    %5553 = vmatprep.subr.mxu0 0.0
    %5554 = vmatpush1.msra.mxu0 0.0
    %5555 = vmatprep.subr.mxu0 0.0
    %5556 = vmatpush1.msra.mxu0 0.0
    %5557 = vmatprep.mubr.f32.mxu0 0.0
    %v5558 = vand.u32 %v5391, 4294901760
    %5559 = vmatmul.mubr.f32.gmra.mrb[0].mxu0 %v5558
    %v5560 = vpop.f32.mrb[0].mxu0
    %v5561 = vadd.f32 %v5470, %v5560
    %v5562 = vpop.f32.mrb[0].mxu0
    %5563 = vmatprep.mubr.f32.mxu0 0.0
    %v5564 = vand.u32 %v5394, 4294901760
    %5565 = vmatmul.mubr.f32.gmra.mrb[0].mxu0 %v5564
    %v5566 = vpop.f32.mrb[0].mxu0
    %v5567 = vadd.f32 %v5480, %v5566
    %v5568 = vpop.f32.mrb[0].mxu0
    %5569 = vdwg.mxu0
    %5570 = vmatprep.subr.mxu0 0.0
    %v5571 = vand.u32 %v3352, 4294901760
    %v5572 = vsub.f32 %v3352, %v5571
    %5573 = vmatpush1.msra.mxu0 %v5572
    %5574 = vmatprep.subr.mxu0 0.0
    %v5575 = vand.u32 %v4122, 4294901760
    %v5576 = vsub.f32 %v4122, %v5575
    %5577 = vmatpush1.msra.mxu0 %v5576
    %5578 = vmatprep.subr.mxu0 0.0
    %5579 = vmatpush1.msra.mxu0 0.0
    %5580 = vmatprep.subr.mxu0 0.0
    %5581 = vmatpush1.msra.mxu0 0.0
    %5582 = vmatprep.subr.mxu0 0.0
    %5583 = vmatpush1.msra.mxu0 0.0
    %5584 = vmatprep.subr.mxu0 0.0
    %5585 = vmatpush1.msra.mxu0 0.0
    %5586 = vmatprep.subr.mxu0 0.0
    %5587 = vmatpush1.msra.mxu0 0.0
    %5588 = vmatprep.subr.mxu0 0.0
    %5589 = vmatpush1.msra.mxu0 0.0
    %5590 = vmatprep.subr.mxu0 0.0
    %5591 = vmatpush1.msra.mxu0 0.0
    %5592 = vmatprep.subr.mxu0 0.0
    %5593 = vmatpush1.msra.mxu0 0.0
    %5594 = vmatprep.subr.mxu0 0.0
    %5595 = vmatpush1.msra.mxu0 0.0
    %5596 = vmatprep.subr.mxu0 0.0
    %5597 = vmatpush1.msra.mxu0 0.0
    %5598 = vmatprep.subr.mxu0 0.0
    %5599 = vmatpush1.msra.mxu0 0.0
    %5600 = vmatprep.subr.mxu0 0.0
    %5601 = vmatpush1.msra.mxu0 0.0
    %5602 = vmatprep.subr.mxu0 0.0
    %5603 = vmatpush1.msra.mxu0 0.0
    %5604 = vmatprep.subr.mxu0 0.0
    %5605 = vmatpush1.msra.mxu0 0.0
    %5606 = vmatprep.subr.mxu0 0.0
    %5607 = vmatpush1.msra.mxu0 0.0
    %5608 = vmatprep.subr.mxu0 0.0
    %5609 = vmatpush1.msra.mxu0 0.0
    %5610 = vmatprep.subr.mxu0 0.0
    %5611 = vmatpush1.msra.mxu0 0.0
    %5612 = vmatprep.subr.mxu0 0.0
    %5613 = vmatpush1.msra.mxu0 0.0
    %5614 = vmatprep.subr.mxu0 0.0
    %5615 = vmatpush1.msra.mxu0 0.0
    %5616 = vmatprep.subr.mxu0 0.0
    %5617 = vmatpush1.msra.mxu0 0.0
    %5618 = vmatprep.subr.mxu0 0.0
    %5619 = vmatpush1.msra.mxu0 0.0
    %5620 = vmatprep.subr.mxu0 0.0
    %5621 = vmatpush1.msra.mxu0 0.0
    %5622 = vmatprep.subr.mxu0 0.0
    %5623 = vmatpush1.msra.mxu0 0.0
    %5624 = vmatprep.subr.mxu0 0.0
    %5625 = vmatpush1.msra.mxu0 0.0
    %5626 = vmatprep.subr.mxu0 0.0
    %5627 = vmatpush1.msra.mxu0 0.0
    %5628 = vmatprep.subr.mxu0 0.0
    %5629 = vmatpush1.msra.mxu0 0.0
    %5630 = vmatprep.subr.mxu0 0.0
    %5631 = vmatpush1.msra.mxu0 0.0
    %5632 = vmatprep.subr.mxu0 0.0
    %5633 = vmatpush1.msra.mxu0 0.0
    %5634 = vmatprep.subr.mxu0 0.0
    %5635 = vmatpush1.msra.mxu0 0.0
    %5636 = vmatprep.subr.mxu0 0.0
    %5637 = vmatpush1.msra.mxu0 0.0
    %5638 = vmatprep.mubr.f32.mxu0 0.0
    %v5639 = vand.u32 %v5391, 4294901760
    %v5640 = vsub.f32 %v5391, %v5639
    %5641 = vmatmul.mubr.f32.gmra.mrb[0].mxu0 %v5640
    %v5642 = vpop.f32.mrb[0].mxu0
    %v5643 = vadd.f32 %v5561, %v5642
    %v5644 = vpop.f32.mrb[0].mxu0
    %5645 = vmatprep.mubr.f32.mxu0 0.0
    %v5646 = vand.u32 %v5394, 4294901760
    %v5647 = vsub.f32 %v5394, %v5646
    %5648 = vmatmul.mubr.f32.gmra.mrb[0].mxu0 %v5647
    %v5649 = vpop.f32.mrb[0].mxu0
    %v5650 = vadd.f32 %v5567, %v5649
    %v5651 = vpop.f32.mrb[0].mxu0
    %5652 = vdwg.mxu0
    %5653 = vmatprep.subr.mxu0 0.0
    %v5654 = vand.u32 %v3352, 4294901760
    %5655 = vmatpush1.msra.mxu0 %v5654
    %5656 = vmatprep.subr.mxu0 0.0
    %v5657 = vand.u32 %v4122, 4294901760
    %5658 = vmatpush1.msra.mxu0 %v5657
    %5659 = vmatprep.subr.mxu0 0.0
    %5660 = vmatpush1.msra.mxu0 0.0
    %5661 = vmatprep.subr.mxu0 0.0
    %5662 = vmatpush1.msra.mxu0 0.0
    %5663 = vmatprep.subr.mxu0 0.0
    %5664 = vmatpush1.msra.mxu0 0.0
    %5665 = vmatprep.subr.mxu0 0.0
    %5666 = vmatpush1.msra.mxu0 0.0
    %5667 = vmatprep.subr.mxu0 0.0
    %5668 = vmatpush1.msra.mxu0 0.0
    %5669 = vmatprep.subr.mxu0 0.0
    %5670 = vmatpush1.msra.mxu0 0.0
    %5671 = vmatprep.subr.mxu0 0.0
    %5672 = vmatpush1.msra.mxu0 0.0
    %5673 = vmatprep.subr.mxu0 0.0
    %5674 = vmatpush1.msra.mxu0 0.0
    %5675 = vmatprep.subr.mxu0 0.0
    %5676 = vmatpush1.msra.mxu0 0.0
    %5677 = vmatprep.subr.mxu0 0.0
    %5678 = vmatpush1.msra.mxu0 0.0
    %5679 = vmatprep.subr.mxu0 0.0
    %5680 = vmatpush1.msra.mxu0 0.0
    %5681 = vmatprep.subr.mxu0 0.0
    %5682 = vmatpush1.msra.mxu0 0.0
    %5683 = vmatprep.subr.mxu0 0.0
    %5684 = vmatpush1.msra.mxu0 0.0
    %5685 = vmatprep.subr.mxu0 0.0
    %5686 = vmatpush1.msra.mxu0 0.0
    %5687 = vmatprep.subr.mxu0 0.0
    %5688 = vmatpush1.msra.mxu0 0.0
    %5689 = vmatprep.subr.mxu0 0.0
    %5690 = vmatpush1.msra.mxu0 0.0
    %5691 = vmatprep.subr.mxu0 0.0
    %5692 = vmatpush1.msra.mxu0 0.0
    %5693 = vmatprep.subr.mxu0 0.0
    %5694 = vmatpush1.msra.mxu0 0.0
    %5695 = vmatprep.subr.mxu0 0.0
    %5696 = vmatpush1.msra.mxu0 0.0
    %5697 = vmatprep.subr.mxu0 0.0
    %5698 = vmatpush1.msra.mxu0 0.0
    %5699 = vmatprep.subr.mxu0 0.0
    %5700 = vmatpush1.msra.mxu0 0.0
    %5701 = vmatprep.subr.mxu0 0.0
    %5702 = vmatpush1.msra.mxu0 0.0
    %5703 = vmatprep.subr.mxu0 0.0
    %5704 = vmatpush1.msra.mxu0 0.0
    %5705 = vmatprep.subr.mxu0 0.0
    %5706 = vmatpush1.msra.mxu0 0.0
    %5707 = vmatprep.subr.mxu0 0.0
    %5708 = vmatpush1.msra.mxu0 0.0
    %5709 = vmatprep.subr.mxu0 0.0
    %5710 = vmatpush1.msra.mxu0 0.0
    %5711 = vmatprep.subr.mxu0 0.0
    %5712 = vmatpush1.msra.mxu0 0.0
    %5713 = vmatprep.subr.mxu0 0.0
    %5714 = vmatpush1.msra.mxu0 0.0
    %5715 = vmatprep.subr.mxu0 0.0
    %5716 = vmatpush1.msra.mxu0 0.0
    %5717 = vmatprep.subr.mxu0 0.0
    %5718 = vmatpush1.msra.mxu0 0.0
    %5719 = vmatprep.mubr.f32.mxu0 0.0
    %v5720 = vand.u32 %v5391, 4294901760
    %v5721 = vsub.f32 %v5391, %v5720
    %v5722 = vand.u32 %v5721, 4294901760
    %5723 = vmatmul.mubr.f32.gmra.mrb[0].mxu0 %v5722
    %v5724 = vpop.f32.mrb[0].mxu0
    %v5725 = vadd.f32 %v5643, %v5724
    %v5726 = vpop.f32.mrb[0].mxu0
    %5727 = vmatprep.mubr.f32.mxu0 0.0
    %v5728 = vand.u32 %v5394, 4294901760
    %v5729 = vsub.f32 %v5394, %v5728
    %v5730 = vand.u32 %v5729, 4294901760
    %5731 = vmatmul.mubr.f32.gmra.mrb[0].mxu0 %v5730
    %v5732 = vpop.f32.mrb[0].mxu0
    %v5733 = vadd.f32 %v5650, %v5732
    %v5734 = vpop.f32.mrb[0].mxu0
    %5735 = vdwg.mxu0
    %5736 = vmatprep.subr.mxu0 0.0
    %v5737 = vand.u32 %v3352, 4294901760
    %v5738 = vsub.f32 %v3352, %v5737
    %v5739 = vand.u32 %v5738, 4294901760
    %5740 = vmatpush1.msra.mxu0 %v5739
    %5741 = vmatprep.subr.mxu0 0.0
    %v5742 = vand.u32 %v4122, 4294901760
    %v5743 = vsub.f32 %v4122, %v5742
    %v5744 = vand.u32 %v5743, 4294901760
    %5745 = vmatpush1.msra.mxu0 %v5744
    %5746 = vmatprep.subr.mxu0 0.0
    %5747 = vmatpush1.msra.mxu0 0.0
    %5748 = vmatprep.subr.mxu0 0.0
    %5749 = vmatpush1.msra.mxu0 0.0
    %5750 = vmatprep.subr.mxu0 0.0
    %5751 = vmatpush1.msra.mxu0 0.0
    %5752 = vmatprep.subr.mxu0 0.0
    %5753 = vmatpush1.msra.mxu0 0.0
    %5754 = vmatprep.subr.mxu0 0.0
    %5755 = vmatpush1.msra.mxu0 0.0
    %5756 = vmatprep.subr.mxu0 0.0
    %5757 = vmatpush1.msra.mxu0 0.0
    %5758 = vmatprep.subr.mxu0 0.0
    %5759 = vmatpush1.msra.mxu0 0.0
    %5760 = vmatprep.subr.mxu0 0.0
    %5761 = vmatpush1.msra.mxu0 0.0
    %5762 = vmatprep.subr.mxu0 0.0
    %5763 = vmatpush1.msra.mxu0 0.0
    %5764 = vmatprep.subr.mxu0 0.0
    %5765 = vmatpush1.msra.mxu0 0.0
    %5766 = vmatprep.subr.mxu0 0.0
    %5767 = vmatpush1.msra.mxu0 0.0
    %5768 = vmatprep.subr.mxu0 0.0
    %5769 = vmatpush1.msra.mxu0 0.0
    %5770 = vmatprep.subr.mxu0 0.0
    %5771 = vmatpush1.msra.mxu0 0.0
    %5772 = vmatprep.subr.mxu0 0.0
    %5773 = vmatpush1.msra.mxu0 0.0
    %5774 = vmatprep.subr.mxu0 0.0
    %5775 = vmatpush1.msra.mxu0 0.0
    %5776 = vmatprep.subr.mxu0 0.0
    %5777 = vmatpush1.msra.mxu0 0.0
    %5778 = vmatprep.subr.mxu0 0.0
    %5779 = vmatpush1.msra.mxu0 0.0
    %5780 = vmatprep.subr.mxu0 0.0
    %5781 = vmatpush1.msra.mxu0 0.0
    %5782 = vmatprep.subr.mxu0 0.0
    %5783 = vmatpush1.msra.mxu0 0.0
    %5784 = vmatprep.subr.mxu0 0.0
    %5785 = vmatpush1.msra.mxu0 0.0
    %5786 = vmatprep.subr.mxu0 0.0
    %5787 = vmatpush1.msra.mxu0 0.0
    %5788 = vmatprep.subr.mxu0 0.0
    %5789 = vmatpush1.msra.mxu0 0.0
    %5790 = vmatprep.subr.mxu0 0.0
    %5791 = vmatpush1.msra.mxu0 0.0
    %5792 = vmatprep.subr.mxu0 0.0
    %5793 = vmatpush1.msra.mxu0 0.0
    %5794 = vmatprep.subr.mxu0 0.0
    %5795 = vmatpush1.msra.mxu0 0.0
    %5796 = vmatprep.subr.mxu0 0.0
    %5797 = vmatpush1.msra.mxu0 0.0
    %5798 = vmatprep.subr.mxu0 0.0
    %5799 = vmatpush1.msra.mxu0 0.0
    %5800 = vmatprep.subr.mxu0 0.0
    %5801 = vmatpush1.msra.mxu0 0.0
    %5802 = vmatprep.subr.mxu0 0.0
    %5803 = vmatpush1.msra.mxu0 0.0
    %5804 = vmatprep.subr.mxu0 0.0
    %5805 = vmatpush1.msra.mxu0 0.0
    %5806 = vmatprep.mubr.f32.mxu0 0.0
    %v5807 = vand.u32 %v5391, 4294901760
    %5808 = vmatmul.mubr.f32.gmra.mrb[0].mxu0 %v5807
    %v5809 = vpop.f32.mrb[0].mxu0
    %v5810 = vadd.f32 %v5725, %v5809
    %v5811 = vpop.f32.mrb[0].mxu0
    %5812 = vmatprep.mubr.f32.mxu0 0.0
    %v5813 = vand.u32 %v5394, 4294901760
    %5814 = vmatmul.mubr.f32.gmra.mrb[0].mxu0 %v5813
    %v5815 = vpop.f32.mrb[0].mxu0
    %v5816 = vadd.f32 %v5733, %v5815
    %v5817 = vpop.f32.mrb[0].mxu0
    %5818 = vdwg.mxu0
    %5819 = vmatprep.subr.mxu0 0.0
    %v5820 = vand.u32 %v3352, 4294901760
    %5821 = vmatpush1.msra.mxu0 %v5820
    %5822 = vmatprep.subr.mxu0 0.0
    %v5823 = vand.u32 %v4122, 4294901760
    %5824 = vmatpush1.msra.mxu0 %v5823
    %5825 = vmatprep.subr.mxu0 0.0
    %5826 = vmatpush1.msra.mxu0 0.0
    %5827 = vmatprep.subr.mxu0 0.0
    %5828 = vmatpush1.msra.mxu0 0.0
    %5829 = vmatprep.subr.mxu0 0.0
    %5830 = vmatpush1.msra.mxu0 0.0
    %5831 = vmatprep.subr.mxu0 0.0
    %5832 = vmatpush1.msra.mxu0 0.0
    %5833 = vmatprep.subr.mxu0 0.0
    %5834 = vmatpush1.msra.mxu0 0.0
    %5835 = vmatprep.subr.mxu0 0.0
    %5836 = vmatpush1.msra.mxu0 0.0
    %5837 = vmatprep.subr.mxu0 0.0
    %5838 = vmatpush1.msra.mxu0 0.0
    %5839 = vmatprep.subr.mxu0 0.0
    %5840 = vmatpush1.msra.mxu0 0.0
    %5841 = vmatprep.subr.mxu0 0.0
    %5842 = vmatpush1.msra.mxu0 0.0
    %5843 = vmatprep.subr.mxu0 0.0
    %5844 = vmatpush1.msra.mxu0 0.0
    %5845 = vmatprep.subr.mxu0 0.0
    %5846 = vmatpush1.msra.mxu0 0.0
    %5847 = vmatprep.subr.mxu0 0.0
    %5848 = vmatpush1.msra.mxu0 0.0
    %5849 = vmatprep.subr.mxu0 0.0
    %5850 = vmatpush1.msra.mxu0 0.0
    %5851 = vmatprep.subr.mxu0 0.0
    %5852 = vmatpush1.msra.mxu0 0.0
    %5853 = vmatprep.subr.mxu0 0.0
    %5854 = vmatpush1.msra.mxu0 0.0
    %5855 = vmatprep.subr.mxu0 0.0
    %5856 = vmatpush1.msra.mxu0 0.0
    %5857 = vmatprep.subr.mxu0 0.0
    %5858 = vmatpush1.msra.mxu0 0.0
    %5859 = vmatprep.subr.mxu0 0.0
    %5860 = vmatpush1.msra.mxu0 0.0
    %5861 = vmatprep.subr.mxu0 0.0
    %5862 = vmatpush1.msra.mxu0 0.0
    %5863 = vmatprep.subr.mxu0 0.0
    %5864 = vmatpush1.msra.mxu0 0.0
    %5865 = vmatprep.subr.mxu0 0.0
    %5866 = vmatpush1.msra.mxu0 0.0
    %5867 = vmatprep.subr.mxu0 0.0
    %5868 = vmatpush1.msra.mxu0 0.0
    %5869 = vmatprep.subr.mxu0 0.0
    %5870 = vmatpush1.msra.mxu0 0.0
    %5871 = vmatprep.subr.mxu0 0.0
    %5872 = vmatpush1.msra.mxu0 0.0
    %5873 = vmatprep.subr.mxu0 0.0
    %5874 = vmatpush1.msra.mxu0 0.0
    %5875 = vmatprep.subr.mxu0 0.0
    %5876 = vmatpush1.msra.mxu0 0.0
    %5877 = vmatprep.subr.mxu0 0.0
    %5878 = vmatpush1.msra.mxu0 0.0
    %5879 = vmatprep.subr.mxu0 0.0
    %5880 = vmatpush1.msra.mxu0 0.0
    %5881 = vmatprep.subr.mxu0 0.0
    %5882 = vmatpush1.msra.mxu0 0.0
    %5883 = vmatprep.subr.mxu0 0.0
    %5884 = vmatpush1.msra.mxu0 0.0
    %5885 = vmatprep.mubr.f32.mxu0 0.0
    %v5886 = vand.u32 %v5391, 4294901760
    %5887 = vmatmul.mubr.f32.gmra.mrb[0].mxu0 %v5886
    %v5888 = vpop.f32.mrb[0].mxu0
    %v5889 = vadd.f32 %v5810, %v5888
    %v5890 = vpop.f32.mrb[0].mxu0
    %5891 = vmatprep.mubr.f32.mxu0 0.0
    %v5892 = vand.u32 %v5394, 4294901760
    %5893 = vmatmul.mubr.f32.gmra.mrb[0].mxu0 %v5892
    %v5894 = vpop.f32.mrb[0].mxu0
    %v5895 = vadd.f32 %v5816, %v5894
    %v5896 = vpop.f32.mrb[0].mxu0
    %5897 = vdwg.mxu0
    %v5898 = vrcp.pop %v5889
    %v5899 = vrcp.pop %v5895
    %v5900 = vmul.f32 %v5387, %v5898
    %v5901 = vmul.f32 %v5389, %v5899
    %v5902 = vmul.f32 %v5900, 0.25
    %v5903 = vmul.f32 %v5901, 0.25
    %v5904 = vmul.f32 %v2523, %v3323
    %v5905 = vmul.f32 %v2525, %v3325
    %v5906 = vmul.f32 %v2530, %v3330
    %v5907 = vmul.f32 %v2532, %v3332
    %v5909 = vsel %vm3358, %v5905, 0
    %v5912 = vsel %vm3358, %v5907, 0
    %5914 = vmatprep.subr.mxu0 0.0
    %v5915 = vand.u32 %v3334, 4294901760
    %5916 = vmatpush1.msra.mxu0 %v5915
    %5917 = vmatprep.subr.mxu0 0.0
    %v5918 = vand.u32 %v3335, 4294901760
    %5919 = vmatpush1.msra.mxu0 %v5918
    %5920 = vmatprep.subr.mxu0 0.0
    %v5921 = vand.u32 %v3336, 4294901760
    %5922 = vmatpush1.msra.mxu0 %v5921
    %5923 = vmatprep.subr.mxu0 0.0
    %v5924 = vand.u32 %v3337, 4294901760
    %5925 = vmatpush1.msra.mxu0 %v5924
    %5926 = vmatprep.subr.mxu0 0.0
    %v5927 = vand.u32 %v3338, 4294901760
    %5928 = vmatpush1.msra.mxu0 %v5927
    %5929 = vmatprep.subr.mxu0 0.0
    %v5930 = vand.u32 %v3339, 4294901760
    %5931 = vmatpush1.msra.mxu0 %v5930
    %5932 = vmatprep.subr.mxu0 0.0
    %v5933 = vand.u32 %v3340, 4294901760
    %5934 = vmatpush1.msra.mxu0 %v5933
    %5935 = vmatprep.subr.mxu0 0.0
    %v5936 = vand.u32 %v3341, 4294901760
    %5937 = vmatpush1.msra.mxu0 %v5936
    %5938 = vmatprep.subr.mxu0 0.0
    %v5939 = vand.u32 %v3342, 4294901760
    %5940 = vmatpush1.msra.mxu0 %v5939
    %5941 = vmatprep.subr.mxu0 0.0
    %v5942 = vand.u32 %v3343, 4294901760
    %5943 = vmatpush1.msra.mxu0 %v5942
    %5944 = vmatprep.subr.mxu0 0.0
    %v5945 = vand.u32 %v3344, 4294901760
    %5946 = vmatpush1.msra.mxu0 %v5945
    %5947 = vmatprep.subr.mxu0 0.0
    %v5948 = vand.u32 %v3345, 4294901760
    %5949 = vmatpush1.msra.mxu0 %v5948
    %5950 = vmatprep.subr.mxu0 0.0
    %v5951 = vand.u32 %v3346, 4294901760
    %5952 = vmatpush1.msra.mxu0 %v5951
    %5953 = vmatprep.subr.mxu0 0.0
    %v5954 = vand.u32 %v3347, 4294901760
    %5955 = vmatpush1.msra.mxu0 %v5954
    %5956 = vmatprep.subr.mxu0 0.0
    %v5957 = vand.u32 %v3348, 4294901760
    %5958 = vmatpush1.msra.mxu0 %v5957
    %5959 = vmatprep.subr.mxu0 0.0
    %v5960 = vand.u32 %v3349, 4294901760
    %5961 = vmatpush1.msra.mxu0 %v5960
    %5962 = vmatprep.subr.mxu0 0.0
    %v5963 = vand.u32 %v3350, 4294901760
    %5964 = vmatpush1.msra.mxu0 %v5963
    %5965 = vmatprep.subr.mxu0 0.0
    %v5966 = vand.u32 %v3351, 4294901760
    %5967 = vmatpush1.msra.mxu0 %v5966
    %5968 = vmatprep.subr.mxu0 0.0
    %5969 = vmatpush1.msra.mxu0 0.0
    %5970 = vmatprep.subr.mxu0 0.0
    %5971 = vmatpush1.msra.mxu0 0.0
    %5972 = vmatprep.subr.mxu0 0.0
    %5973 = vmatpush1.msra.mxu0 0.0
    %5974 = vmatprep.subr.mxu0 0.0
    %5975 = vmatpush1.msra.mxu0 0.0
    %5976 = vmatprep.subr.mxu0 0.0
    %5977 = vmatpush1.msra.mxu0 0.0
    %5978 = vmatprep.subr.mxu0 0.0
    %5979 = vmatpush1.msra.mxu0 0.0
    %5980 = vmatprep.subr.mxu0 0.0
    %5981 = vmatpush1.msra.mxu0 0.0
    %5982 = vmatprep.subr.mxu0 0.0
    %5983 = vmatpush1.msra.mxu0 0.0
    %5984 = vmatprep.subr.mxu0 0.0
    %5985 = vmatpush1.msra.mxu0 0.0
    %5986 = vmatprep.subr.mxu0 0.0
    %5987 = vmatpush1.msra.mxu0 0.0
    %5988 = vmatprep.subr.mxu0 0.0
    %5989 = vmatpush1.msra.mxu0 0.0
    %5990 = vmatprep.subr.mxu0 0.0
    %5991 = vmatpush1.msra.mxu0 0.0
    %5992 = vmatprep.subr.mxu0 0.0
    %5993 = vmatpush1.msra.mxu0 0.0
    %5994 = vmatprep.subr.mxu0 0.0
    %5995 = vmatpush1.msra.mxu0 0.0
    %v5996 = vand.u32 %v5909, 4294901760
    %v5997 = vsub.f32 %v5909, %v5996
    %v5998 = vand.u32 %v5997, 4294901760
    %v5999 = vsub.f32 %v5997, %v5998
    %v6000 = vand.u32 %v5999, 4294901760
    %6001 = vmatprep.mubr.f32.mxu0 %v6000
    %v6002 = vand.u32 %v5904, 4294901760
    %v6003 = vsub.f32 %v5904, %v6002
    %v6004 = vand.u32 %v6003, 4294901760
    %v6005 = vsub.f32 %v6003, %v6004
    %v6006 = vand.u32 %v6005, 4294901760
    %6007 = vmatmul.mubr.f32.gmra.mrb[0].mxu0 %v6006
    %v6008 = vpop.f32.mrb[0].mxu0
    %v6009 = vadd.f32 0.0, %v6008
    %v6010 = vpop.f32.mrb[0].mxu0
    %v6011 = vand.u32 %v5912, 4294901760
    %v6012 = vsub.f32 %v5912, %v6011
    %v6013 = vand.u32 %v6012, 4294901760
    %v6014 = vsub.f32 %v6012, %v6013
    %v6015 = vand.u32 %v6014, 4294901760
    %6016 = vmatprep.mubr.f32.mxu0 %v6015
    %v6017 = vand.u32 %v5906, 4294901760
    %v6018 = vsub.f32 %v5906, %v6017
    %v6019 = vand.u32 %v6018, 4294901760
    %v6020 = vsub.f32 %v6018, %v6019
    %v6021 = vand.u32 %v6020, 4294901760
    %6022 = vmatmul.mubr.f32.gmra.mrb[0].mxu0 %v6021
    %v6023 = vpop.f32.mrb[0].mxu0
    %v6024 = vadd.f32 0.0, %v6023
    %v6025 = vpop.f32.mrb[0].mxu0
    %6026 = vdwg.mxu0
    %6027 = vmatprep.subr.mxu0 0.0
    %v6028 = vand.u32 %v3334, 4294901760
    %v6029 = vsub.f32 %v3334, %v6028
    %v6030 = vand.u32 %v6029, 4294901760
    %v6031 = vsub.f32 %v6029, %v6030
    %v6032 = vand.u32 %v6031, 4294901760
    %6033 = vmatpush1.msra.mxu0 %v6032
    %6034 = vmatprep.subr.mxu0 0.0
    %v6035 = vand.u32 %v3335, 4294901760
    %v6036 = vsub.f32 %v3335, %v6035
    %v6037 = vand.u32 %v6036, 4294901760
    %v6038 = vsub.f32 %v6036, %v6037
    %v6039 = vand.u32 %v6038, 4294901760
    %6040 = vmatpush1.msra.mxu0 %v6039
    %6041 = vmatprep.subr.mxu0 0.0
    %v6042 = vand.u32 %v3336, 4294901760
    %v6043 = vsub.f32 %v3336, %v6042
    %v6044 = vand.u32 %v6043, 4294901760
    %v6045 = vsub.f32 %v6043, %v6044
    %v6046 = vand.u32 %v6045, 4294901760
    %6047 = vmatpush1.msra.mxu0 %v6046
    %6048 = vmatprep.subr.mxu0 0.0
    %v6049 = vand.u32 %v3337, 4294901760
    %v6050 = vsub.f32 %v3337, %v6049
    %v6051 = vand.u32 %v6050, 4294901760
    %v6052 = vsub.f32 %v6050, %v6051
    %v6053 = vand.u32 %v6052, 4294901760
    %6054 = vmatpush1.msra.mxu0 %v6053
    %6055 = vmatprep.subr.mxu0 0.0
    %v6056 = vand.u32 %v3338, 4294901760
    %v6057 = vsub.f32 %v3338, %v6056
    %v6058 = vand.u32 %v6057, 4294901760
    %v6059 = vsub.f32 %v6057, %v6058
    %v6060 = vand.u32 %v6059, 4294901760
    %6061 = vmatpush1.msra.mxu0 %v6060
    %6062 = vmatprep.subr.mxu0 0.0
    %v6063 = vand.u32 %v3339, 4294901760
    %v6064 = vsub.f32 %v3339, %v6063
    %v6065 = vand.u32 %v6064, 4294901760
    %v6066 = vsub.f32 %v6064, %v6065
    %v6067 = vand.u32 %v6066, 4294901760
    %6068 = vmatpush1.msra.mxu0 %v6067
    %6069 = vmatprep.subr.mxu0 0.0
    %v6070 = vand.u32 %v3340, 4294901760
    %v6071 = vsub.f32 %v3340, %v6070
    %v6072 = vand.u32 %v6071, 4294901760
    %v6073 = vsub.f32 %v6071, %v6072
    %v6074 = vand.u32 %v6073, 4294901760
    %6075 = vmatpush1.msra.mxu0 %v6074
    %6076 = vmatprep.subr.mxu0 0.0
    %v6077 = vand.u32 %v3341, 4294901760
    %v6078 = vsub.f32 %v3341, %v6077
    %v6079 = vand.u32 %v6078, 4294901760
    %v6080 = vsub.f32 %v6078, %v6079
    %v6081 = vand.u32 %v6080, 4294901760
    %6082 = vmatpush1.msra.mxu0 %v6081
    %6083 = vmatprep.subr.mxu0 0.0
    %v6084 = vand.u32 %v3342, 4294901760
    %v6085 = vsub.f32 %v3342, %v6084
    %v6086 = vand.u32 %v6085, 4294901760
    %v6087 = vsub.f32 %v6085, %v6086
    %v6088 = vand.u32 %v6087, 4294901760
    %6089 = vmatpush1.msra.mxu0 %v6088
    %6090 = vmatprep.subr.mxu0 0.0
    %v6091 = vand.u32 %v3343, 4294901760
    %v6092 = vsub.f32 %v3343, %v6091
    %v6093 = vand.u32 %v6092, 4294901760
    %v6094 = vsub.f32 %v6092, %v6093
    %v6095 = vand.u32 %v6094, 4294901760
    %6096 = vmatpush1.msra.mxu0 %v6095
    %6097 = vmatprep.subr.mxu0 0.0
    %v6098 = vand.u32 %v3344, 4294901760
    %v6099 = vsub.f32 %v3344, %v6098
    %v6100 = vand.u32 %v6099, 4294901760
    %v6101 = vsub.f32 %v6099, %v6100
    %v6102 = vand.u32 %v6101, 4294901760
    %6103 = vmatpush1.msra.mxu0 %v6102
    %6104 = vmatprep.subr.mxu0 0.0
    %v6105 = vand.u32 %v3345, 4294901760
    %v6106 = vsub.f32 %v3345, %v6105
    %v6107 = vand.u32 %v6106, 4294901760
    %v6108 = vsub.f32 %v6106, %v6107
    %v6109 = vand.u32 %v6108, 4294901760
    %6110 = vmatpush1.msra.mxu0 %v6109
    %6111 = vmatprep.subr.mxu0 0.0
    %v6112 = vand.u32 %v3346, 4294901760
    %v6113 = vsub.f32 %v3346, %v6112
    %v6114 = vand.u32 %v6113, 4294901760
    %v6115 = vsub.f32 %v6113, %v6114
    %v6116 = vand.u32 %v6115, 4294901760
    %6117 = vmatpush1.msra.mxu0 %v6116
    %6118 = vmatprep.subr.mxu0 0.0
    %v6119 = vand.u32 %v3347, 4294901760
    %v6120 = vsub.f32 %v3347, %v6119
    %v6121 = vand.u32 %v6120, 4294901760
    %v6122 = vsub.f32 %v6120, %v6121
    %v6123 = vand.u32 %v6122, 4294901760
    %6124 = vmatpush1.msra.mxu0 %v6123
    %6125 = vmatprep.subr.mxu0 0.0
    %v6126 = vand.u32 %v3348, 4294901760
    %v6127 = vsub.f32 %v3348, %v6126
    %v6128 = vand.u32 %v6127, 4294901760
    %v6129 = vsub.f32 %v6127, %v6128
    %v6130 = vand.u32 %v6129, 4294901760
    %6131 = vmatpush1.msra.mxu0 %v6130
    %6132 = vmatprep.subr.mxu0 0.0
    %v6133 = vand.u32 %v3349, 4294901760
    %v6134 = vsub.f32 %v3349, %v6133
    %v6135 = vand.u32 %v6134, 4294901760
    %v6136 = vsub.f32 %v6134, %v6135
    %v6137 = vand.u32 %v6136, 4294901760
    %6138 = vmatpush1.msra.mxu0 %v6137
    %6139 = vmatprep.subr.mxu0 0.0
    %v6140 = vand.u32 %v3350, 4294901760
    %v6141 = vsub.f32 %v3350, %v6140
    %v6142 = vand.u32 %v6141, 4294901760
    %v6143 = vsub.f32 %v6141, %v6142
    %v6144 = vand.u32 %v6143, 4294901760
    %6145 = vmatpush1.msra.mxu0 %v6144
    %6146 = vmatprep.subr.mxu0 0.0
    %v6147 = vand.u32 %v3351, 4294901760
    %v6148 = vsub.f32 %v3351, %v6147
    %v6149 = vand.u32 %v6148, 4294901760
    %v6150 = vsub.f32 %v6148, %v6149
    %v6151 = vand.u32 %v6150, 4294901760
    %6152 = vmatpush1.msra.mxu0 %v6151
    %6153 = vmatprep.subr.mxu0 0.0
    %6154 = vmatpush1.msra.mxu0 0.0
    %6155 = vmatprep.subr.mxu0 0.0
    %6156 = vmatpush1.msra.mxu0 0.0
    %6157 = vmatprep.subr.mxu0 0.0
    %6158 = vmatpush1.msra.mxu0 0.0
    %6159 = vmatprep.subr.mxu0 0.0
    %6160 = vmatpush1.msra.mxu0 0.0
    %6161 = vmatprep.subr.mxu0 0.0
    %6162 = vmatpush1.msra.mxu0 0.0
    %6163 = vmatprep.subr.mxu0 0.0
    %6164 = vmatpush1.msra.mxu0 0.0
    %6165 = vmatprep.subr.mxu0 0.0
    %6166 = vmatpush1.msra.mxu0 0.0
    %6167 = vmatprep.subr.mxu0 0.0
    %6168 = vmatpush1.msra.mxu0 0.0
    %6169 = vmatprep.subr.mxu0 0.0
    %6170 = vmatpush1.msra.mxu0 0.0
    %6171 = vmatprep.subr.mxu0 0.0
    %6172 = vmatpush1.msra.mxu0 0.0
    %6173 = vmatprep.subr.mxu0 0.0
    %6174 = vmatpush1.msra.mxu0 0.0
    %6175 = vmatprep.subr.mxu0 0.0
    %6176 = vmatpush1.msra.mxu0 0.0
    %6177 = vmatprep.subr.mxu0 0.0
    %6178 = vmatpush1.msra.mxu0 0.0
    %6179 = vmatprep.subr.mxu0 0.0
    %6180 = vmatpush1.msra.mxu0 0.0
    %v6181 = vand.u32 %v5909, 4294901760
    %6182 = vmatprep.mubr.f32.mxu0 %v6181
    %v6183 = vand.u32 %v5904, 4294901760
    %6184 = vmatmul.mubr.f32.gmra.mrb[0].mxu0 %v6183
    %v6185 = vpop.f32.mrb[0].mxu0
    %v6186 = vadd.f32 %v6009, %v6185
    %v6187 = vpop.f32.mrb[0].mxu0
    %v6188 = vand.u32 %v5912, 4294901760
    %6189 = vmatprep.mubr.f32.mxu0 %v6188
    %v6190 = vand.u32 %v5906, 4294901760
    %6191 = vmatmul.mubr.f32.gmra.mrb[0].mxu0 %v6190
    %v6192 = vpop.f32.mrb[0].mxu0
    %v6193 = vadd.f32 %v6024, %v6192
    %v6194 = vpop.f32.mrb[0].mxu0
    %6195 = vdwg.mxu0
    %6196 = vmatprep.subr.mxu0 0.0
    %v6197 = vand.u32 %v3334, 4294901760
    %v6198 = vsub.f32 %v3334, %v6197
    %6199 = vmatpush1.msra.mxu0 %v6198
    %6200 = vmatprep.subr.mxu0 0.0
    %v6201 = vand.u32 %v3335, 4294901760
    %v6202 = vsub.f32 %v3335, %v6201
    %6203 = vmatpush1.msra.mxu0 %v6202
    %6204 = vmatprep.subr.mxu0 0.0
    %v6205 = vand.u32 %v3336, 4294901760
    %v6206 = vsub.f32 %v3336, %v6205
    %6207 = vmatpush1.msra.mxu0 %v6206
    %6208 = vmatprep.subr.mxu0 0.0
    %v6209 = vand.u32 %v3337, 4294901760
    %v6210 = vsub.f32 %v3337, %v6209
    %6211 = vmatpush1.msra.mxu0 %v6210
    %6212 = vmatprep.subr.mxu0 0.0
    %v6213 = vand.u32 %v3338, 4294901760
    %v6214 = vsub.f32 %v3338, %v6213
    %6215 = vmatpush1.msra.mxu0 %v6214
    %6216 = vmatprep.subr.mxu0 0.0
    %v6217 = vand.u32 %v3339, 4294901760
    %v6218 = vsub.f32 %v3339, %v6217
    %6219 = vmatpush1.msra.mxu0 %v6218
    %6220 = vmatprep.subr.mxu0 0.0
    %v6221 = vand.u32 %v3340, 4294901760
    %v6222 = vsub.f32 %v3340, %v6221
    %6223 = vmatpush1.msra.mxu0 %v6222
    %6224 = vmatprep.subr.mxu0 0.0
    %v6225 = vand.u32 %v3341, 4294901760
    %v6226 = vsub.f32 %v3341, %v6225
    %6227 = vmatpush1.msra.mxu0 %v6226
    %6228 = vmatprep.subr.mxu0 0.0
    %v6229 = vand.u32 %v3342, 4294901760
    %v6230 = vsub.f32 %v3342, %v6229
    %6231 = vmatpush1.msra.mxu0 %v6230
    %6232 = vmatprep.subr.mxu0 0.0
    %v6233 = vand.u32 %v3343, 4294901760
    %v6234 = vsub.f32 %v3343, %v6233
    %6235 = vmatpush1.msra.mxu0 %v6234
    %6236 = vmatprep.subr.mxu0 0.0
    %v6237 = vand.u32 %v3344, 4294901760
    %v6238 = vsub.f32 %v3344, %v6237
    %6239 = vmatpush1.msra.mxu0 %v6238
    %6240 = vmatprep.subr.mxu0 0.0
    %v6241 = vand.u32 %v3345, 4294901760
    %v6242 = vsub.f32 %v3345, %v6241
    %6243 = vmatpush1.msra.mxu0 %v6242
    %6244 = vmatprep.subr.mxu0 0.0
    %v6245 = vand.u32 %v3346, 4294901760
    %v6246 = vsub.f32 %v3346, %v6245
    %6247 = vmatpush1.msra.mxu0 %v6246
    %6248 = vmatprep.subr.mxu0 0.0
    %v6249 = vand.u32 %v3347, 4294901760
    %v6250 = vsub.f32 %v3347, %v6249
    %6251 = vmatpush1.msra.mxu0 %v6250
    %6252 = vmatprep.subr.mxu0 0.0
    %v6253 = vand.u32 %v3348, 4294901760
    %v6254 = vsub.f32 %v3348, %v6253
    %6255 = vmatpush1.msra.mxu0 %v6254
    %6256 = vmatprep.subr.mxu0 0.0
    %v6257 = vand.u32 %v3349, 4294901760
    %v6258 = vsub.f32 %v3349, %v6257
    %6259 = vmatpush1.msra.mxu0 %v6258
    %6260 = vmatprep.subr.mxu0 0.0
    %v6261 = vand.u32 %v3350, 4294901760
    %v6262 = vsub.f32 %v3350, %v6261
    %6263 = vmatpush1.msra.mxu0 %v6262
    %6264 = vmatprep.subr.mxu0 0.0
    %v6265 = vand.u32 %v3351, 4294901760
    %v6266 = vsub.f32 %v3351, %v6265
    %6267 = vmatpush1.msra.mxu0 %v6266
    %6268 = vmatprep.subr.mxu0 0.0
    %6269 = vmatpush1.msra.mxu0 0.0
    %6270 = vmatprep.subr.mxu0 0.0
    %6271 = vmatpush1.msra.mxu0 0.0
    %6272 = vmatprep.subr.mxu0 0.0
    %6273 = vmatpush1.msra.mxu0 0.0
    %6274 = vmatprep.subr.mxu0 0.0
    %6275 = vmatpush1.msra.mxu0 0.0
    %6276 = vmatprep.subr.mxu0 0.0
    %6277 = vmatpush1.msra.mxu0 0.0
    %6278 = vmatprep.subr.mxu0 0.0
    %6279 = vmatpush1.msra.mxu0 0.0
    %6280 = vmatprep.subr.mxu0 0.0
    %6281 = vmatpush1.msra.mxu0 0.0
    %6282 = vmatprep.subr.mxu0 0.0
    %6283 = vmatpush1.msra.mxu0 0.0
    %6284 = vmatprep.subr.mxu0 0.0
    %6285 = vmatpush1.msra.mxu0 0.0
    %6286 = vmatprep.subr.mxu0 0.0
    %6287 = vmatpush1.msra.mxu0 0.0
    %6288 = vmatprep.subr.mxu0 0.0
    %6289 = vmatpush1.msra.mxu0 0.0
    %6290 = vmatprep.subr.mxu0 0.0
    %6291 = vmatpush1.msra.mxu0 0.0
    %6292 = vmatprep.subr.mxu0 0.0
    %6293 = vmatpush1.msra.mxu0 0.0
    %6294 = vmatprep.subr.mxu0 0.0
    %6295 = vmatpush1.msra.mxu0 0.0
    %v6296 = vand.u32 %v5909, 4294901760
    %v6297 = vsub.f32 %v5909, %v6296
    %6298 = vmatprep.mubr.f32.mxu0 %v6297
    %v6299 = vand.u32 %v5904, 4294901760
    %v6300 = vsub.f32 %v5904, %v6299
    %6301 = vmatmul.mubr.f32.gmra.mrb[0].mxu0 %v6300
    %v6302 = vpop.f32.mrb[0].mxu0
    %v6303 = vadd.f32 %v6186, %v6302
    %v6304 = vpop.f32.mrb[0].mxu0
    %v6305 = vand.u32 %v5912, 4294901760
    %v6306 = vsub.f32 %v5912, %v6305
    %6307 = vmatprep.mubr.f32.mxu0 %v6306
    %v6308 = vand.u32 %v5906, 4294901760
    %v6309 = vsub.f32 %v5906, %v6308
    %6310 = vmatmul.mubr.f32.gmra.mrb[0].mxu0 %v6309
    %v6311 = vpop.f32.mrb[0].mxu0
    %v6312 = vadd.f32 %v6193, %v6311
    %v6313 = vpop.f32.mrb[0].mxu0
    %6314 = vdwg.mxu0
    %6315 = vmatprep.subr.mxu0 0.0
    %v6316 = vand.u32 %v3334, 4294901760
    %6317 = vmatpush1.msra.mxu0 %v6316
    %6318 = vmatprep.subr.mxu0 0.0
    %v6319 = vand.u32 %v3335, 4294901760
    %6320 = vmatpush1.msra.mxu0 %v6319
    %6321 = vmatprep.subr.mxu0 0.0
    %v6322 = vand.u32 %v3336, 4294901760
    %6323 = vmatpush1.msra.mxu0 %v6322
    %6324 = vmatprep.subr.mxu0 0.0
    %v6325 = vand.u32 %v3337, 4294901760
    %6326 = vmatpush1.msra.mxu0 %v6325
    %6327 = vmatprep.subr.mxu0 0.0
    %v6328 = vand.u32 %v3338, 4294901760
    %6329 = vmatpush1.msra.mxu0 %v6328
    %6330 = vmatprep.subr.mxu0 0.0
    %v6331 = vand.u32 %v3339, 4294901760
    %6332 = vmatpush1.msra.mxu0 %v6331
    %6333 = vmatprep.subr.mxu0 0.0
    %v6334 = vand.u32 %v3340, 4294901760
    %6335 = vmatpush1.msra.mxu0 %v6334
    %6336 = vmatprep.subr.mxu0 0.0
    %v6337 = vand.u32 %v3341, 4294901760
    %6338 = vmatpush1.msra.mxu0 %v6337
    %6339 = vmatprep.subr.mxu0 0.0
    %v6340 = vand.u32 %v3342, 4294901760
    %6341 = vmatpush1.msra.mxu0 %v6340
    %6342 = vmatprep.subr.mxu0 0.0
    %v6343 = vand.u32 %v3343, 4294901760
    %6344 = vmatpush1.msra.mxu0 %v6343
    %6345 = vmatprep.subr.mxu0 0.0
    %v6346 = vand.u32 %v3344, 4294901760
    %6347 = vmatpush1.msra.mxu0 %v6346
    %6348 = vmatprep.subr.mxu0 0.0
    %v6349 = vand.u32 %v3345, 4294901760
    %6350 = vmatpush1.msra.mxu0 %v6349
    %6351 = vmatprep.subr.mxu0 0.0
    %v6352 = vand.u32 %v3346, 4294901760
    %6353 = vmatpush1.msra.mxu0 %v6352
    %6354 = vmatprep.subr.mxu0 0.0
    %v6355 = vand.u32 %v3347, 4294901760
    %6356 = vmatpush1.msra.mxu0 %v6355
    %6357 = vmatprep.subr.mxu0 0.0
    %v6358 = vand.u32 %v3348, 4294901760
    %6359 = vmatpush1.msra.mxu0 %v6358
    %6360 = vmatprep.subr.mxu0 0.0
    %v6361 = vand.u32 %v3349, 4294901760
    %6362 = vmatpush1.msra.mxu0 %v6361
    %6363 = vmatprep.subr.mxu0 0.0
    %v6364 = vand.u32 %v3350, 4294901760
    %6365 = vmatpush1.msra.mxu0 %v6364
    %6366 = vmatprep.subr.mxu0 0.0
    %v6367 = vand.u32 %v3351, 4294901760
    %6368 = vmatpush1.msra.mxu0 %v6367
    %6369 = vmatprep.subr.mxu0 0.0
    %6370 = vmatpush1.msra.mxu0 0.0
    %6371 = vmatprep.subr.mxu0 0.0
    %6372 = vmatpush1.msra.mxu0 0.0
    %6373 = vmatprep.subr.mxu0 0.0
    %6374 = vmatpush1.msra.mxu0 0.0
    %6375 = vmatprep.subr.mxu0 0.0
    %6376 = vmatpush1.msra.mxu0 0.0
    %6377 = vmatprep.subr.mxu0 0.0
    %6378 = vmatpush1.msra.mxu0 0.0
    %6379 = vmatprep.subr.mxu0 0.0
    %6380 = vmatpush1.msra.mxu0 0.0
    %6381 = vmatprep.subr.mxu0 0.0
    %6382 = vmatpush1.msra.mxu0 0.0
    %6383 = vmatprep.subr.mxu0 0.0
    %6384 = vmatpush1.msra.mxu0 0.0
    %6385 = vmatprep.subr.mxu0 0.0
    %6386 = vmatpush1.msra.mxu0 0.0
    %6387 = vmatprep.subr.mxu0 0.0
    %6388 = vmatpush1.msra.mxu0 0.0
    %6389 = vmatprep.subr.mxu0 0.0
    %6390 = vmatpush1.msra.mxu0 0.0
    %6391 = vmatprep.subr.mxu0 0.0
    %6392 = vmatpush1.msra.mxu0 0.0
    %6393 = vmatprep.subr.mxu0 0.0
    %6394 = vmatpush1.msra.mxu0 0.0
    %6395 = vmatprep.subr.mxu0 0.0
    %6396 = vmatpush1.msra.mxu0 0.0
    %v6397 = vand.u32 %v5909, 4294901760
    %v6398 = vsub.f32 %v5909, %v6397
    %v6399 = vand.u32 %v6398, 4294901760
    %6400 = vmatprep.mubr.f32.mxu0 %v6399
    %v6401 = vand.u32 %v5904, 4294901760
    %v6402 = vsub.f32 %v5904, %v6401
    %v6403 = vand.u32 %v6402, 4294901760
    %6404 = vmatmul.mubr.f32.gmra.mrb[0].mxu0 %v6403
    %v6405 = vpop.f32.mrb[0].mxu0
    %v6406 = vadd.f32 %v6303, %v6405
    %v6407 = vpop.f32.mrb[0].mxu0
    %v6408 = vand.u32 %v5912, 4294901760
    %v6409 = vsub.f32 %v5912, %v6408
    %v6410 = vand.u32 %v6409, 4294901760
    %6411 = vmatprep.mubr.f32.mxu0 %v6410
    %v6412 = vand.u32 %v5906, 4294901760
    %v6413 = vsub.f32 %v5906, %v6412
    %v6414 = vand.u32 %v6413, 4294901760
    %6415 = vmatmul.mubr.f32.gmra.mrb[0].mxu0 %v6414
    %v6416 = vpop.f32.mrb[0].mxu0
    %v6417 = vadd.f32 %v6312, %v6416
    %v6418 = vpop.f32.mrb[0].mxu0
    %6419 = vdwg.mxu0
    %6420 = vmatprep.subr.mxu0 0.0
    %v6421 = vand.u32 %v3334, 4294901760
    %v6422 = vsub.f32 %v3334, %v6421
    %v6423 = vand.u32 %v6422, 4294901760
    %6424 = vmatpush1.msra.mxu0 %v6423
    %6425 = vmatprep.subr.mxu0 0.0
    %v6426 = vand.u32 %v3335, 4294901760
    %v6427 = vsub.f32 %v3335, %v6426
    %v6428 = vand.u32 %v6427, 4294901760
    %6429 = vmatpush1.msra.mxu0 %v6428
    %6430 = vmatprep.subr.mxu0 0.0
    %v6431 = vand.u32 %v3336, 4294901760
    %v6432 = vsub.f32 %v3336, %v6431
    %v6433 = vand.u32 %v6432, 4294901760
    %6434 = vmatpush1.msra.mxu0 %v6433
    %6435 = vmatprep.subr.mxu0 0.0
    %v6436 = vand.u32 %v3337, 4294901760
    %v6437 = vsub.f32 %v3337, %v6436
    %v6438 = vand.u32 %v6437, 4294901760
    %6439 = vmatpush1.msra.mxu0 %v6438
    %6440 = vmatprep.subr.mxu0 0.0
    %v6441 = vand.u32 %v3338, 4294901760
    %v6442 = vsub.f32 %v3338, %v6441
    %v6443 = vand.u32 %v6442, 4294901760
    %6444 = vmatpush1.msra.mxu0 %v6443
    %6445 = vmatprep.subr.mxu0 0.0
    %v6446 = vand.u32 %v3339, 4294901760
    %v6447 = vsub.f32 %v3339, %v6446
    %v6448 = vand.u32 %v6447, 4294901760
    %6449 = vmatpush1.msra.mxu0 %v6448
    %6450 = vmatprep.subr.mxu0 0.0
    %v6451 = vand.u32 %v3340, 4294901760
    %v6452 = vsub.f32 %v3340, %v6451
    %v6453 = vand.u32 %v6452, 4294901760
    %6454 = vmatpush1.msra.mxu0 %v6453
    %6455 = vmatprep.subr.mxu0 0.0
    %v6456 = vand.u32 %v3341, 4294901760
    %v6457 = vsub.f32 %v3341, %v6456
    %v6458 = vand.u32 %v6457, 4294901760
    %6459 = vmatpush1.msra.mxu0 %v6458
    %6460 = vmatprep.subr.mxu0 0.0
    %v6461 = vand.u32 %v3342, 4294901760
    %v6462 = vsub.f32 %v3342, %v6461
    %v6463 = vand.u32 %v6462, 4294901760
    %6464 = vmatpush1.msra.mxu0 %v6463
    %6465 = vmatprep.subr.mxu0 0.0
    %v6466 = vand.u32 %v3343, 4294901760
    %v6467 = vsub.f32 %v3343, %v6466
    %v6468 = vand.u32 %v6467, 4294901760
    %6469 = vmatpush1.msra.mxu0 %v6468
    %6470 = vmatprep.subr.mxu0 0.0
    %v6471 = vand.u32 %v3344, 4294901760
    %v6472 = vsub.f32 %v3344, %v6471
    %v6473 = vand.u32 %v6472, 4294901760
    %6474 = vmatpush1.msra.mxu0 %v6473
    %6475 = vmatprep.subr.mxu0 0.0
    %v6476 = vand.u32 %v3345, 4294901760
    %v6477 = vsub.f32 %v3345, %v6476
    %v6478 = vand.u32 %v6477, 4294901760
    %6479 = vmatpush1.msra.mxu0 %v6478
    %6480 = vmatprep.subr.mxu0 0.0
    %v6481 = vand.u32 %v3346, 4294901760
    %v6482 = vsub.f32 %v3346, %v6481
    %v6483 = vand.u32 %v6482, 4294901760
    %6484 = vmatpush1.msra.mxu0 %v6483
    %6485 = vmatprep.subr.mxu0 0.0
    %v6486 = vand.u32 %v3347, 4294901760
    %v6487 = vsub.f32 %v3347, %v6486
    %v6488 = vand.u32 %v6487, 4294901760
    %6489 = vmatpush1.msra.mxu0 %v6488
    %6490 = vmatprep.subr.mxu0 0.0
    %v6491 = vand.u32 %v3348, 4294901760
    %v6492 = vsub.f32 %v3348, %v6491
    %v6493 = vand.u32 %v6492, 4294901760
    %6494 = vmatpush1.msra.mxu0 %v6493
    %6495 = vmatprep.subr.mxu0 0.0
    %v6496 = vand.u32 %v3349, 4294901760
    %v6497 = vsub.f32 %v3349, %v6496
    %v6498 = vand.u32 %v6497, 4294901760
    %6499 = vmatpush1.msra.mxu0 %v6498
    %6500 = vmatprep.subr.mxu0 0.0
    %v6501 = vand.u32 %v3350, 4294901760
    %v6502 = vsub.f32 %v3350, %v6501
    %v6503 = vand.u32 %v6502, 4294901760
    %6504 = vmatpush1.msra.mxu0 %v6503
    %6505 = vmatprep.subr.mxu0 0.0
    %v6506 = vand.u32 %v3351, 4294901760
    %v6507 = vsub.f32 %v3351, %v6506
    %v6508 = vand.u32 %v6507, 4294901760
    %6509 = vmatpush1.msra.mxu0 %v6508
    %6510 = vmatprep.subr.mxu0 0.0
    %6511 = vmatpush1.msra.mxu0 0.0
    %6512 = vmatprep.subr.mxu0 0.0
    %6513 = vmatpush1.msra.mxu0 0.0
    %6514 = vmatprep.subr.mxu0 0.0
    %6515 = vmatpush1.msra.mxu0 0.0
    %6516 = vmatprep.subr.mxu0 0.0
    %6517 = vmatpush1.msra.mxu0 0.0
    %6518 = vmatprep.subr.mxu0 0.0
    %6519 = vmatpush1.msra.mxu0 0.0
    %6520 = vmatprep.subr.mxu0 0.0
    %6521 = vmatpush1.msra.mxu0 0.0
    %6522 = vmatprep.subr.mxu0 0.0
    %6523 = vmatpush1.msra.mxu0 0.0
    %6524 = vmatprep.subr.mxu0 0.0
    %6525 = vmatpush1.msra.mxu0 0.0
    %6526 = vmatprep.subr.mxu0 0.0
    %6527 = vmatpush1.msra.mxu0 0.0
    %6528 = vmatprep.subr.mxu0 0.0
    %6529 = vmatpush1.msra.mxu0 0.0
    %6530 = vmatprep.subr.mxu0 0.0
    %6531 = vmatpush1.msra.mxu0 0.0
    %6532 = vmatprep.subr.mxu0 0.0
    %6533 = vmatpush1.msra.mxu0 0.0
    %6534 = vmatprep.subr.mxu0 0.0
    %6535 = vmatpush1.msra.mxu0 0.0
    %6536 = vmatprep.subr.mxu0 0.0
    %6537 = vmatpush1.msra.mxu0 0.0
    %v6538 = vand.u32 %v5909, 4294901760
    %6539 = vmatprep.mubr.f32.mxu0 %v6538
    %v6540 = vand.u32 %v5904, 4294901760
    %6541 = vmatmul.mubr.f32.gmra.mrb[0].mxu0 %v6540
    %v6542 = vpop.f32.mrb[0].mxu0
    %v6543 = vadd.f32 %v6406, %v6542
    %v6544 = vpop.f32.mrb[0].mxu0
    %v6545 = vand.u32 %v5912, 4294901760
    %6546 = vmatprep.mubr.f32.mxu0 %v6545
    %v6547 = vand.u32 %v5906, 4294901760
    %6548 = vmatmul.mubr.f32.gmra.mrb[0].mxu0 %v6547
    %v6549 = vpop.f32.mrb[0].mxu0
    %v6550 = vadd.f32 %v6417, %v6549
    %v6551 = vpop.f32.mrb[0].mxu0
    %6552 = vdwg.mxu0
    %6553 = vmatprep.subr.mxu0 0.0
    %v6554 = vand.u32 %v3334, 4294901760
    %6555 = vmatpush1.msra.mxu0 %v6554
    %6556 = vmatprep.subr.mxu0 0.0
    %v6557 = vand.u32 %v3335, 4294901760
    %6558 = vmatpush1.msra.mxu0 %v6557
    %6559 = vmatprep.subr.mxu0 0.0
    %v6560 = vand.u32 %v3336, 4294901760
    %6561 = vmatpush1.msra.mxu0 %v6560
    %6562 = vmatprep.subr.mxu0 0.0
    %v6563 = vand.u32 %v3337, 4294901760
    %6564 = vmatpush1.msra.mxu0 %v6563
    %6565 = vmatprep.subr.mxu0 0.0
    %v6566 = vand.u32 %v3338, 4294901760
    %6567 = vmatpush1.msra.mxu0 %v6566
    %6568 = vmatprep.subr.mxu0 0.0
    %v6569 = vand.u32 %v3339, 4294901760
    %6570 = vmatpush1.msra.mxu0 %v6569
    %6571 = vmatprep.subr.mxu0 0.0
    %v6572 = vand.u32 %v3340, 4294901760
    %6573 = vmatpush1.msra.mxu0 %v6572
    %6574 = vmatprep.subr.mxu0 0.0
    %v6575 = vand.u32 %v3341, 4294901760
    %6576 = vmatpush1.msra.mxu0 %v6575
    %6577 = vmatprep.subr.mxu0 0.0
    %v6578 = vand.u32 %v3342, 4294901760
    %6579 = vmatpush1.msra.mxu0 %v6578
    %6580 = vmatprep.subr.mxu0 0.0
    %v6581 = vand.u32 %v3343, 4294901760
    %6582 = vmatpush1.msra.mxu0 %v6581
    %6583 = vmatprep.subr.mxu0 0.0
    %v6584 = vand.u32 %v3344, 4294901760
    %6585 = vmatpush1.msra.mxu0 %v6584
    %6586 = vmatprep.subr.mxu0 0.0
    %v6587 = vand.u32 %v3345, 4294901760
    %6588 = vmatpush1.msra.mxu0 %v6587
    %6589 = vmatprep.subr.mxu0 0.0
    %v6590 = vand.u32 %v3346, 4294901760
    %6591 = vmatpush1.msra.mxu0 %v6590
    %6592 = vmatprep.subr.mxu0 0.0
    %v6593 = vand.u32 %v3347, 4294901760
    %6594 = vmatpush1.msra.mxu0 %v6593
    %6595 = vmatprep.subr.mxu0 0.0
    %v6596 = vand.u32 %v3348, 4294901760
    %6597 = vmatpush1.msra.mxu0 %v6596
    %6598 = vmatprep.subr.mxu0 0.0
    %v6599 = vand.u32 %v3349, 4294901760
    %6600 = vmatpush1.msra.mxu0 %v6599
    %6601 = vmatprep.subr.mxu0 0.0
    %v6602 = vand.u32 %v3350, 4294901760
    %6603 = vmatpush1.msra.mxu0 %v6602
    %6604 = vmatprep.subr.mxu0 0.0
    %v6605 = vand.u32 %v3351, 4294901760
    %6606 = vmatpush1.msra.mxu0 %v6605
    %6607 = vmatprep.subr.mxu0 0.0
    %6608 = vmatpush1.msra.mxu0 0.0
    %6609 = vmatprep.subr.mxu0 0.0
    %6610 = vmatpush1.msra.mxu0 0.0
    %6611 = vmatprep.subr.mxu0 0.0
    %6612 = vmatpush1.msra.mxu0 0.0
    %6613 = vmatprep.subr.mxu0 0.0
    %6614 = vmatpush1.msra.mxu0 0.0
    %6615 = vmatprep.subr.mxu0 0.0
    %6616 = vmatpush1.msra.mxu0 0.0
    %6617 = vmatprep.subr.mxu0 0.0
    %6618 = vmatpush1.msra.mxu0 0.0
    %6619 = vmatprep.subr.mxu0 0.0
    %6620 = vmatpush1.msra.mxu0 0.0
    %6621 = vmatprep.subr.mxu0 0.0
    %6622 = vmatpush1.msra.mxu0 0.0
    %6623 = vmatprep.subr.mxu0 0.0
    %6624 = vmatpush1.msra.mxu0 0.0
    %6625 = vmatprep.subr.mxu0 0.0
    %6626 = vmatpush1.msra.mxu0 0.0
    %6627 = vmatprep.subr.mxu0 0.0
    %6628 = vmatpush1.msra.mxu0 0.0
    %6629 = vmatprep.subr.mxu0 0.0
    %6630 = vmatpush1.msra.mxu0 0.0
    %6631 = vmatprep.subr.mxu0 0.0
    %6632 = vmatpush1.msra.mxu0 0.0
    %6633 = vmatprep.subr.mxu0 0.0
    %6634 = vmatpush1.msra.mxu0 0.0
    %v6635 = vand.u32 %v5909, 4294901760
    %6636 = vmatprep.mubr.f32.mxu0 %v6635
    %v6637 = vand.u32 %v5904, 4294901760
    %6638 = vmatmul.mubr.f32.gmra.mrb[0].mxu0 %v6637
    %v6639 = vpop.f32.mrb[0].mxu0
    %v6640 = vadd.f32 %v6543, %v6639
    %v6641 = vpop.f32.mrb[0].mxu0
    %v6642 = vand.u32 %v5912, 4294901760
    %6643 = vmatprep.mubr.f32.mxu0 %v6642
    %v6644 = vand.u32 %v5906, 4294901760
    %6645 = vmatmul.mubr.f32.gmra.mrb[0].mxu0 %v6644
    %v6646 = vpop.f32.mrb[0].mxu0
    %v6647 = vadd.f32 %v6550, %v6646
    %v6648 = vpop.f32.mrb[0].mxu0
    %6649 = vdwg.mxu0
    %v6650 = vsel %vm4101, %v6640, -inf
    %6651 = vmax.xlane.f32.xlu0 %v6650
    %v6652 = vpop.xlane.xlu0 %6651
    %v6653 = vsel %vm4101, %v6647, -inf
    %6654 = vmax.xlane.f32.xlu0 %v6653
    %v6655 = vpop.xlane.xlu0 %6654
    %v6656 = vsub.f32 %v6640, %v6652
    %v6657 = vsub.f32 %v6647, %v6655
    %v6658 = vmul.f32 %v6656, 1.442695
    %v6659 = vpow.pop %v6658
    %v6660 = vmul.f32 %v6657, 1.442695
    %v6661 = vpow.pop %v6660
    %v6663 = vsel %vm4101, %v6659, 0
    %v6666 = vsel %vm4101, %v6661, 0
    %6668 = vmatprep.subr.mxu0 0.0
    %v6669 = vand.u32 %v3352, 4294901760
    %6670 = vmatpush1.msra.mxu0 %v6669
    %6671 = vmatprep.subr.mxu0 0.0
    %v6672 = vand.u32 %v4122, 4294901760
    %6673 = vmatpush1.msra.mxu0 %v6672
    %6674 = vmatprep.subr.mxu0 0.0
    %6675 = vmatpush1.msra.mxu0 0.0
    %6676 = vmatprep.subr.mxu0 0.0
    %6677 = vmatpush1.msra.mxu0 0.0
    %6678 = vmatprep.subr.mxu0 0.0
    %6679 = vmatpush1.msra.mxu0 0.0
    %6680 = vmatprep.subr.mxu0 0.0
    %6681 = vmatpush1.msra.mxu0 0.0
    %6682 = vmatprep.subr.mxu0 0.0
    %6683 = vmatpush1.msra.mxu0 0.0
    %6684 = vmatprep.subr.mxu0 0.0
    %6685 = vmatpush1.msra.mxu0 0.0
    %6686 = vmatprep.subr.mxu0 0.0
    %6687 = vmatpush1.msra.mxu0 0.0
    %6688 = vmatprep.subr.mxu0 0.0
    %6689 = vmatpush1.msra.mxu0 0.0
    %6690 = vmatprep.subr.mxu0 0.0
    %6691 = vmatpush1.msra.mxu0 0.0
    %6692 = vmatprep.subr.mxu0 0.0
    %6693 = vmatpush1.msra.mxu0 0.0
    %6694 = vmatprep.subr.mxu0 0.0
    %6695 = vmatpush1.msra.mxu0 0.0
    %6696 = vmatprep.subr.mxu0 0.0
    %6697 = vmatpush1.msra.mxu0 0.0
    %6698 = vmatprep.subr.mxu0 0.0
    %6699 = vmatpush1.msra.mxu0 0.0
    %6700 = vmatprep.subr.mxu0 0.0
    %6701 = vmatpush1.msra.mxu0 0.0
    %6702 = vmatprep.subr.mxu0 0.0
    %6703 = vmatpush1.msra.mxu0 0.0
    %6704 = vmatprep.subr.mxu0 0.0
    %6705 = vmatpush1.msra.mxu0 0.0
    %6706 = vmatprep.subr.mxu0 0.0
    %6707 = vmatpush1.msra.mxu0 0.0
    %6708 = vmatprep.subr.mxu0 0.0
    %6709 = vmatpush1.msra.mxu0 0.0
    %6710 = vmatprep.subr.mxu0 0.0
    %6711 = vmatpush1.msra.mxu0 0.0
    %6712 = vmatprep.subr.mxu0 0.0
    %6713 = vmatpush1.msra.mxu0 0.0
    %6714 = vmatprep.subr.mxu0 0.0
    %6715 = vmatpush1.msra.mxu0 0.0
    %6716 = vmatprep.subr.mxu0 0.0
    %6717 = vmatpush1.msra.mxu0 0.0
    %6718 = vmatprep.subr.mxu0 0.0
    %6719 = vmatpush1.msra.mxu0 0.0
    %6720 = vmatprep.subr.mxu0 0.0
    %6721 = vmatpush1.msra.mxu0 0.0
    %6722 = vmatprep.subr.mxu0 0.0
    %6723 = vmatpush1.msra.mxu0 0.0
    %6724 = vmatprep.subr.mxu0 0.0
    %6725 = vmatpush1.msra.mxu0 0.0
    %6726 = vmatprep.subr.mxu0 0.0
    %6727 = vmatpush1.msra.mxu0 0.0
    %6728 = vmatprep.subr.mxu0 0.0
    %6729 = vmatpush1.msra.mxu0 0.0
    %6730 = vmatprep.subr.mxu0 0.0
    %6731 = vmatpush1.msra.mxu0 0.0
    %6732 = vmatprep.subr.mxu0 0.0
    %6733 = vmatpush1.msra.mxu0 0.0
    %6734 = vmatprep.mubr.f32.mxu0 0.0
    %v6735 = vand.u32 %v6663, 4294901760
    %v6736 = vsub.f32 %v6663, %v6735
    %v6737 = vand.u32 %v6736, 4294901760
    %v6738 = vsub.f32 %v6736, %v6737
    %v6739 = vand.u32 %v6738, 4294901760
    %6740 = vmatmul.mubr.f32.gmra.mrb[0].mxu0 %v6739
    %v6741 = vpop.f32.mrb[0].mxu0
    %v6742 = vadd.f32 0.0, %v6741
    %v6743 = vpop.f32.mrb[0].mxu0
    %6744 = vmatprep.mubr.f32.mxu0 0.0
    %v6745 = vand.u32 %v6666, 4294901760
    %v6746 = vsub.f32 %v6666, %v6745
    %v6747 = vand.u32 %v6746, 4294901760
    %v6748 = vsub.f32 %v6746, %v6747
    %v6749 = vand.u32 %v6748, 4294901760
    %6750 = vmatmul.mubr.f32.gmra.mrb[0].mxu0 %v6749
    %v6751 = vpop.f32.mrb[0].mxu0
    %v6752 = vadd.f32 0.0, %v6751
    %v6753 = vpop.f32.mrb[0].mxu0
    %6754 = vdwg.mxu0
    %6755 = vmatprep.subr.mxu0 0.0
    %v6756 = vand.u32 %v3352, 4294901760
    %v6757 = vsub.f32 %v3352, %v6756
    %v6758 = vand.u32 %v6757, 4294901760
    %v6759 = vsub.f32 %v6757, %v6758
    %v6760 = vand.u32 %v6759, 4294901760
    %6761 = vmatpush1.msra.mxu0 %v6760
    %6762 = vmatprep.subr.mxu0 0.0
    %v6763 = vand.u32 %v4122, 4294901760
    %v6764 = vsub.f32 %v4122, %v6763
    %v6765 = vand.u32 %v6764, 4294901760
    %v6766 = vsub.f32 %v6764, %v6765
    %v6767 = vand.u32 %v6766, 4294901760
    %6768 = vmatpush1.msra.mxu0 %v6767
    %6769 = vmatprep.subr.mxu0 0.0
    %6770 = vmatpush1.msra.mxu0 0.0
    %6771 = vmatprep.subr.mxu0 0.0
    %6772 = vmatpush1.msra.mxu0 0.0
    %6773 = vmatprep.subr.mxu0 0.0
    %6774 = vmatpush1.msra.mxu0 0.0
    %6775 = vmatprep.subr.mxu0 0.0
    %6776 = vmatpush1.msra.mxu0 0.0
    %6777 = vmatprep.subr.mxu0 0.0
    %6778 = vmatpush1.msra.mxu0 0.0
    %6779 = vmatprep.subr.mxu0 0.0
    %6780 = vmatpush1.msra.mxu0 0.0
    %6781 = vmatprep.subr.mxu0 0.0
    %6782 = vmatpush1.msra.mxu0 0.0
    %6783 = vmatprep.subr.mxu0 0.0
    %6784 = vmatpush1.msra.mxu0 0.0
    %6785 = vmatprep.subr.mxu0 0.0
    %6786 = vmatpush1.msra.mxu0 0.0
    %6787 = vmatprep.subr.mxu0 0.0
    %6788 = vmatpush1.msra.mxu0 0.0
    %6789 = vmatprep.subr.mxu0 0.0
    %6790 = vmatpush1.msra.mxu0 0.0
    %6791 = vmatprep.subr.mxu0 0.0
    %6792 = vmatpush1.msra.mxu0 0.0
    %6793 = vmatprep.subr.mxu0 0.0
    %6794 = vmatpush1.msra.mxu0 0.0
    %6795 = vmatprep.subr.mxu0 0.0
    %6796 = vmatpush1.msra.mxu0 0.0
    %6797 = vmatprep.subr.mxu0 0.0
    %6798 = vmatpush1.msra.mxu0 0.0
    %6799 = vmatprep.subr.mxu0 0.0
    %6800 = vmatpush1.msra.mxu0 0.0
    %6801 = vmatprep.subr.mxu0 0.0
    %6802 = vmatpush1.msra.mxu0 0.0
    %6803 = vmatprep.subr.mxu0 0.0
    %6804 = vmatpush1.msra.mxu0 0.0
    %6805 = vmatprep.subr.mxu0 0.0
    %6806 = vmatpush1.msra.mxu0 0.0
    %6807 = vmatprep.subr.mxu0 0.0
    %6808 = vmatpush1.msra.mxu0 0.0
    %6809 = vmatprep.subr.mxu0 0.0
    %6810 = vmatpush1.msra.mxu0 0.0
    %6811 = vmatprep.subr.mxu0 0.0
    %6812 = vmatpush1.msra.mxu0 0.0
    %6813 = vmatprep.subr.mxu0 0.0
    %6814 = vmatpush1.msra.mxu0 0.0
    %6815 = vmatprep.subr.mxu0 0.0
    %6816 = vmatpush1.msra.mxu0 0.0
    %6817 = vmatprep.subr.mxu0 0.0
    %6818 = vmatpush1.msra.mxu0 0.0
    %6819 = vmatprep.subr.mxu0 0.0
    %6820 = vmatpush1.msra.mxu0 0.0
    %6821 = vmatprep.subr.mxu0 0.0
    %6822 = vmatpush1.msra.mxu0 0.0
    %6823 = vmatprep.subr.mxu0 0.0
    %6824 = vmatpush1.msra.mxu0 0.0
    %6825 = vmatprep.subr.mxu0 0.0
    %6826 = vmatpush1.msra.mxu0 0.0
    %6827 = vmatprep.subr.mxu0 0.0
    %6828 = vmatpush1.msra.mxu0 0.0
    %6829 = vmatprep.mubr.f32.mxu0 0.0
    %v6830 = vand.u32 %v6663, 4294901760
    %6831 = vmatmul.mubr.f32.gmra.mrb[0].mxu0 %v6830
    %v6832 = vpop.f32.mrb[0].mxu0
    %v6833 = vadd.f32 %v6742, %v6832
    %v6834 = vpop.f32.mrb[0].mxu0
    %6835 = vmatprep.mubr.f32.mxu0 0.0
    %v6836 = vand.u32 %v6666, 4294901760
    %6837 = vmatmul.mubr.f32.gmra.mrb[0].mxu0 %v6836
    %v6838 = vpop.f32.mrb[0].mxu0
    %v6839 = vadd.f32 %v6752, %v6838
    %v6840 = vpop.f32.mrb[0].mxu0
    %6841 = vdwg.mxu0
    %6842 = vmatprep.subr.mxu0 0.0
    %v6843 = vand.u32 %v3352, 4294901760
    %v6844 = vsub.f32 %v3352, %v6843
    %6845 = vmatpush1.msra.mxu0 %v6844
    %6846 = vmatprep.subr.mxu0 0.0
    %v6847 = vand.u32 %v4122, 4294901760
    %v6848 = vsub.f32 %v4122, %v6847
    %6849 = vmatpush1.msra.mxu0 %v6848
    %6850 = vmatprep.subr.mxu0 0.0
    %6851 = vmatpush1.msra.mxu0 0.0
    %6852 = vmatprep.subr.mxu0 0.0
    %6853 = vmatpush1.msra.mxu0 0.0
    %6854 = vmatprep.subr.mxu0 0.0
    %6855 = vmatpush1.msra.mxu0 0.0
    %6856 = vmatprep.subr.mxu0 0.0
    %6857 = vmatpush1.msra.mxu0 0.0
    %6858 = vmatprep.subr.mxu0 0.0
    %6859 = vmatpush1.msra.mxu0 0.0
    %6860 = vmatprep.subr.mxu0 0.0
    %6861 = vmatpush1.msra.mxu0 0.0
    %6862 = vmatprep.subr.mxu0 0.0
    %6863 = vmatpush1.msra.mxu0 0.0
    %6864 = vmatprep.subr.mxu0 0.0
    %6865 = vmatpush1.msra.mxu0 0.0
    %6866 = vmatprep.subr.mxu0 0.0
    %6867 = vmatpush1.msra.mxu0 0.0
    %6868 = vmatprep.subr.mxu0 0.0
    %6869 = vmatpush1.msra.mxu0 0.0
    %6870 = vmatprep.subr.mxu0 0.0
    %6871 = vmatpush1.msra.mxu0 0.0
    %6872 = vmatprep.subr.mxu0 0.0
    %6873 = vmatpush1.msra.mxu0 0.0
    %6874 = vmatprep.subr.mxu0 0.0
    %6875 = vmatpush1.msra.mxu0 0.0
    %6876 = vmatprep.subr.mxu0 0.0
    %6877 = vmatpush1.msra.mxu0 0.0
    %6878 = vmatprep.subr.mxu0 0.0
    %6879 = vmatpush1.msra.mxu0 0.0
    %6880 = vmatprep.subr.mxu0 0.0
    %6881 = vmatpush1.msra.mxu0 0.0
    %6882 = vmatprep.subr.mxu0 0.0
    %6883 = vmatpush1.msra.mxu0 0.0
    %6884 = vmatprep.subr.mxu0 0.0
    %6885 = vmatpush1.msra.mxu0 0.0
    %6886 = vmatprep.subr.mxu0 0.0
    %6887 = vmatpush1.msra.mxu0 0.0
    %6888 = vmatprep.subr.mxu0 0.0
    %6889 = vmatpush1.msra.mxu0 0.0
    %6890 = vmatprep.subr.mxu0 0.0
    %6891 = vmatpush1.msra.mxu0 0.0
    %6892 = vmatprep.subr.mxu0 0.0
    %6893 = vmatpush1.msra.mxu0 0.0
    %6894 = vmatprep.subr.mxu0 0.0
    %6895 = vmatpush1.msra.mxu0 0.0
    %6896 = vmatprep.subr.mxu0 0.0
    %6897 = vmatpush1.msra.mxu0 0.0
    %6898 = vmatprep.subr.mxu0 0.0
    %6899 = vmatpush1.msra.mxu0 0.0
    %6900 = vmatprep.subr.mxu0 0.0
    %6901 = vmatpush1.msra.mxu0 0.0
    %6902 = vmatprep.subr.mxu0 0.0
    %6903 = vmatpush1.msra.mxu0 0.0
    %6904 = vmatprep.subr.mxu0 0.0
    %6905 = vmatpush1.msra.mxu0 0.0
    %6906 = vmatprep.subr.mxu0 0.0
    %6907 = vmatpush1.msra.mxu0 0.0
    %6908 = vmatprep.subr.mxu0 0.0
    %6909 = vmatpush1.msra.mxu0 0.0
    %6910 = vmatprep.mubr.f32.mxu0 0.0
    %v6911 = vand.u32 %v6663, 4294901760
    %v6912 = vsub.f32 %v6663, %v6911
    %6913 = vmatmul.mubr.f32.gmra.mrb[0].mxu0 %v6912
    %v6914 = vpop.f32.mrb[0].mxu0
    %v6915 = vadd.f32 %v6833, %v6914
    %v6916 = vpop.f32.mrb[0].mxu0
    %6917 = vmatprep.mubr.f32.mxu0 0.0
    %v6918 = vand.u32 %v6666, 4294901760
    %v6919 = vsub.f32 %v6666, %v6918
    %6920 = vmatmul.mubr.f32.gmra.mrb[0].mxu0 %v6919
    %v6921 = vpop.f32.mrb[0].mxu0
    %v6922 = vadd.f32 %v6839, %v6921
    %v6923 = vpop.f32.mrb[0].mxu0
    %6924 = vdwg.mxu0
    %6925 = vmatprep.subr.mxu0 0.0
    %v6926 = vand.u32 %v3352, 4294901760
    %6927 = vmatpush1.msra.mxu0 %v6926
    %6928 = vmatprep.subr.mxu0 0.0
    %v6929 = vand.u32 %v4122, 4294901760
    %6930 = vmatpush1.msra.mxu0 %v6929
    %6931 = vmatprep.subr.mxu0 0.0
    %6932 = vmatpush1.msra.mxu0 0.0
    %6933 = vmatprep.subr.mxu0 0.0
    %6934 = vmatpush1.msra.mxu0 0.0
    %6935 = vmatprep.subr.mxu0 0.0
    %6936 = vmatpush1.msra.mxu0 0.0
    %6937 = vmatprep.subr.mxu0 0.0
    %6938 = vmatpush1.msra.mxu0 0.0
    %6939 = vmatprep.subr.mxu0 0.0
    %6940 = vmatpush1.msra.mxu0 0.0
    %6941 = vmatprep.subr.mxu0 0.0
    %6942 = vmatpush1.msra.mxu0 0.0
    %6943 = vmatprep.subr.mxu0 0.0
    %6944 = vmatpush1.msra.mxu0 0.0
    %6945 = vmatprep.subr.mxu0 0.0
    %6946 = vmatpush1.msra.mxu0 0.0
    %6947 = vmatprep.subr.mxu0 0.0
    %6948 = vmatpush1.msra.mxu0 0.0
    %6949 = vmatprep.subr.mxu0 0.0
    %6950 = vmatpush1.msra.mxu0 0.0
    %6951 = vmatprep.subr.mxu0 0.0
    %6952 = vmatpush1.msra.mxu0 0.0
    %6953 = vmatprep.subr.mxu0 0.0
    %6954 = vmatpush1.msra.mxu0 0.0
    %6955 = vmatprep.subr.mxu0 0.0
    %6956 = vmatpush1.msra.mxu0 0.0
    %6957 = vmatprep.subr.mxu0 0.0
    %6958 = vmatpush1.msra.mxu0 0.0
    %6959 = vmatprep.subr.mxu0 0.0
    %6960 = vmatpush1.msra.mxu0 0.0
    %6961 = vmatprep.subr.mxu0 0.0
    %6962 = vmatpush1.msra.mxu0 0.0
    %6963 = vmatprep.subr.mxu0 0.0
    %6964 = vmatpush1.msra.mxu0 0.0
    %6965 = vmatprep.subr.mxu0 0.0
    %6966 = vmatpush1.msra.mxu0 0.0
    %6967 = vmatprep.subr.mxu0 0.0
    %6968 = vmatpush1.msra.mxu0 0.0
    %6969 = vmatprep.subr.mxu0 0.0
    %6970 = vmatpush1.msra.mxu0 0.0
    %6971 = vmatprep.subr.mxu0 0.0
    %6972 = vmatpush1.msra.mxu0 0.0
    %6973 = vmatprep.subr.mxu0 0.0
    %6974 = vmatpush1.msra.mxu0 0.0
    %6975 = vmatprep.subr.mxu0 0.0
    %6976 = vmatpush1.msra.mxu0 0.0
    %6977 = vmatprep.subr.mxu0 0.0
    %6978 = vmatpush1.msra.mxu0 0.0
    %6979 = vmatprep.subr.mxu0 0.0
    %6980 = vmatpush1.msra.mxu0 0.0
    %6981 = vmatprep.subr.mxu0 0.0
    %6982 = vmatpush1.msra.mxu0 0.0
    %6983 = vmatprep.subr.mxu0 0.0
    %6984 = vmatpush1.msra.mxu0 0.0
    %6985 = vmatprep.subr.mxu0 0.0
    %6986 = vmatpush1.msra.mxu0 0.0
    %6987 = vmatprep.subr.mxu0 0.0
    %6988 = vmatpush1.msra.mxu0 0.0
    %6989 = vmatprep.subr.mxu0 0.0
    %6990 = vmatpush1.msra.mxu0 0.0
    %6991 = vmatprep.mubr.f32.mxu0 0.0
    %v6992 = vand.u32 %v6663, 4294901760
    %v6993 = vsub.f32 %v6663, %v6992
    %v6994 = vand.u32 %v6993, 4294901760
    %6995 = vmatmul.mubr.f32.gmra.mrb[0].mxu0 %v6994
    %v6996 = vpop.f32.mrb[0].mxu0
    %v6997 = vadd.f32 %v6915, %v6996
    %v6998 = vpop.f32.mrb[0].mxu0
    %6999 = vmatprep.mubr.f32.mxu0 0.0
    %v7000 = vand.u32 %v6666, 4294901760
    %v7001 = vsub.f32 %v6666, %v7000
    %v7002 = vand.u32 %v7001, 4294901760
    %7003 = vmatmul.mubr.f32.gmra.mrb[0].mxu0 %v7002
    %v7004 = vpop.f32.mrb[0].mxu0
    %v7005 = vadd.f32 %v6922, %v7004
    %v7006 = vpop.f32.mrb[0].mxu0
    %7007 = vdwg.mxu0
    %7008 = vmatprep.subr.mxu0 0.0
    %v7009 = vand.u32 %v3352, 4294901760
    %v7010 = vsub.f32 %v3352, %v7009
    %v7011 = vand.u32 %v7010, 4294901760
    %7012 = vmatpush1.msra.mxu0 %v7011
    %7013 = vmatprep.subr.mxu0 0.0
    %v7014 = vand.u32 %v4122, 4294901760
    %v7015 = vsub.f32 %v4122, %v7014
    %v7016 = vand.u32 %v7015, 4294901760
    %7017 = vmatpush1.msra.mxu0 %v7016
    %7018 = vmatprep.subr.mxu0 0.0
    %7019 = vmatpush1.msra.mxu0 0.0
    %7020 = vmatprep.subr.mxu0 0.0
    %7021 = vmatpush1.msra.mxu0 0.0
    %7022 = vmatprep.subr.mxu0 0.0
    %7023 = vmatpush1.msra.mxu0 0.0
    %7024 = vmatprep.subr.mxu0 0.0
    %7025 = vmatpush1.msra.mxu0 0.0
    %7026 = vmatprep.subr.mxu0 0.0
    %7027 = vmatpush1.msra.mxu0 0.0
    %7028 = vmatprep.subr.mxu0 0.0
    %7029 = vmatpush1.msra.mxu0 0.0
    %7030 = vmatprep.subr.mxu0 0.0
    %7031 = vmatpush1.msra.mxu0 0.0
    %7032 = vmatprep.subr.mxu0 0.0
    %7033 = vmatpush1.msra.mxu0 0.0
    %7034 = vmatprep.subr.mxu0 0.0
    %7035 = vmatpush1.msra.mxu0 0.0
    %7036 = vmatprep.subr.mxu0 0.0
    %7037 = vmatpush1.msra.mxu0 0.0
    %7038 = vmatprep.subr.mxu0 0.0
    %7039 = vmatpush1.msra.mxu0 0.0
    %7040 = vmatprep.subr.mxu0 0.0
    %7041 = vmatpush1.msra.mxu0 0.0
    %7042 = vmatprep.subr.mxu0 0.0
    %7043 = vmatpush1.msra.mxu0 0.0
    %7044 = vmatprep.subr.mxu0 0.0
    %7045 = vmatpush1.msra.mxu0 0.0
    %7046 = vmatprep.subr.mxu0 0.0
    %7047 = vmatpush1.msra.mxu0 0.0
    %7048 = vmatprep.subr.mxu0 0.0
    %7049 = vmatpush1.msra.mxu0 0.0
    %7050 = vmatprep.subr.mxu0 0.0
    %7051 = vmatpush1.msra.mxu0 0.0
    %7052 = vmatprep.subr.mxu0 0.0
    %7053 = vmatpush1.msra.mxu0 0.0
    %7054 = vmatprep.subr.mxu0 0.0
    %7055 = vmatpush1.msra.mxu0 0.0
    %7056 = vmatprep.subr.mxu0 0.0
    %7057 = vmatpush1.msra.mxu0 0.0
    %7058 = vmatprep.subr.mxu0 0.0
    %7059 = vmatpush1.msra.mxu0 0.0
    %7060 = vmatprep.subr.mxu0 0.0
    %7061 = vmatpush1.msra.mxu0 0.0
    %7062 = vmatprep.subr.mxu0 0.0
    %7063 = vmatpush1.msra.mxu0 0.0
    %7064 = vmatprep.subr.mxu0 0.0
    %7065 = vmatpush1.msra.mxu0 0.0
    %7066 = vmatprep.subr.mxu0 0.0
    %7067 = vmatpush1.msra.mxu0 0.0
    %7068 = vmatprep.subr.mxu0 0.0
    %7069 = vmatpush1.msra.mxu0 0.0
    %7070 = vmatprep.subr.mxu0 0.0
    %7071 = vmatpush1.msra.mxu0 0.0
    %7072 = vmatprep.subr.mxu0 0.0
    %7073 = vmatpush1.msra.mxu0 0.0
    %7074 = vmatprep.subr.mxu0 0.0
    %7075 = vmatpush1.msra.mxu0 0.0
    %7076 = vmatprep.subr.mxu0 0.0
    %7077 = vmatpush1.msra.mxu0 0.0
    %7078 = vmatprep.mubr.f32.mxu0 0.0
    %v7079 = vand.u32 %v6663, 4294901760
    %7080 = vmatmul.mubr.f32.gmra.mrb[0].mxu0 %v7079
    %v7081 = vpop.f32.mrb[0].mxu0
    %v7082 = vadd.f32 %v6997, %v7081
    %v7083 = vpop.f32.mrb[0].mxu0
    %7084 = vmatprep.mubr.f32.mxu0 0.0
    %v7085 = vand.u32 %v6666, 4294901760
    %7086 = vmatmul.mubr.f32.gmra.mrb[0].mxu0 %v7085
    %v7087 = vpop.f32.mrb[0].mxu0
    %v7088 = vadd.f32 %v7005, %v7087
    %v7089 = vpop.f32.mrb[0].mxu0
    %7090 = vdwg.mxu0
    %7091 = vmatprep.subr.mxu0 0.0
    %v7092 = vand.u32 %v3352, 4294901760
    %7093 = vmatpush1.msra.mxu0 %v7092
    %7094 = vmatprep.subr.mxu0 0.0
    %v7095 = vand.u32 %v4122, 4294901760
    %7096 = vmatpush1.msra.mxu0 %v7095
    %7097 = vmatprep.subr.mxu0 0.0
    %7098 = vmatpush1.msra.mxu0 0.0
    %7099 = vmatprep.subr.mxu0 0.0
    %7100 = vmatpush1.msra.mxu0 0.0
    %7101 = vmatprep.subr.mxu0 0.0
    %7102 = vmatpush1.msra.mxu0 0.0
    %7103 = vmatprep.subr.mxu0 0.0
    %7104 = vmatpush1.msra.mxu0 0.0
    %7105 = vmatprep.subr.mxu0 0.0
    %7106 = vmatpush1.msra.mxu0 0.0
    %7107 = vmatprep.subr.mxu0 0.0
    %7108 = vmatpush1.msra.mxu0 0.0
    %7109 = vmatprep.subr.mxu0 0.0
    %7110 = vmatpush1.msra.mxu0 0.0
    %7111 = vmatprep.subr.mxu0 0.0
    %7112 = vmatpush1.msra.mxu0 0.0
    %7113 = vmatprep.subr.mxu0 0.0
    %7114 = vmatpush1.msra.mxu0 0.0
    %7115 = vmatprep.subr.mxu0 0.0
    %7116 = vmatpush1.msra.mxu0 0.0
    %7117 = vmatprep.subr.mxu0 0.0
    %7118 = vmatpush1.msra.mxu0 0.0
    %7119 = vmatprep.subr.mxu0 0.0
    %7120 = vmatpush1.msra.mxu0 0.0
    %7121 = vmatprep.subr.mxu0 0.0
    %7122 = vmatpush1.msra.mxu0 0.0
    %7123 = vmatprep.subr.mxu0 0.0
    %7124 = vmatpush1.msra.mxu0 0.0
    %7125 = vmatprep.subr.mxu0 0.0
    %7126 = vmatpush1.msra.mxu0 0.0
    %7127 = vmatprep.subr.mxu0 0.0
    %7128 = vmatpush1.msra.mxu0 0.0
    %7129 = vmatprep.subr.mxu0 0.0
    %7130 = vmatpush1.msra.mxu0 0.0
    %7131 = vmatprep.subr.mxu0 0.0
    %7132 = vmatpush1.msra.mxu0 0.0
    %7133 = vmatprep.subr.mxu0 0.0
    %7134 = vmatpush1.msra.mxu0 0.0
    %7135 = vmatprep.subr.mxu0 0.0
    %7136 = vmatpush1.msra.mxu0 0.0
    %7137 = vmatprep.subr.mxu0 0.0
    %7138 = vmatpush1.msra.mxu0 0.0
    %7139 = vmatprep.subr.mxu0 0.0
    %7140 = vmatpush1.msra.mxu0 0.0
    %7141 = vmatprep.subr.mxu0 0.0
    %7142 = vmatpush1.msra.mxu0 0.0
    %7143 = vmatprep.subr.mxu0 0.0
    %7144 = vmatpush1.msra.mxu0 0.0
    %7145 = vmatprep.subr.mxu0 0.0
    %7146 = vmatpush1.msra.mxu0 0.0
    %7147 = vmatprep.subr.mxu0 0.0
    %7148 = vmatpush1.msra.mxu0 0.0
    %7149 = vmatprep.subr.mxu0 0.0
    %7150 = vmatpush1.msra.mxu0 0.0
    %7151 = vmatprep.subr.mxu0 0.0
    %7152 = vmatpush1.msra.mxu0 0.0
    %7153 = vmatprep.subr.mxu0 0.0
    %7154 = vmatpush1.msra.mxu0 0.0
    %7155 = vmatprep.subr.mxu0 0.0
    %7156 = vmatpush1.msra.mxu0 0.0
    %7157 = vmatprep.mubr.f32.mxu0 0.0
    %v7158 = vand.u32 %v6663, 4294901760
    %7159 = vmatmul.mubr.f32.gmra.mrb[0].mxu0 %v7158
    %v7160 = vpop.f32.mrb[0].mxu0
    %v7161 = vadd.f32 %v7082, %v7160
    %v7162 = vpop.f32.mrb[0].mxu0
    %7163 = vmatprep.mubr.f32.mxu0 0.0
    %v7164 = vand.u32 %v6666, 4294901760
    %7165 = vmatmul.mubr.f32.gmra.mrb[0].mxu0 %v7164
    %v7166 = vpop.f32.mrb[0].mxu0
    %v7167 = vadd.f32 %v7088, %v7166
    %v7168 = vpop.f32.mrb[0].mxu0
    %7169 = vdwg.mxu0
    %v7170 = vrcp.pop %v7161
    %v7171 = vrcp.pop %v7167
    %v7172 = vmul.f32 %v6659, %v7170
    %v7173 = vmul.f32 %v6661, %v7171
    %v7174 = vmul.f32 %v7172, 0.25
    %v7175 = vmul.f32 %v7173, 0.25
    %v7176 = vld [vmem:[%s8] sm:$0xff]
    %v7177 = vld [vmem:[%s8 + $0x8] sm:$0x1]
    %v7178 = vld [vmem:[%s9] sm:$0x1]
    %v7179 = vld [vmem:[%s10] sm:$0xff]
    %v7180 = vld [vmem:[%s10 + $0x8] sm:$0x1]
    %v7181 = vld [vmem:[%s11] sm:$0x1]
    %v7182 = vld [vmem:[%s12] sm:$0xff]
    %v7183 = vld [vmem:[%s12 + $0x8] sm:$0xff]
    %v7184 = vld [vmem:[%s12 + $0x10] sm:$0xff]
    %v7185 = vld [vmem:[%s12 + $0x18] sm:$0x7]
    %v7187 = vlaneseq
    %v7188 = vshrl.u32 %v7187, 7
    %v7189 = vsub.s32 0, %v7188
    %v7190 = vrot.slane %v7178, %v7189
    %v7193 = vsel %vm4101, %v4630, 0
    %v7196 = vsel %vm4101, %v4631, 0
    %v7199 = vsel %vm4120, %v7177, 0
    %7201 = vmatprep.subr.mxu0 0.0
    %v7202 = vand.u32 %v7176, 4294901760
    %7203 = vmatpush1.msra.mxu0 %v7202
    %7204 = vmatprep.subr.mxu0 0.0
    %v7205 = vand.u32 %v7199, 4294901760
    %7206 = vmatpush1.msra.mxu0 %v7205
    %7207 = vmatprep.subr.mxu0 0.0
    %7208 = vmatpush1.msra.mxu0 0.0
    %7209 = vmatprep.subr.mxu0 0.0
    %7210 = vmatpush1.msra.mxu0 0.0
    %7211 = vmatprep.subr.mxu0 0.0
    %7212 = vmatpush1.msra.mxu0 0.0
    %7213 = vmatprep.subr.mxu0 0.0
    %7214 = vmatpush1.msra.mxu0 0.0
    %7215 = vmatprep.subr.mxu0 0.0
    %7216 = vmatpush1.msra.mxu0 0.0
    %7217 = vmatprep.subr.mxu0 0.0
    %7218 = vmatpush1.msra.mxu0 0.0
    %7219 = vmatprep.subr.mxu0 0.0
    %7220 = vmatpush1.msra.mxu0 0.0
    %7221 = vmatprep.subr.mxu0 0.0
    %7222 = vmatpush1.msra.mxu0 0.0
    %7223 = vmatprep.subr.mxu0 0.0
    %7224 = vmatpush1.msra.mxu0 0.0
    %7225 = vmatprep.subr.mxu0 0.0
    %7226 = vmatpush1.msra.mxu0 0.0
    %7227 = vmatprep.subr.mxu0 0.0
    %7228 = vmatpush1.msra.mxu0 0.0
    %7229 = vmatprep.subr.mxu0 0.0
    %7230 = vmatpush1.msra.mxu0 0.0
    %7231 = vmatprep.subr.mxu0 0.0
    %7232 = vmatpush1.msra.mxu0 0.0
    %7233 = vmatprep.subr.mxu0 0.0
    %7234 = vmatpush1.msra.mxu0 0.0
    %7235 = vmatprep.subr.mxu0 0.0
    %7236 = vmatpush1.msra.mxu0 0.0
    %7237 = vmatprep.subr.mxu0 0.0
    %7238 = vmatpush1.msra.mxu0 0.0
    %7239 = vmatprep.subr.mxu0 0.0
    %7240 = vmatpush1.msra.mxu0 0.0
    %7241 = vmatprep.subr.mxu0 0.0
    %7242 = vmatpush1.msra.mxu0 0.0
    %7243 = vmatprep.subr.mxu0 0.0
    %7244 = vmatpush1.msra.mxu0 0.0
    %7245 = vmatprep.subr.mxu0 0.0
    %7246 = vmatpush1.msra.mxu0 0.0
    %7247 = vmatprep.subr.mxu0 0.0
    %7248 = vmatpush1.msra.mxu0 0.0
    %7249 = vmatprep.subr.mxu0 0.0
    %7250 = vmatpush1.msra.mxu0 0.0
    %7251 = vmatprep.subr.mxu0 0.0
    %7252 = vmatpush1.msra.mxu0 0.0
    %7253 = vmatprep.subr.mxu0 0.0
    %7254 = vmatpush1.msra.mxu0 0.0
    %7255 = vmatprep.subr.mxu0 0.0
    %7256 = vmatpush1.msra.mxu0 0.0
    %7257 = vmatprep.subr.mxu0 0.0
    %7258 = vmatpush1.msra.mxu0 0.0
    %7259 = vmatprep.subr.mxu0 0.0
    %7260 = vmatpush1.msra.mxu0 0.0
    %7261 = vmatprep.subr.mxu0 0.0
    %7262 = vmatpush1.msra.mxu0 0.0
    %7263 = vmatprep.subr.mxu0 0.0
    %7264 = vmatpush1.msra.mxu0 0.0
    %7265 = vmatprep.subr.mxu0 0.0
    %7266 = vmatpush1.msra.mxu0 0.0
    %7267 = vmatprep.mubr.f32.mxu0 0.0
    %v7268 = vand.u32 %v7193, 4294901760
    %v7269 = vsub.f32 %v7193, %v7268
    %v7270 = vand.u32 %v7269, 4294901760
    %v7271 = vsub.f32 %v7269, %v7270
    %v7272 = vand.u32 %v7271, 4294901760
    %7273 = vmatmul.mubr.f32.gmra.mrb[0].mxu0 %v7272
    %v7274 = vpop.f32.mrb[0].mxu0
    %v7275 = vadd.f32 %v7190, %v7274
    %v7276 = vpop.f32.mrb[0].mxu0
    %7277 = vmatprep.mubr.f32.mxu0 0.0
    %v7278 = vand.u32 %v7196, 4294901760
    %v7279 = vsub.f32 %v7196, %v7278
    %v7280 = vand.u32 %v7279, 4294901760
    %v7281 = vsub.f32 %v7279, %v7280
    %v7282 = vand.u32 %v7281, 4294901760
    %7283 = vmatmul.mubr.f32.gmra.mrb[0].mxu0 %v7282
    %v7284 = vpop.f32.mrb[0].mxu0
    %v7285 = vadd.f32 %v7190, %v7284
    %v7286 = vpop.f32.mrb[0].mxu0
    %7287 = vdwg.mxu0
    %7288 = vmatprep.subr.mxu0 0.0
    %v7289 = vand.u32 %v7176, 4294901760
    %v7290 = vsub.f32 %v7176, %v7289
    %v7291 = vand.u32 %v7290, 4294901760
    %v7292 = vsub.f32 %v7290, %v7291
    %v7293 = vand.u32 %v7292, 4294901760
    %7294 = vmatpush1.msra.mxu0 %v7293
    %7295 = vmatprep.subr.mxu0 0.0
    %v7296 = vand.u32 %v7199, 4294901760
    %v7297 = vsub.f32 %v7199, %v7296
    %v7298 = vand.u32 %v7297, 4294901760
    %v7299 = vsub.f32 %v7297, %v7298
    %v7300 = vand.u32 %v7299, 4294901760
    %7301 = vmatpush1.msra.mxu0 %v7300
    %7302 = vmatprep.subr.mxu0 0.0
    %7303 = vmatpush1.msra.mxu0 0.0
    %7304 = vmatprep.subr.mxu0 0.0
    %7305 = vmatpush1.msra.mxu0 0.0
    %7306 = vmatprep.subr.mxu0 0.0
    %7307 = vmatpush1.msra.mxu0 0.0
    %7308 = vmatprep.subr.mxu0 0.0
    %7309 = vmatpush1.msra.mxu0 0.0
    %7310 = vmatprep.subr.mxu0 0.0
    %7311 = vmatpush1.msra.mxu0 0.0
    %7312 = vmatprep.subr.mxu0 0.0
    %7313 = vmatpush1.msra.mxu0 0.0
    %7314 = vmatprep.subr.mxu0 0.0
    %7315 = vmatpush1.msra.mxu0 0.0
    %7316 = vmatprep.subr.mxu0 0.0
    %7317 = vmatpush1.msra.mxu0 0.0
    %7318 = vmatprep.subr.mxu0 0.0
    %7319 = vmatpush1.msra.mxu0 0.0
    %7320 = vmatprep.subr.mxu0 0.0
    %7321 = vmatpush1.msra.mxu0 0.0
    %7322 = vmatprep.subr.mxu0 0.0
    %7323 = vmatpush1.msra.mxu0 0.0
    %7324 = vmatprep.subr.mxu0 0.0
    %7325 = vmatpush1.msra.mxu0 0.0
    %7326 = vmatprep.subr.mxu0 0.0
    %7327 = vmatpush1.msra.mxu0 0.0
    %7328 = vmatprep.subr.mxu0 0.0
    %7329 = vmatpush1.msra.mxu0 0.0
    %7330 = vmatprep.subr.mxu0 0.0
    %7331 = vmatpush1.msra.mxu0 0.0
    %7332 = vmatprep.subr.mxu0 0.0
    %7333 = vmatpush1.msra.mxu0 0.0
    %7334 = vmatprep.subr.mxu0 0.0
    %7335 = vmatpush1.msra.mxu0 0.0
    %7336 = vmatprep.subr.mxu0 0.0
    %7337 = vmatpush1.msra.mxu0 0.0
    %7338 = vmatprep.subr.mxu0 0.0
    %7339 = vmatpush1.msra.mxu0 0.0
    %7340 = vmatprep.subr.mxu0 0.0
    %7341 = vmatpush1.msra.mxu0 0.0
    %7342 = vmatprep.subr.mxu0 0.0
    %7343 = vmatpush1.msra.mxu0 0.0
    %7344 = vmatprep.subr.mxu0 0.0
    %7345 = vmatpush1.msra.mxu0 0.0
    %7346 = vmatprep.subr.mxu0 0.0
    %7347 = vmatpush1.msra.mxu0 0.0
    %7348 = vmatprep.subr.mxu0 0.0
    %7349 = vmatpush1.msra.mxu0 0.0
    %7350 = vmatprep.subr.mxu0 0.0
    %7351 = vmatpush1.msra.mxu0 0.0
    %7352 = vmatprep.subr.mxu0 0.0
    %7353 = vmatpush1.msra.mxu0 0.0
    %7354 = vmatprep.subr.mxu0 0.0
    %7355 = vmatpush1.msra.mxu0 0.0
    %7356 = vmatprep.subr.mxu0 0.0
    %7357 = vmatpush1.msra.mxu0 0.0
    %7358 = vmatprep.subr.mxu0 0.0
    %7359 = vmatpush1.msra.mxu0 0.0
    %7360 = vmatprep.subr.mxu0 0.0
    %7361 = vmatpush1.msra.mxu0 0.0
    %7362 = vmatprep.mubr.f32.mxu0 0.0
    %v7363 = vand.u32 %v7193, 4294901760
    %7364 = vmatmul.mubr.f32.gmra.mrb[0].mxu0 %v7363
    %v7365 = vpop.f32.mrb[0].mxu0
    %v7366 = vadd.f32 %v7275, %v7365
    %v7367 = vpop.f32.mrb[0].mxu0
    %7368 = vmatprep.mubr.f32.mxu0 0.0
    %v7369 = vand.u32 %v7196, 4294901760
    %7370 = vmatmul.mubr.f32.gmra.mrb[0].mxu0 %v7369
    %v7371 = vpop.f32.mrb[0].mxu0
    %v7372 = vadd.f32 %v7285, %v7371
    %v7373 = vpop.f32.mrb[0].mxu0
    %7374 = vdwg.mxu0
    %7375 = vmatprep.subr.mxu0 0.0
    %v7376 = vand.u32 %v7176, 4294901760
    %v7377 = vsub.f32 %v7176, %v7376
    %7378 = vmatpush1.msra.mxu0 %v7377
    %7379 = vmatprep.subr.mxu0 0.0
    %v7380 = vand.u32 %v7199, 4294901760
    %v7381 = vsub.f32 %v7199, %v7380
    %7382 = vmatpush1.msra.mxu0 %v7381
    %7383 = vmatprep.subr.mxu0 0.0
    %7384 = vmatpush1.msra.mxu0 0.0
    %7385 = vmatprep.subr.mxu0 0.0
    %7386 = vmatpush1.msra.mxu0 0.0
    %7387 = vmatprep.subr.mxu0 0.0
    %7388 = vmatpush1.msra.mxu0 0.0
    %7389 = vmatprep.subr.mxu0 0.0
    %7390 = vmatpush1.msra.mxu0 0.0
    %7391 = vmatprep.subr.mxu0 0.0
    %7392 = vmatpush1.msra.mxu0 0.0
    %7393 = vmatprep.subr.mxu0 0.0
    %7394 = vmatpush1.msra.mxu0 0.0
    %7395 = vmatprep.subr.mxu0 0.0
    %7396 = vmatpush1.msra.mxu0 0.0
    %7397 = vmatprep.subr.mxu0 0.0
    %7398 = vmatpush1.msra.mxu0 0.0
    %7399 = vmatprep.subr.mxu0 0.0
    %7400 = vmatpush1.msra.mxu0 0.0
    %7401 = vmatprep.subr.mxu0 0.0
    %7402 = vmatpush1.msra.mxu0 0.0
    %7403 = vmatprep.subr.mxu0 0.0
    %7404 = vmatpush1.msra.mxu0 0.0
    %7405 = vmatprep.subr.mxu0 0.0
    %7406 = vmatpush1.msra.mxu0 0.0
    %7407 = vmatprep.subr.mxu0 0.0
    %7408 = vmatpush1.msra.mxu0 0.0
    %7409 = vmatprep.subr.mxu0 0.0
    %7410 = vmatpush1.msra.mxu0 0.0
    %7411 = vmatprep.subr.mxu0 0.0
    %7412 = vmatpush1.msra.mxu0 0.0
    %7413 = vmatprep.subr.mxu0 0.0
    %7414 = vmatpush1.msra.mxu0 0.0
    %7415 = vmatprep.subr.mxu0 0.0
    %7416 = vmatpush1.msra.mxu0 0.0
    %7417 = vmatprep.subr.mxu0 0.0
    %7418 = vmatpush1.msra.mxu0 0.0
    %7419 = vmatprep.subr.mxu0 0.0
    %7420 = vmatpush1.msra.mxu0 0.0
    %7421 = vmatprep.subr.mxu0 0.0
    %7422 = vmatpush1.msra.mxu0 0.0
    %7423 = vmatprep.subr.mxu0 0.0
    %7424 = vmatpush1.msra.mxu0 0.0
    %7425 = vmatprep.subr.mxu0 0.0
    %7426 = vmatpush1.msra.mxu0 0.0
    %7427 = vmatprep.subr.mxu0 0.0
    %7428 = vmatpush1.msra.mxu0 0.0
    %7429 = vmatprep.subr.mxu0 0.0
    %7430 = vmatpush1.msra.mxu0 0.0
    %7431 = vmatprep.subr.mxu0 0.0
    %7432 = vmatpush1.msra.mxu0 0.0
    %7433 = vmatprep.subr.mxu0 0.0
    %7434 = vmatpush1.msra.mxu0 0.0
    %7435 = vmatprep.subr.mxu0 0.0
    %7436 = vmatpush1.msra.mxu0 0.0
    %7437 = vmatprep.subr.mxu0 0.0
    %7438 = vmatpush1.msra.mxu0 0.0
    %7439 = vmatprep.subr.mxu0 0.0
    %7440 = vmatpush1.msra.mxu0 0.0
    %7441 = vmatprep.subr.mxu0 0.0
    %7442 = vmatpush1.msra.mxu0 0.0
    %7443 = vmatprep.mubr.f32.mxu0 0.0
    %v7444 = vand.u32 %v7193, 4294901760
    %v7445 = vsub.f32 %v7193, %v7444
    %7446 = vmatmul.mubr.f32.gmra.mrb[0].mxu0 %v7445
    %v7447 = vpop.f32.mrb[0].mxu0
    %v7448 = vadd.f32 %v7366, %v7447
    %v7449 = vpop.f32.mrb[0].mxu0
    %7450 = vmatprep.mubr.f32.mxu0 0.0
    %v7451 = vand.u32 %v7196, 4294901760
    %v7452 = vsub.f32 %v7196, %v7451
    %7453 = vmatmul.mubr.f32.gmra.mrb[0].mxu0 %v7452
    %v7454 = vpop.f32.mrb[0].mxu0
    %v7455 = vadd.f32 %v7372, %v7454
    %v7456 = vpop.f32.mrb[0].mxu0
    %7457 = vdwg.mxu0
    %7458 = vmatprep.subr.mxu0 0.0
    %v7459 = vand.u32 %v7176, 4294901760
    %7460 = vmatpush1.msra.mxu0 %v7459
    %7461 = vmatprep.subr.mxu0 0.0
    %v7462 = vand.u32 %v7199, 4294901760
    %7463 = vmatpush1.msra.mxu0 %v7462
    %7464 = vmatprep.subr.mxu0 0.0
    %7465 = vmatpush1.msra.mxu0 0.0
    %7466 = vmatprep.subr.mxu0 0.0
    %7467 = vmatpush1.msra.mxu0 0.0
    %7468 = vmatprep.subr.mxu0 0.0
    %7469 = vmatpush1.msra.mxu0 0.0
    %7470 = vmatprep.subr.mxu0 0.0
    %7471 = vmatpush1.msra.mxu0 0.0
    %7472 = vmatprep.subr.mxu0 0.0
    %7473 = vmatpush1.msra.mxu0 0.0
    %7474 = vmatprep.subr.mxu0 0.0
    %7475 = vmatpush1.msra.mxu0 0.0
    %7476 = vmatprep.subr.mxu0 0.0
    %7477 = vmatpush1.msra.mxu0 0.0
    %7478 = vmatprep.subr.mxu0 0.0
    %7479 = vmatpush1.msra.mxu0 0.0
    %7480 = vmatprep.subr.mxu0 0.0
    %7481 = vmatpush1.msra.mxu0 0.0
    %7482 = vmatprep.subr.mxu0 0.0
    %7483 = vmatpush1.msra.mxu0 0.0
    %7484 = vmatprep.subr.mxu0 0.0
    %7485 = vmatpush1.msra.mxu0 0.0
    %7486 = vmatprep.subr.mxu0 0.0
    %7487 = vmatpush1.msra.mxu0 0.0
    %7488 = vmatprep.subr.mxu0 0.0
    %7489 = vmatpush1.msra.mxu0 0.0
    %7490 = vmatprep.subr.mxu0 0.0
    %7491 = vmatpush1.msra.mxu0 0.0
    %7492 = vmatprep.subr.mxu0 0.0
    %7493 = vmatpush1.msra.mxu0 0.0
    %7494 = vmatprep.subr.mxu0 0.0
    %7495 = vmatpush1.msra.mxu0 0.0
    %7496 = vmatprep.subr.mxu0 0.0
    %7497 = vmatpush1.msra.mxu0 0.0
    %7498 = vmatprep.subr.mxu0 0.0
    %7499 = vmatpush1.msra.mxu0 0.0
    %7500 = vmatprep.subr.mxu0 0.0
    %7501 = vmatpush1.msra.mxu0 0.0
    %7502 = vmatprep.subr.mxu0 0.0
    %7503 = vmatpush1.msra.mxu0 0.0
    %7504 = vmatprep.subr.mxu0 0.0
    %7505 = vmatpush1.msra.mxu0 0.0
    %7506 = vmatprep.subr.mxu0 0.0
    %7507 = vmatpush1.msra.mxu0 0.0
    %7508 = vmatprep.subr.mxu0 0.0
    %7509 = vmatpush1.msra.mxu0 0.0
    %7510 = vmatprep.subr.mxu0 0.0
    %7511 = vmatpush1.msra.mxu0 0.0
    %7512 = vmatprep.subr.mxu0 0.0
    %7513 = vmatpush1.msra.mxu0 0.0
    %7514 = vmatprep.subr.mxu0 0.0
    %7515 = vmatpush1.msra.mxu0 0.0
    %7516 = vmatprep.subr.mxu0 0.0
    %7517 = vmatpush1.msra.mxu0 0.0
    %7518 = vmatprep.subr.mxu0 0.0
    %7519 = vmatpush1.msra.mxu0 0.0
    %7520 = vmatprep.subr.mxu0 0.0
    %7521 = vmatpush1.msra.mxu0 0.0
    %7522 = vmatprep.subr.mxu0 0.0
    %7523 = vmatpush1.msra.mxu0 0.0
    %7524 = vmatprep.mubr.f32.mxu0 0.0
    %v7525 = vand.u32 %v7193, 4294901760
    %v7526 = vsub.f32 %v7193, %v7525
    %v7527 = vand.u32 %v7526, 4294901760
    %7528 = vmatmul.mubr.f32.gmra.mrb[0].mxu0 %v7527
    %v7529 = vpop.f32.mrb[0].mxu0
    %v7530 = vadd.f32 %v7448, %v7529
    %v7531 = vpop.f32.mrb[0].mxu0
    %7532 = vmatprep.mubr.f32.mxu0 0.0
    %v7533 = vand.u32 %v7196, 4294901760
    %v7534 = vsub.f32 %v7196, %v7533
    %v7535 = vand.u32 %v7534, 4294901760
    %7536 = vmatmul.mubr.f32.gmra.mrb[0].mxu0 %v7535
    %v7537 = vpop.f32.mrb[0].mxu0
    %v7538 = vadd.f32 %v7455, %v7537
    %v7539 = vpop.f32.mrb[0].mxu0
    %7540 = vdwg.mxu0
    %7541 = vmatprep.subr.mxu0 0.0
    %v7542 = vand.u32 %v7176, 4294901760
    %v7543 = vsub.f32 %v7176, %v7542
    %v7544 = vand.u32 %v7543, 4294901760
    %7545 = vmatpush1.msra.mxu0 %v7544
    %7546 = vmatprep.subr.mxu0 0.0
    %v7547 = vand.u32 %v7199, 4294901760
    %v7548 = vsub.f32 %v7199, %v7547
    %v7549 = vand.u32 %v7548, 4294901760
    %7550 = vmatpush1.msra.mxu0 %v7549
    %7551 = vmatprep.subr.mxu0 0.0
    %7552 = vmatpush1.msra.mxu0 0.0
    %7553 = vmatprep.subr.mxu0 0.0
    %7554 = vmatpush1.msra.mxu0 0.0
    %7555 = vmatprep.subr.mxu0 0.0
    %7556 = vmatpush1.msra.mxu0 0.0
    %7557 = vmatprep.subr.mxu0 0.0
    %7558 = vmatpush1.msra.mxu0 0.0
    %7559 = vmatprep.subr.mxu0 0.0
    %7560 = vmatpush1.msra.mxu0 0.0
    %7561 = vmatprep.subr.mxu0 0.0
    %7562 = vmatpush1.msra.mxu0 0.0
    %7563 = vmatprep.subr.mxu0 0.0
    %7564 = vmatpush1.msra.mxu0 0.0
    %7565 = vmatprep.subr.mxu0 0.0
    %7566 = vmatpush1.msra.mxu0 0.0
    %7567 = vmatprep.subr.mxu0 0.0
    %7568 = vmatpush1.msra.mxu0 0.0
    %7569 = vmatprep.subr.mxu0 0.0
    %7570 = vmatpush1.msra.mxu0 0.0
    %7571 = vmatprep.subr.mxu0 0.0
    %7572 = vmatpush1.msra.mxu0 0.0
    %7573 = vmatprep.subr.mxu0 0.0
    %7574 = vmatpush1.msra.mxu0 0.0
    %7575 = vmatprep.subr.mxu0 0.0
    %7576 = vmatpush1.msra.mxu0 0.0
    %7577 = vmatprep.subr.mxu0 0.0
    %7578 = vmatpush1.msra.mxu0 0.0
    %7579 = vmatprep.subr.mxu0 0.0
    %7580 = vmatpush1.msra.mxu0 0.0
    %7581 = vmatprep.subr.mxu0 0.0
    %7582 = vmatpush1.msra.mxu0 0.0
    %7583 = vmatprep.subr.mxu0 0.0
    %7584 = vmatpush1.msra.mxu0 0.0
    %7585 = vmatprep.subr.mxu0 0.0
    %7586 = vmatpush1.msra.mxu0 0.0
    %7587 = vmatprep.subr.mxu0 0.0
    %7588 = vmatpush1.msra.mxu0 0.0
    %7589 = vmatprep.subr.mxu0 0.0
    %7590 = vmatpush1.msra.mxu0 0.0
    %7591 = vmatprep.subr.mxu0 0.0
    %7592 = vmatpush1.msra.mxu0 0.0
    %7593 = vmatprep.subr.mxu0 0.0
    %7594 = vmatpush1.msra.mxu0 0.0
    %7595 = vmatprep.subr.mxu0 0.0
    %7596 = vmatpush1.msra.mxu0 0.0
    %7597 = vmatprep.subr.mxu0 0.0
    %7598 = vmatpush1.msra.mxu0 0.0
    %7599 = vmatprep.subr.mxu0 0.0
    %7600 = vmatpush1.msra.mxu0 0.0
    %7601 = vmatprep.subr.mxu0 0.0
    %7602 = vmatpush1.msra.mxu0 0.0
    %7603 = vmatprep.subr.mxu0 0.0
    %7604 = vmatpush1.msra.mxu0 0.0
    %7605 = vmatprep.subr.mxu0 0.0
    %7606 = vmatpush1.msra.mxu0 0.0
    %7607 = vmatprep.subr.mxu0 0.0
    %7608 = vmatpush1.msra.mxu0 0.0
    %7609 = vmatprep.subr.mxu0 0.0
    %7610 = vmatpush1.msra.mxu0 0.0
    %7611 = vmatprep.mubr.f32.mxu0 0.0
    %v7612 = vand.u32 %v7193, 4294901760
    %7613 = vmatmul.mubr.f32.gmra.mrb[0].mxu0 %v7612
    %v7614 = vpop.f32.mrb[0].mxu0
    %v7615 = vadd.f32 %v7530, %v7614
    %v7616 = vpop.f32.mrb[0].mxu0
    %7617 = vmatprep.mubr.f32.mxu0 0.0
    %v7618 = vand.u32 %v7196, 4294901760
    %7619 = vmatmul.mubr.f32.gmra.mrb[0].mxu0 %v7618
    %v7620 = vpop.f32.mrb[0].mxu0
    %v7621 = vadd.f32 %v7538, %v7620
    %v7622 = vpop.f32.mrb[0].mxu0
    %7623 = vdwg.mxu0
    %7624 = vmatprep.subr.mxu0 0.0
    %v7625 = vand.u32 %v7176, 4294901760
    %7626 = vmatpush1.msra.mxu0 %v7625
    %7627 = vmatprep.subr.mxu0 0.0
    %v7628 = vand.u32 %v7199, 4294901760
    %7629 = vmatpush1.msra.mxu0 %v7628
    %7630 = vmatprep.subr.mxu0 0.0
    %7631 = vmatpush1.msra.mxu0 0.0
    %7632 = vmatprep.subr.mxu0 0.0
    %7633 = vmatpush1.msra.mxu0 0.0
    %7634 = vmatprep.subr.mxu0 0.0
    %7635 = vmatpush1.msra.mxu0 0.0
    %7636 = vmatprep.subr.mxu0 0.0
    %7637 = vmatpush1.msra.mxu0 0.0
    %7638 = vmatprep.subr.mxu0 0.0
    %7639 = vmatpush1.msra.mxu0 0.0
    %7640 = vmatprep.subr.mxu0 0.0
    %7641 = vmatpush1.msra.mxu0 0.0
    %7642 = vmatprep.subr.mxu0 0.0
    %7643 = vmatpush1.msra.mxu0 0.0
    %7644 = vmatprep.subr.mxu0 0.0
    %7645 = vmatpush1.msra.mxu0 0.0
    %7646 = vmatprep.subr.mxu0 0.0
    %7647 = vmatpush1.msra.mxu0 0.0
    %7648 = vmatprep.subr.mxu0 0.0
    %7649 = vmatpush1.msra.mxu0 0.0
    %7650 = vmatprep.subr.mxu0 0.0
    %7651 = vmatpush1.msra.mxu0 0.0
    %7652 = vmatprep.subr.mxu0 0.0
    %7653 = vmatpush1.msra.mxu0 0.0
    %7654 = vmatprep.subr.mxu0 0.0
    %7655 = vmatpush1.msra.mxu0 0.0
    %7656 = vmatprep.subr.mxu0 0.0
    %7657 = vmatpush1.msra.mxu0 0.0
    %7658 = vmatprep.subr.mxu0 0.0
    %7659 = vmatpush1.msra.mxu0 0.0
    %7660 = vmatprep.subr.mxu0 0.0
    %7661 = vmatpush1.msra.mxu0 0.0
    %7662 = vmatprep.subr.mxu0 0.0
    %7663 = vmatpush1.msra.mxu0 0.0
    %7664 = vmatprep.subr.mxu0 0.0
    %7665 = vmatpush1.msra.mxu0 0.0
    %7666 = vmatprep.subr.mxu0 0.0
    %7667 = vmatpush1.msra.mxu0 0.0
    %7668 = vmatprep.subr.mxu0 0.0
    %7669 = vmatpush1.msra.mxu0 0.0
    %7670 = vmatprep.subr.mxu0 0.0
    %7671 = vmatpush1.msra.mxu0 0.0
    %7672 = vmatprep.subr.mxu0 0.0
    %7673 = vmatpush1.msra.mxu0 0.0
    %7674 = vmatprep.subr.mxu0 0.0
    %7675 = vmatpush1.msra.mxu0 0.0
    %7676 = vmatprep.subr.mxu0 0.0
    %7677 = vmatpush1.msra.mxu0 0.0
    %7678 = vmatprep.subr.mxu0 0.0
    %7679 = vmatpush1.msra.mxu0 0.0
    %7680 = vmatprep.subr.mxu0 0.0
    %7681 = vmatpush1.msra.mxu0 0.0
    %7682 = vmatprep.subr.mxu0 0.0
    %7683 = vmatpush1.msra.mxu0 0.0
    %7684 = vmatprep.subr.mxu0 0.0
    %7685 = vmatpush1.msra.mxu0 0.0
    %7686 = vmatprep.subr.mxu0 0.0
    %7687 = vmatpush1.msra.mxu0 0.0
    %7688 = vmatprep.subr.mxu0 0.0
    %7689 = vmatpush1.msra.mxu0 0.0
    %7690 = vmatprep.mubr.f32.mxu0 0.0
    %v7691 = vand.u32 %v7193, 4294901760
    %7692 = vmatmul.mubr.f32.gmra.mrb[0].mxu0 %v7691
    %v7693 = vpop.f32.mrb[0].mxu0
    %v7694 = vadd.f32 %v7615, %v7693
    %v7695 = vpop.f32.mrb[0].mxu0
    %7696 = vmatprep.mubr.f32.mxu0 0.0
    %v7697 = vand.u32 %v7196, 4294901760
    %7698 = vmatmul.mubr.f32.gmra.mrb[0].mxu0 %v7697
    %v7699 = vpop.f32.mrb[0].mxu0
    %v7700 = vadd.f32 %v7621, %v7699
    %v7701 = vpop.f32.mrb[0].mxu0
    %7702 = vdwg.mxu0
    %v7704 = vlaneseq
    %v7705 = vshrl.u32 %v7704, 7
    %v7706 = vsub.s32 0, %v7705
    %v7707 = vrot.slane %v7181, %v7706
    %v7710 = vsel %vm4101, %v5902, 0
    %v7713 = vsel %vm4101, %v5903, 0
    %v7716 = vsel %vm4120, %v7180, 0
    %7718 = vmatprep.subr.mxu0 0.0
    %v7719 = vand.u32 %v7179, 4294901760
    %7720 = vmatpush1.msra.mxu0 %v7719
    %7721 = vmatprep.subr.mxu0 0.0
    %v7722 = vand.u32 %v7716, 4294901760
    %7723 = vmatpush1.msra.mxu0 %v7722
    %7724 = vmatprep.subr.mxu0 0.0
    %7725 = vmatpush1.msra.mxu0 0.0
    %7726 = vmatprep.subr.mxu0 0.0
    %7727 = vmatpush1.msra.mxu0 0.0
    %7728 = vmatprep.subr.mxu0 0.0
    %7729 = vmatpush1.msra.mxu0 0.0
    %7730 = vmatprep.subr.mxu0 0.0
    %7731 = vmatpush1.msra.mxu0 0.0
    %7732 = vmatprep.subr.mxu0 0.0
    %7733 = vmatpush1.msra.mxu0 0.0
    %7734 = vmatprep.subr.mxu0 0.0
    %7735 = vmatpush1.msra.mxu0 0.0
    %7736 = vmatprep.subr.mxu0 0.0
    %7737 = vmatpush1.msra.mxu0 0.0
    %7738 = vmatprep.subr.mxu0 0.0
    %7739 = vmatpush1.msra.mxu0 0.0
    %7740 = vmatprep.subr.mxu0 0.0
    %7741 = vmatpush1.msra.mxu0 0.0
    %7742 = vmatprep.subr.mxu0 0.0
    %7743 = vmatpush1.msra.mxu0 0.0
    %7744 = vmatprep.subr.mxu0 0.0
    %7745 = vmatpush1.msra.mxu0 0.0
    %7746 = vmatprep.subr.mxu0 0.0
    %7747 = vmatpush1.msra.mxu0 0.0
    %7748 = vmatprep.subr.mxu0 0.0
    %7749 = vmatpush1.msra.mxu0 0.0
    %7750 = vmatprep.subr.mxu0 0.0
    %7751 = vmatpush1.msra.mxu0 0.0
    %7752 = vmatprep.subr.mxu0 0.0
    %7753 = vmatpush1.msra.mxu0 0.0
    %7754 = vmatprep.subr.mxu0 0.0
    %7755 = vmatpush1.msra.mxu0 0.0
    %7756 = vmatprep.subr.mxu0 0.0
    %7757 = vmatpush1.msra.mxu0 0.0
    %7758 = vmatprep.subr.mxu0 0.0
    %7759 = vmatpush1.msra.mxu0 0.0
    %7760 = vmatprep.subr.mxu0 0.0
    %7761 = vmatpush1.msra.mxu0 0.0
    %7762 = vmatprep.subr.mxu0 0.0
    %7763 = vmatpush1.msra.mxu0 0.0
    %7764 = vmatprep.subr.mxu0 0.0
    %7765 = vmatpush1.msra.mxu0 0.0
    %7766 = vmatprep.subr.mxu0 0.0
    %7767 = vmatpush1.msra.mxu0 0.0
    %7768 = vmatprep.subr.mxu0 0.0
    %7769 = vmatpush1.msra.mxu0 0.0
    %7770 = vmatprep.subr.mxu0 0.0
    %7771 = vmatpush1.msra.mxu0 0.0
    %7772 = vmatprep.subr.mxu0 0.0
    %7773 = vmatpush1.msra.mxu0 0.0
    %7774 = vmatprep.subr.mxu0 0.0
    %7775 = vmatpush1.msra.mxu0 0.0
    %7776 = vmatprep.subr.mxu0 0.0
    %7777 = vmatpush1.msra.mxu0 0.0
    %7778 = vmatprep.subr.mxu0 0.0
    %7779 = vmatpush1.msra.mxu0 0.0
    %7780 = vmatprep.subr.mxu0 0.0
    %7781 = vmatpush1.msra.mxu0 0.0
    %7782 = vmatprep.subr.mxu0 0.0
    %7783 = vmatpush1.msra.mxu0 0.0
    %7784 = vmatprep.mubr.f32.mxu0 0.0
    %v7785 = vand.u32 %v7710, 4294901760
    %v7786 = vsub.f32 %v7710, %v7785
    %v7787 = vand.u32 %v7786, 4294901760
    %v7788 = vsub.f32 %v7786, %v7787
    %v7789 = vand.u32 %v7788, 4294901760
    %7790 = vmatmul.mubr.f32.gmra.mrb[0].mxu0 %v7789
    %v7791 = vpop.f32.mrb[0].mxu0
    %v7792 = vadd.f32 %v7707, %v7791
    %v7793 = vpop.f32.mrb[0].mxu0
    %7794 = vmatprep.mubr.f32.mxu0 0.0
    %v7795 = vand.u32 %v7713, 4294901760
    %v7796 = vsub.f32 %v7713, %v7795
    %v7797 = vand.u32 %v7796, 4294901760
    %v7798 = vsub.f32 %v7796, %v7797
    %v7799 = vand.u32 %v7798, 4294901760
    %7800 = vmatmul.mubr.f32.gmra.mrb[0].mxu0 %v7799
    %v7801 = vpop.f32.mrb[0].mxu0
    %v7802 = vadd.f32 %v7707, %v7801
    %v7803 = vpop.f32.mrb[0].mxu0
    %7804 = vdwg.mxu0
    %7805 = vmatprep.subr.mxu0 0.0
    %v7806 = vand.u32 %v7179, 4294901760
    %v7807 = vsub.f32 %v7179, %v7806
    %v7808 = vand.u32 %v7807, 4294901760
    %v7809 = vsub.f32 %v7807, %v7808
    %v7810 = vand.u32 %v7809, 4294901760
    %7811 = vmatpush1.msra.mxu0 %v7810
    %7812 = vmatprep.subr.mxu0 0.0
    %v7813 = vand.u32 %v7716, 4294901760
    %v7814 = vsub.f32 %v7716, %v7813
    %v7815 = vand.u32 %v7814, 4294901760
    %v7816 = vsub.f32 %v7814, %v7815
    %v7817 = vand.u32 %v7816, 4294901760
    %7818 = vmatpush1.msra.mxu0 %v7817
    %7819 = vmatprep.subr.mxu0 0.0
    %7820 = vmatpush1.msra.mxu0 0.0
    %7821 = vmatprep.subr.mxu0 0.0
    %7822 = vmatpush1.msra.mxu0 0.0
    %7823 = vmatprep.subr.mxu0 0.0
    %7824 = vmatpush1.msra.mxu0 0.0
    %7825 = vmatprep.subr.mxu0 0.0
    %7826 = vmatpush1.msra.mxu0 0.0
    %7827 = vmatprep.subr.mxu0 0.0
    %7828 = vmatpush1.msra.mxu0 0.0
    %7829 = vmatprep.subr.mxu0 0.0
    %7830 = vmatpush1.msra.mxu0 0.0
    %7831 = vmatprep.subr.mxu0 0.0
    %7832 = vmatpush1.msra.mxu0 0.0
    %7833 = vmatprep.subr.mxu0 0.0
    %7834 = vmatpush1.msra.mxu0 0.0
    %7835 = vmatprep.subr.mxu0 0.0
    %7836 = vmatpush1.msra.mxu0 0.0
    %7837 = vmatprep.subr.mxu0 0.0
    %7838 = vmatpush1.msra.mxu0 0.0
    %7839 = vmatprep.subr.mxu0 0.0
    %7840 = vmatpush1.msra.mxu0 0.0
    %7841 = vmatprep.subr.mxu0 0.0
    %7842 = vmatpush1.msra.mxu0 0.0
    %7843 = vmatprep.subr.mxu0 0.0
    %7844 = vmatpush1.msra.mxu0 0.0
    %7845 = vmatprep.subr.mxu0 0.0
    %7846 = vmatpush1.msra.mxu0 0.0
    %7847 = vmatprep.subr.mxu0 0.0
    %7848 = vmatpush1.msra.mxu0 0.0
    %7849 = vmatprep.subr.mxu0 0.0
    %7850 = vmatpush1.msra.mxu0 0.0
    %7851 = vmatprep.subr.mxu0 0.0
    %7852 = vmatpush1.msra.mxu0 0.0
    %7853 = vmatprep.subr.mxu0 0.0
    %7854 = vmatpush1.msra.mxu0 0.0
    %7855 = vmatprep.subr.mxu0 0.0
    %7856 = vmatpush1.msra.mxu0 0.0
    %7857 = vmatprep.subr.mxu0 0.0
    %7858 = vmatpush1.msra.mxu0 0.0
    %7859 = vmatprep.subr.mxu0 0.0
    %7860 = vmatpush1.msra.mxu0 0.0
    %7861 = vmatprep.subr.mxu0 0.0
    %7862 = vmatpush1.msra.mxu0 0.0
    %7863 = vmatprep.subr.mxu0 0.0
    %7864 = vmatpush1.msra.mxu0 0.0
    %7865 = vmatprep.subr.mxu0 0.0
    %7866 = vmatpush1.msra.mxu0 0.0
    %7867 = vmatprep.subr.mxu0 0.0
    %7868 = vmatpush1.msra.mxu0 0.0
    %7869 = vmatprep.subr.mxu0 0.0
    %7870 = vmatpush1.msra.mxu0 0.0
    %7871 = vmatprep.subr.mxu0 0.0
    %7872 = vmatpush1.msra.mxu0 0.0
    %7873 = vmatprep.subr.mxu0 0.0
    %7874 = vmatpush1.msra.mxu0 0.0
    %7875 = vmatprep.subr.mxu0 0.0
    %7876 = vmatpush1.msra.mxu0 0.0
    %7877 = vmatprep.subr.mxu0 0.0
    %7878 = vmatpush1.msra.mxu0 0.0
    %7879 = vmatprep.mubr.f32.mxu0 0.0
    %v7880 = vand.u32 %v7710, 4294901760
    %7881 = vmatmul.mubr.f32.gmra.mrb[0].mxu0 %v7880
    %v7882 = vpop.f32.mrb[0].mxu0
    %v7883 = vadd.f32 %v7792, %v7882
    %v7884 = vpop.f32.mrb[0].mxu0
    %7885 = vmatprep.mubr.f32.mxu0 0.0
    %v7886 = vand.u32 %v7713, 4294901760
    %7887 = vmatmul.mubr.f32.gmra.mrb[0].mxu0 %v7886
    %v7888 = vpop.f32.mrb[0].mxu0
    %v7889 = vadd.f32 %v7802, %v7888
    %v7890 = vpop.f32.mrb[0].mxu0
    %7891 = vdwg.mxu0
    %7892 = vmatprep.subr.mxu0 0.0
    %v7893 = vand.u32 %v7179, 4294901760
    %v7894 = vsub.f32 %v7179, %v7893
    %7895 = vmatpush1.msra.mxu0 %v7894
    %7896 = vmatprep.subr.mxu0 0.0
    %v7897 = vand.u32 %v7716, 4294901760
    %v7898 = vsub.f32 %v7716, %v7897
    %7899 = vmatpush1.msra.mxu0 %v7898
    %7900 = vmatprep.subr.mxu0 0.0
    %7901 = vmatpush1.msra.mxu0 0.0
    %7902 = vmatprep.subr.mxu0 0.0
    %7903 = vmatpush1.msra.mxu0 0.0
    %7904 = vmatprep.subr.mxu0 0.0
    %7905 = vmatpush1.msra.mxu0 0.0
    %7906 = vmatprep.subr.mxu0 0.0
    %7907 = vmatpush1.msra.mxu0 0.0
    %7908 = vmatprep.subr.mxu0 0.0
    %7909 = vmatpush1.msra.mxu0 0.0
    %7910 = vmatprep.subr.mxu0 0.0
    %7911 = vmatpush1.msra.mxu0 0.0
    %7912 = vmatprep.subr.mxu0 0.0
    %7913 = vmatpush1.msra.mxu0 0.0
    %7914 = vmatprep.subr.mxu0 0.0
    %7915 = vmatpush1.msra.mxu0 0.0
    %7916 = vmatprep.subr.mxu0 0.0
    %7917 = vmatpush1.msra.mxu0 0.0
    %7918 = vmatprep.subr.mxu0 0.0
    %7919 = vmatpush1.msra.mxu0 0.0
    %7920 = vmatprep.subr.mxu0 0.0
    %7921 = vmatpush1.msra.mxu0 0.0
    %7922 = vmatprep.subr.mxu0 0.0
    %7923 = vmatpush1.msra.mxu0 0.0
    %7924 = vmatprep.subr.mxu0 0.0
    %7925 = vmatpush1.msra.mxu0 0.0
    %7926 = vmatprep.subr.mxu0 0.0
    %7927 = vmatpush1.msra.mxu0 0.0
    %7928 = vmatprep.subr.mxu0 0.0
    %7929 = vmatpush1.msra.mxu0 0.0
    %7930 = vmatprep.subr.mxu0 0.0
    %7931 = vmatpush1.msra.mxu0 0.0
    %7932 = vmatprep.subr.mxu0 0.0
    %7933 = vmatpush1.msra.mxu0 0.0
    %7934 = vmatprep.subr.mxu0 0.0
    %7935 = vmatpush1.msra.mxu0 0.0
    %7936 = vmatprep.subr.mxu0 0.0
    %7937 = vmatpush1.msra.mxu0 0.0
    %7938 = vmatprep.subr.mxu0 0.0
    %7939 = vmatpush1.msra.mxu0 0.0
    %7940 = vmatprep.subr.mxu0 0.0
    %7941 = vmatpush1.msra.mxu0 0.0
    %7942 = vmatprep.subr.mxu0 0.0
    %7943 = vmatpush1.msra.mxu0 0.0
    %7944 = vmatprep.subr.mxu0 0.0
    %7945 = vmatpush1.msra.mxu0 0.0
    %7946 = vmatprep.subr.mxu0 0.0
    %7947 = vmatpush1.msra.mxu0 0.0
    %7948 = vmatprep.subr.mxu0 0.0
    %7949 = vmatpush1.msra.mxu0 0.0
    %7950 = vmatprep.subr.mxu0 0.0
    %7951 = vmatpush1.msra.mxu0 0.0
    %7952 = vmatprep.subr.mxu0 0.0
    %7953 = vmatpush1.msra.mxu0 0.0
    %7954 = vmatprep.subr.mxu0 0.0
    %7955 = vmatpush1.msra.mxu0 0.0
    %7956 = vmatprep.subr.mxu0 0.0
    %7957 = vmatpush1.msra.mxu0 0.0
    %7958 = vmatprep.subr.mxu0 0.0
    %7959 = vmatpush1.msra.mxu0 0.0
    %7960 = vmatprep.mubr.f32.mxu0 0.0
    %v7961 = vand.u32 %v7710, 4294901760
    %v7962 = vsub.f32 %v7710, %v7961
    %7963 = vmatmul.mubr.f32.gmra.mrb[0].mxu0 %v7962
    %v7964 = vpop.f32.mrb[0].mxu0
    %v7965 = vadd.f32 %v7883, %v7964
    %v7966 = vpop.f32.mrb[0].mxu0
    %7967 = vmatprep.mubr.f32.mxu0 0.0
    %v7968 = vand.u32 %v7713, 4294901760
    %v7969 = vsub.f32 %v7713, %v7968
    %7970 = vmatmul.mubr.f32.gmra.mrb[0].mxu0 %v7969
    %v7971 = vpop.f32.mrb[0].mxu0
    %v7972 = vadd.f32 %v7889, %v7971
    %v7973 = vpop.f32.mrb[0].mxu0
    %7974 = vdwg.mxu0
    %7975 = vmatprep.subr.mxu0 0.0
    %v7976 = vand.u32 %v7179, 4294901760
    %7977 = vmatpush1.msra.mxu0 %v7976
    %7978 = vmatprep.subr.mxu0 0.0
    %v7979 = vand.u32 %v7716, 4294901760
    %7980 = vmatpush1.msra.mxu0 %v7979
    %7981 = vmatprep.subr.mxu0 0.0
    %7982 = vmatpush1.msra.mxu0 0.0
    %7983 = vmatprep.subr.mxu0 0.0
    %7984 = vmatpush1.msra.mxu0 0.0
    %7985 = vmatprep.subr.mxu0 0.0
    %7986 = vmatpush1.msra.mxu0 0.0
    %7987 = vmatprep.subr.mxu0 0.0
    %7988 = vmatpush1.msra.mxu0 0.0
    %7989 = vmatprep.subr.mxu0 0.0
    %7990 = vmatpush1.msra.mxu0 0.0
    %7991 = vmatprep.subr.mxu0 0.0
    %7992 = vmatpush1.msra.mxu0 0.0
    %7993 = vmatprep.subr.mxu0 0.0
    %7994 = vmatpush1.msra.mxu0 0.0
    %7995 = vmatprep.subr.mxu0 0.0
    %7996 = vmatpush1.msra.mxu0 0.0
    %7997 = vmatprep.subr.mxu0 0.0
    %7998 = vmatpush1.msra.mxu0 0.0
    %7999 = vmatprep.subr.mxu0 0.0
    %8000 = vmatpush1.msra.mxu0 0.0
    %8001 = vmatprep.subr.mxu0 0.0
    %8002 = vmatpush1.msra.mxu0 0.0
    %8003 = vmatprep.subr.mxu0 0.0
    %8004 = vmatpush1.msra.mxu0 0.0
    %8005 = vmatprep.subr.mxu0 0.0
    %8006 = vmatpush1.msra.mxu0 0.0
    %8007 = vmatprep.subr.mxu0 0.0
    %8008 = vmatpush1.msra.mxu0 0.0
    %8009 = vmatprep.subr.mxu0 0.0
    %8010 = vmatpush1.msra.mxu0 0.0
    %8011 = vmatprep.subr.mxu0 0.0
    %8012 = vmatpush1.msra.mxu0 0.0
    %8013 = vmatprep.subr.mxu0 0.0
    %8014 = vmatpush1.msra.mxu0 0.0
    %8015 = vmatprep.subr.mxu0 0.0
    %8016 = vmatpush1.msra.mxu0 0.0
    %8017 = vmatprep.subr.mxu0 0.0
    %8018 = vmatpush1.msra.mxu0 0.0
    %8019 = vmatprep.subr.mxu0 0.0
    %8020 = vmatpush1.msra.mxu0 0.0
    %8021 = vmatprep.subr.mxu0 0.0
    %8022 = vmatpush1.msra.mxu0 0.0
    %8023 = vmatprep.subr.mxu0 0.0
    %8024 = vmatpush1.msra.mxu0 0.0
    %8025 = vmatprep.subr.mxu0 0.0
    %8026 = vmatpush1.msra.mxu0 0.0
    %8027 = vmatprep.subr.mxu0 0.0
    %8028 = vmatpush1.msra.mxu0 0.0
    %8029 = vmatprep.subr.mxu0 0.0
    %8030 = vmatpush1.msra.mxu0 0.0
    %8031 = vmatprep.subr.mxu0 0.0
    %8032 = vmatpush1.msra.mxu0 0.0
    %8033 = vmatprep.subr.mxu0 0.0
    %8034 = vmatpush1.msra.mxu0 0.0
    %8035 = vmatprep.subr.mxu0 0.0
    %8036 = vmatpush1.msra.mxu0 0.0
    %8037 = vmatprep.subr.mxu0 0.0
    %8038 = vmatpush1.msra.mxu0 0.0
    %8039 = vmatprep.subr.mxu0 0.0
    %8040 = vmatpush1.msra.mxu0 0.0
    %8041 = vmatprep.mubr.f32.mxu0 0.0
    %v8042 = vand.u32 %v7710, 4294901760
    %v8043 = vsub.f32 %v7710, %v8042
    %v8044 = vand.u32 %v8043, 4294901760
    %8045 = vmatmul.mubr.f32.gmra.mrb[0].mxu0 %v8044
    %v8046 = vpop.f32.mrb[0].mxu0
    %v8047 = vadd.f32 %v7965, %v8046
    %v8048 = vpop.f32.mrb[0].mxu0
    %8049 = vmatprep.mubr.f32.mxu0 0.0
    %v8050 = vand.u32 %v7713, 4294901760
    %v8051 = vsub.f32 %v7713, %v8050
    %v8052 = vand.u32 %v8051, 4294901760
    %8053 = vmatmul.mubr.f32.gmra.mrb[0].mxu0 %v8052
    %v8054 = vpop.f32.mrb[0].mxu0
    %v8055 = vadd.f32 %v7972, %v8054
    %v8056 = vpop.f32.mrb[0].mxu0
    %8057 = vdwg.mxu0
    %8058 = vmatprep.subr.mxu0 0.0
    %v8059 = vand.u32 %v7179, 4294901760
    %v8060 = vsub.f32 %v7179, %v8059
    %v8061 = vand.u32 %v8060, 4294901760
    %8062 = vmatpush1.msra.mxu0 %v8061
    %8063 = vmatprep.subr.mxu0 0.0
    %v8064 = vand.u32 %v7716, 4294901760
    %v8065 = vsub.f32 %v7716, %v8064
    %v8066 = vand.u32 %v8065, 4294901760
    %8067 = vmatpush1.msra.mxu0 %v8066
    %8068 = vmatprep.subr.mxu0 0.0
    %8069 = vmatpush1.msra.mxu0 0.0
    %8070 = vmatprep.subr.mxu0 0.0
    %8071 = vmatpush1.msra.mxu0 0.0
    %8072 = vmatprep.subr.mxu0 0.0
    %8073 = vmatpush1.msra.mxu0 0.0
    %8074 = vmatprep.subr.mxu0 0.0
    %8075 = vmatpush1.msra.mxu0 0.0
    %8076 = vmatprep.subr.mxu0 0.0
    %8077 = vmatpush1.msra.mxu0 0.0
    %8078 = vmatprep.subr.mxu0 0.0
    %8079 = vmatpush1.msra.mxu0 0.0
    %8080 = vmatprep.subr.mxu0 0.0
    %8081 = vmatpush1.msra.mxu0 0.0
    %8082 = vmatprep.subr.mxu0 0.0
    %8083 = vmatpush1.msra.mxu0 0.0
    %8084 = vmatprep.subr.mxu0 0.0
    %8085 = vmatpush1.msra.mxu0 0.0
    %8086 = vmatprep.subr.mxu0 0.0
    %8087 = vmatpush1.msra.mxu0 0.0
    %8088 = vmatprep.subr.mxu0 0.0
    %8089 = vmatpush1.msra.mxu0 0.0
    %8090 = vmatprep.subr.mxu0 0.0
    %8091 = vmatpush1.msra.mxu0 0.0
    %8092 = vmatprep.subr.mxu0 0.0
    %8093 = vmatpush1.msra.mxu0 0.0
    %8094 = vmatprep.subr.mxu0 0.0
    %8095 = vmatpush1.msra.mxu0 0.0
    %8096 = vmatprep.subr.mxu0 0.0
    %8097 = vmatpush1.msra.mxu0 0.0
    %8098 = vmatprep.subr.mxu0 0.0
    %8099 = vmatpush1.msra.mxu0 0.0
    %8100 = vmatprep.subr.mxu0 0.0
    %8101 = vmatpush1.msra.mxu0 0.0
    %8102 = vmatprep.subr.mxu0 0.0
    %8103 = vmatpush1.msra.mxu0 0.0
    %8104 = vmatprep.subr.mxu0 0.0
    %8105 = vmatpush1.msra.mxu0 0.0
    %8106 = vmatprep.subr.mxu0 0.0
    %8107 = vmatpush1.msra.mxu0 0.0
    %8108 = vmatprep.subr.mxu0 0.0
    %8109 = vmatpush1.msra.mxu0 0.0
    %8110 = vmatprep.subr.mxu0 0.0
    %8111 = vmatpush1.msra.mxu0 0.0
    %8112 = vmatprep.subr.mxu0 0.0
    %8113 = vmatpush1.msra.mxu0 0.0
    %8114 = vmatprep.subr.mxu0 0.0
    %8115 = vmatpush1.msra.mxu0 0.0
    %8116 = vmatprep.subr.mxu0 0.0
    %8117 = vmatpush1.msra.mxu0 0.0
    %8118 = vmatprep.subr.mxu0 0.0
    %8119 = vmatpush1.msra.mxu0 0.0
    %8120 = vmatprep.subr.mxu0 0.0
    %8121 = vmatpush1.msra.mxu0 0.0
    %8122 = vmatprep.subr.mxu0 0.0
    %8123 = vmatpush1.msra.mxu0 0.0
    %8124 = vmatprep.subr.mxu0 0.0
    %8125 = vmatpush1.msra.mxu0 0.0
    %8126 = vmatprep.subr.mxu0 0.0
    %8127 = vmatpush1.msra.mxu0 0.0
    %8128 = vmatprep.mubr.f32.mxu0 0.0
    %v8129 = vand.u32 %v7710, 4294901760
    %8130 = vmatmul.mubr.f32.gmra.mrb[0].mxu0 %v8129
    %v8131 = vpop.f32.mrb[0].mxu0
    %v8132 = vadd.f32 %v8047, %v8131
    %v8133 = vpop.f32.mrb[0].mxu0
    %8134 = vmatprep.mubr.f32.mxu0 0.0
    %v8135 = vand.u32 %v7713, 4294901760
    %8136 = vmatmul.mubr.f32.gmra.mrb[0].mxu0 %v8135
    %v8137 = vpop.f32.mrb[0].mxu0
    %v8138 = vadd.f32 %v8055, %v8137
    %v8139 = vpop.f32.mrb[0].mxu0
    %8140 = vdwg.mxu0
    %8141 = vmatprep.subr.mxu0 0.0
    %v8142 = vand.u32 %v7179, 4294901760
    %8143 = vmatpush1.msra.mxu0 %v8142
    %8144 = vmatprep.subr.mxu0 0.0
    %v8145 = vand.u32 %v7716, 4294901760
    %8146 = vmatpush1.msra.mxu0 %v8145
    %8147 = vmatprep.subr.mxu0 0.0
    %8148 = vmatpush1.msra.mxu0 0.0
    %8149 = vmatprep.subr.mxu0 0.0
    %8150 = vmatpush1.msra.mxu0 0.0
    %8151 = vmatprep.subr.mxu0 0.0
    %8152 = vmatpush1.msra.mxu0 0.0
    %8153 = vmatprep.subr.mxu0 0.0
    %8154 = vmatpush1.msra.mxu0 0.0
    %8155 = vmatprep.subr.mxu0 0.0
    %8156 = vmatpush1.msra.mxu0 0.0
    %8157 = vmatprep.subr.mxu0 0.0
    %8158 = vmatpush1.msra.mxu0 0.0
    %8159 = vmatprep.subr.mxu0 0.0
    %8160 = vmatpush1.msra.mxu0 0.0
    %8161 = vmatprep.subr.mxu0 0.0
    %8162 = vmatpush1.msra.mxu0 0.0
    %8163 = vmatprep.subr.mxu0 0.0
    %8164 = vmatpush1.msra.mxu0 0.0
    %8165 = vmatprep.subr.mxu0 0.0
    %8166 = vmatpush1.msra.mxu0 0.0
    %8167 = vmatprep.subr.mxu0 0.0
    %8168 = vmatpush1.msra.mxu0 0.0
    %8169 = vmatprep.subr.mxu0 0.0
    %8170 = vmatpush1.msra.mxu0 0.0
    %8171 = vmatprep.subr.mxu0 0.0
    %8172 = vmatpush1.msra.mxu0 0.0
    %8173 = vmatprep.subr.mxu0 0.0
    %8174 = vmatpush1.msra.mxu0 0.0
    %8175 = vmatprep.subr.mxu0 0.0
    %8176 = vmatpush1.msra.mxu0 0.0
    %8177 = vmatprep.subr.mxu0 0.0
    %8178 = vmatpush1.msra.mxu0 0.0
    %8179 = vmatprep.subr.mxu0 0.0
    %8180 = vmatpush1.msra.mxu0 0.0
    %8181 = vmatprep.subr.mxu0 0.0
    %8182 = vmatpush1.msra.mxu0 0.0
    %8183 = vmatprep.subr.mxu0 0.0
    %8184 = vmatpush1.msra.mxu0 0.0
    %8185 = vmatprep.subr.mxu0 0.0
    %8186 = vmatpush1.msra.mxu0 0.0
    %8187 = vmatprep.subr.mxu0 0.0
    %8188 = vmatpush1.msra.mxu0 0.0
    %8189 = vmatprep.subr.mxu0 0.0
    %8190 = vmatpush1.msra.mxu0 0.0
    %8191 = vmatprep.subr.mxu0 0.0
    %8192 = vmatpush1.msra.mxu0 0.0
    %8193 = vmatprep.subr.mxu0 0.0
    %8194 = vmatpush1.msra.mxu0 0.0
    %8195 = vmatprep.subr.mxu0 0.0
    %8196 = vmatpush1.msra.mxu0 0.0
    %8197 = vmatprep.subr.mxu0 0.0
    %8198 = vmatpush1.msra.mxu0 0.0
    %8199 = vmatprep.subr.mxu0 0.0
    %8200 = vmatpush1.msra.mxu0 0.0
    %8201 = vmatprep.subr.mxu0 0.0
    %8202 = vmatpush1.msra.mxu0 0.0
    %8203 = vmatprep.subr.mxu0 0.0
    %8204 = vmatpush1.msra.mxu0 0.0
    %8205 = vmatprep.subr.mxu0 0.0
    %8206 = vmatpush1.msra.mxu0 0.0
    %8207 = vmatprep.mubr.f32.mxu0 0.0
    %v8208 = vand.u32 %v7710, 4294901760
    %8209 = vmatmul.mubr.f32.gmra.mrb[0].mxu0 %v8208
    %v8210 = vpop.f32.mrb[0].mxu0
    %v8211 = vadd.f32 %v8132, %v8210
    %v8212 = vpop.f32.mrb[0].mxu0
    %8213 = vmatprep.mubr.f32.mxu0 0.0
    %v8214 = vand.u32 %v7713, 4294901760
    %8215 = vmatmul.mubr.f32.gmra.mrb[0].mxu0 %v8214
    %v8216 = vpop.f32.mrb[0].mxu0
    %v8217 = vadd.f32 %v8138, %v8216
    %v8218 = vpop.f32.mrb[0].mxu0
    %8219 = vdwg.mxu0
    %v8220 = vmul.f32 %v7694, %v8211
    %v8221 = vmul.f32 %v7700, %v8217
    %vm8222 = vcmask 220160
    %v8224 = vsel %vm8222, %v8220, 0
    %v8227 = vsel %vm8222, %v8221, 0
    %vm8229 = vcmask 1042432
    %v8231 = vsel %vm8229, %v7185, 0
    %8233 = vmatprep.subr.mxu0 0.0
    %v8234 = vand.u32 %v7182, 4294901760
    %8235 = vmatpush1.msra.mxu0 %v8234
    %8236 = vmatprep.subr.mxu0 0.0
    %v8237 = vand.u32 %v7183, 4294901760
    %8238 = vmatpush1.msra.mxu0 %v8237
    %8239 = vmatprep.subr.mxu0 0.0
    %v8240 = vand.u32 %v7184, 4294901760
    %8241 = vmatpush1.msra.mxu0 %v8240
    %8242 = vmatprep.subr.mxu0 0.0
    %v8243 = vand.u32 %v8231, 4294901760
    %8244 = vmatpush1.msra.mxu0 %v8243
    %8245 = vmatprep.subr.mxu0 0.0
    %8246 = vmatpush1.msra.mxu0 0.0
    %8247 = vmatprep.subr.mxu0 0.0
    %8248 = vmatpush1.msra.mxu0 0.0
    %8249 = vmatprep.subr.mxu0 0.0
    %8250 = vmatpush1.msra.mxu0 0.0
    %8251 = vmatprep.subr.mxu0 0.0
    %8252 = vmatpush1.msra.mxu0 0.0
    %8253 = vmatprep.subr.mxu0 0.0
    %8254 = vmatpush1.msra.mxu0 0.0
    %8255 = vmatprep.subr.mxu0 0.0
    %8256 = vmatpush1.msra.mxu0 0.0
    %8257 = vmatprep.subr.mxu0 0.0
    %8258 = vmatpush1.msra.mxu0 0.0
    %8259 = vmatprep.subr.mxu0 0.0
    %8260 = vmatpush1.msra.mxu0 0.0
    %8261 = vmatprep.subr.mxu0 0.0
    %8262 = vmatpush1.msra.mxu0 0.0
    %8263 = vmatprep.subr.mxu0 0.0
    %8264 = vmatpush1.msra.mxu0 0.0
    %8265 = vmatprep.subr.mxu0 0.0
    %8266 = vmatpush1.msra.mxu0 0.0
    %8267 = vmatprep.subr.mxu0 0.0
    %8268 = vmatpush1.msra.mxu0 0.0
    %8269 = vmatprep.subr.mxu0 0.0
    %8270 = vmatpush1.msra.mxu0 0.0
    %8271 = vmatprep.subr.mxu0 0.0
    %8272 = vmatpush1.msra.mxu0 0.0
    %8273 = vmatprep.subr.mxu0 0.0
    %8274 = vmatpush1.msra.mxu0 0.0
    %8275 = vmatprep.subr.mxu0 0.0
    %8276 = vmatpush1.msra.mxu0 0.0
    %8277 = vmatprep.subr.mxu0 0.0
    %8278 = vmatpush1.msra.mxu0 0.0
    %8279 = vmatprep.subr.mxu0 0.0
    %8280 = vmatpush1.msra.mxu0 0.0
    %8281 = vmatprep.subr.mxu0 0.0
    %8282 = vmatpush1.msra.mxu0 0.0
    %8283 = vmatprep.subr.mxu0 0.0
    %8284 = vmatpush1.msra.mxu0 0.0
    %8285 = vmatprep.subr.mxu0 0.0
    %8286 = vmatpush1.msra.mxu0 0.0
    %8287 = vmatprep.subr.mxu0 0.0
    %8288 = vmatpush1.msra.mxu0 0.0
    %8289 = vmatprep.subr.mxu0 0.0
    %8290 = vmatpush1.msra.mxu0 0.0
    %8291 = vmatprep.subr.mxu0 0.0
    %8292 = vmatpush1.msra.mxu0 0.0
    %8293 = vmatprep.subr.mxu0 0.0
    %8294 = vmatpush1.msra.mxu0 0.0
    %8295 = vmatprep.subr.mxu0 0.0
    %8296 = vmatpush1.msra.mxu0 0.0
    %8297 = vmatprep.subr.mxu0 0.0
    %8298 = vmatpush1.msra.mxu0 0.0
    %8299 = vmatprep.subr.mxu0 0.0
    %8300 = vmatpush1.msra.mxu0 0.0
    %8301 = vmatprep.mubr.f32.mxu0 0.0
    %v8302 = vand.u32 %v8224, 4294901760
    %v8303 = vsub.f32 %v8224, %v8302
    %v8304 = vand.u32 %v8303, 4294901760
    %v8305 = vsub.f32 %v8303, %v8304
    %v8306 = vand.u32 %v8305, 4294901760
    %8307 = vmatmul.mubr.f32.gmra.mrb[0].mxu0 %v8306
    %v8308 = vpop.f32.mrb[0].mxu0
    %v8309 = vadd.f32 0.0, %v8308
    %v8310 = vpop.f32.mrb[0].mxu0
    %8311 = vmatprep.mubr.f32.mxu0 0.0
    %v8312 = vand.u32 %v8227, 4294901760
    %v8313 = vsub.f32 %v8227, %v8312
    %v8314 = vand.u32 %v8313, 4294901760
    %v8315 = vsub.f32 %v8313, %v8314
    %v8316 = vand.u32 %v8315, 4294901760
    %8317 = vmatmul.mubr.f32.gmra.mrb[0].mxu0 %v8316
    %v8318 = vpop.f32.mrb[0].mxu0
    %v8319 = vadd.f32 0.0, %v8318
    %v8320 = vpop.f32.mrb[0].mxu0
    %8321 = vdwg.mxu0
    %8322 = vmatprep.subr.mxu0 0.0
    %v8323 = vand.u32 %v7182, 4294901760
    %v8324 = vsub.f32 %v7182, %v8323
    %v8325 = vand.u32 %v8324, 4294901760
    %v8326 = vsub.f32 %v8324, %v8325
    %v8327 = vand.u32 %v8326, 4294901760
    %8328 = vmatpush1.msra.mxu0 %v8327
    %8329 = vmatprep.subr.mxu0 0.0
    %v8330 = vand.u32 %v7183, 4294901760
    %v8331 = vsub.f32 %v7183, %v8330
    %v8332 = vand.u32 %v8331, 4294901760
    %v8333 = vsub.f32 %v8331, %v8332
    %v8334 = vand.u32 %v8333, 4294901760
    %8335 = vmatpush1.msra.mxu0 %v8334
    %8336 = vmatprep.subr.mxu0 0.0
    %v8337 = vand.u32 %v7184, 4294901760
    %v8338 = vsub.f32 %v7184, %v8337
    %v8339 = vand.u32 %v8338, 4294901760
    %v8340 = vsub.f32 %v8338, %v8339
    %v8341 = vand.u32 %v8340, 4294901760
    %8342 = vmatpush1.msra.mxu0 %v8341
    %8343 = vmatprep.subr.mxu0 0.0
    %v8344 = vand.u32 %v8231, 4294901760
    %v8345 = vsub.f32 %v8231, %v8344
    %v8346 = vand.u32 %v8345, 4294901760
    %v8347 = vsub.f32 %v8345, %v8346
    %v8348 = vand.u32 %v8347, 4294901760
    %8349 = vmatpush1.msra.mxu0 %v8348
    %8350 = vmatprep.subr.mxu0 0.0
    %8351 = vmatpush1.msra.mxu0 0.0
    %8352 = vmatprep.subr.mxu0 0.0
    %8353 = vmatpush1.msra.mxu0 0.0
    %8354 = vmatprep.subr.mxu0 0.0
    %8355 = vmatpush1.msra.mxu0 0.0
    %8356 = vmatprep.subr.mxu0 0.0
    %8357 = vmatpush1.msra.mxu0 0.0
    %8358 = vmatprep.subr.mxu0 0.0
    %8359 = vmatpush1.msra.mxu0 0.0
    %8360 = vmatprep.subr.mxu0 0.0
    %8361 = vmatpush1.msra.mxu0 0.0
    %8362 = vmatprep.subr.mxu0 0.0
    %8363 = vmatpush1.msra.mxu0 0.0
    %8364 = vmatprep.subr.mxu0 0.0
    %8365 = vmatpush1.msra.mxu0 0.0
    %8366 = vmatprep.subr.mxu0 0.0
    %8367 = vmatpush1.msra.mxu0 0.0
    %8368 = vmatprep.subr.mxu0 0.0
    %8369 = vmatpush1.msra.mxu0 0.0
    %8370 = vmatprep.subr.mxu0 0.0
    %8371 = vmatpush1.msra.mxu0 0.0
    %8372 = vmatprep.subr.mxu0 0.0
    %8373 = vmatpush1.msra.mxu0 0.0
    %8374 = vmatprep.subr.mxu0 0.0
    %8375 = vmatpush1.msra.mxu0 0.0
    %8376 = vmatprep.subr.mxu0 0.0
    %8377 = vmatpush1.msra.mxu0 0.0
    %8378 = vmatprep.subr.mxu0 0.0
    %8379 = vmatpush1.msra.mxu0 0.0
    %8380 = vmatprep.subr.mxu0 0.0
    %8381 = vmatpush1.msra.mxu0 0.0
    %8382 = vmatprep.subr.mxu0 0.0
    %8383 = vmatpush1.msra.mxu0 0.0
    %8384 = vmatprep.subr.mxu0 0.0
    %8385 = vmatpush1.msra.mxu0 0.0
    %8386 = vmatprep.subr.mxu0 0.0
    %8387 = vmatpush1.msra.mxu0 0.0
    %8388 = vmatprep.subr.mxu0 0.0
    %8389 = vmatpush1.msra.mxu0 0.0
    %8390 = vmatprep.subr.mxu0 0.0
    %8391 = vmatpush1.msra.mxu0 0.0
    %8392 = vmatprep.subr.mxu0 0.0
    %8393 = vmatpush1.msra.mxu0 0.0
    %8394 = vmatprep.subr.mxu0 0.0
    %8395 = vmatpush1.msra.mxu0 0.0
    %8396 = vmatprep.subr.mxu0 0.0
    %8397 = vmatpush1.msra.mxu0 0.0
    %8398 = vmatprep.subr.mxu0 0.0
    %8399 = vmatpush1.msra.mxu0 0.0
    %8400 = vmatprep.subr.mxu0 0.0
    %8401 = vmatpush1.msra.mxu0 0.0
    %8402 = vmatprep.subr.mxu0 0.0
    %8403 = vmatpush1.msra.mxu0 0.0
    %8404 = vmatprep.subr.mxu0 0.0
    %8405 = vmatpush1.msra.mxu0 0.0
    %8406 = vmatprep.mubr.f32.mxu0 0.0
    %v8407 = vand.u32 %v8224, 4294901760
    %8408 = vmatmul.mubr.f32.gmra.mrb[0].mxu0 %v8407
    %v8409 = vpop.f32.mrb[0].mxu0
    %v8410 = vadd.f32 %v8309, %v8409
    %v8411 = vpop.f32.mrb[0].mxu0
    %8412 = vmatprep.mubr.f32.mxu0 0.0
    %v8413 = vand.u32 %v8227, 4294901760
    %8414 = vmatmul.mubr.f32.gmra.mrb[0].mxu0 %v8413
    %v8415 = vpop.f32.mrb[0].mxu0
    %v8416 = vadd.f32 %v8319, %v8415
    %v8417 = vpop.f32.mrb[0].mxu0
    %8418 = vdwg.mxu0
    %8419 = vmatprep.subr.mxu0 0.0
    %v8420 = vand.u32 %v7182, 4294901760
    %v8421 = vsub.f32 %v7182, %v8420
    %8422 = vmatpush1.msra.mxu0 %v8421
    %8423 = vmatprep.subr.mxu0 0.0
    %v8424 = vand.u32 %v7183, 4294901760
    %v8425 = vsub.f32 %v7183, %v8424
    %8426 = vmatpush1.msra.mxu0 %v8425
    %8427 = vmatprep.subr.mxu0 0.0
    %v8428 = vand.u32 %v7184, 4294901760
    %v8429 = vsub.f32 %v7184, %v8428
    %8430 = vmatpush1.msra.mxu0 %v8429
    %8431 = vmatprep.subr.mxu0 0.0
    %v8432 = vand.u32 %v8231, 4294901760
    %v8433 = vsub.f32 %v8231, %v8432
    %8434 = vmatpush1.msra.mxu0 %v8433
    %8435 = vmatprep.subr.mxu0 0.0
    %8436 = vmatpush1.msra.mxu0 0.0
    %8437 = vmatprep.subr.mxu0 0.0
    %8438 = vmatpush1.msra.mxu0 0.0
    %8439 = vmatprep.subr.mxu0 0.0
    %8440 = vmatpush1.msra.mxu0 0.0
    %8441 = vmatprep.subr.mxu0 0.0
    %8442 = vmatpush1.msra.mxu0 0.0
    %8443 = vmatprep.subr.mxu0 0.0
    %8444 = vmatpush1.msra.mxu0 0.0
    %8445 = vmatprep.subr.mxu0 0.0
    %8446 = vmatpush1.msra.mxu0 0.0
    %8447 = vmatprep.subr.mxu0 0.0
    %8448 = vmatpush1.msra.mxu0 0.0
    %8449 = vmatprep.subr.mxu0 0.0
    %8450 = vmatpush1.msra.mxu0 0.0
    %8451 = vmatprep.subr.mxu0 0.0
    %8452 = vmatpush1.msra.mxu0 0.0
    %8453 = vmatprep.subr.mxu0 0.0
    %8454 = vmatpush1.msra.mxu0 0.0
    %8455 = vmatprep.subr.mxu0 0.0
    %8456 = vmatpush1.msra.mxu0 0.0
    %8457 = vmatprep.subr.mxu0 0.0
    %8458 = vmatpush1.msra.mxu0 0.0
    %8459 = vmatprep.subr.mxu0 0.0
    %8460 = vmatpush1.msra.mxu0 0.0
    %8461 = vmatprep.subr.mxu0 0.0
    %8462 = vmatpush1.msra.mxu0 0.0
    %8463 = vmatprep.subr.mxu0 0.0
    %8464 = vmatpush1.msra.mxu0 0.0
    %8465 = vmatprep.subr.mxu0 0.0
    %8466 = vmatpush1.msra.mxu0 0.0
    %8467 = vmatprep.subr.mxu0 0.0
    %8468 = vmatpush1.msra.mxu0 0.0
    %8469 = vmatprep.subr.mxu0 0.0
    %8470 = vmatpush1.msra.mxu0 0.0
    %8471 = vmatprep.subr.mxu0 0.0
    %8472 = vmatpush1.msra.mxu0 0.0
    %8473 = vmatprep.subr.mxu0 0.0
    %8474 = vmatpush1.msra.mxu0 0.0
    %8475 = vmatprep.subr.mxu0 0.0
    %8476 = vmatpush1.msra.mxu0 0.0
    %8477 = vmatprep.subr.mxu0 0.0
    %8478 = vmatpush1.msra.mxu0 0.0
    %8479 = vmatprep.subr.mxu0 0.0
    %8480 = vmatpush1.msra.mxu0 0.0
    %8481 = vmatprep.subr.mxu0 0.0
    %8482 = vmatpush1.msra.mxu0 0.0
    %8483 = vmatprep.subr.mxu0 0.0
    %8484 = vmatpush1.msra.mxu0 0.0
    %8485 = vmatprep.subr.mxu0 0.0
    %8486 = vmatpush1.msra.mxu0 0.0
    %8487 = vmatprep.subr.mxu0 0.0
    %8488 = vmatpush1.msra.mxu0 0.0
    %8489 = vmatprep.subr.mxu0 0.0
    %8490 = vmatpush1.msra.mxu0 0.0
    %8491 = vmatprep.mubr.f32.mxu0 0.0
    %v8492 = vand.u32 %v8224, 4294901760
    %v8493 = vsub.f32 %v8224, %v8492
    %8494 = vmatmul.mubr.f32.gmra.mrb[0].mxu0 %v8493
    %v8495 = vpop.f32.mrb[0].mxu0
    %v8496 = vadd.f32 %v8410, %v8495
    %v8497 = vpop.f32.mrb[0].mxu0
    %8498 = vmatprep.mubr.f32.mxu0 0.0
    %v8499 = vand.u32 %v8227, 4294901760
    %v8500 = vsub.f32 %v8227, %v8499
    %8501 = vmatmul.mubr.f32.gmra.mrb[0].mxu0 %v8500
    %v8502 = vpop.f32.mrb[0].mxu0
    %v8503 = vadd.f32 %v8416, %v8502
    %v8504 = vpop.f32.mrb[0].mxu0
    %8505 = vdwg.mxu0
    %8506 = vmatprep.subr.mxu0 0.0
    %v8507 = vand.u32 %v7182, 4294901760
    %8508 = vmatpush1.msra.mxu0 %v8507
    %8509 = vmatprep.subr.mxu0 0.0
    %v8510 = vand.u32 %v7183, 4294901760
    %8511 = vmatpush1.msra.mxu0 %v8510
    %8512 = vmatprep.subr.mxu0 0.0
    %v8513 = vand.u32 %v7184, 4294901760
    %8514 = vmatpush1.msra.mxu0 %v8513
    %8515 = vmatprep.subr.mxu0 0.0
    %v8516 = vand.u32 %v8231, 4294901760
    %8517 = vmatpush1.msra.mxu0 %v8516
    %8518 = vmatprep.subr.mxu0 0.0
    %8519 = vmatpush1.msra.mxu0 0.0
    %8520 = vmatprep.subr.mxu0 0.0
    %8521 = vmatpush1.msra.mxu0 0.0
    %8522 = vmatprep.subr.mxu0 0.0
    %8523 = vmatpush1.msra.mxu0 0.0
    %8524 = vmatprep.subr.mxu0 0.0
    %8525 = vmatpush1.msra.mxu0 0.0
    %8526 = vmatprep.subr.mxu0 0.0
    %8527 = vmatpush1.msra.mxu0 0.0
    %8528 = vmatprep.subr.mxu0 0.0
    %8529 = vmatpush1.msra.mxu0 0.0
    %8530 = vmatprep.subr.mxu0 0.0
    %8531 = vmatpush1.msra.mxu0 0.0
    %8532 = vmatprep.subr.mxu0 0.0
    %8533 = vmatpush1.msra.mxu0 0.0
    %8534 = vmatprep.subr.mxu0 0.0
    %8535 = vmatpush1.msra.mxu0 0.0
    %8536 = vmatprep.subr.mxu0 0.0
    %8537 = vmatpush1.msra.mxu0 0.0
    %8538 = vmatprep.subr.mxu0 0.0
    %8539 = vmatpush1.msra.mxu0 0.0
    %8540 = vmatprep.subr.mxu0 0.0
    %8541 = vmatpush1.msra.mxu0 0.0
    %8542 = vmatprep.subr.mxu0 0.0
    %8543 = vmatpush1.msra.mxu0 0.0
    %8544 = vmatprep.subr.mxu0 0.0
    %8545 = vmatpush1.msra.mxu0 0.0
    %8546 = vmatprep.subr.mxu0 0.0
    %8547 = vmatpush1.msra.mxu0 0.0
    %8548 = vmatprep.subr.mxu0 0.0
    %8549 = vmatpush1.msra.mxu0 0.0
    %8550 = vmatprep.subr.mxu0 0.0
    %8551 = vmatpush1.msra.mxu0 0.0
    %8552 = vmatprep.subr.mxu0 0.0
    %8553 = vmatpush1.msra.mxu0 0.0
    %8554 = vmatprep.subr.mxu0 0.0
    %8555 = vmatpush1.msra.mxu0 0.0
    %8556 = vmatprep.subr.mxu0 0.0
    %8557 = vmatpush1.msra.mxu0 0.0
    %8558 = vmatprep.subr.mxu0 0.0
    %8559 = vmatpush1.msra.mxu0 0.0
    %8560 = vmatprep.subr.mxu0 0.0
    %8561 = vmatpush1.msra.mxu0 0.0
    %8562 = vmatprep.subr.mxu0 0.0
    %8563 = vmatpush1.msra.mxu0 0.0
    %8564 = vmatprep.subr.mxu0 0.0
    %8565 = vmatpush1.msra.mxu0 0.0
    %8566 = vmatprep.subr.mxu0 0.0
    %8567 = vmatpush1.msra.mxu0 0.0
    %8568 = vmatprep.subr.mxu0 0.0
    %8569 = vmatpush1.msra.mxu0 0.0
    %8570 = vmatprep.subr.mxu0 0.0
    %8571 = vmatpush1.msra.mxu0 0.0
    %8572 = vmatprep.subr.mxu0 0.0
    %8573 = vmatpush1.msra.mxu0 0.0
    %8574 = vmatprep.mubr.f32.mxu0 0.0
    %v8575 = vand.u32 %v8224, 4294901760
    %v8576 = vsub.f32 %v8224, %v8575
    %v8577 = vand.u32 %v8576, 4294901760
    %8578 = vmatmul.mubr.f32.gmra.mrb[0].mxu0 %v8577
    %v8579 = vpop.f32.mrb[0].mxu0
    %v8580 = vadd.f32 %v8496, %v8579
    %v8581 = vpop.f32.mrb[0].mxu0
    %8582 = vmatprep.mubr.f32.mxu0 0.0
    %v8583 = vand.u32 %v8227, 4294901760
    %v8584 = vsub.f32 %v8227, %v8583
    %v8585 = vand.u32 %v8584, 4294901760
    %8586 = vmatmul.mubr.f32.gmra.mrb[0].mxu0 %v8585
    %v8587 = vpop.f32.mrb[0].mxu0
    %v8588 = vadd.f32 %v8503, %v8587
    %v8589 = vpop.f32.mrb[0].mxu0
    %8590 = vdwg.mxu0
    %8591 = vmatprep.subr.mxu0 0.0
    %v8592 = vand.u32 %v7182, 4294901760
    %v8593 = vsub.f32 %v7182, %v8592
    %v8594 = vand.u32 %v8593, 4294901760
    %8595 = vmatpush1.msra.mxu0 %v8594
    %8596 = vmatprep.subr.mxu0 0.0
    %v8597 = vand.u32 %v7183, 4294901760
    %v8598 = vsub.f32 %v7183, %v8597
    %v8599 = vand.u32 %v8598, 4294901760
    %8600 = vmatpush1.msra.mxu0 %v8599
    %8601 = vmatprep.subr.mxu0 0.0
    %v8602 = vand.u32 %v7184, 4294901760
    %v8603 = vsub.f32 %v7184, %v8602
    %v8604 = vand.u32 %v8603, 4294901760
    %8605 = vmatpush1.msra.mxu0 %v8604
    %8606 = vmatprep.subr.mxu0 0.0
    %v8607 = vand.u32 %v8231, 4294901760
    %v8608 = vsub.f32 %v8231, %v8607
    %v8609 = vand.u32 %v8608, 4294901760
    %8610 = vmatpush1.msra.mxu0 %v8609
    %8611 = vmatprep.subr.mxu0 0.0
    %8612 = vmatpush1.msra.mxu0 0.0
    %8613 = vmatprep.subr.mxu0 0.0
    %8614 = vmatpush1.msra.mxu0 0.0
    %8615 = vmatprep.subr.mxu0 0.0
    %8616 = vmatpush1.msra.mxu0 0.0
    %8617 = vmatprep.subr.mxu0 0.0
    %8618 = vmatpush1.msra.mxu0 0.0
    %8619 = vmatprep.subr.mxu0 0.0
    %8620 = vmatpush1.msra.mxu0 0.0
    %8621 = vmatprep.subr.mxu0 0.0
    %8622 = vmatpush1.msra.mxu0 0.0
    %8623 = vmatprep.subr.mxu0 0.0
    %8624 = vmatpush1.msra.mxu0 0.0
    %8625 = vmatprep.subr.mxu0 0.0
    %8626 = vmatpush1.msra.mxu0 0.0
    %8627 = vmatprep.subr.mxu0 0.0
    %8628 = vmatpush1.msra.mxu0 0.0
    %8629 = vmatprep.subr.mxu0 0.0
    %8630 = vmatpush1.msra.mxu0 0.0
    %8631 = vmatprep.subr.mxu0 0.0
    %8632 = vmatpush1.msra.mxu0 0.0
    %8633 = vmatprep.subr.mxu0 0.0
    %8634 = vmatpush1.msra.mxu0 0.0
    %8635 = vmatprep.subr.mxu0 0.0
    %8636 = vmatpush1.msra.mxu0 0.0
    %8637 = vmatprep.subr.mxu0 0.0
    %8638 = vmatpush1.msra.mxu0 0.0
    %8639 = vmatprep.subr.mxu0 0.0
    %8640 = vmatpush1.msra.mxu0 0.0
    %8641 = vmatprep.subr.mxu0 0.0
    %8642 = vmatpush1.msra.mxu0 0.0
    %8643 = vmatprep.subr.mxu0 0.0
    %8644 = vmatpush1.msra.mxu0 0.0
    %8645 = vmatprep.subr.mxu0 0.0
    %8646 = vmatpush1.msra.mxu0 0.0
    %8647 = vmatprep.subr.mxu0 0.0
    %8648 = vmatpush1.msra.mxu0 0.0
    %8649 = vmatprep.subr.mxu0 0.0
    %8650 = vmatpush1.msra.mxu0 0.0
    %8651 = vmatprep.subr.mxu0 0.0
    %8652 = vmatpush1.msra.mxu0 0.0
    %8653 = vmatprep.subr.mxu0 0.0
    %8654 = vmatpush1.msra.mxu0 0.0
    %8655 = vmatprep.subr.mxu0 0.0
    %8656 = vmatpush1.msra.mxu0 0.0
    %8657 = vmatprep.subr.mxu0 0.0
    %8658 = vmatpush1.msra.mxu0 0.0
    %8659 = vmatprep.subr.mxu0 0.0
    %8660 = vmatpush1.msra.mxu0 0.0
    %8661 = vmatprep.subr.mxu0 0.0
    %8662 = vmatpush1.msra.mxu0 0.0
    %8663 = vmatprep.subr.mxu0 0.0
    %8664 = vmatpush1.msra.mxu0 0.0
    %8665 = vmatprep.subr.mxu0 0.0
    %8666 = vmatpush1.msra.mxu0 0.0
    %8667 = vmatprep.mubr.f32.mxu0 0.0
    %v8668 = vand.u32 %v8224, 4294901760
    %8669 = vmatmul.mubr.f32.gmra.mrb[0].mxu0 %v8668
    %v8670 = vpop.f32.mrb[0].mxu0
    %v8671 = vadd.f32 %v8580, %v8670
    %v8672 = vpop.f32.mrb[0].mxu0
    %8673 = vmatprep.mubr.f32.mxu0 0.0
    %v8674 = vand.u32 %v8227, 4294901760
    %8675 = vmatmul.mubr.f32.gmra.mrb[0].mxu0 %v8674
    %v8676 = vpop.f32.mrb[0].mxu0
    %v8677 = vadd.f32 %v8588, %v8676
    %v8678 = vpop.f32.mrb[0].mxu0
    %8679 = vdwg.mxu0
    %8680 = vmatprep.subr.mxu0 0.0
    %v8681 = vand.u32 %v7182, 4294901760
    %8682 = vmatpush1.msra.mxu0 %v8681
    %8683 = vmatprep.subr.mxu0 0.0
    %v8684 = vand.u32 %v7183, 4294901760
    %8685 = vmatpush1.msra.mxu0 %v8684
    %8686 = vmatprep.subr.mxu0 0.0
    %v8687 = vand.u32 %v7184, 4294901760
    %8688 = vmatpush1.msra.mxu0 %v8687
    %8689 = vmatprep.subr.mxu0 0.0
    %v8690 = vand.u32 %v8231, 4294901760
    %8691 = vmatpush1.msra.mxu0 %v8690
    %8692 = vmatprep.subr.mxu0 0.0
    %8693 = vmatpush1.msra.mxu0 0.0
    %8694 = vmatprep.subr.mxu0 0.0
    %8695 = vmatpush1.msra.mxu0 0.0
    %8696 = vmatprep.subr.mxu0 0.0
    %8697 = vmatpush1.msra.mxu0 0.0
    %8698 = vmatprep.subr.mxu0 0.0
    %8699 = vmatpush1.msra.mxu0 0.0
    %8700 = vmatprep.subr.mxu0 0.0
    %8701 = vmatpush1.msra.mxu0 0.0
    %8702 = vmatprep.subr.mxu0 0.0
    %8703 = vmatpush1.msra.mxu0 0.0
    %8704 = vmatprep.subr.mxu0 0.0
    %8705 = vmatpush1.msra.mxu0 0.0
    %8706 = vmatprep.subr.mxu0 0.0
    %8707 = vmatpush1.msra.mxu0 0.0
    %8708 = vmatprep.subr.mxu0 0.0
    %8709 = vmatpush1.msra.mxu0 0.0
    %8710 = vmatprep.subr.mxu0 0.0
    %8711 = vmatpush1.msra.mxu0 0.0
    %8712 = vmatprep.subr.mxu0 0.0
    %8713 = vmatpush1.msra.mxu0 0.0
    %8714 = vmatprep.subr.mxu0 0.0
    %8715 = vmatpush1.msra.mxu0 0.0
    %8716 = vmatprep.subr.mxu0 0.0
    %8717 = vmatpush1.msra.mxu0 0.0
    %8718 = vmatprep.subr.mxu0 0.0
    %8719 = vmatpush1.msra.mxu0 0.0
    %8720 = vmatprep.subr.mxu0 0.0
    %8721 = vmatpush1.msra.mxu0 0.0
    %8722 = vmatprep.subr.mxu0 0.0
    %8723 = vmatpush1.msra.mxu0 0.0
    %8724 = vmatprep.subr.mxu0 0.0
    %8725 = vmatpush1.msra.mxu0 0.0
    %8726 = vmatprep.subr.mxu0 0.0
    %8727 = vmatpush1.msra.mxu0 0.0
    %8728 = vmatprep.subr.mxu0 0.0
    %8729 = vmatpush1.msra.mxu0 0.0
    %8730 = vmatprep.subr.mxu0 0.0
    %8731 = vmatpush1.msra.mxu0 0.0
    %8732 = vmatprep.subr.mxu0 0.0
    %8733 = vmatpush1.msra.mxu0 0.0
    %8734 = vmatprep.subr.mxu0 0.0
    %8735 = vmatpush1.msra.mxu0 0.0
    %8736 = vmatprep.subr.mxu0 0.0
    %8737 = vmatpush1.msra.mxu0 0.0
    %8738 = vmatprep.subr.mxu0 0.0
    %8739 = vmatpush1.msra.mxu0 0.0
    %8740 = vmatprep.subr.mxu0 0.0
    %8741 = vmatpush1.msra.mxu0 0.0
    %8742 = vmatprep.subr.mxu0 0.0
    %8743 = vmatpush1.msra.mxu0 0.0
    %8744 = vmatprep.subr.mxu0 0.0
    %8745 = vmatpush1.msra.mxu0 0.0
    %8746 = vmatprep.subr.mxu0 0.0
    %8747 = vmatpush1.msra.mxu0 0.0
    %8748 = vmatprep.mubr.f32.mxu0 0.0
    %v8749 = vand.u32 %v8224, 4294901760
    %8750 = vmatmul.mubr.f32.gmra.mrb[0].mxu0 %v8749
    %v8751 = vpop.f32.mrb[0].mxu0
    %v8752 = vadd.f32 %v8671, %v8751
    %v8753 = vpop.f32.mrb[0].mxu0
    %8754 = vmatprep.mubr.f32.mxu0 0.0
    %v8755 = vand.u32 %v8227, 4294901760
    %8756 = vmatmul.mubr.f32.gmra.mrb[0].mxu0 %v8755
    %v8757 = vpop.f32.mrb[0].mxu0
    %v8758 = vadd.f32 %v8677, %v8757
    %v8759 = vpop.f32.mrb[0].mxu0
    %8760 = vdwg.mxu0
    %v8762 = vsel %vm4101, %v7174, 0
    %v8765 = vsel %vm4101, %v7175, 0
    %8767 = vmatprep.subr.mxu0 0.0
    %v8768 = vand.u32 %v7179, 4294901760
    %8769 = vmatpush1.msra.mxu0 %v8768
    %8770 = vmatprep.subr.mxu0 0.0
    %v8771 = vand.u32 %v7716, 4294901760
    %8772 = vmatpush1.msra.mxu0 %v8771
    %8773 = vmatprep.subr.mxu0 0.0
    %8774 = vmatpush1.msra.mxu0 0.0
    %8775 = vmatprep.subr.mxu0 0.0
    %8776 = vmatpush1.msra.mxu0 0.0
    %8777 = vmatprep.subr.mxu0 0.0
    %8778 = vmatpush1.msra.mxu0 0.0
    %8779 = vmatprep.subr.mxu0 0.0
    %8780 = vmatpush1.msra.mxu0 0.0
    %8781 = vmatprep.subr.mxu0 0.0
    %8782 = vmatpush1.msra.mxu0 0.0
    %8783 = vmatprep.subr.mxu0 0.0
    %8784 = vmatpush1.msra.mxu0 0.0
    %8785 = vmatprep.subr.mxu0 0.0
    %8786 = vmatpush1.msra.mxu0 0.0
    %8787 = vmatprep.subr.mxu0 0.0
    %8788 = vmatpush1.msra.mxu0 0.0
    %8789 = vmatprep.subr.mxu0 0.0
    %8790 = vmatpush1.msra.mxu0 0.0
    %8791 = vmatprep.subr.mxu0 0.0
    %8792 = vmatpush1.msra.mxu0 0.0
    %8793 = vmatprep.subr.mxu0 0.0
    %8794 = vmatpush1.msra.mxu0 0.0
    %8795 = vmatprep.subr.mxu0 0.0
    %8796 = vmatpush1.msra.mxu0 0.0
    %8797 = vmatprep.subr.mxu0 0.0
    %8798 = vmatpush1.msra.mxu0 0.0
    %8799 = vmatprep.subr.mxu0 0.0
    %8800 = vmatpush1.msra.mxu0 0.0
    %8801 = vmatprep.subr.mxu0 0.0
    %8802 = vmatpush1.msra.mxu0 0.0
    %8803 = vmatprep.subr.mxu0 0.0
    %8804 = vmatpush1.msra.mxu0 0.0
    %8805 = vmatprep.subr.mxu0 0.0
    %8806 = vmatpush1.msra.mxu0 0.0
    %8807 = vmatprep.subr.mxu0 0.0
    %8808 = vmatpush1.msra.mxu0 0.0
    %8809 = vmatprep.subr.mxu0 0.0
    %8810 = vmatpush1.msra.mxu0 0.0
    %8811 = vmatprep.subr.mxu0 0.0
    %8812 = vmatpush1.msra.mxu0 0.0
    %8813 = vmatprep.subr.mxu0 0.0
    %8814 = vmatpush1.msra.mxu0 0.0
    %8815 = vmatprep.subr.mxu0 0.0
    %8816 = vmatpush1.msra.mxu0 0.0
    %8817 = vmatprep.subr.mxu0 0.0
    %8818 = vmatpush1.msra.mxu0 0.0
    %8819 = vmatprep.subr.mxu0 0.0
    %8820 = vmatpush1.msra.mxu0 0.0
    %8821 = vmatprep.subr.mxu0 0.0
    %8822 = vmatpush1.msra.mxu0 0.0
    %8823 = vmatprep.subr.mxu0 0.0
    %8824 = vmatpush1.msra.mxu0 0.0
    %8825 = vmatprep.subr.mxu0 0.0
    %8826 = vmatpush1.msra.mxu0 0.0
    %8827 = vmatprep.subr.mxu0 0.0
    %8828 = vmatpush1.msra.mxu0 0.0
    %8829 = vmatprep.subr.mxu0 0.0
    %8830 = vmatpush1.msra.mxu0 0.0
    %8831 = vmatprep.subr.mxu0 0.0
    %8832 = vmatpush1.msra.mxu0 0.0
    %8833 = vmatprep.mubr.f32.mxu0 0.0
    %v8834 = vand.u32 %v8762, 4294901760
    %v8835 = vsub.f32 %v8762, %v8834
    %v8836 = vand.u32 %v8835, 4294901760
    %v8837 = vsub.f32 %v8835, %v8836
    %v8838 = vand.u32 %v8837, 4294901760
    %8839 = vmatmul.mubr.f32.gmra.mrb[0].mxu0 %v8838
    %v8840 = vpop.f32.mrb[0].mxu0
    %v8841 = vadd.f32 %v7707, %v8840
    %v8842 = vpop.f32.mrb[0].mxu0
    %8843 = vmatprep.mubr.f32.mxu0 0.0
    %v8844 = vand.u32 %v8765, 4294901760
    %v8845 = vsub.f32 %v8765, %v8844
    %v8846 = vand.u32 %v8845, 4294901760
    %v8847 = vsub.f32 %v8845, %v8846
    %v8848 = vand.u32 %v8847, 4294901760
    %8849 = vmatmul.mubr.f32.gmra.mrb[0].mxu0 %v8848
    %v8850 = vpop.f32.mrb[0].mxu0
    %v8851 = vadd.f32 %v7707, %v8850
    %v8852 = vpop.f32.mrb[0].mxu0
    %8853 = vdwg.mxu0
    %8854 = vmatprep.subr.mxu0 0.0
    %v8855 = vand.u32 %v7179, 4294901760
    %v8856 = vsub.f32 %v7179, %v8855
    %v8857 = vand.u32 %v8856, 4294901760
    %v8858 = vsub.f32 %v8856, %v8857
    %v8859 = vand.u32 %v8858, 4294901760
    %8860 = vmatpush1.msra.mxu0 %v8859
    %8861 = vmatprep.subr.mxu0 0.0
    %v8862 = vand.u32 %v7716, 4294901760
    %v8863 = vsub.f32 %v7716, %v8862
    %v8864 = vand.u32 %v8863, 4294901760
    %v8865 = vsub.f32 %v8863, %v8864
    %v8866 = vand.u32 %v8865, 4294901760
    %8867 = vmatpush1.msra.mxu0 %v8866
    %8868 = vmatprep.subr.mxu0 0.0
    %8869 = vmatpush1.msra.mxu0 0.0
    %8870 = vmatprep.subr.mxu0 0.0
    %8871 = vmatpush1.msra.mxu0 0.0
    %8872 = vmatprep.subr.mxu0 0.0
    %8873 = vmatpush1.msra.mxu0 0.0
    %8874 = vmatprep.subr.mxu0 0.0
    %8875 = vmatpush1.msra.mxu0 0.0
    %8876 = vmatprep.subr.mxu0 0.0
    %8877 = vmatpush1.msra.mxu0 0.0
    %8878 = vmatprep.subr.mxu0 0.0
    %8879 = vmatpush1.msra.mxu0 0.0
    %8880 = vmatprep.subr.mxu0 0.0
    %8881 = vmatpush1.msra.mxu0 0.0
    %8882 = vmatprep.subr.mxu0 0.0
    %8883 = vmatpush1.msra.mxu0 0.0
    %8884 = vmatprep.subr.mxu0 0.0
    %8885 = vmatpush1.msra.mxu0 0.0
    %8886 = vmatprep.subr.mxu0 0.0
    %8887 = vmatpush1.msra.mxu0 0.0
    %8888 = vmatprep.subr.mxu0 0.0
    %8889 = vmatpush1.msra.mxu0 0.0
    %8890 = vmatprep.subr.mxu0 0.0
    %8891 = vmatpush1.msra.mxu0 0.0
    %8892 = vmatprep.subr.mxu0 0.0
    %8893 = vmatpush1.msra.mxu0 0.0
    %8894 = vmatprep.subr.mxu0 0.0
    %8895 = vmatpush1.msra.mxu0 0.0
    %8896 = vmatprep.subr.mxu0 0.0
    %8897 = vmatpush1.msra.mxu0 0.0
    %8898 = vmatprep.subr.mxu0 0.0
    %8899 = vmatpush1.msra.mxu0 0.0
    %8900 = vmatprep.subr.mxu0 0.0
    %8901 = vmatpush1.msra.mxu0 0.0
    %8902 = vmatprep.subr.mxu0 0.0
    %8903 = vmatpush1.msra.mxu0 0.0
    %8904 = vmatprep.subr.mxu0 0.0
    %8905 = vmatpush1.msra.mxu0 0.0
    %8906 = vmatprep.subr.mxu0 0.0
    %8907 = vmatpush1.msra.mxu0 0.0
    %8908 = vmatprep.subr.mxu0 0.0
    %8909 = vmatpush1.msra.mxu0 0.0
    %8910 = vmatprep.subr.mxu0 0.0
    %8911 = vmatpush1.msra.mxu0 0.0
    %8912 = vmatprep.subr.mxu0 0.0
    %8913 = vmatpush1.msra.mxu0 0.0
    %8914 = vmatprep.subr.mxu0 0.0
    %8915 = vmatpush1.msra.mxu0 0.0
    %8916 = vmatprep.subr.mxu0 0.0
    %8917 = vmatpush1.msra.mxu0 0.0
    %8918 = vmatprep.subr.mxu0 0.0
    %8919 = vmatpush1.msra.mxu0 0.0
    %8920 = vmatprep.subr.mxu0 0.0
    %8921 = vmatpush1.msra.mxu0 0.0
    %8922 = vmatprep.subr.mxu0 0.0
    %8923 = vmatpush1.msra.mxu0 0.0
    %8924 = vmatprep.subr.mxu0 0.0
    %8925 = vmatpush1.msra.mxu0 0.0
    %8926 = vmatprep.subr.mxu0 0.0
    %8927 = vmatpush1.msra.mxu0 0.0
    %8928 = vmatprep.mubr.f32.mxu0 0.0
    %v8929 = vand.u32 %v8762, 4294901760
    %8930 = vmatmul.mubr.f32.gmra.mrb[0].mxu0 %v8929
    %v8931 = vpop.f32.mrb[0].mxu0
    %v8932 = vadd.f32 %v8841, %v8931
    %v8933 = vpop.f32.mrb[0].mxu0
    %8934 = vmatprep.mubr.f32.mxu0 0.0
    %v8935 = vand.u32 %v8765, 4294901760
    %8936 = vmatmul.mubr.f32.gmra.mrb[0].mxu0 %v8935
    %v8937 = vpop.f32.mrb[0].mxu0
    %v8938 = vadd.f32 %v8851, %v8937
    %v8939 = vpop.f32.mrb[0].mxu0
    %8940 = vdwg.mxu0
    %8941 = vmatprep.subr.mxu0 0.0
    %v8942 = vand.u32 %v7179, 4294901760
    %v8943 = vsub.f32 %v7179, %v8942
    %8944 = vmatpush1.msra.mxu0 %v8943
    %8945 = vmatprep.subr.mxu0 0.0
    %v8946 = vand.u32 %v7716, 4294901760
    %v8947 = vsub.f32 %v7716, %v8946
    %8948 = vmatpush1.msra.mxu0 %v8947
    %8949 = vmatprep.subr.mxu0 0.0
    %8950 = vmatpush1.msra.mxu0 0.0
    %8951 = vmatprep.subr.mxu0 0.0
    %8952 = vmatpush1.msra.mxu0 0.0
    %8953 = vmatprep.subr.mxu0 0.0
    %8954 = vmatpush1.msra.mxu0 0.0
    %8955 = vmatprep.subr.mxu0 0.0
    %8956 = vmatpush1.msra.mxu0 0.0
    %8957 = vmatprep.subr.mxu0 0.0
    %8958 = vmatpush1.msra.mxu0 0.0
    %8959 = vmatprep.subr.mxu0 0.0
    %8960 = vmatpush1.msra.mxu0 0.0
    %8961 = vmatprep.subr.mxu0 0.0
    %8962 = vmatpush1.msra.mxu0 0.0
    %8963 = vmatprep.subr.mxu0 0.0
    %8964 = vmatpush1.msra.mxu0 0.0
    %8965 = vmatprep.subr.mxu0 0.0
    %8966 = vmatpush1.msra.mxu0 0.0
    %8967 = vmatprep.subr.mxu0 0.0
    %8968 = vmatpush1.msra.mxu0 0.0
    %8969 = vmatprep.subr.mxu0 0.0
    %8970 = vmatpush1.msra.mxu0 0.0
    %8971 = vmatprep.subr.mxu0 0.0
    %8972 = vmatpush1.msra.mxu0 0.0
    %8973 = vmatprep.subr.mxu0 0.0
    %8974 = vmatpush1.msra.mxu0 0.0
    %8975 = vmatprep.subr.mxu0 0.0
    %8976 = vmatpush1.msra.mxu0 0.0
    %8977 = vmatprep.subr.mxu0 0.0
    %8978 = vmatpush1.msra.mxu0 0.0
    %8979 = vmatprep.subr.mxu0 0.0
    %8980 = vmatpush1.msra.mxu0 0.0
    %8981 = vmatprep.subr.mxu0 0.0
    %8982 = vmatpush1.msra.mxu0 0.0
    %8983 = vmatprep.subr.mxu0 0.0
    %8984 = vmatpush1.msra.mxu0 0.0
    %8985 = vmatprep.subr.mxu0 0.0
    %8986 = vmatpush1.msra.mxu0 0.0
    %8987 = vmatprep.subr.mxu0 0.0
    %8988 = vmatpush1.msra.mxu0 0.0
    %8989 = vmatprep.subr.mxu0 0.0
    %8990 = vmatpush1.msra.mxu0 0.0
    %8991 = vmatprep.subr.mxu0 0.0
    %8992 = vmatpush1.msra.mxu0 0.0
    %8993 = vmatprep.subr.mxu0 0.0
    %8994 = vmatpush1.msra.mxu0 0.0
    %8995 = vmatprep.subr.mxu0 0.0
    %8996 = vmatpush1.msra.mxu0 0.0
    %8997 = vmatprep.subr.mxu0 0.0
    %8998 = vmatpush1.msra.mxu0 0.0
    %8999 = vmatprep.subr.mxu0 0.0
    %9000 = vmatpush1.msra.mxu0 0.0
    %9001 = vmatprep.subr.mxu0 0.0
    %9002 = vmatpush1.msra.mxu0 0.0
    %9003 = vmatprep.subr.mxu0 0.0
    %9004 = vmatpush1.msra.mxu0 0.0
    %9005 = vmatprep.subr.mxu0 0.0
    %9006 = vmatpush1.msra.mxu0 0.0
    %9007 = vmatprep.subr.mxu0 0.0
    %9008 = vmatpush1.msra.mxu0 0.0
    %9009 = vmatprep.mubr.f32.mxu0 0.0
    %v9010 = vand.u32 %v8762, 4294901760
    %v9011 = vsub.f32 %v8762, %v9010
    %9012 = vmatmul.mubr.f32.gmra.mrb[0].mxu0 %v9011
    %v9013 = vpop.f32.mrb[0].mxu0
    %v9014 = vadd.f32 %v8932, %v9013
    %v9015 = vpop.f32.mrb[0].mxu0
    %9016 = vmatprep.mubr.f32.mxu0 0.0
    %v9017 = vand.u32 %v8765, 4294901760
    %v9018 = vsub.f32 %v8765, %v9017
    %9019 = vmatmul.mubr.f32.gmra.mrb[0].mxu0 %v9018
    %v9020 = vpop.f32.mrb[0].mxu0
    %v9021 = vadd.f32 %v8938, %v9020
    %v9022 = vpop.f32.mrb[0].mxu0
    %9023 = vdwg.mxu0
    %9024 = vmatprep.subr.mxu0 0.0
    %v9025 = vand.u32 %v7179, 4294901760
    %9026 = vmatpush1.msra.mxu0 %v9025
    %9027 = vmatprep.subr.mxu0 0.0
    %v9028 = vand.u32 %v7716, 4294901760
    %9029 = vmatpush1.msra.mxu0 %v9028
    %9030 = vmatprep.subr.mxu0 0.0
    %9031 = vmatpush1.msra.mxu0 0.0
    %9032 = vmatprep.subr.mxu0 0.0
    %9033 = vmatpush1.msra.mxu0 0.0
    %9034 = vmatprep.subr.mxu0 0.0
    %9035 = vmatpush1.msra.mxu0 0.0
    %9036 = vmatprep.subr.mxu0 0.0
    %9037 = vmatpush1.msra.mxu0 0.0
    %9038 = vmatprep.subr.mxu0 0.0
    %9039 = vmatpush1.msra.mxu0 0.0
    %9040 = vmatprep.subr.mxu0 0.0
    %9041 = vmatpush1.msra.mxu0 0.0
    %9042 = vmatprep.subr.mxu0 0.0
    %9043 = vmatpush1.msra.mxu0 0.0
    %9044 = vmatprep.subr.mxu0 0.0
    %9045 = vmatpush1.msra.mxu0 0.0
    %9046 = vmatprep.subr.mxu0 0.0
    %9047 = vmatpush1.msra.mxu0 0.0
    %9048 = vmatprep.subr.mxu0 0.0
    %9049 = vmatpush1.msra.mxu0 0.0
    %9050 = vmatprep.subr.mxu0 0.0
    %9051 = vmatpush1.msra.mxu0 0.0
    %9052 = vmatprep.subr.mxu0 0.0
    %9053 = vmatpush1.msra.mxu0 0.0
    %9054 = vmatprep.subr.mxu0 0.0
    %9055 = vmatpush1.msra.mxu0 0.0
    %9056 = vmatprep.subr.mxu0 0.0
    %9057 = vmatpush1.msra.mxu0 0.0
    %9058 = vmatprep.subr.mxu0 0.0
    %9059 = vmatpush1.msra.mxu0 0.0
    %9060 = vmatprep.subr.mxu0 0.0
    %9061 = vmatpush1.msra.mxu0 0.0
    %9062 = vmatprep.subr.mxu0 0.0
    %9063 = vmatpush1.msra.mxu0 0.0
    %9064 = vmatprep.subr.mxu0 0.0
    %9065 = vmatpush1.msra.mxu0 0.0
    %9066 = vmatprep.subr.mxu0 0.0
    %9067 = vmatpush1.msra.mxu0 0.0
    %9068 = vmatprep.subr.mxu0 0.0
    %9069 = vmatpush1.msra.mxu0 0.0
    %9070 = vmatprep.subr.mxu0 0.0
    %9071 = vmatpush1.msra.mxu0 0.0
    %9072 = vmatprep.subr.mxu0 0.0
    %9073 = vmatpush1.msra.mxu0 0.0
    %9074 = vmatprep.subr.mxu0 0.0
    %9075 = vmatpush1.msra.mxu0 0.0
    %9076 = vmatprep.subr.mxu0 0.0
    %9077 = vmatpush1.msra.mxu0 0.0
    %9078 = vmatprep.subr.mxu0 0.0
    %9079 = vmatpush1.msra.mxu0 0.0
    %9080 = vmatprep.subr.mxu0 0.0
    %9081 = vmatpush1.msra.mxu0 0.0
    %9082 = vmatprep.subr.mxu0 0.0
    %9083 = vmatpush1.msra.mxu0 0.0
    %9084 = vmatprep.subr.mxu0 0.0
    %9085 = vmatpush1.msra.mxu0 0.0
    %9086 = vmatprep.subr.mxu0 0.0
    %9087 = vmatpush1.msra.mxu0 0.0
    %9088 = vmatprep.subr.mxu0 0.0
    %9089 = vmatpush1.msra.mxu0 0.0
    %9090 = vmatprep.mubr.f32.mxu0 0.0
    %v9091 = vand.u32 %v8762, 4294901760
    %v9092 = vsub.f32 %v8762, %v9091
    %v9093 = vand.u32 %v9092, 4294901760
    %9094 = vmatmul.mubr.f32.gmra.mrb[0].mxu0 %v9093
    %v9095 = vpop.f32.mrb[0].mxu0
    %v9096 = vadd.f32 %v9014, %v9095
    %v9097 = vpop.f32.mrb[0].mxu0
    %9098 = vmatprep.mubr.f32.mxu0 0.0
    %v9099 = vand.u32 %v8765, 4294901760
    %v9100 = vsub.f32 %v8765, %v9099
    %v9101 = vand.u32 %v9100, 4294901760
    %9102 = vmatmul.mubr.f32.gmra.mrb[0].mxu0 %v9101
    %v9103 = vpop.f32.mrb[0].mxu0
    %v9104 = vadd.f32 %v9021, %v9103
    %v9105 = vpop.f32.mrb[0].mxu0
    %9106 = vdwg.mxu0
    %9107 = vmatprep.subr.mxu0 0.0
    %v9108 = vand.u32 %v7179, 4294901760
    %v9109 = vsub.f32 %v7179, %v9108
    %v9110 = vand.u32 %v9109, 4294901760
    %9111 = vmatpush1.msra.mxu0 %v9110
    %9112 = vmatprep.subr.mxu0 0.0
    %v9113 = vand.u32 %v7716, 4294901760
    %v9114 = vsub.f32 %v7716, %v9113
    %v9115 = vand.u32 %v9114, 4294901760
    %9116 = vmatpush1.msra.mxu0 %v9115
    %9117 = vmatprep.subr.mxu0 0.0
    %9118 = vmatpush1.msra.mxu0 0.0
    %9119 = vmatprep.subr.mxu0 0.0
    %9120 = vmatpush1.msra.mxu0 0.0
    %9121 = vmatprep.subr.mxu0 0.0
    %9122 = vmatpush1.msra.mxu0 0.0
    %9123 = vmatprep.subr.mxu0 0.0
    %9124 = vmatpush1.msra.mxu0 0.0
    %9125 = vmatprep.subr.mxu0 0.0
    %9126 = vmatpush1.msra.mxu0 0.0
    %9127 = vmatprep.subr.mxu0 0.0
    %9128 = vmatpush1.msra.mxu0 0.0
    %9129 = vmatprep.subr.mxu0 0.0
    %9130 = vmatpush1.msra.mxu0 0.0
    %9131 = vmatprep.subr.mxu0 0.0
    %9132 = vmatpush1.msra.mxu0 0.0
    %9133 = vmatprep.subr.mxu0 0.0
    %9134 = vmatpush1.msra.mxu0 0.0
    %9135 = vmatprep.subr.mxu0 0.0
    %9136 = vmatpush1.msra.mxu0 0.0
    %9137 = vmatprep.subr.mxu0 0.0
    %9138 = vmatpush1.msra.mxu0 0.0
    %9139 = vmatprep.subr.mxu0 0.0
    %9140 = vmatpush1.msra.mxu0 0.0
    %9141 = vmatprep.subr.mxu0 0.0
    %9142 = vmatpush1.msra.mxu0 0.0
    %9143 = vmatprep.subr.mxu0 0.0
    %9144 = vmatpush1.msra.mxu0 0.0
    %9145 = vmatprep.subr.mxu0 0.0
    %9146 = vmatpush1.msra.mxu0 0.0
    %9147 = vmatprep.subr.mxu0 0.0
    %9148 = vmatpush1.msra.mxu0 0.0
    %9149 = vmatprep.subr.mxu0 0.0
    %9150 = vmatpush1.msra.mxu0 0.0
    %9151 = vmatprep.subr.mxu0 0.0
    %9152 = vmatpush1.msra.mxu0 0.0
    %9153 = vmatprep.subr.mxu0 0.0
    %9154 = vmatpush1.msra.mxu0 0.0
    %9155 = vmatprep.subr.mxu0 0.0
    %9156 = vmatpush1.msra.mxu0 0.0
    %9157 = vmatprep.subr.mxu0 0.0
    %9158 = vmatpush1.msra.mxu0 0.0
    %9159 = vmatprep.subr.mxu0 0.0
    %9160 = vmatpush1.msra.mxu0 0.0
    %9161 = vmatprep.subr.mxu0 0.0
    %9162 = vmatpush1.msra.mxu0 0.0
    %9163 = vmatprep.subr.mxu0 0.0
    %9164 = vmatpush1.msra.mxu0 0.0
    %9165 = vmatprep.subr.mxu0 0.0
    %9166 = vmatpush1.msra.mxu0 0.0
    %9167 = vmatprep.subr.mxu0 0.0
    %9168 = vmatpush1.msra.mxu0 0.0
    %9169 = vmatprep.subr.mxu0 0.0
    %9170 = vmatpush1.msra.mxu0 0.0
    %9171 = vmatprep.subr.mxu0 0.0
    %9172 = vmatpush1.msra.mxu0 0.0
    %9173 = vmatprep.subr.mxu0 0.0
    %9174 = vmatpush1.msra.mxu0 0.0
    %9175 = vmatprep.subr.mxu0 0.0
    %9176 = vmatpush1.msra.mxu0 0.0
    %9177 = vmatprep.mubr.f32.mxu0 0.0
    %v9178 = vand.u32 %v8762, 4294901760
    %9179 = vmatmul.mubr.f32.gmra.mrb[0].mxu0 %v9178
    %v9180 = vpop.f32.mrb[0].mxu0
    %v9181 = vadd.f32 %v9096, %v9180
    %v9182 = vpop.f32.mrb[0].mxu0
    %9183 = vmatprep.mubr.f32.mxu0 0.0
    %v9184 = vand.u32 %v8765, 4294901760
    %9185 = vmatmul.mubr.f32.gmra.mrb[0].mxu0 %v9184
    %v9186 = vpop.f32.mrb[0].mxu0
    %v9187 = vadd.f32 %v9104, %v9186
    %v9188 = vpop.f32.mrb[0].mxu0
    %9189 = vdwg.mxu0
    %9190 = vmatprep.subr.mxu0 0.0
    %v9191 = vand.u32 %v7179, 4294901760
    %9192 = vmatpush1.msra.mxu0 %v9191
    %9193 = vmatprep.subr.mxu0 0.0
    %v9194 = vand.u32 %v7716, 4294901760
    %9195 = vmatpush1.msra.mxu0 %v9194
    %9196 = vmatprep.subr.mxu0 0.0
    %9197 = vmatpush1.msra.mxu0 0.0
    %9198 = vmatprep.subr.mxu0 0.0
    %9199 = vmatpush1.msra.mxu0 0.0
    %9200 = vmatprep.subr.mxu0 0.0
    %9201 = vmatpush1.msra.mxu0 0.0
    %9202 = vmatprep.subr.mxu0 0.0
    %9203 = vmatpush1.msra.mxu0 0.0
    %9204 = vmatprep.subr.mxu0 0.0
    %9205 = vmatpush1.msra.mxu0 0.0
    %9206 = vmatprep.subr.mxu0 0.0
    %9207 = vmatpush1.msra.mxu0 0.0
    %9208 = vmatprep.subr.mxu0 0.0
    %9209 = vmatpush1.msra.mxu0 0.0
    %9210 = vmatprep.subr.mxu0 0.0
    %9211 = vmatpush1.msra.mxu0 0.0
    %9212 = vmatprep.subr.mxu0 0.0
    %9213 = vmatpush1.msra.mxu0 0.0
    %9214 = vmatprep.subr.mxu0 0.0
    %9215 = vmatpush1.msra.mxu0 0.0
    %9216 = vmatprep.subr.mxu0 0.0
    %9217 = vmatpush1.msra.mxu0 0.0
    %9218 = vmatprep.subr.mxu0 0.0
    %9219 = vmatpush1.msra.mxu0 0.0
    %9220 = vmatprep.subr.mxu0 0.0
    %9221 = vmatpush1.msra.mxu0 0.0
    %9222 = vmatprep.subr.mxu0 0.0
    %9223 = vmatpush1.msra.mxu0 0.0
    %9224 = vmatprep.subr.mxu0 0.0
    %9225 = vmatpush1.msra.mxu0 0.0
    %9226 = vmatprep.subr.mxu0 0.0
    %9227 = vmatpush1.msra.mxu0 0.0
    %9228 = vmatprep.subr.mxu0 0.0
    %9229 = vmatpush1.msra.mxu0 0.0
    %9230 = vmatprep.subr.mxu0 0.0
    %9231 = vmatpush1.msra.mxu0 0.0
    %9232 = vmatprep.subr.mxu0 0.0
    %9233 = vmatpush1.msra.mxu0 0.0
    %9234 = vmatprep.subr.mxu0 0.0
    %9235 = vmatpush1.msra.mxu0 0.0
    %9236 = vmatprep.subr.mxu0 0.0
    %9237 = vmatpush1.msra.mxu0 0.0
    %9238 = vmatprep.subr.mxu0 0.0
    %9239 = vmatpush1.msra.mxu0 0.0
    %9240 = vmatprep.subr.mxu0 0.0
    %9241 = vmatpush1.msra.mxu0 0.0
    %9242 = vmatprep.subr.mxu0 0.0
    %9243 = vmatpush1.msra.mxu0 0.0
    %9244 = vmatprep.subr.mxu0 0.0
    %9245 = vmatpush1.msra.mxu0 0.0
    %9246 = vmatprep.subr.mxu0 0.0
    %9247 = vmatpush1.msra.mxu0 0.0
    %9248 = vmatprep.subr.mxu0 0.0
    %9249 = vmatpush1.msra.mxu0 0.0
    %9250 = vmatprep.subr.mxu0 0.0
    %9251 = vmatpush1.msra.mxu0 0.0
    %9252 = vmatprep.subr.mxu0 0.0
    %9253 = vmatpush1.msra.mxu0 0.0
    %9254 = vmatprep.subr.mxu0 0.0
    %9255 = vmatpush1.msra.mxu0 0.0
    %9256 = vmatprep.mubr.f32.mxu0 0.0
    %v9257 = vand.u32 %v8762, 4294901760
    %9258 = vmatmul.mubr.f32.gmra.mrb[0].mxu0 %v9257
    %v9259 = vpop.f32.mrb[0].mxu0
    %v9260 = vadd.f32 %v9181, %v9259
    %v9261 = vpop.f32.mrb[0].mxu0
    %9262 = vmatprep.mubr.f32.mxu0 0.0
    %v9263 = vand.u32 %v8765, 4294901760
    %9264 = vmatmul.mubr.f32.gmra.mrb[0].mxu0 %v9263
    %v9265 = vpop.f32.mrb[0].mxu0
    %v9266 = vadd.f32 %v9187, %v9265
    %v9267 = vpop.f32.mrb[0].mxu0
    %9268 = vdwg.mxu0
    %v9269 = vmul.f32 %v7694, %v9260
    %v9270 = vmul.f32 %v7700, %v9266
    %v9272 = vsel %vm8222, %v9269, 0
    %v9275 = vsel %vm8222, %v9270, 0
    %9277 = vmatprep.subr.mxu0 0.0
    %v9278 = vand.u32 %v7182, 4294901760
    %9279 = vmatpush1.msra.mxu0 %v9278
    %9280 = vmatprep.subr.mxu0 0.0
    %v9281 = vand.u32 %v7183, 4294901760
    %9282 = vmatpush1.msra.mxu0 %v9281
    %9283 = vmatprep.subr.mxu0 0.0
    %v9284 = vand.u32 %v7184, 4294901760
    %9285 = vmatpush1.msra.mxu0 %v9284
    %9286 = vmatprep.subr.mxu0 0.0
    %v9287 = vand.u32 %v8231, 4294901760
    %9288 = vmatpush1.msra.mxu0 %v9287
    %9289 = vmatprep.subr.mxu0 0.0
    %9290 = vmatpush1.msra.mxu0 0.0
    %9291 = vmatprep.subr.mxu0 0.0
    %9292 = vmatpush1.msra.mxu0 0.0
    %9293 = vmatprep.subr.mxu0 0.0
    %9294 = vmatpush1.msra.mxu0 0.0
    %9295 = vmatprep.subr.mxu0 0.0
    %9296 = vmatpush1.msra.mxu0 0.0
    %9297 = vmatprep.subr.mxu0 0.0
    %9298 = vmatpush1.msra.mxu0 0.0
    %9299 = vmatprep.subr.mxu0 0.0
    %9300 = vmatpush1.msra.mxu0 0.0
    %9301 = vmatprep.subr.mxu0 0.0
    %9302 = vmatpush1.msra.mxu0 0.0
    %9303 = vmatprep.subr.mxu0 0.0
    %9304 = vmatpush1.msra.mxu0 0.0
    %9305 = vmatprep.subr.mxu0 0.0
    %9306 = vmatpush1.msra.mxu0 0.0
    %9307 = vmatprep.subr.mxu0 0.0
    %9308 = vmatpush1.msra.mxu0 0.0
    %9309 = vmatprep.subr.mxu0 0.0
    %9310 = vmatpush1.msra.mxu0 0.0
    %9311 = vmatprep.subr.mxu0 0.0
    %9312 = vmatpush1.msra.mxu0 0.0
    %9313 = vmatprep.subr.mxu0 0.0
    %9314 = vmatpush1.msra.mxu0 0.0
    %9315 = vmatprep.subr.mxu0 0.0
    %9316 = vmatpush1.msra.mxu0 0.0
    %9317 = vmatprep.subr.mxu0 0.0
    %9318 = vmatpush1.msra.mxu0 0.0
    %9319 = vmatprep.subr.mxu0 0.0
    %9320 = vmatpush1.msra.mxu0 0.0
    %9321 = vmatprep.subr.mxu0 0.0
    %9322 = vmatpush1.msra.mxu0 0.0
    %9323 = vmatprep.subr.mxu0 0.0
    %9324 = vmatpush1.msra.mxu0 0.0
    %9325 = vmatprep.subr.mxu0 0.0
    %9326 = vmatpush1.msra.mxu0 0.0
    %9327 = vmatprep.subr.mxu0 0.0
    %9328 = vmatpush1.msra.mxu0 0.0
    %9329 = vmatprep.subr.mxu0 0.0
    %9330 = vmatpush1.msra.mxu0 0.0
    %9331 = vmatprep.subr.mxu0 0.0
    %9332 = vmatpush1.msra.mxu0 0.0
    %9333 = vmatprep.subr.mxu0 0.0
    %9334 = vmatpush1.msra.mxu0 0.0
    %9335 = vmatprep.subr.mxu0 0.0
    %9336 = vmatpush1.msra.mxu0 0.0
    %9337 = vmatprep.subr.mxu0 0.0
    %9338 = vmatpush1.msra.mxu0 0.0
    %9339 = vmatprep.subr.mxu0 0.0
    %9340 = vmatpush1.msra.mxu0 0.0
    %9341 = vmatprep.subr.mxu0 0.0
    %9342 = vmatpush1.msra.mxu0 0.0
    %9343 = vmatprep.subr.mxu0 0.0
    %9344 = vmatpush1.msra.mxu0 0.0
    %9345 = vmatprep.mubr.f32.mxu0 0.0
    %v9346 = vand.u32 %v9272, 4294901760
    %v9347 = vsub.f32 %v9272, %v9346
    %v9348 = vand.u32 %v9347, 4294901760
    %v9349 = vsub.f32 %v9347, %v9348
    %v9350 = vand.u32 %v9349, 4294901760
    %9351 = vmatmul.mubr.f32.gmra.mrb[0].mxu0 %v9350
    %v9352 = vpop.f32.mrb[0].mxu0
    %v9353 = vadd.f32 0.0, %v9352
    %v9354 = vpop.f32.mrb[0].mxu0
    %9355 = vmatprep.mubr.f32.mxu0 0.0
    %v9356 = vand.u32 %v9275, 4294901760
    %v9357 = vsub.f32 %v9275, %v9356
    %v9358 = vand.u32 %v9357, 4294901760
    %v9359 = vsub.f32 %v9357, %v9358
    %v9360 = vand.u32 %v9359, 4294901760
    %9361 = vmatmul.mubr.f32.gmra.mrb[0].mxu0 %v9360
    %v9362 = vpop.f32.mrb[0].mxu0
    %v9363 = vadd.f32 0.0, %v9362
    %v9364 = vpop.f32.mrb[0].mxu0
    %9365 = vdwg.mxu0
    %9366 = vmatprep.subr.mxu0 0.0
    %v9367 = vand.u32 %v7182, 4294901760
    %v9368 = vsub.f32 %v7182, %v9367
    %v9369 = vand.u32 %v9368, 4294901760
    %v9370 = vsub.f32 %v9368, %v9369
    %v9371 = vand.u32 %v9370, 4294901760
    %9372 = vmatpush1.msra.mxu0 %v9371
    %9373 = vmatprep.subr.mxu0 0.0
    %v9374 = vand.u32 %v7183, 4294901760
    %v9375 = vsub.f32 %v7183, %v9374
    %v9376 = vand.u32 %v9375, 4294901760
    %v9377 = vsub.f32 %v9375, %v9376
    %v9378 = vand.u32 %v9377, 4294901760
    %9379 = vmatpush1.msra.mxu0 %v9378
    %9380 = vmatprep.subr.mxu0 0.0
    %v9381 = vand.u32 %v7184, 4294901760
    %v9382 = vsub.f32 %v7184, %v9381
    %v9383 = vand.u32 %v9382, 4294901760
    %v9384 = vsub.f32 %v9382, %v9383
    %v9385 = vand.u32 %v9384, 4294901760
    %9386 = vmatpush1.msra.mxu0 %v9385
    %9387 = vmatprep.subr.mxu0 0.0
    %v9388 = vand.u32 %v8231, 4294901760
    %v9389 = vsub.f32 %v8231, %v9388
    %v9390 = vand.u32 %v9389, 4294901760
    %v9391 = vsub.f32 %v9389, %v9390
    %v9392 = vand.u32 %v9391, 4294901760
    %9393 = vmatpush1.msra.mxu0 %v9392
    %9394 = vmatprep.subr.mxu0 0.0
    %9395 = vmatpush1.msra.mxu0 0.0
    %9396 = vmatprep.subr.mxu0 0.0
    %9397 = vmatpush1.msra.mxu0 0.0
    %9398 = vmatprep.subr.mxu0 0.0
    %9399 = vmatpush1.msra.mxu0 0.0
    %9400 = vmatprep.subr.mxu0 0.0
    %9401 = vmatpush1.msra.mxu0 0.0
    %9402 = vmatprep.subr.mxu0 0.0
    %9403 = vmatpush1.msra.mxu0 0.0
    %9404 = vmatprep.subr.mxu0 0.0
    %9405 = vmatpush1.msra.mxu0 0.0
    %9406 = vmatprep.subr.mxu0 0.0
    %9407 = vmatpush1.msra.mxu0 0.0
    %9408 = vmatprep.subr.mxu0 0.0
    %9409 = vmatpush1.msra.mxu0 0.0
    %9410 = vmatprep.subr.mxu0 0.0
    %9411 = vmatpush1.msra.mxu0 0.0
    %9412 = vmatprep.subr.mxu0 0.0
    %9413 = vmatpush1.msra.mxu0 0.0
    %9414 = vmatprep.subr.mxu0 0.0
    %9415 = vmatpush1.msra.mxu0 0.0
    %9416 = vmatprep.subr.mxu0 0.0
    %9417 = vmatpush1.msra.mxu0 0.0
    %9418 = vmatprep.subr.mxu0 0.0
    %9419 = vmatpush1.msra.mxu0 0.0
    %9420 = vmatprep.subr.mxu0 0.0
    %9421 = vmatpush1.msra.mxu0 0.0
    %9422 = vmatprep.subr.mxu0 0.0
    %9423 = vmatpush1.msra.mxu0 0.0
    %9424 = vmatprep.subr.mxu0 0.0
    %9425 = vmatpush1.msra.mxu0 0.0
    %9426 = vmatprep.subr.mxu0 0.0
    %9427 = vmatpush1.msra.mxu0 0.0
    %9428 = vmatprep.subr.mxu0 0.0
    %9429 = vmatpush1.msra.mxu0 0.0
    %9430 = vmatprep.subr.mxu0 0.0
    %9431 = vmatpush1.msra.mxu0 0.0
    %9432 = vmatprep.subr.mxu0 0.0
    %9433 = vmatpush1.msra.mxu0 0.0
    %9434 = vmatprep.subr.mxu0 0.0
    %9435 = vmatpush1.msra.mxu0 0.0
    %9436 = vmatprep.subr.mxu0 0.0
    %9437 = vmatpush1.msra.mxu0 0.0
    %9438 = vmatprep.subr.mxu0 0.0
    %9439 = vmatpush1.msra.mxu0 0.0
    %9440 = vmatprep.subr.mxu0 0.0
    %9441 = vmatpush1.msra.mxu0 0.0
    %9442 = vmatprep.subr.mxu0 0.0
    %9443 = vmatpush1.msra.mxu0 0.0
    %9444 = vmatprep.subr.mxu0 0.0
    %9445 = vmatpush1.msra.mxu0 0.0
    %9446 = vmatprep.subr.mxu0 0.0
    %9447 = vmatpush1.msra.mxu0 0.0
    %9448 = vmatprep.subr.mxu0 0.0
    %9449 = vmatpush1.msra.mxu0 0.0
    %9450 = vmatprep.mubr.f32.mxu0 0.0
    %v9451 = vand.u32 %v9272, 4294901760
    %9452 = vmatmul.mubr.f32.gmra.mrb[0].mxu0 %v9451
    %v9453 = vpop.f32.mrb[0].mxu0
    %v9454 = vadd.f32 %v9353, %v9453
    %v9455 = vpop.f32.mrb[0].mxu0
    %9456 = vmatprep.mubr.f32.mxu0 0.0
    %v9457 = vand.u32 %v9275, 4294901760
    %9458 = vmatmul.mubr.f32.gmra.mrb[0].mxu0 %v9457
    %v9459 = vpop.f32.mrb[0].mxu0
    %v9460 = vadd.f32 %v9363, %v9459
    %v9461 = vpop.f32.mrb[0].mxu0
    %9462 = vdwg.mxu0
    %9463 = vmatprep.subr.mxu0 0.0
    %v9464 = vand.u32 %v7182, 4294901760
    %v9465 = vsub.f32 %v7182, %v9464
    %9466 = vmatpush1.msra.mxu0 %v9465
    %9467 = vmatprep.subr.mxu0 0.0
    %v9468 = vand.u32 %v7183, 4294901760
    %v9469 = vsub.f32 %v7183, %v9468
    %9470 = vmatpush1.msra.mxu0 %v9469
    %9471 = vmatprep.subr.mxu0 0.0
    %v9472 = vand.u32 %v7184, 4294901760
    %v9473 = vsub.f32 %v7184, %v9472
    %9474 = vmatpush1.msra.mxu0 %v9473
    %9475 = vmatprep.subr.mxu0 0.0
    %v9476 = vand.u32 %v8231, 4294901760
    %v9477 = vsub.f32 %v8231, %v9476
    %9478 = vmatpush1.msra.mxu0 %v9477
    %9479 = vmatprep.subr.mxu0 0.0
    %9480 = vmatpush1.msra.mxu0 0.0
    %9481 = vmatprep.subr.mxu0 0.0
    %9482 = vmatpush1.msra.mxu0 0.0
    %9483 = vmatprep.subr.mxu0 0.0
    %9484 = vmatpush1.msra.mxu0 0.0
    %9485 = vmatprep.subr.mxu0 0.0
    %9486 = vmatpush1.msra.mxu0 0.0
    %9487 = vmatprep.subr.mxu0 0.0
    %9488 = vmatpush1.msra.mxu0 0.0
    %9489 = vmatprep.subr.mxu0 0.0
    %9490 = vmatpush1.msra.mxu0 0.0
    %9491 = vmatprep.subr.mxu0 0.0
    %9492 = vmatpush1.msra.mxu0 0.0
    %9493 = vmatprep.subr.mxu0 0.0
    %9494 = vmatpush1.msra.mxu0 0.0
    %9495 = vmatprep.subr.mxu0 0.0
    %9496 = vmatpush1.msra.mxu0 0.0
    %9497 = vmatprep.subr.mxu0 0.0
    %9498 = vmatpush1.msra.mxu0 0.0
    %9499 = vmatprep.subr.mxu0 0.0
    %9500 = vmatpush1.msra.mxu0 0.0
    %9501 = vmatprep.subr.mxu0 0.0
    %9502 = vmatpush1.msra.mxu0 0.0
    %9503 = vmatprep.subr.mxu0 0.0
    %9504 = vmatpush1.msra.mxu0 0.0
    %9505 = vmatprep.subr.mxu0 0.0
    %9506 = vmatpush1.msra.mxu0 0.0
    %9507 = vmatprep.subr.mxu0 0.0
    %9508 = vmatpush1.msra.mxu0 0.0
    %9509 = vmatprep.subr.mxu0 0.0
    %9510 = vmatpush1.msra.mxu0 0.0
    %9511 = vmatprep.subr.mxu0 0.0
    %9512 = vmatpush1.msra.mxu0 0.0
    %9513 = vmatprep.subr.mxu0 0.0
    %9514 = vmatpush1.msra.mxu0 0.0
    %9515 = vmatprep.subr.mxu0 0.0
    %9516 = vmatpush1.msra.mxu0 0.0
    %9517 = vmatprep.subr.mxu0 0.0
    %9518 = vmatpush1.msra.mxu0 0.0
    %9519 = vmatprep.subr.mxu0 0.0
    %9520 = vmatpush1.msra.mxu0 0.0
    %9521 = vmatprep.subr.mxu0 0.0
    %9522 = vmatpush1.msra.mxu0 0.0
    %9523 = vmatprep.subr.mxu0 0.0
    %9524 = vmatpush1.msra.mxu0 0.0
    %9525 = vmatprep.subr.mxu0 0.0
    %9526 = vmatpush1.msra.mxu0 0.0
    %9527 = vmatprep.subr.mxu0 0.0
    %9528 = vmatpush1.msra.mxu0 0.0
    %9529 = vmatprep.subr.mxu0 0.0
    %9530 = vmatpush1.msra.mxu0 0.0
    %9531 = vmatprep.subr.mxu0 0.0
    %9532 = vmatpush1.msra.mxu0 0.0
    %9533 = vmatprep.subr.mxu0 0.0
    %9534 = vmatpush1.msra.mxu0 0.0
    %9535 = vmatprep.mubr.f32.mxu0 0.0
    %v9536 = vand.u32 %v9272, 4294901760
    %v9537 = vsub.f32 %v9272, %v9536
    %9538 = vmatmul.mubr.f32.gmra.mrb[0].mxu0 %v9537
    %v9539 = vpop.f32.mrb[0].mxu0
    %v9540 = vadd.f32 %v9454, %v9539
    %v9541 = vpop.f32.mrb[0].mxu0
    %9542 = vmatprep.mubr.f32.mxu0 0.0
    %v9543 = vand.u32 %v9275, 4294901760
    %v9544 = vsub.f32 %v9275, %v9543
    %9545 = vmatmul.mubr.f32.gmra.mrb[0].mxu0 %v9544
    %v9546 = vpop.f32.mrb[0].mxu0
    %v9547 = vadd.f32 %v9460, %v9546
    %v9548 = vpop.f32.mrb[0].mxu0
    %9549 = vdwg.mxu0
    %9550 = vmatprep.subr.mxu0 0.0
    %v9551 = vand.u32 %v7182, 4294901760
    %9552 = vmatpush1.msra.mxu0 %v9551
    %9553 = vmatprep.subr.mxu0 0.0
    %v9554 = vand.u32 %v7183, 4294901760
    %9555 = vmatpush1.msra.mxu0 %v9554
    %9556 = vmatprep.subr.mxu0 0.0
    %v9557 = vand.u32 %v7184, 4294901760
    %9558 = vmatpush1.msra.mxu0 %v9557
    %9559 = vmatprep.subr.mxu0 0.0
    %v9560 = vand.u32 %v8231, 4294901760
    %9561 = vmatpush1.msra.mxu0 %v9560
    %9562 = vmatprep.subr.mxu0 0.0
    %9563 = vmatpush1.msra.mxu0 0.0
    %9564 = vmatprep.subr.mxu0 0.0
    %9565 = vmatpush1.msra.mxu0 0.0
    %9566 = vmatprep.subr.mxu0 0.0
    %9567 = vmatpush1.msra.mxu0 0.0
    %9568 = vmatprep.subr.mxu0 0.0
    %9569 = vmatpush1.msra.mxu0 0.0
    %9570 = vmatprep.subr.mxu0 0.0
    %9571 = vmatpush1.msra.mxu0 0.0
    %9572 = vmatprep.subr.mxu0 0.0
    %9573 = vmatpush1.msra.mxu0 0.0
    %9574 = vmatprep.subr.mxu0 0.0
    %9575 = vmatpush1.msra.mxu0 0.0
    %9576 = vmatprep.subr.mxu0 0.0
    %9577 = vmatpush1.msra.mxu0 0.0
    %9578 = vmatprep.subr.mxu0 0.0
    %9579 = vmatpush1.msra.mxu0 0.0
    %9580 = vmatprep.subr.mxu0 0.0
    %9581 = vmatpush1.msra.mxu0 0.0
    %9582 = vmatprep.subr.mxu0 0.0
    %9583 = vmatpush1.msra.mxu0 0.0
    %9584 = vmatprep.subr.mxu0 0.0
    %9585 = vmatpush1.msra.mxu0 0.0
    %9586 = vmatprep.subr.mxu0 0.0
    %9587 = vmatpush1.msra.mxu0 0.0
    %9588 = vmatprep.subr.mxu0 0.0
    %9589 = vmatpush1.msra.mxu0 0.0
    %9590 = vmatprep.subr.mxu0 0.0
    %9591 = vmatpush1.msra.mxu0 0.0
    %9592 = vmatprep.subr.mxu0 0.0
    %9593 = vmatpush1.msra.mxu0 0.0
    %9594 = vmatprep.subr.mxu0 0.0
    %9595 = vmatpush1.msra.mxu0 0.0
    %9596 = vmatprep.subr.mxu0 0.0
    %9597 = vmatpush1.msra.mxu0 0.0
    %9598 = vmatprep.subr.mxu0 0.0
    %9599 = vmatpush1.msra.mxu0 0.0
    %9600 = vmatprep.subr.mxu0 0.0
    %9601 = vmatpush1.msra.mxu0 0.0
    %9602 = vmatprep.subr.mxu0 0.0
    %9603 = vmatpush1.msra.mxu0 0.0
    %9604 = vmatprep.subr.mxu0 0.0
    %9605 = vmatpush1.msra.mxu0 0.0
    %9606 = vmatprep.subr.mxu0 0.0
    %9607 = vmatpush1.msra.mxu0 0.0
    %9608 = vmatprep.subr.mxu0 0.0
    %9609 = vmatpush1.msra.mxu0 0.0
    %9610 = vmatprep.subr.mxu0 0.0
    %9611 = vmatpush1.msra.mxu0 0.0
    %9612 = vmatprep.subr.mxu0 0.0
    %9613 = vmatpush1.msra.mxu0 0.0
    %9614 = vmatprep.subr.mxu0 0.0
    %9615 = vmatpush1.msra.mxu0 0.0
    %9616 = vmatprep.subr.mxu0 0.0
    %9617 = vmatpush1.msra.mxu0 0.0
    %9618 = vmatprep.mubr.f32.mxu0 0.0
    %v9619 = vand.u32 %v9272, 4294901760
    %v9620 = vsub.f32 %v9272, %v9619
    %v9621 = vand.u32 %v9620, 4294901760
    %9622 = vmatmul.mubr.f32.gmra.mrb[0].mxu0 %v9621
    %v9623 = vpop.f32.mrb[0].mxu0
    %v9624 = vadd.f32 %v9540, %v9623
    %v9625 = vpop.f32.mrb[0].mxu0
    %9626 = vmatprep.mubr.f32.mxu0 0.0
    %v9627 = vand.u32 %v9275, 4294901760
    %v9628 = vsub.f32 %v9275, %v9627
    %v9629 = vand.u32 %v9628, 4294901760
    %9630 = vmatmul.mubr.f32.gmra.mrb[0].mxu0 %v9629
    %v9631 = vpop.f32.mrb[0].mxu0
    %v9632 = vadd.f32 %v9547, %v9631
    %v9633 = vpop.f32.mrb[0].mxu0
    %9634 = vdwg.mxu0
    %9635 = vmatprep.subr.mxu0 0.0
    %v9636 = vand.u32 %v7182, 4294901760
    %v9637 = vsub.f32 %v7182, %v9636
    %v9638 = vand.u32 %v9637, 4294901760
    %9639 = vmatpush1.msra.mxu0 %v9638
    %9640 = vmatprep.subr.mxu0 0.0
    %v9641 = vand.u32 %v7183, 4294901760
    %v9642 = vsub.f32 %v7183, %v9641
    %v9643 = vand.u32 %v9642, 4294901760
    %9644 = vmatpush1.msra.mxu0 %v9643
    %9645 = vmatprep.subr.mxu0 0.0
    %v9646 = vand.u32 %v7184, 4294901760
    %v9647 = vsub.f32 %v7184, %v9646
    %v9648 = vand.u32 %v9647, 4294901760
    %9649 = vmatpush1.msra.mxu0 %v9648
    %9650 = vmatprep.subr.mxu0 0.0
    %v9651 = vand.u32 %v8231, 4294901760
    %v9652 = vsub.f32 %v8231, %v9651
    %v9653 = vand.u32 %v9652, 4294901760
    %9654 = vmatpush1.msra.mxu0 %v9653
    %9655 = vmatprep.subr.mxu0 0.0
    %9656 = vmatpush1.msra.mxu0 0.0
    %9657 = vmatprep.subr.mxu0 0.0
    %9658 = vmatpush1.msra.mxu0 0.0
    %9659 = vmatprep.subr.mxu0 0.0
    %9660 = vmatpush1.msra.mxu0 0.0
    %9661 = vmatprep.subr.mxu0 0.0
    %9662 = vmatpush1.msra.mxu0 0.0
    %9663 = vmatprep.subr.mxu0 0.0
    %9664 = vmatpush1.msra.mxu0 0.0
    %9665 = vmatprep.subr.mxu0 0.0
    %9666 = vmatpush1.msra.mxu0 0.0
    %9667 = vmatprep.subr.mxu0 0.0
    %9668 = vmatpush1.msra.mxu0 0.0
    %9669 = vmatprep.subr.mxu0 0.0
    %9670 = vmatpush1.msra.mxu0 0.0
    %9671 = vmatprep.subr.mxu0 0.0
    %9672 = vmatpush1.msra.mxu0 0.0
    %9673 = vmatprep.subr.mxu0 0.0
    %9674 = vmatpush1.msra.mxu0 0.0
    %9675 = vmatprep.subr.mxu0 0.0
    %9676 = vmatpush1.msra.mxu0 0.0
    %9677 = vmatprep.subr.mxu0 0.0
    %9678 = vmatpush1.msra.mxu0 0.0
    %9679 = vmatprep.subr.mxu0 0.0
    %9680 = vmatpush1.msra.mxu0 0.0
    %9681 = vmatprep.subr.mxu0 0.0
    %9682 = vmatpush1.msra.mxu0 0.0
    %9683 = vmatprep.subr.mxu0 0.0
    %9684 = vmatpush1.msra.mxu0 0.0
    %9685 = vmatprep.subr.mxu0 0.0
    %9686 = vmatpush1.msra.mxu0 0.0
    %9687 = vmatprep.subr.mxu0 0.0
    %9688 = vmatpush1.msra.mxu0 0.0
    %9689 = vmatprep.subr.mxu0 0.0
    %9690 = vmatpush1.msra.mxu0 0.0
    %9691 = vmatprep.subr.mxu0 0.0
    %9692 = vmatpush1.msra.mxu0 0.0
    %9693 = vmatprep.subr.mxu0 0.0
    %9694 = vmatpush1.msra.mxu0 0.0
    %9695 = vmatprep.subr.mxu0 0.0
    %9696 = vmatpush1.msra.mxu0 0.0
    %9697 = vmatprep.subr.mxu0 0.0
    %9698 = vmatpush1.msra.mxu0 0.0
    %9699 = vmatprep.subr.mxu0 0.0
    %9700 = vmatpush1.msra.mxu0 0.0
    %9701 = vmatprep.subr.mxu0 0.0
    %9702 = vmatpush1.msra.mxu0 0.0
    %9703 = vmatprep.subr.mxu0 0.0
    %9704 = vmatpush1.msra.mxu0 0.0
    %9705 = vmatprep.subr.mxu0 0.0
    %9706 = vmatpush1.msra.mxu0 0.0
    %9707 = vmatprep.subr.mxu0 0.0
    %9708 = vmatpush1.msra.mxu0 0.0
    %9709 = vmatprep.subr.mxu0 0.0
    %9710 = vmatpush1.msra.mxu0 0.0
    %9711 = vmatprep.mubr.f32.mxu0 0.0
    %v9712 = vand.u32 %v9272, 4294901760
    %9713 = vmatmul.mubr.f32.gmra.mrb[0].mxu0 %v9712
    %v9714 = vpop.f32.mrb[0].mxu0
    %v9715 = vadd.f32 %v9624, %v9714
    %v9716 = vpop.f32.mrb[0].mxu0
    %9717 = vmatprep.mubr.f32.mxu0 0.0
    %v9718 = vand.u32 %v9275, 4294901760
    %9719 = vmatmul.mubr.f32.gmra.mrb[0].mxu0 %v9718
    %v9720 = vpop.f32.mrb[0].mxu0
    %v9721 = vadd.f32 %v9632, %v9720
    %v9722 = vpop.f32.mrb[0].mxu0
    %9723 = vdwg.mxu0
    %9724 = vmatprep.subr.mxu0 0.0
    %v9725 = vand.u32 %v7182, 4294901760
    %9726 = vmatpush1.msra.mxu0 %v9725
    %9727 = vmatprep.subr.mxu0 0.0
    %v9728 = vand.u32 %v7183, 4294901760
    %9729 = vmatpush1.msra.mxu0 %v9728
    %9730 = vmatprep.subr.mxu0 0.0
    %v9731 = vand.u32 %v7184, 4294901760
    %9732 = vmatpush1.msra.mxu0 %v9731
    %9733 = vmatprep.subr.mxu0 0.0
    %v9734 = vand.u32 %v8231, 4294901760
    %9735 = vmatpush1.msra.mxu0 %v9734
    %9736 = vmatprep.subr.mxu0 0.0
    %9737 = vmatpush1.msra.mxu0 0.0
    %9738 = vmatprep.subr.mxu0 0.0
    %9739 = vmatpush1.msra.mxu0 0.0
    %9740 = vmatprep.subr.mxu0 0.0
    %9741 = vmatpush1.msra.mxu0 0.0
    %9742 = vmatprep.subr.mxu0 0.0
    %9743 = vmatpush1.msra.mxu0 0.0
    %9744 = vmatprep.subr.mxu0 0.0
    %9745 = vmatpush1.msra.mxu0 0.0
    %9746 = vmatprep.subr.mxu0 0.0
    %9747 = vmatpush1.msra.mxu0 0.0
    %9748 = vmatprep.subr.mxu0 0.0
    %9749 = vmatpush1.msra.mxu0 0.0
    %9750 = vmatprep.subr.mxu0 0.0
    %9751 = vmatpush1.msra.mxu0 0.0
    %9752 = vmatprep.subr.mxu0 0.0
    %9753 = vmatpush1.msra.mxu0 0.0
    %9754 = vmatprep.subr.mxu0 0.0
    %9755 = vmatpush1.msra.mxu0 0.0
    %9756 = vmatprep.subr.mxu0 0.0
    %9757 = vmatpush1.msra.mxu0 0.0
    %9758 = vmatprep.subr.mxu0 0.0
    %9759 = vmatpush1.msra.mxu0 0.0
    %9760 = vmatprep.subr.mxu0 0.0
    %9761 = vmatpush1.msra.mxu0 0.0
    %9762 = vmatprep.subr.mxu0 0.0
    %9763 = vmatpush1.msra.mxu0 0.0
    %9764 = vmatprep.subr.mxu0 0.0
    %9765 = vmatpush1.msra.mxu0 0.0
    %9766 = vmatprep.subr.mxu0 0.0
    %9767 = vmatpush1.msra.mxu0 0.0
    %9768 = vmatprep.subr.mxu0 0.0
    %9769 = vmatpush1.msra.mxu0 0.0
    %9770 = vmatprep.subr.mxu0 0.0
    %9771 = vmatpush1.msra.mxu0 0.0
    %9772 = vmatprep.subr.mxu0 0.0
    %9773 = vmatpush1.msra.mxu0 0.0
    %9774 = vmatprep.subr.mxu0 0.0
    %9775 = vmatpush1.msra.mxu0 0.0
    %9776 = vmatprep.subr.mxu0 0.0
    %9777 = vmatpush1.msra.mxu0 0.0
    %9778 = vmatprep.subr.mxu0 0.0
    %9779 = vmatpush1.msra.mxu0 0.0
    %9780 = vmatprep.subr.mxu0 0.0
    %9781 = vmatpush1.msra.mxu0 0.0
    %9782 = vmatprep.subr.mxu0 0.0
    %9783 = vmatpush1.msra.mxu0 0.0
    %9784 = vmatprep.subr.mxu0 0.0
    %9785 = vmatpush1.msra.mxu0 0.0
    %9786 = vmatprep.subr.mxu0 0.0
    %9787 = vmatpush1.msra.mxu0 0.0
    %9788 = vmatprep.subr.mxu0 0.0
    %9789 = vmatpush1.msra.mxu0 0.0
    %9790 = vmatprep.subr.mxu0 0.0
    %9791 = vmatpush1.msra.mxu0 0.0
    %9792 = vmatprep.mubr.f32.mxu0 0.0
    %v9793 = vand.u32 %v9272, 4294901760
    %9794 = vmatmul.mubr.f32.gmra.mrb[0].mxu0 %v9793
    %v9795 = vpop.f32.mrb[0].mxu0
    %v9796 = vadd.f32 %v9715, %v9795
    %v9797 = vpop.f32.mrb[0].mxu0
    %9798 = vmatprep.mubr.f32.mxu0 0.0
    %v9799 = vand.u32 %v9275, 4294901760
    %9800 = vmatmul.mubr.f32.gmra.mrb[0].mxu0 %v9799
    %v9801 = vpop.f32.mrb[0].mxu0
    %v9802 = vadd.f32 %v9721, %v9801
    %v9803 = vpop.f32.mrb[0].mxu0
    %9804 = vdwg.mxu0
    %9806 = vset.pattern.permute.xlu0 0
    %9807 = vperm.xlu0 %9806, %v8752
    %v9808 = vpop.permute.xlu0 %9807
    %9811 = vset.pattern.permute.xlu0 0
    %9812 = vperm.xlu0 %9811, %v8758
    %v9813 = vpop.permute.xlu0 %9812
    %v9815 = vmul.f32 %v9808, %v45
    %v9816 = vmul.f32 %v9813, %v46
    %9817 = vset.pattern.permute.xlu0 1
    %9818 = vperm.xlu0 %9817, %v8752
    %v9819 = vpop.permute.xlu0 %9818
    %9821 = vset.pattern.permute.xlu0 1
    %9822 = vperm.xlu0 %9821, %v8758
    %v9823 = vpop.permute.xlu0 %9822
    %v9825 = vmul.f32 %v9819, %v45
    %v9826 = vmul.f32 %v9823, %v46
    %9829 = vrot.lane.b32.xlu0 %v9825, 96
    %v9830 = vpop.permute.xlu0 %9829
    %9831 = vrot.lane.b32.xlu0 %v9826, 96
    %v9832 = vpop.permute.xlu0 %9831
    %v9835 = vadd.f32 %v9815, %v9830
    %v9836 = vadd.f32 %v9816, %v9832
    %9837 = vset.pattern.permute.xlu0 2
    %9838 = vperm.xlu0 %9837, %v8752
    %v9839 = vpop.permute.xlu0 %9838
    %9841 = vset.pattern.permute.xlu0 2
    %9842 = vperm.xlu0 %9841, %v8758
    %v9843 = vpop.permute.xlu0 %9842
    %v9845 = vmul.f32 %v9839, %v45
    %v9846 = vmul.f32 %v9843, %v46
    %9849 = vrot.lane.b32.xlu0 %v9845, 64
    %v9850 = vpop.permute.xlu0 %9849
    %9851 = vrot.lane.b32.xlu0 %v9846, 64
    %v9852 = vpop.permute.xlu0 %9851
    %v9855 = vadd.f32 %v9835, %v9850
    %v9856 = vadd.f32 %v9836, %v9852
    %9857 = vset.pattern.permute.xlu0 3
    %9858 = vperm.xlu0 %9857, %v8752
    %v9859 = vpop.permute.xlu0 %9858
    %9861 = vset.pattern.permute.xlu0 3
    %9862 = vperm.xlu0 %9861, %v8758
    %v9863 = vpop.permute.xlu0 %9862
    %v9865 = vmul.f32 %v9859, %v45
    %v9866 = vmul.f32 %v9863, %v46
    %9867 = vset.pattern.permute.xlu0 4
    %9868 = vperm.xlu0 %9867, %v8752
    %v9869 = vpop.permute.xlu0 %9868
    %9871 = vset.pattern.permute.xlu0 4
    %9872 = vperm.xlu0 %9871, %v8758
    %v9873 = vpop.permute.xlu0 %9872
    %v9875 = vmul.f32 %v9869, %v45
    %v9876 = vmul.f32 %v9873, %v46
    %9879 = vrot.lane.b32.xlu0 %v9875, 96
    %v9880 = vpop.permute.xlu0 %9879
    %9881 = vrot.lane.b32.xlu0 %v9876, 96
    %v9882 = vpop.permute.xlu0 %9881
    %v9885 = vadd.f32 %v9865, %v9880
    %v9886 = vadd.f32 %v9866, %v9882
    %9887 = vset.pattern.permute.xlu0 5
    %9888 = vperm.xlu0 %9887, %v8752
    %v9889 = vpop.permute.xlu0 %9888
    %9891 = vset.pattern.permute.xlu0 5
    %9892 = vperm.xlu0 %9891, %v8758
    %v9893 = vpop.permute.xlu0 %9892
    %v9895 = vmul.f32 %v9889, %v45
    %v9896 = vmul.f32 %v9893, %v46
    %9899 = vrot.lane.b32.xlu0 %v9895, 64
    %v9900 = vpop.permute.xlu0 %9899
    %9901 = vrot.lane.b32.xlu0 %v9896, 64
    %v9902 = vpop.permute.xlu0 %9901
    %v9905 = vadd.f32 %v9885, %v9900
    %v9906 = vadd.f32 %v9886, %v9902
    %9907 = vset.pattern.permute.xlu0 6
    %9908 = vperm.xlu0 %9907, %v8752
    %v9909 = vpop.permute.xlu0 %9908
    %9911 = vset.pattern.permute.xlu0 6
    %9912 = vperm.xlu0 %9911, %v8758
    %v9913 = vpop.permute.xlu0 %9912
    %v9915 = vmul.f32 %v9909, %v45
    %v9916 = vmul.f32 %v9913, %v46
    %9917 = vset.pattern.permute.xlu0 7
    %9918 = vperm.xlu0 %9917, %v8752
    %v9919 = vpop.permute.xlu0 %9918
    %9921 = vset.pattern.permute.xlu0 7
    %9922 = vperm.xlu0 %9921, %v8758
    %v9923 = vpop.permute.xlu0 %9922
    %v9925 = vmul.f32 %v9919, %v45
    %v9926 = vmul.f32 %v9923, %v46
    %9929 = vrot.lane.b32.xlu0 %v9925, 96
    %v9930 = vpop.permute.xlu0 %9929
    %9931 = vrot.lane.b32.xlu0 %v9926, 96
    %v9932 = vpop.permute.xlu0 %9931
    %v9935 = vadd.f32 %v9915, %v9930
    %v9936 = vadd.f32 %v9916, %v9932
    %9937 = vset.pattern.permute.xlu0 8
    %9938 = vperm.xlu0 %9937, %v8752
    %v9939 = vpop.permute.xlu0 %9938
    %9941 = vset.pattern.permute.xlu0 8
    %9942 = vperm.xlu0 %9941, %v8758
    %v9943 = vpop.permute.xlu0 %9942
    %v9945 = vmul.f32 %v9939, %v45
    %v9946 = vmul.f32 %v9943, %v46
    %9949 = vrot.lane.b32.xlu0 %v9945, 64
    %v9950 = vpop.permute.xlu0 %9949
    %9951 = vrot.lane.b32.xlu0 %v9946, 64
    %v9952 = vpop.permute.xlu0 %9951
    %v9955 = vadd.f32 %v9935, %v9950
    %v9956 = vadd.f32 %v9936, %v9952
    %9958 = vset.pattern.permute.xlu0 0
    %9959 = vperm.xlu0 %9958, %v9796
    %v9960 = vpop.permute.xlu0 %9959
    %9963 = vset.pattern.permute.xlu0 0
    %9964 = vperm.xlu0 %9963, %v9802
    %v9965 = vpop.permute.xlu0 %9964
    %v9967 = vmul.f32 %v9960, %v47
    %v9968 = vmul.f32 %v9965, %v48
    %9969 = vset.pattern.permute.xlu0 1
    %9970 = vperm.xlu0 %9969, %v9796
    %v9971 = vpop.permute.xlu0 %9970
    %9973 = vset.pattern.permute.xlu0 1
    %9974 = vperm.xlu0 %9973, %v9802
    %v9975 = vpop.permute.xlu0 %9974
    %v9977 = vmul.f32 %v9971, %v47
    %v9978 = vmul.f32 %v9975, %v48
    %9981 = vrot.lane.b32.xlu0 %v9977, 96
    %v9982 = vpop.permute.xlu0 %9981
    %9983 = vrot.lane.b32.xlu0 %v9978, 96
    %v9984 = vpop.permute.xlu0 %9983
    %v9987 = vadd.f32 %v9967, %v9982
    %v9988 = vadd.f32 %v9968, %v9984
    %9989 = vset.pattern.permute.xlu0 2
    %9990 = vperm.xlu0 %9989, %v9796
    %v9991 = vpop.permute.xlu0 %9990
    %9993 = vset.pattern.permute.xlu0 2
    %9994 = vperm.xlu0 %9993, %v9802
    %v9995 = vpop.permute.xlu0 %9994
    %v9997 = vmul.f32 %v9991, %v47
    %v9998 = vmul.f32 %v9995, %v48
    %10001 = vrot.lane.b32.xlu0 %v9997, 64
    %v10002 = vpop.permute.xlu0 %10001
    %10003 = vrot.lane.b32.xlu0 %v9998, 64
    %v10004 = vpop.permute.xlu0 %10003
    %v10007 = vadd.f32 %v9987, %v10002
    %v10008 = vadd.f32 %v9988, %v10004
    %10009 = vset.pattern.permute.xlu0 3
    %10010 = vperm.xlu0 %10009, %v9796
    %v10011 = vpop.permute.xlu0 %10010
    %10013 = vset.pattern.permute.xlu0 3
    %10014 = vperm.xlu0 %10013, %v9802
    %v10015 = vpop.permute.xlu0 %10014
    %v10017 = vmul.f32 %v10011, %v47
    %v10018 = vmul.f32 %v10015, %v48
    %10019 = vset.pattern.permute.xlu0 4
    %10020 = vperm.xlu0 %10019, %v9796
    %v10021 = vpop.permute.xlu0 %10020
    %10023 = vset.pattern.permute.xlu0 4
    %10024 = vperm.xlu0 %10023, %v9802
    %v10025 = vpop.permute.xlu0 %10024
    %v10027 = vmul.f32 %v10021, %v47
    %v10028 = vmul.f32 %v10025, %v48
    %10031 = vrot.lane.b32.xlu0 %v10027, 96
    %v10032 = vpop.permute.xlu0 %10031
    %10033 = vrot.lane.b32.xlu0 %v10028, 96
    %v10034 = vpop.permute.xlu0 %10033
    %v10037 = vadd.f32 %v10017, %v10032
    %v10038 = vadd.f32 %v10018, %v10034
    %10039 = vset.pattern.permute.xlu0 5
    %10040 = vperm.xlu0 %10039, %v9796
    %v10041 = vpop.permute.xlu0 %10040
    %10043 = vset.pattern.permute.xlu0 5
    %10044 = vperm.xlu0 %10043, %v9802
    %v10045 = vpop.permute.xlu0 %10044
    %v10047 = vmul.f32 %v10041, %v47
    %v10048 = vmul.f32 %v10045, %v48
    %10051 = vrot.lane.b32.xlu0 %v10047, 64
    %v10052 = vpop.permute.xlu0 %10051
    %10053 = vrot.lane.b32.xlu0 %v10048, 64
    %v10054 = vpop.permute.xlu0 %10053
    %v10057 = vadd.f32 %v10037, %v10052
    %v10058 = vadd.f32 %v10038, %v10054
    %10059 = vset.pattern.permute.xlu0 6
    %10060 = vperm.xlu0 %10059, %v9796
    %v10061 = vpop.permute.xlu0 %10060
    %10063 = vset.pattern.permute.xlu0 6
    %10064 = vperm.xlu0 %10063, %v9802
    %v10065 = vpop.permute.xlu0 %10064
    %v10067 = vmul.f32 %v10061, %v47
    %v10068 = vmul.f32 %v10065, %v48
    %10069 = vset.pattern.permute.xlu0 7
    %10070 = vperm.xlu0 %10069, %v9796
    %v10071 = vpop.permute.xlu0 %10070
    %10073 = vset.pattern.permute.xlu0 7
    %10074 = vperm.xlu0 %10073, %v9802
    %v10075 = vpop.permute.xlu0 %10074
    %v10077 = vmul.f32 %v10071, %v47
    %v10078 = vmul.f32 %v10075, %v48
    %10081 = vrot.lane.b32.xlu0 %v10077, 96
    %v10082 = vpop.permute.xlu0 %10081
    %10083 = vrot.lane.b32.xlu0 %v10078, 96
    %v10084 = vpop.permute.xlu0 %10083
    %v10087 = vadd.f32 %v10067, %v10082
    %v10088 = vadd.f32 %v10068, %v10084
    %10089 = vset.pattern.permute.xlu0 8
    %10090 = vperm.xlu0 %10089, %v9796
    %v10091 = vpop.permute.xlu0 %10090
    %10093 = vset.pattern.permute.xlu0 8
    %10094 = vperm.xlu0 %10093, %v9802
    %v10095 = vpop.permute.xlu0 %10094
    %v10097 = vmul.f32 %v10091, %v47
    %v10098 = vmul.f32 %v10095, %v48
    %10101 = vrot.lane.b32.xlu0 %v10097, 64
    %v10102 = vpop.permute.xlu0 %10101
    %10103 = vrot.lane.b32.xlu0 %v10098, 64
    %v10104 = vpop.permute.xlu0 %10103
    %v10107 = vadd.f32 %v10087, %v10102
    %v10108 = vadd.f32 %v10088, %v10104
    %10111 = vrot.lane.b32.xlu0 %v9905, 32
    %v10112 = vpop.permute.xlu0 %10111
    %10113 = vrot.lane.b32.xlu0 %v9906, 32
    %v10114 = vpop.permute.xlu0 %10113
    %10119 = vrot.lane.b32.xlu0 %v9955, 64
    %v10120 = vpop.permute.xlu0 %10119
    %10121 = vrot.lane.b32.xlu0 %v9956, 64
    %v10122 = vpop.permute.xlu0 %10121
    %10127 = vrot.lane.b32.xlu0 %v10007, 96
    %v10128 = vpop.permute.xlu0 %10127
    %10129 = vrot.lane.b32.xlu0 %v10008, 96
    %v10130 = vpop.permute.xlu0 %10129
    %10135 = vrot.lane.b32.xlu0 %v10107, 32
    %v10136 = vpop.permute.xlu0 %10135
    %10137 = vrot.lane.b32.xlu0 %v10108, 32
    %v10138 = vpop.permute.xlu0 %10137
    %vm10141 = vcmask 261120
    %v10142 = vsel %vm10141, %v9855, %v10112
    %v10143 = vsel %vm10141, %v9856, %v10114
    %vm10144 = vcmask 523264
    %v10145 = vsel %vm10144, %v10142, %v10120
    %v10146 = vsel %vm10144, %v10143, %v10122
    %v10147 = vsel %vm110, %v10145, %v10128
    %v10148 = vsel %vm110, %v10146, %v10130
    %v10149 = vsel %vm10141, %v10057, %v10136
    %v10150 = vsel %vm10141, %v10058, %v10138
    %10151 = vst [vmem:[#allocation2] sm:$0xff] %v10147
    %10152 = vst.msk [vmem:[#allocation2 + $0x8] sm:$0xff] %vm10144, %v10149
    %10153 = vst [vmem:[#allocation2 + $0x10] sm:$0xff] %v10148
    %10154 = vst.msk [vmem:[#allocation2 + $0x18] sm:$0xff] %vm10144, %v10150
    // Predicated region
    $region54: #{tpu_custom_call.1} parent=1 // pred_check
      _
    $region55: #{tpu_custom_call.1} parent=1 // pred_check_branch
      %10156 = sbr.rel (0) target = $region57
    $region56: #{tpu_custom_call.1} parent=1 // pred_region
      %s10158 = ssub.s32 512, 512
      %10159 = vsyncadd [#allocation3], %s10158
      %s10160 = sshll.u32 [#allocation2], 4
      %s10161 = int_to_ptr.vmem [resolvable:$true] %s10160
      %10166 = dma.vmem_to_hbm [thread:$0]  %s10161, 512, %s13, [#allocation3], 256, 256, 16
    $region57: #{tpu_custom_call.1} parent=1 // pred_fallthru
      _
    // Predicated region
    $region58: #{tpu_custom_call.1} parent=1 // pred_check
      _
    $region59: #{tpu_custom_call.1} parent=1 // pred_check_branch
      %10168 = sbr.rel (0) target = $region61
    $region60: #{tpu_custom_call.1} parent=1 // pred_region
      %10169 = dma.done [#allocation3], 512
    $region61: #{tpu_custom_call.1} parent=1 // pred_fallthru
      _
    %10170 = vsyncpa [#allocation3], 1

</llo_original>
